<compile_context>
chip_gen: v6e
topology: v6e:2x2x1
jax: 0.10.0
libtpu: 0.0.40
codegen_flags: <defaults>
</compile_context>

<pallas_src>
import functools

import jax
import jax.numpy as jnp
from jax.experimental import pallas as pl
from jax.experimental.pallas import tpu as pltpu

# ---------------- configuration (mirrors args.num_updates / args.update_lr) --
NUM_UPDATES = 5
UPDATE_LR = 0.01

N_SUPPORT = 16    # support rows per task
N_QUERY = 16      # query rows per task
D_IN = 32         # input feature dim
HIDDEN = 64       # encoder hidden dim
TASK_BLOCK = 64   # max tasks per grid step (B = min(TASK_BLOCK, T))
# NOTE: on v7x (2 TensorCores) pass task_block=ceil(T/2) so the "parallel"
# grid axis gives both cores a task block; on v5e/v6e B=T (G=1) is best.


def _anil_kernel(xs_ref, xq_ref, ys_ref,
                 w1_ref, w2_ref, small_ref,
                 qlog_ref,
                 *, num_updates, update_lr, n_support, n_query, tasks):
    f32 = jnp.float32
    ns, nq, B = n_support, n_query, tasks
    H = w1_ref.shape[1]

    # packed small params: rows = [b1; b2; wh; (bh, 0, ...)]
    small = small_ref[...]                                         # [4, H]
    b1 = small[0:1, :]
    b2 = small[1:2, :]
    wh = small[2:3, :]
    bh = small[3:4, 0:1]                                           # [1, 1]

    w1 = w1_ref[...]                                               # [D, H]
    w2 = w2_ref[...]                                               # [H, H]

    def encode(x):                                                 # [M, D] -> [M, H]
        h = jnp.dot(x, w1, preferred_element_type=f32) + b1
        h = jnp.maximum(h, 0.0)
        h = jnp.dot(h, w2, preferred_element_type=f32) + b2
        return jnp.maximum(h, 0.0)

    # ---- frozen encoder: support and query as two wide MXU passes
    fs = encode(xs_ref[...]).reshape(B, ns, H)                     # [B,Ns,H]
    fq = encode(xq_ref[...]).reshape(B, nq, H)                     # [B,Nq,H]

    ys = ys_ref[...]                                               # [B, Ns]

    # ---- ANIL inner loop: per-task head (w, b), analytic MSE gradients.
    # Row-vector head state; pure VPU multiplies + lane/sublane reductions
    # (no width-1 MXU matmuls, no transposes).
    w = jnp.broadcast_to(wh[None], (B, 1, H))                      # [B,1,H]
    b = jnp.broadcast_to(bh, (B, 1))                               # [B, 1]

    inv_n = 1.0 / float(ns)
    for _ in range(num_updates):                # static unroll (small count)
        pred = jnp.sum(fs * w, axis=2) + b                         # [B, Ns]
        g = (2.0 * inv_n) * (pred - ys)                            # dL/dpred
        grad_w = jnp.sum(fs * g[:, :, None], axis=1, keepdims=True)  # [B,1,H]
        grad_b = jnp.sum(g, axis=1, keepdims=True)                 # [B, 1]
        w = w - update_lr * grad_w
        b = b - update_lr * grad_b

    # ---- query predictions with adapted head; lane-dense store
    pred_q = jnp.sum(fq * w, axis=2) + b                           # [B, Nq]
    qlog_ref[...] = pred_q.reshape(1, 1, B * nq)


def anil_forward_tasks(xs, ys, xq, yq, params,
                       num_updates=NUM_UPDATES, update_lr=UPDATE_LR,
                       task_block=TASK_BLOCK):
    """Batched ANIL forward: xs [T,Ns,D], ys [T,Ns], xq [T,Nq,D], yq [T,Nq].

    Returns (query_loss [T], query_logits [T,Nq])."""
    w1, b1, w2, b2, wh, bh = params
    T, ns, d = xs.shape
    nq = xq.shape[1]
    h = w1.shape[1]

    B = min(task_block, T)
    G = pl.cdiv(T, B)
    T_pad = G * B

    xs_f = xs.astype(jnp.float32)
    xq_f = xq.astype(jnp.float32)
    ys_f = ys.astype(jnp.float32).reshape(T, ns)
    yq_f = yq.astype(jnp.float32).reshape(T, nq)
    if T_pad != T:
        pad = T_pad - T
        xs_f = jnp.pad(xs_f, ((0, pad), (0, 0), (0, 0)))
        xq_f = jnp.pad(xq_f, ((0, pad), (0, 0), (0, 0)))
        ys_f = jnp.pad(ys_f, ((0, pad), (0, 0)))
    # contiguous reshape -> free metadata change, no HBM copy
    xs_flat = xs_f.reshape(T_pad * ns, d)
    xq_flat = xq_f.reshape(T_pad * nq, d)

    # pack b1, b2, wh, bh into a single (4, H) block (one DMA, one BlockSpec)
    bh_row = jnp.pad(bh.reshape(1, 1).astype(jnp.float32), ((0, 0), (0, h - 1)))
    small = jnp.concatenate(
        [b1.reshape(1, h), b2.reshape(1, h), wh.reshape(1, h), bh_row],
        axis=0).astype(jnp.float32)                                # [4, H]

    kernel = functools.partial(
        _anil_kernel, num_updates=num_updates, update_lr=update_lr,
        n_support=ns, n_query=nq, tasks=B)

    # constant index_map -> weights DMA'd once, VMEM-resident across steps
    const = lambda shape: pl.BlockSpec(shape, lambda i, _s=shape: (0,) * len(_s))

    flops = int(2 * T_pad * (ns + nq) * (d * h + h * h)
                + num_updates * T_pad * ns * 4 * h
                + 2 * T_pad * nq * h)
    bytes_accessed = int(4 * (T_pad * ns * d + T_pad * nq * d + T_pad * ns
                              + d * h + h * h + 4 * h
                              + T_pad * nq))

    qlog = pl.pallas_call(
        kernel,
        out_shape=jax.ShapeDtypeStruct((G, 1, B * nq), jnp.float32),
        grid=(G,),
        in_specs=[
            pl.BlockSpec((B * ns, d), lambda i: (i, 0)),   # support features
            pl.BlockSpec((B * nq, d), lambda i: (i, 0)),   # query features
            pl.BlockSpec((B, ns), lambda i: (i, 0)),       # support labels
            const((d, h)),                                 # frozen encoder W1
            const((h, h)),                                 # frozen encoder W2
            const((4, h)),                                 # packed b1/b2/wh/bh
        ],
        out_specs=pl.BlockSpec((1, 1, B * nq), lambda i: (i, 0, 0)),
        compiler_params=pltpu.CompilerParams(
            dimension_semantics=("parallel",)),
        cost_estimate=pl.CostEstimate(
            flops=flops, transcendentals=0, bytes_accessed=bytes_accessed),
    )(xs_flat, xq_flat, ys_f, w1, w2, small)

    qlog = qlog.reshape(T_pad, nq)[:T]
    # query MSE per task, computed on the (tiny) logits in the wrapper --
    # keeps the kernel's only store fully lane-dense.
    loss = jnp.mean((qlog - yq_f) ** 2, axis=1)
    return loss, qlog


def anil_forward(xs, ys, xq, yq, params,
                 num_updates=NUM_UPDATES, update_lr=UPDATE_LR, train=True):
    """Single-task ANIL.forward, matching the PyTorch module's return values."""
    loss, qlog = anil_forward_tasks(
        xs[None], ys.reshape(1, -1), xq[None], yq.reshape(1, -1), params,
        num_updates=num_updates, update_lr=update_lr, task_block=1)
    query_loss = loss[0]
    if train:
        return query_loss
    # .squeeze() of the [Nq,1] logits in the original -> [Nq]
    return query_loss, qlog[0], yq.reshape(-1).astype(jnp.float32)


def _reference(xs, ys, xq, yq, params,
               num_updates=NUM_UPDATES, update_lr=UPDATE_LR):
    """Pure-JAX reference of the same math (single task), for checking."""
    w1, b1, w2, b2, wh, bh = params
    enc = lambda x: jnp.maximum(
        jnp.maximum(x @ w1 + b1, 0.0) @ w2 + b2, 0.0)
    fs, fq = enc(xs), enc(xq)
    ys2, yq2 = ys.reshape(-1, 1), yq.reshape(-1, 1)
    w = wh.T          # [H, 1]
    b = bh            # [1, 1]
    for _ in range(num_updates):
        g = (2.0 / xs.shape[0]) * (fs @ w + b - ys2)
        w = w - update_lr * (fs.T @ g)
        b = b - update_lr * jnp.sum(g, axis=0, keepdims=True)
    pred_q = fq @ w + b
    return jnp.mean((pred_q - yq2) ** 2), pred_q[:, 0]


if __name__ == "__main__":
    key = jax.random.PRNGKey(0)
    ks = jax.random.split(key, 10)

    # deterministic synthetic "learner" parameters (frozen encoder + head)
    w1 = jax.random.normal(ks[0], (D_IN, HIDDEN), jnp.float32) * 0.1
    b1 = jax.random.normal(ks[1], (1, HIDDEN), jnp.float32) * 0.01
    w2 = jax.random.normal(ks[2], (HIDDEN, HIDDEN), jnp.float32) * 0.1
    b2 = jax.random.normal(ks[3], (1, HIDDEN), jnp.float32) * 0.01
    wh = jax.random.normal(ks[4], (1, HIDDEN), jnp.float32) * 0.1
    bh = jnp.zeros((1, 1), jnp.float32)
    params = (w1, b1, w2, b2, wh, bh)

    # deterministic synthetic tasks (support / query), batched on a task axis
    T = 16
    xs = jax.random.normal(ks[5], (T, N_SUPPORT, D_IN), jnp.float32)
    ys = jax.random.normal(ks[6], (T, N_SUPPORT), jnp.float32)
    xq = jax.random.normal(ks[7], (T, N_QUERY, D_IN), jnp.float32)
    yq = jax.random.normal(ks[8], (T, N_QUERY), jnp.float32)

    # TODO(synk): the np.random-based `filter` subsampling (>2000 rows) is host
    # glue and is skipped for these small synthetic shapes.

    losses, qlogits = anil_forward_tasks(xs, ys, xq, yq, params)
    losses, qlogits = jax.block_until_ready((losses, qlogits))

    ref_loss, ref_qlog = jax.vmap(_reference, in_axes=(0, 0, 0, 0, None))(
        xs, ys, xq, yq, params)
    assert jnp.allclose(losses, ref_loss, rtol=1e-4, atol=1e-4), (losses, ref_loss)
    assert jnp.allclose(qlogits, ref_qlog, rtol=1e-4, atol=1e-4)

    # exercise the padded / multi-grid-step path (T not a multiple of B, G > 1)
    losses2, qlogits2 = anil_forward_tasks(xs[:11], ys[:11], xq[:11], yq[:11],
                                           params, task_block=4)
    losses2, qlogits2 = jax.block_until_ready((losses2, qlogits2))
    assert jnp.allclose(losses2, ref_loss[:11], rtol=1e-4, atol=1e-4)
    assert jnp.allclose(qlogits2, ref_qlog[:11], rtol=1e-4, atol=1e-4)

    # single-task path mirrors the PyTorch module's forward (train=True/False)
    single_loss = anil_forward(xs[0], ys[0], xq[0], yq[0], params, train=True)
    single_loss = jax.block_until_ready(single_loss)
    assert jnp.allclose(single_loss, ref_loss[0], rtol=1e-4, atol=1e-4)
    out = anil_forward(xs[0], ys[0], xq[0], yq[0], params, train=False)
    jax.block_until_ready(out)

    print("KERNEL_OK")
</pallas_src>

<mosaic_0001>
module attributes {stable_mosaic.version = 11 : i64} {
  func.func @_anil_kernel(%arg0: i32, %arg1: memref<256x32xf32, #tpu.memory_space<vmem>>, %arg2: memref<256x32xf32, #tpu.memory_space<vmem>>, %arg3: memref<16x16xf32, #tpu.memory_space<vmem>>, %arg4: memref<32x64xf32, #tpu.memory_space<vmem>>, %arg5: memref<64x64xf32, #tpu.memory_space<vmem>>, %arg6: memref<4x64xf32, #tpu.memory_space<vmem>>, %arg7: memref<1x1x256xf32, #tpu.memory_space<vmem>>) attributes {dimension_semantics = [#tpu.dimension_semantics<parallel>], iteration_bounds = array<i64: 1>, scalar_prefetch = 0 : i64, scratch_operands = 0 : i64, tpu.core_type = #tpu.core_type<tc>, window_params = [{transform_indices = @transform_0, window_bounds = array<i64: 256, 32>}, {transform_indices = @transform_1, window_bounds = array<i64: 256, 32>}, {transform_indices = @transform_2, window_bounds = array<i64: 16, 16>}, {pipeline_mode = #tpu.pipeline_mode<synchronous>, transform_indices = @transform_3, window_bounds = array<i64: 32, 64>}, {pipeline_mode = #tpu.pipeline_mode<synchronous>, transform_indices = @transform_4, window_bounds = array<i64: 64, 64>}, {pipeline_mode = #tpu.pipeline_mode<synchronous>, transform_indices = @transform_5, window_bounds = array<i64: 4, 64>}, {transform_indices = @transform_6, window_bounds = array<i64: 1, 1, 256>}]} {
    %c0 = arith.constant 0 : index
    %c0_0 = arith.constant 0 : index
    %0 = vector.load %arg6[%c0, %c0_0] : memref<4x64xf32, #tpu.memory_space<vmem>>, vector<4x64xf32>
    %1 = vector.extract_strided_slice %0 {offsets = [0, 0], sizes = [1, 64], strides = [1, 1]} : vector<4x64xf32> to vector<1x64xf32>
    %2 = vector.extract_strided_slice %0 {offsets = [1, 0], sizes = [1, 64], strides = [1, 1]} : vector<4x64xf32> to vector<1x64xf32>
    %3 = vector.extract_strided_slice %0 {offsets = [2, 0], sizes = [1, 64], strides = [1, 1]} : vector<4x64xf32> to vector<1x64xf32>
    %4 = vector.extract_strided_slice %0 {offsets = [3, 0], sizes = [1, 1], strides = [1, 1]} : vector<4x64xf32> to vector<1x1xf32>
    %c0_1 = arith.constant 0 : index
    %c0_2 = arith.constant 0 : index
    %5 = vector.load %arg4[%c0_1, %c0_2] : memref<32x64xf32, #tpu.memory_space<vmem>>, vector<32x64xf32>
    %c0_3 = arith.constant 0 : index
    %c0_4 = arith.constant 0 : index
    %6 = vector.load %arg5[%c0_3, %c0_4] : memref<64x64xf32, #tpu.memory_space<vmem>>, vector<64x64xf32>
    %c0_5 = arith.constant 0 : index
    %c0_6 = arith.constant 0 : index
    %7 = vector.load %arg1[%c0_5, %c0_6] : memref<256x32xf32, #tpu.memory_space<vmem>>, vector<256x32xf32>
    %cst = arith.constant dense<0.000000e+00> : vector<256x64xf32>
    %8 = tpu.matmul %7, %5, %cst {dimension_numbers = #tpu.dot_dimension_numbers<[1], [0], [0], [1], [0, 0, 1, 1], [], []>} : vector<256x32xf32>, vector<32x64xf32>, vector<256x64xf32> -> vector<256x64xf32>
    %9 = vector.broadcast %1 : vector<1x64xf32> to vector<256x64xf32>
    %10 = arith.addf %8, %9 : vector<256x64xf32>
    %cst_7 = arith.constant 0.000000e+00 : f32
    %11 = vector.broadcast %cst_7 : f32 to vector<256x64xf32>
    %12 = arith.maximumf %10, %11 : vector<256x64xf32>
    %cst_8 = arith.constant dense<0.000000e+00> : vector<256x64xf32>
    %13 = tpu.matmul %12, %6, %cst_8 {dimension_numbers = #tpu.dot_dimension_numbers<[1], [0], [0], [1], [0, 0, 1, 1], [], []>} : vector<256x64xf32>, vector<64x64xf32>, vector<256x64xf32> -> vector<256x64xf32>
    %14 = vector.broadcast %2 : vector<1x64xf32> to vector<256x64xf32>
    %15 = arith.addf %13, %14 : vector<256x64xf32>
    %cst_9 = arith.constant 0.000000e+00 : f32
    %16 = vector.broadcast %cst_9 : f32 to vector<256x64xf32>
    %17 = arith.maximumf %15, %16 : vector<256x64xf32>
    %18 = vector.shape_cast %17 : vector<256x64xf32> to vector<16x16x64xf32>
    %c0_10 = arith.constant 0 : index
    %c0_11 = arith.constant 0 : index
    %19 = vector.load %arg2[%c0_10, %c0_11] : memref<256x32xf32, #tpu.memory_space<vmem>>, vector<256x32xf32>
    %cst_12 = arith.constant dense<0.000000e+00> : vector<256x64xf32>
    %20 = tpu.matmul %19, %5, %cst_12 {dimension_numbers = #tpu.dot_dimension_numbers<[1], [0], [0], [1], [0, 0, 1, 1], [], []>} : vector<256x32xf32>, vector<32x64xf32>, vector<256x64xf32> -> vector<256x64xf32>
    %21 = vector.broadcast %1 : vector<1x64xf32> to vector<256x64xf32>
    %22 = arith.addf %20, %21 : vector<256x64xf32>
    %cst_13 = arith.constant 0.000000e+00 : f32
    %23 = vector.broadcast %cst_13 : f32 to vector<256x64xf32>
    %24 = arith.maximumf %22, %23 : vector<256x64xf32>
    %cst_14 = arith.constant dense<0.000000e+00> : vector<256x64xf32>
    %25 = tpu.matmul %24, %6, %cst_14 {dimension_numbers = #tpu.dot_dimension_numbers<[1], [0], [0], [1], [0, 0, 1, 1], [], []>} : vector<256x64xf32>, vector<64x64xf32>, vector<256x64xf32> -> vector<256x64xf32>
    %26 = vector.broadcast %2 : vector<1x64xf32> to vector<256x64xf32>
    %27 = arith.addf %25, %26 : vector<256x64xf32>
    %cst_15 = arith.constant 0.000000e+00 : f32
    %28 = vector.broadcast %cst_15 : f32 to vector<256x64xf32>
    %29 = arith.maximumf %27, %28 : vector<256x64xf32>
    %30 = vector.shape_cast %29 : vector<256x64xf32> to vector<16x16x64xf32>
    %c0_16 = arith.constant 0 : index
    %c0_17 = arith.constant 0 : index
    %31 = vector.load %arg3[%c0_16, %c0_17] : memref<16x16xf32, #tpu.memory_space<vmem>>, vector<16x16xf32>
    %32 = vector.shape_cast %3 : vector<1x64xf32> to vector<1x1x64xf32>
    %33 = vector.shape_cast %32 : vector<1x1x64xf32> to vector<1x1x64xf32>
    %34 = vector.broadcast %33 : vector<1x1x64xf32> to vector<16x1x64xf32>
    %35 = vector.shape_cast %4 : vector<1x1xf32> to vector<1x1xf32>
    %36 = vector.broadcast %35 : vector<1x1xf32> to vector<16x1xf32>
    %37 = vector.broadcast %34 : vector<16x1x64xf32> to vector<16x16x64xf32>
    %38 = arith.mulf %18, %37 : vector<16x16x64xf32>
    %cst_18 = arith.constant dense<0.000000e+00> : vector<16x16xf32>
    %39 = vector.multi_reduction <add>, %38, %cst_18 [2] : vector<16x16x64xf32> to vector<16x16xf32>
    %40 = vector.broadcast %36 : vector<16x1xf32> to vector<16x16xf32>
    %41 = arith.addf %39, %40 : vector<16x16xf32>
    %42 = arith.subf %41, %31 : vector<16x16xf32>
    %cst_19 = arith.constant 1.250000e-01 : f32
    %43 = vector.broadcast %cst_19 : f32 to vector<16x16xf32>
    %44 = arith.mulf %43, %42 : vector<16x16xf32>
    %45 = vector.shape_cast %44 : vector<16x16xf32> to vector<16x16x1xf32>
    %46 = vector.broadcast %45 : vector<16x16x1xf32> to vector<16x16x64xf32>
    %47 = arith.mulf %18, %46 : vector<16x16x64xf32>
    %cst_20 = arith.constant dense<0.000000e+00> : vector<16x64xf32>
    %48 = vector.multi_reduction <add>, %47, %cst_20 [1] : vector<16x16x64xf32> to vector<16x64xf32>
    %49 = vector.shape_cast %48 : vector<16x64xf32> to vector<16x1x64xf32>
    %cst_21 = arith.constant dense<0.000000e+00> : vector<16xf32>
    %50 = vector.multi_reduction <add>, %44, %cst_21 [1] : vector<16x16xf32> to vector<16xf32>
    %51 = vector.shape_cast %50 : vector<16xf32> to vector<16x1xf32>
    %cst_22 = arith.constant 0.00999999977 : f32
    %52 = vector.broadcast %cst_22 : f32 to vector<16x1x64xf32>
    %53 = arith.mulf %52, %49 : vector<16x1x64xf32>
    %54 = arith.subf %34, %53 : vector<16x1x64xf32>
    %cst_23 = arith.constant 0.00999999977 : f32
    %55 = vector.broadcast %cst_23 : f32 to vector<16x1xf32>
    %56 = arith.mulf %55, %51 : vector<16x1xf32>
    %57 = arith.subf %36, %56 : vector<16x1xf32>
    %58 = vector.broadcast %54 : vector<16x1x64xf32> to vector<16x16x64xf32>
    %59 = arith.mulf %18, %58 : vector<16x16x64xf32>
    %cst_24 = arith.constant dense<0.000000e+00> : vector<16x16xf32>
    %60 = vector.multi_reduction <add>, %59, %cst_24 [2] : vector<16x16x64xf32> to vector<16x16xf32>
    %61 = vector.broadcast %57 : vector<16x1xf32> to vector<16x16xf32>
    %62 = arith.addf %60, %61 : vector<16x16xf32>
    %63 = arith.subf %62, %31 : vector<16x16xf32>
    %cst_25 = arith.constant 1.250000e-01 : f32
    %64 = vector.broadcast %cst_25 : f32 to vector<16x16xf32>
    %65 = arith.mulf %64, %63 : vector<16x16xf32>
    %66 = vector.shape_cast %65 : vector<16x16xf32> to vector<16x16x1xf32>
    %67 = vector.broadcast %66 : vector<16x16x1xf32> to vector<16x16x64xf32>
    %68 = arith.mulf %18, %67 : vector<16x16x64xf32>
    %cst_26 = arith.constant dense<0.000000e+00> : vector<16x64xf32>
    %69 = vector.multi_reduction <add>, %68, %cst_26 [1] : vector<16x16x64xf32> to vector<16x64xf32>
    %70 = vector.shape_cast %69 : vector<16x64xf32> to vector<16x1x64xf32>
    %cst_27 = arith.constant dense<0.000000e+00> : vector<16xf32>
    %71 = vector.multi_reduction <add>, %65, %cst_27 [1] : vector<16x16xf32> to vector<16xf32>
    %72 = vector.shape_cast %71 : vector<16xf32> to vector<16x1xf32>
    %cst_28 = arith.constant 0.00999999977 : f32
    %73 = vector.broadcast %cst_28 : f32 to vector<16x1x64xf32>
    %74 = arith.mulf %73, %70 : vector<16x1x64xf32>
    %75 = arith.subf %54, %74 : vector<16x1x64xf32>
    %cst_29 = arith.constant 0.00999999977 : f32
    %76 = vector.broadcast %cst_29 : f32 to vector<16x1xf32>
    %77 = arith.mulf %76, %72 : vector<16x1xf32>
    %78 = arith.subf %57, %77 : vector<16x1xf32>
    %79 = vector.broadcast %75 : vector<16x1x64xf32> to vector<16x16x64xf32>
    %80 = arith.mulf %18, %79 : vector<16x16x64xf32>
    %cst_30 = arith.constant dense<0.000000e+00> : vector<16x16xf32>
    %81 = vector.multi_reduction <add>, %80, %cst_30 [2] : vector<16x16x64xf32> to vector<16x16xf32>
    %82 = vector.broadcast %78 : vector<16x1xf32> to vector<16x16xf32>
    %83 = arith.addf %81, %82 : vector<16x16xf32>
    %84 = arith.subf %83, %31 : vector<16x16xf32>
    %cst_31 = arith.constant 1.250000e-01 : f32
    %85 = vector.broadcast %cst_31 : f32 to vector<16x16xf32>
    %86 = arith.mulf %85, %84 : vector<16x16xf32>
    %87 = vector.shape_cast %86 : vector<16x16xf32> to vector<16x16x1xf32>
    %88 = vector.broadcast %87 : vector<16x16x1xf32> to vector<16x16x64xf32>
    %89 = arith.mulf %18, %88 : vector<16x16x64xf32>
    %cst_32 = arith.constant dense<0.000000e+00> : vector<16x64xf32>
    %90 = vector.multi_reduction <add>, %89, %cst_32 [1] : vector<16x16x64xf32> to vector<16x64xf32>
    %91 = vector.shape_cast %90 : vector<16x64xf32> to vector<16x1x64xf32>
    %cst_33 = arith.constant dense<0.000000e+00> : vector<16xf32>
    %92 = vector.multi_reduction <add>, %86, %cst_33 [1] : vector<16x16xf32> to vector<16xf32>
    %93 = vector.shape_cast %92 : vector<16xf32> to vector<16x1xf32>
    %cst_34 = arith.constant 0.00999999977 : f32
    %94 = vector.broadcast %cst_34 : f32 to vector<16x1x64xf32>
    %95 = arith.mulf %94, %91 : vector<16x1x64xf32>
    %96 = arith.subf %75, %95 : vector<16x1x64xf32>
    %cst_35 = arith.constant 0.00999999977 : f32
    %97 = vector.broadcast %cst_35 : f32 to vector<16x1xf32>
    %98 = arith.mulf %97, %93 : vector<16x1xf32>
    %99 = arith.subf %78, %98 : vector<16x1xf32>
    %100 = vector.broadcast %96 : vector<16x1x64xf32> to vector<16x16x64xf32>
    %101 = arith.mulf %18, %100 : vector<16x16x64xf32>
    %cst_36 = arith.constant dense<0.000000e+00> : vector<16x16xf32>
    %102 = vector.multi_reduction <add>, %101, %cst_36 [2] : vector<16x16x64xf32> to vector<16x16xf32>
    %103 = vector.broadcast %99 : vector<16x1xf32> to vector<16x16xf32>
    %104 = arith.addf %102, %103 : vector<16x16xf32>
    %105 = arith.subf %104, %31 : vector<16x16xf32>
    %cst_37 = arith.constant 1.250000e-01 : f32
    %106 = vector.broadcast %cst_37 : f32 to vector<16x16xf32>
    %107 = arith.mulf %106, %105 : vector<16x16xf32>
    %108 = vector.shape_cast %107 : vector<16x16xf32> to vector<16x16x1xf32>
    %109 = vector.broadcast %108 : vector<16x16x1xf32> to vector<16x16x64xf32>
    %110 = arith.mulf %18, %109 : vector<16x16x64xf32>
    %cst_38 = arith.constant dense<0.000000e+00> : vector<16x64xf32>
    %111 = vector.multi_reduction <add>, %110, %cst_38 [1] : vector<16x16x64xf32> to vector<16x64xf32>
    %112 = vector.shape_cast %111 : vector<16x64xf32> to vector<16x1x64xf32>
    %cst_39 = arith.constant dense<0.000000e+00> : vector<16xf32>
    %113 = vector.multi_reduction <add>, %107, %cst_39 [1] : vector<16x16xf32> to vector<16xf32>
    %114 = vector.shape_cast %113 : vector<16xf32> to vector<16x1xf32>
    %cst_40 = arith.constant 0.00999999977 : f32
    %115 = vector.broadcast %cst_40 : f32 to vector<16x1x64xf32>
    %116 = arith.mulf %115, %112 : vector<16x1x64xf32>
    %117 = arith.subf %96, %116 : vector<16x1x64xf32>
    %cst_41 = arith.constant 0.00999999977 : f32
    %118 = vector.broadcast %cst_41 : f32 to vector<16x1xf32>
    %119 = arith.mulf %118, %114 : vector<16x1xf32>
    %120 = arith.subf %99, %119 : vector<16x1xf32>
    %121 = vector.broadcast %117 : vector<16x1x64xf32> to vector<16x16x64xf32>
    %122 = arith.mulf %18, %121 : vector<16x16x64xf32>
    %cst_42 = arith.constant dense<0.000000e+00> : vector<16x16xf32>
    %123 = vector.multi_reduction <add>, %122, %cst_42 [2] : vector<16x16x64xf32> to vector<16x16xf32>
    %124 = vector.broadcast %120 : vector<16x1xf32> to vector<16x16xf32>
    %125 = arith.addf %123, %124 : vector<16x16xf32>
    %126 = arith.subf %125, %31 : vector<16x16xf32>
    %cst_43 = arith.constant 1.250000e-01 : f32
    %127 = vector.broadcast %cst_43 : f32 to vector<16x16xf32>
    %128 = arith.mulf %127, %126 : vector<16x16xf32>
    %129 = vector.shape_cast %128 : vector<16x16xf32> to vector<16x16x1xf32>
    %130 = vector.broadcast %129 : vector<16x16x1xf32> to vector<16x16x64xf32>
    %131 = arith.mulf %18, %130 : vector<16x16x64xf32>
    %cst_44 = arith.constant dense<0.000000e+00> : vector<16x64xf32>
    %132 = vector.multi_reduction <add>, %131, %cst_44 [1] : vector<16x16x64xf32> to vector<16x64xf32>
    %133 = vector.shape_cast %132 : vector<16x64xf32> to vector<16x1x64xf32>
    %cst_45 = arith.constant dense<0.000000e+00> : vector<16xf32>
    %134 = vector.multi_reduction <add>, %128, %cst_45 [1] : vector<16x16xf32> to vector<16xf32>
    %135 = vector.shape_cast %134 : vector<16xf32> to vector<16x1xf32>
    %cst_46 = arith.constant 0.00999999977 : f32
    %136 = vector.broadcast %cst_46 : f32 to vector<16x1x64xf32>
    %137 = arith.mulf %136, %133 : vector<16x1x64xf32>
    %138 = arith.subf %117, %137 : vector<16x1x64xf32>
    %cst_47 = arith.constant 0.00999999977 : f32
    %139 = vector.broadcast %cst_47 : f32 to vector<16x1xf32>
    %140 = arith.mulf %139, %135 : vector<16x1xf32>
    %141 = arith.subf %120, %140 : vector<16x1xf32>
    %142 = vector.broadcast %138 : vector<16x1x64xf32> to vector<16x16x64xf32>
    %143 = arith.mulf %30, %142 : vector<16x16x64xf32>
    %cst_48 = arith.constant dense<0.000000e+00> : vector<16x16xf32>
    %144 = vector.multi_reduction <add>, %143, %cst_48 [2] : vector<16x16x64xf32> to vector<16x16xf32>
    %145 = vector.broadcast %141 : vector<16x1xf32> to vector<16x16xf32>
    %146 = arith.addf %144, %145 : vector<16x16xf32>
    %147 = vector.shape_cast %146 : vector<16x16xf32> to vector<1x1x256xf32>
    %c0_49 = arith.constant 0 : index
    %c0_50 = arith.constant 0 : index
    %c0_51 = arith.constant 0 : index
    %148 = vector.load %arg7[%c0_49, %c0_50, %c0_51] : memref<1x1x256xf32, #tpu.memory_space<vmem>>, vector<1x1x256xf32>
    tpu.vector_store %arg7[%c0_49, %c0_50, %c0_51], %147 {strides = array<i32>} : memref<1x1x256xf32, #tpu.memory_space<vmem>>, vector<1x1x256xf32>,
    return
  }
  func.func @transform_0(%arg0: i32) -> (i32, i32) {
    %c0_i32 = arith.constant 0 : i32
    %c0_i32_0 = arith.constant 0 : i32
    return %arg0, %c0_i32 : i32, i32
  }
  func.func @transform_1(%arg0: i32) -> (i32, i32) {
    %c0_i32 = arith.constant 0 : i32
    %c0_i32_0 = arith.constant 0 : i32
    return %arg0, %c0_i32 : i32, i32
  }
  func.func @transform_2(%arg0: i32) -> (i32, i32) {
    %c0_i32 = arith.constant 0 : i32
    %c0_i32_0 = arith.constant 0 : i32
    return %arg0, %c0_i32 : i32, i32
  }
  func.func @transform_3(%arg0: i32) -> (i32, i32) {
    %c0_i32 = arith.constant 0 : i32
    %c0_i32_0 = arith.constant 0 : i32
    %c0_i32_1 = arith.constant 0 : i32
    return %c0_i32, %c0_i32_0 : i32, i32
  }
  func.func @transform_4(%arg0: i32) -> (i32, i32) {
    %c0_i32 = arith.constant 0 : i32
    %c0_i32_0 = arith.constant 0 : i32
    %c0_i32_1 = arith.constant 0 : i32
    return %c0_i32, %c0_i32_0 : i32, i32
  }
  func.func @transform_5(%arg0: i32) -> (i32, i32) {
    %c0_i32 = arith.constant 0 : i32
    %c0_i32_0 = arith.constant 0 : i32
    %c0_i32_1 = arith.constant 0 : i32
    return %c0_i32, %c0_i32_0 : i32, i32
  }
  func.func @transform_6(%arg0: i32) -> (i32, i32, i32) {
    %c0_i32 = arith.constant 0 : i32
    %c0_i32_0 = arith.constant 0 : i32
    %c0_i32_1 = arith.constant 0 : i32
    return %arg0, %c0_i32, %c0_i32_0 : i32, i32, i32
  }
}

</mosaic_0001>

<llo_original>
// kernel: tpu_custom_call.1
$region0: #{tpu_custom_call.1}
  #allocation0 [shape = 'u32[]', space=smem, size = 0x4, offset = 0x4, fixed_abs, tag = 'smem constant byte address 0x4 - core index']
  #allocation1 [shape = 'u32[144,128]{1,0:T(1,128)}', space=vmem, size = 0x12000, scoped, tag = 'internal scratch']
  %s0 = inlined_call_operand.vmem [shape: f32[256,32], index: 0, kind: input, shape index: {}]
  %s1 = inlined_call_operand.vmem [shape: f32[256,32], index: 1, kind: input, shape index: {}]
  %s2 = inlined_call_operand.vmem [shape: f32[16,16], index: 2, kind: input, shape index: {}]
  %s3 = inlined_call_operand.vmem [shape: f32[32,64], index: 3, kind: input, shape index: {}]
  %s4 = inlined_call_operand.vmem [shape: f32[64,64], index: 4, kind: input, shape index: {}]
  %s5 = inlined_call_operand.vmem [shape: f32[4,64], index: 5, kind: input, shape index: {}]
  %s6 = inlined_call_operand.hbm [shape: f32[1,1,256], index: 6, kind: output, shape index: {}]
  %s7 = sld [smem:[#allocation0]]
  $region34: #{tpu_custom_call.1} parent=0
    _
  %s9 = ssub.s32 1, %s7
  %s10 = scalar_select 0, %s9, %s7
  $region1: #{tpu_custom_call.1} parent=0
    #allocation2 [shape = 'u8[1024]{0}', space=vmem, size = 0x400, scoped, tag = 'output window, operand 0, single buffered']
    #allocation3 [shape = 's32[1]{0}', space=sflag, size = 0x4, scoped, tag = 'scoped memory for tpu_custom_call.1']
    %11 = vsyncpa [#allocation3], 0
    // Predicated region
    $region2: #{tpu_custom_call.1} parent=1 // pred_check
      _
    $region3: #{tpu_custom_call.1} parent=1 // pred_check_branch
      %13 = sbr.rel (0) target = $region5
    $region4: #{tpu_custom_call.1} parent=1 // pred_region
      _
    $region5: #{tpu_custom_call.1} parent=1 // pred_fallthru
      _
    // Predicated region
    $region6: #{tpu_custom_call.1} parent=1 // pred_check
      _
    $region7: #{tpu_custom_call.1} parent=1 // pred_check_branch
      %15 = sbr.rel (0) target = $region9
    $region8: #{tpu_custom_call.1} parent=1 // pred_region
      _
    $region9: #{tpu_custom_call.1} parent=1 // pred_fallthru
      _
    // Predicated region
    $region10: #{tpu_custom_call.1} parent=1 // pred_check
      _
    $region11: #{tpu_custom_call.1} parent=1 // pred_check_branch
      %17 = sbr.rel (0) target = $region13
    $region12: #{tpu_custom_call.1} parent=1 // pred_region
      _
    $region13: #{tpu_custom_call.1} parent=1 // pred_fallthru
      _
    // Predicated region
    $region14: #{tpu_custom_call.1} parent=1 // pred_check
      _
    $region15: #{tpu_custom_call.1} parent=1 // pred_check_branch
      %19 = sbr.rel (0) target = $region17
    $region16: #{tpu_custom_call.1} parent=1 // pred_region
      _
    $region17: #{tpu_custom_call.1} parent=1 // pred_fallthru
      _
    // Predicated region
    $region18: #{tpu_custom_call.1} parent=1 // pred_check
      _
    $region19: #{tpu_custom_call.1} parent=1 // pred_check_branch
      %21 = sbr.rel (0) target = $region21
    $region20: #{tpu_custom_call.1} parent=1 // pred_region
      _
    $region21: #{tpu_custom_call.1} parent=1 // pred_fallthru
      _
    // Predicated region
    $region22: #{tpu_custom_call.1} parent=1 // pred_check
      _
    $region23: #{tpu_custom_call.1} parent=1 // pred_check_branch
      %23 = sbr.rel (0) target = $region25
    $region24: #{tpu_custom_call.1} parent=1 // pred_region
      _
    $region25: #{tpu_custom_call.1} parent=1 // pred_fallthru
      _
    %v24 = vld [vmem:[%s5] sm:$0xf]
    %v25 = vld [vmem:[%s3] sm:$0xff]
    %v26 = vld [vmem:[%s3 + $0x8] sm:$0xff]
    %v27 = vld [vmem:[%s3 + $0x10] sm:$0xff]
    %v28 = vld [vmem:[%s3 + $0x18] sm:$0xff]
    %v29 = vld [vmem:[%s4] sm:$0xff]
    %v30 = vld [vmem:[%s4 + $0x8] sm:$0xff]
    %v31 = vld [vmem:[%s4 + $0x10] sm:$0xff]
    %v32 = vld [vmem:[%s4 + $0x18] sm:$0xff]
    %v33 = vld [vmem:[%s4 + $0x20] sm:$0xff]
    %v34 = vld [vmem:[%s4 + $0x28] sm:$0xff]
    %v35 = vld [vmem:[%s4 + $0x30] sm:$0xff]
    %v36 = vld [vmem:[%s4 + $0x38] sm:$0xff]
    %v37 = vld [vmem:[%s0] sm:$0xff]
    %v38 = vld [vmem:[%s0 + $0x8] sm:$0xff]
    %v39 = vld [vmem:[%s0 + $0x10] sm:$0xff]
    %v40 = vld [vmem:[%s0 + $0x18] sm:$0xff]
    %v41 = vld [vmem:[%s0 + $0x20] sm:$0xff]
    %v42 = vld [vmem:[%s0 + $0x28] sm:$0xff]
    %v43 = vld [vmem:[%s0 + $0x30] sm:$0xff]
    %v44 = vld [vmem:[%s0 + $0x38] sm:$0xff]
    %v45 = vld [vmem:[%s0 + $0x40] sm:$0xff]
    %v46 = vld [vmem:[%s0 + $0x48] sm:$0xff]
    %v47 = vld [vmem:[%s0 + $0x50] sm:$0xff]
    %v48 = vld [vmem:[%s0 + $0x58] sm:$0xff]
    %v49 = vld [vmem:[%s0 + $0x60] sm:$0xff]
    %v50 = vld [vmem:[%s0 + $0x68] sm:$0xff]
    %v51 = vld [vmem:[%s0 + $0x70] sm:$0xff]
    %v52 = vld [vmem:[%s0 + $0x78] sm:$0xff]
    %v53 = vld [vmem:[%s0 + $0x80] sm:$0xff]
    %v54 = vld [vmem:[%s0 + $0x88] sm:$0xff]
    %v55 = vld [vmem:[%s0 + $0x90] sm:$0xff]
    %v56 = vld [vmem:[%s0 + $0x98] sm:$0xff]
    %v57 = vld [vmem:[%s0 + $0xa0] sm:$0xff]
    %v58 = vld [vmem:[%s0 + $0xa8] sm:$0xff]
    %v59 = vld [vmem:[%s0 + $0xb0] sm:$0xff]
    %v60 = vld [vmem:[%s0 + $0xb8] sm:$0xff]
    %v61 = vld [vmem:[%s0 + $0xc0] sm:$0xff]
    %v62 = vld [vmem:[%s0 + $0xc8] sm:$0xff]
    %v63 = vld [vmem:[%s0 + $0xd0] sm:$0xff]
    %v64 = vld [vmem:[%s0 + $0xd8] sm:$0xff]
    %v65 = vld [vmem:[%s0 + $0xe0] sm:$0xff]
    %v66 = vld [vmem:[%s0 + $0xe8] sm:$0xff]
    %v67 = vld [vmem:[%s0 + $0xf0] sm:$0xff]
    %v68 = vld [vmem:[%s0 + $0xf8] sm:$0xff]
    %v69 = vlaneseq
    %v70 = vshrl.u32 %v69, 7
    %v71 = vsub.s32 0, %v70
    %v72 = vrot.slane %v24, %v71
    %vm73 = vcmask 261120
    %v75 = vsel %vm73, %v37, 0
    %v78 = vsel %vm73, %v38, 0
    %v81 = vsel %vm73, %v39, 0
    %v84 = vsel %vm73, %v40, 0
    %v87 = vsel %vm73, %v41, 0
    %v90 = vsel %vm73, %v42, 0
    %v93 = vsel %vm73, %v43, 0
    %v96 = vsel %vm73, %v44, 0
    %v99 = vsel %vm73, %v45, 0
    %v102 = vsel %vm73, %v46, 0
    %v105 = vsel %vm73, %v47, 0
    %v108 = vsel %vm73, %v48, 0
    %v111 = vsel %vm73, %v49, 0
    %v114 = vsel %vm73, %v50, 0
    %v117 = vsel %vm73, %v51, 0
    %v120 = vsel %vm73, %v52, 0
    %v123 = vsel %vm73, %v53, 0
    %v126 = vsel %vm73, %v54, 0
    %v129 = vsel %vm73, %v55, 0
    %v132 = vsel %vm73, %v56, 0
    %v135 = vsel %vm73, %v57, 0
    %v138 = vsel %vm73, %v58, 0
    %v141 = vsel %vm73, %v59, 0
    %v144 = vsel %vm73, %v60, 0
    %v147 = vsel %vm73, %v61, 0
    %v150 = vsel %vm73, %v62, 0
    %v153 = vsel %vm73, %v63, 0
    %v156 = vsel %vm73, %v64, 0
    %v159 = vsel %vm73, %v65, 0
    %v162 = vsel %vm73, %v66, 0
    %v165 = vsel %vm73, %v67, 0
    %v168 = vsel %vm73, %v68, 0
    %170 = vmatprep.subr.mxu0 0.0
    %171 = vmatpush1.msra.mxu0 0.0
    %172 = vmatprep.subr.mxu0 0.0
    %173 = vmatpush1.msra.mxu0 0.0
    %174 = vmatprep.subr.mxu0 0.0
    %175 = vmatpush1.msra.mxu0 0.0
    %176 = vmatprep.subr.mxu0 0.0
    %177 = vmatpush1.msra.mxu0 0.0
    %178 = vmatprep.subr.mxu0 0.0
    %179 = vmatpush1.msra.mxu0 0.0
    %180 = vmatprep.subr.mxu0 0.0
    %181 = vmatpush1.msra.mxu0 0.0
    %182 = vmatprep.subr.mxu0 0.0
    %183 = vmatpush1.msra.mxu0 0.0
    %184 = vmatprep.subr.mxu0 0.0
    %185 = vmatpush1.msra.mxu0 0.0
    %186 = vmatprep.subr.mxu0 0.0
    %187 = vmatpush1.msra.mxu0 0.0
    %188 = vmatprep.subr.mxu0 0.0
    %189 = vmatpush1.msra.mxu0 0.0
    %190 = vmatprep.subr.mxu0 0.0
    %191 = vmatpush1.msra.mxu0 0.0
    %192 = vmatprep.subr.mxu0 0.0
    %193 = vmatpush1.msra.mxu0 0.0
    %194 = vmatprep.subr.mxu0 0.0
    %195 = vmatpush1.msra.mxu0 %v28
    %196 = vmatprep.subr.mxu0 0.0
    %197 = vmatpush1.msra.mxu0 %v27
    %198 = vmatprep.subr.mxu0 0.0
    %199 = vmatpush1.msra.mxu0 %v26
    %200 = vmatprep.subr.mxu0 0.0
    %201 = vmatpush1.msra.mxu0 %v25
    %202 = vmatprep.subr.mxu0 0.0
    %203 = vmatpush2.msra.mxu0 0.0
    %204 = vmatprep.subr.mxu0 0.0
    %205 = vmatpush2.msra.mxu0 0.0
    %206 = vmatprep.subr.mxu0 0.0
    %207 = vmatpush2.msra.mxu0 0.0
    %208 = vmatprep.subr.mxu0 0.0
    %209 = vmatpush2.msra.mxu0 0.0
    %210 = vmatprep.subr.mxu0 0.0
    %211 = vmatpush2.msra.mxu0 0.0
    %212 = vmatprep.subr.mxu0 0.0
    %213 = vmatpush2.msra.mxu0 0.0
    %214 = vmatprep.subr.mxu0 0.0
    %215 = vmatpush2.msra.mxu0 0.0
    %216 = vmatprep.subr.mxu0 0.0
    %217 = vmatpush2.msra.mxu0 0.0
    %218 = vmatprep.subr.mxu0 0.0
    %219 = vmatpush2.msra.mxu0 0.0
    %220 = vmatprep.subr.mxu0 0.0
    %221 = vmatpush2.msra.mxu0 0.0
    %222 = vmatprep.subr.mxu0 0.0
    %223 = vmatpush2.msra.mxu0 0.0
    %224 = vmatprep.subr.mxu0 0.0
    %225 = vmatpush2.msra.mxu0 0.0
    %226 = vmatprep.subr.mxu0 0.0
    %227 = vmatpush2.msra.mxu0 0.0
    %228 = vmatprep.subr.mxu0 0.0
    %229 = vmatpush2.msra.mxu0 0.0
    %230 = vmatprep.subr.mxu0 0.0
    %231 = vmatpush2.msra.mxu0 0.0
    %232 = vmatprep.subr.mxu0 0.0
    %233 = vmatpush2.msra.mxu0 0.0
    %234 = vmatprep.mubr.f32.mxu0 0.0
    %235 = vmatmul.mubr.f32.gmra.mxu0 %v75
    %v236 = vpop.f32.mrf.mxu0
    %v237 = vadd.f32 %v72, %v236
    %v238 = vpop.f32.mrf.mxu0
    %239 = vmatprep.mubr.f32.mxu0 0.0
    %240 = vmatmul.mubr.f32.gmra.mxu0 %v78
    %v241 = vpop.f32.mrf.mxu0
    %v242 = vadd.f32 %v72, %v241
    %v243 = vpop.f32.mrf.mxu0
    %244 = vmatprep.mubr.f32.mxu0 0.0
    %245 = vmatmul.mubr.f32.gmra.mxu0 %v81
    %v246 = vpop.f32.mrf.mxu0
    %v247 = vadd.f32 %v72, %v246
    %v248 = vpop.f32.mrf.mxu0
    %249 = vmatprep.mubr.f32.mxu0 0.0
    %250 = vmatmul.mubr.f32.gmra.mxu0 %v84
    %v251 = vpop.f32.mrf.mxu0
    %v252 = vadd.f32 %v72, %v251
    %v253 = vpop.f32.mrf.mxu0
    %254 = vmatprep.mubr.f32.mxu0 0.0
    %255 = vmatmul.mubr.f32.gmra.mxu0 %v87
    %v256 = vpop.f32.mrf.mxu0
    %v257 = vadd.f32 %v72, %v256
    %v258 = vpop.f32.mrf.mxu0
    %259 = vmatprep.mubr.f32.mxu0 0.0
    %260 = vmatmul.mubr.f32.gmra.mxu0 %v90
    %v261 = vpop.f32.mrf.mxu0
    %v262 = vadd.f32 %v72, %v261
    %v263 = vpop.f32.mrf.mxu0
    %264 = vmatprep.mubr.f32.mxu0 0.0
    %265 = vmatmul.mubr.f32.gmra.mxu0 %v93
    %v266 = vpop.f32.mrf.mxu0
    %v267 = vadd.f32 %v72, %v266
    %v268 = vpop.f32.mrf.mxu0
    %269 = vmatprep.mubr.f32.mxu0 0.0
    %270 = vmatmul.mubr.f32.gmra.mxu0 %v96
    %v271 = vpop.f32.mrf.mxu0
    %v272 = vadd.f32 %v72, %v271
    %v273 = vpop.f32.mrf.mxu0
    %274 = vmatprep.mubr.f32.mxu0 0.0
    %275 = vmatmul.mubr.f32.gmra.mxu0 %v99
    %v276 = vpop.f32.mrf.mxu0
    %v277 = vadd.f32 %v72, %v276
    %v278 = vpop.f32.mrf.mxu0
    %279 = vmatprep.mubr.f32.mxu0 0.0
    %280 = vmatmul.mubr.f32.gmra.mxu0 %v102
    %v281 = vpop.f32.mrf.mxu0
    %v282 = vadd.f32 %v72, %v281
    %v283 = vpop.f32.mrf.mxu0
    %284 = vmatprep.mubr.f32.mxu0 0.0
    %285 = vmatmul.mubr.f32.gmra.mxu0 %v105
    %v286 = vpop.f32.mrf.mxu0
    %v287 = vadd.f32 %v72, %v286
    %v288 = vpop.f32.mrf.mxu0
    %289 = vmatprep.mubr.f32.mxu0 0.0
    %290 = vmatmul.mubr.f32.gmra.mxu0 %v108
    %v291 = vpop.f32.mrf.mxu0
    %v292 = vadd.f32 %v72, %v291
    %v293 = vpop.f32.mrf.mxu0
    %294 = vmatprep.mubr.f32.mxu0 0.0
    %295 = vmatmul.mubr.f32.gmra.mxu0 %v111
    %v296 = vpop.f32.mrf.mxu0
    %v297 = vadd.f32 %v72, %v296
    %v298 = vpop.f32.mrf.mxu0
    %299 = vmatprep.mubr.f32.mxu0 0.0
    %300 = vmatmul.mubr.f32.gmra.mxu0 %v114
    %v301 = vpop.f32.mrf.mxu0
    %v302 = vadd.f32 %v72, %v301
    %v303 = vpop.f32.mrf.mxu0
    %304 = vmatprep.mubr.f32.mxu0 0.0
    %305 = vmatmul.mubr.f32.gmra.mxu0 %v117
    %v306 = vpop.f32.mrf.mxu0
    %v307 = vadd.f32 %v72, %v306
    %v308 = vpop.f32.mrf.mxu0
    %309 = vmatprep.mubr.f32.mxu0 0.0
    %310 = vmatmul.mubr.f32.gmra.mxu0 %v120
    %v311 = vpop.f32.mrf.mxu0
    %v312 = vadd.f32 %v72, %v311
    %v313 = vpop.f32.mrf.mxu0
    %314 = vmatprep.mubr.f32.mxu0 0.0
    %315 = vmatmul.mubr.f32.gmra.mxu0 %v123
    %v316 = vpop.f32.mrf.mxu0
    %v317 = vadd.f32 %v72, %v316
    %v318 = vpop.f32.mrf.mxu0
    %319 = vmatprep.mubr.f32.mxu0 0.0
    %320 = vmatmul.mubr.f32.gmra.mxu0 %v126
    %v321 = vpop.f32.mrf.mxu0
    %v322 = vadd.f32 %v72, %v321
    %v323 = vpop.f32.mrf.mxu0
    %324 = vmatprep.mubr.f32.mxu0 0.0
    %325 = vmatmul.mubr.f32.gmra.mxu0 %v129
    %v326 = vpop.f32.mrf.mxu0
    %v327 = vadd.f32 %v72, %v326
    %v328 = vpop.f32.mrf.mxu0
    %329 = vmatprep.mubr.f32.mxu0 0.0
    %330 = vmatmul.mubr.f32.gmra.mxu0 %v132
    %v331 = vpop.f32.mrf.mxu0
    %v332 = vadd.f32 %v72, %v331
    %v333 = vpop.f32.mrf.mxu0
    %334 = vmatprep.mubr.f32.mxu0 0.0
    %335 = vmatmul.mubr.f32.gmra.mxu0 %v135
    %v336 = vpop.f32.mrf.mxu0
    %v337 = vadd.f32 %v72, %v336
    %v338 = vpop.f32.mrf.mxu0
    %339 = vmatprep.mubr.f32.mxu0 0.0
    %340 = vmatmul.mubr.f32.gmra.mxu0 %v138
    %v341 = vpop.f32.mrf.mxu0
    %v342 = vadd.f32 %v72, %v341
    %v343 = vpop.f32.mrf.mxu0
    %344 = vmatprep.mubr.f32.mxu0 0.0
    %345 = vmatmul.mubr.f32.gmra.mxu0 %v141
    %v346 = vpop.f32.mrf.mxu0
    %v347 = vadd.f32 %v72, %v346
    %v348 = vpop.f32.mrf.mxu0
    %349 = vmatprep.mubr.f32.mxu0 0.0
    %350 = vmatmul.mubr.f32.gmra.mxu0 %v144
    %v351 = vpop.f32.mrf.mxu0
    %v352 = vadd.f32 %v72, %v351
    %v353 = vpop.f32.mrf.mxu0
    %354 = vmatprep.mubr.f32.mxu0 0.0
    %355 = vmatmul.mubr.f32.gmra.mxu0 %v147
    %v356 = vpop.f32.mrf.mxu0
    %v357 = vadd.f32 %v72, %v356
    %v358 = vpop.f32.mrf.mxu0
    %359 = vmatprep.mubr.f32.mxu0 0.0
    %360 = vmatmul.mubr.f32.gmra.mxu0 %v150
    %v361 = vpop.f32.mrf.mxu0
    %v362 = vadd.f32 %v72, %v361
    %v363 = vpop.f32.mrf.mxu0
    %364 = vmatprep.mubr.f32.mxu0 0.0
    %365 = vmatmul.mubr.f32.gmra.mxu0 %v153
    %v366 = vpop.f32.mrf.mxu0
    %v367 = vadd.f32 %v72, %v366
    %v368 = vpop.f32.mrf.mxu0
    %369 = vmatprep.mubr.f32.mxu0 0.0
    %370 = vmatmul.mubr.f32.gmra.mxu0 %v156
    %v371 = vpop.f32.mrf.mxu0
    %v372 = vadd.f32 %v72, %v371
    %v373 = vpop.f32.mrf.mxu0
    %374 = vmatprep.mubr.f32.mxu0 0.0
    %375 = vmatmul.mubr.f32.gmra.mxu0 %v159
    %v376 = vpop.f32.mrf.mxu0
    %v377 = vadd.f32 %v72, %v376
    %v378 = vpop.f32.mrf.mxu0
    %379 = vmatprep.mubr.f32.mxu0 0.0
    %380 = vmatmul.mubr.f32.gmra.mxu0 %v162
    %v381 = vpop.f32.mrf.mxu0
    %v382 = vadd.f32 %v72, %v381
    %v383 = vpop.f32.mrf.mxu0
    %384 = vmatprep.mubr.f32.mxu0 0.0
    %385 = vmatmul.mubr.f32.gmra.mxu0 %v165
    %v386 = vpop.f32.mrf.mxu0
    %v387 = vadd.f32 %v72, %v386
    %v388 = vpop.f32.mrf.mxu0
    %389 = vmatprep.mubr.f32.mxu0 0.0
    %390 = vmatmul.mubr.f32.gmra.mxu0 %v168
    %v391 = vpop.f32.mrf.mxu0
    %v392 = vadd.f32 %v72, %v391
    %v393 = vpop.f32.mrf.mxu0
    %394 = vdwg.mxu0
    %v395 = vmax.f32 %v237, 0.0
    %v396 = vmax.f32 %v242, 0.0
    %v397 = vmax.f32 %v247, 0.0
    %v398 = vmax.f32 %v252, 0.0
    %v399 = vmax.f32 %v257, 0.0
    %v400 = vmax.f32 %v262, 0.0
    %v401 = vmax.f32 %v267, 0.0
    %v402 = vmax.f32 %v272, 0.0
    %v403 = vmax.f32 %v277, 0.0
    %v404 = vmax.f32 %v282, 0.0
    %v405 = vmax.f32 %v287, 0.0
    %v406 = vmax.f32 %v292, 0.0
    %v407 = vmax.f32 %v297, 0.0
    %v408 = vmax.f32 %v302, 0.0
    %v409 = vmax.f32 %v307, 0.0
    %v410 = vmax.f32 %v312, 0.0
    %v411 = vmax.f32 %v317, 0.0
    %v412 = vmax.f32 %v322, 0.0
    %v413 = vmax.f32 %v327, 0.0
    %v414 = vmax.f32 %v332, 0.0
    %v415 = vmax.f32 %v337, 0.0
    %v416 = vmax.f32 %v342, 0.0
    %v417 = vmax.f32 %v347, 0.0
    %v418 = vmax.f32 %v352, 0.0
    %v419 = vmax.f32 %v357, 0.0
    %v420 = vmax.f32 %v362, 0.0
    %v421 = vmax.f32 %v367, 0.0
    %v422 = vmax.f32 %v372, 0.0
    %v423 = vmax.f32 %v377, 0.0
    %v424 = vmax.f32 %v382, 0.0
    %v425 = vmax.f32 %v387, 0.0
    %v426 = vmax.f32 %v392, 0.0
    %v427 = vlaneseq
    %v428 = vshrl.u32 %v427, 7
    %v429 = vsub.s32 1, %v428
    %v430 = vrot.slane %v24, %v429
    %vm431 = vcmask 523264
    %v433 = vsel %vm431, %v395, 0
    %v436 = vsel %vm431, %v396, 0
    %v439 = vsel %vm431, %v397, 0
    %v442 = vsel %vm431, %v398, 0
    %v445 = vsel %vm431, %v399, 0
    %v448 = vsel %vm431, %v400, 0
    %v451 = vsel %vm431, %v401, 0
    %v454 = vsel %vm431, %v402, 0
    %v457 = vsel %vm431, %v403, 0
    %v460 = vsel %vm431, %v404, 0
    %v463 = vsel %vm431, %v405, 0
    %v466 = vsel %vm431, %v406, 0
    %v469 = vsel %vm431, %v407, 0
    %v472 = vsel %vm431, %v408, 0
    %v475 = vsel %vm431, %v409, 0
    %v478 = vsel %vm431, %v410, 0
    %v481 = vsel %vm431, %v411, 0
    %v484 = vsel %vm431, %v412, 0
    %v487 = vsel %vm431, %v413, 0
    %v490 = vsel %vm431, %v414, 0
    %v493 = vsel %vm431, %v415, 0
    %v496 = vsel %vm431, %v416, 0
    %v499 = vsel %vm431, %v417, 0
    %v502 = vsel %vm431, %v418, 0
    %v505 = vsel %vm431, %v419, 0
    %v508 = vsel %vm431, %v420, 0
    %v511 = vsel %vm431, %v421, 0
    %v514 = vsel %vm431, %v422, 0
    %v517 = vsel %vm431, %v423, 0
    %v520 = vsel %vm431, %v424, 0
    %v523 = vsel %vm431, %v425, 0
    %v526 = vsel %vm431, %v426, 0
    %528 = vmatprep.subr.mxu0 0.0
    %529 = vmatpush1.msra.mxu0 0.0
    %530 = vmatprep.subr.mxu0 0.0
    %531 = vmatpush1.msra.mxu0 0.0
    %532 = vmatprep.subr.mxu0 0.0
    %533 = vmatpush1.msra.mxu0 0.0
    %534 = vmatprep.subr.mxu0 0.0
    %535 = vmatpush1.msra.mxu0 0.0
    %536 = vmatprep.subr.mxu0 0.0
    %537 = vmatpush1.msra.mxu0 0.0
    %538 = vmatprep.subr.mxu0 0.0
    %539 = vmatpush1.msra.mxu0 0.0
    %540 = vmatprep.subr.mxu0 0.0
    %541 = vmatpush1.msra.mxu0 0.0
    %542 = vmatprep.subr.mxu0 0.0
    %543 = vmatpush1.msra.mxu0 0.0
    %544 = vmatprep.subr.mxu0 0.0
    %545 = vmatpush1.msra.mxu0 %v36
    %546 = vmatprep.subr.mxu0 0.0
    %547 = vmatpush1.msra.mxu0 %v35
    %548 = vmatprep.subr.mxu0 0.0
    %549 = vmatpush1.msra.mxu0 %v34
    %550 = vmatprep.subr.mxu0 0.0
    %551 = vmatpush1.msra.mxu0 %v33
    %552 = vmatprep.subr.mxu0 0.0
    %553 = vmatpush1.msra.mxu0 %v32
    %554 = vmatprep.subr.mxu0 0.0
    %555 = vmatpush1.msra.mxu0 %v31
    %556 = vmatprep.subr.mxu0 0.0
    %557 = vmatpush1.msra.mxu0 %v30
    %558 = vmatprep.subr.mxu0 0.0
    %559 = vmatpush1.msra.mxu0 %v29
    %560 = vmatprep.subr.mxu0 0.0
    %561 = vmatpush2.msra.mxu0 0.0
    %562 = vmatprep.subr.mxu0 0.0
    %563 = vmatpush2.msra.mxu0 0.0
    %564 = vmatprep.subr.mxu0 0.0
    %565 = vmatpush2.msra.mxu0 0.0
    %566 = vmatprep.subr.mxu0 0.0
    %567 = vmatpush2.msra.mxu0 0.0
    %568 = vmatprep.subr.mxu0 0.0
    %569 = vmatpush2.msra.mxu0 0.0
    %570 = vmatprep.subr.mxu0 0.0
    %571 = vmatpush2.msra.mxu0 0.0
    %572 = vmatprep.subr.mxu0 0.0
    %573 = vmatpush2.msra.mxu0 0.0
    %574 = vmatprep.subr.mxu0 0.0
    %575 = vmatpush2.msra.mxu0 0.0
    %576 = vmatprep.subr.mxu0 0.0
    %577 = vmatpush2.msra.mxu0 0.0
    %578 = vmatprep.subr.mxu0 0.0
    %579 = vmatpush2.msra.mxu0 0.0
    %580 = vmatprep.subr.mxu0 0.0
    %581 = vmatpush2.msra.mxu0 0.0
    %582 = vmatprep.subr.mxu0 0.0
    %583 = vmatpush2.msra.mxu0 0.0
    %584 = vmatprep.subr.mxu0 0.0
    %585 = vmatpush2.msra.mxu0 0.0
    %586 = vmatprep.subr.mxu0 0.0
    %587 = vmatpush2.msra.mxu0 0.0
    %588 = vmatprep.subr.mxu0 0.0
    %589 = vmatpush2.msra.mxu0 0.0
    %590 = vmatprep.subr.mxu0 0.0
    %591 = vmatpush2.msra.mxu0 0.0
    %592 = vmatprep.mubr.f32.mxu0 0.0
    %593 = vmatmul.mubr.f32.gmra.mxu0 %v433
    %v594 = vpop.f32.mrf.mxu0
    %v595 = vadd.f32 %v430, %v594
    %v596 = vpop.f32.mrf.mxu0
    %597 = vmatprep.mubr.f32.mxu0 0.0
    %598 = vmatmul.mubr.f32.gmra.mxu0 %v436
    %v599 = vpop.f32.mrf.mxu0
    %v600 = vadd.f32 %v430, %v599
    %v601 = vpop.f32.mrf.mxu0
    %602 = vmatprep.mubr.f32.mxu0 0.0
    %603 = vmatmul.mubr.f32.gmra.mxu0 %v439
    %v604 = vpop.f32.mrf.mxu0
    %v605 = vadd.f32 %v430, %v604
    %v606 = vpop.f32.mrf.mxu0
    %607 = vmatprep.mubr.f32.mxu0 0.0
    %608 = vmatmul.mubr.f32.gmra.mxu0 %v442
    %v609 = vpop.f32.mrf.mxu0
    %v610 = vadd.f32 %v430, %v609
    %v611 = vpop.f32.mrf.mxu0
    %612 = vmatprep.mubr.f32.mxu0 0.0
    %613 = vmatmul.mubr.f32.gmra.mxu0 %v445
    %v614 = vpop.f32.mrf.mxu0
    %v615 = vadd.f32 %v430, %v614
    %v616 = vpop.f32.mrf.mxu0
    %617 = vmatprep.mubr.f32.mxu0 0.0
    %618 = vmatmul.mubr.f32.gmra.mxu0 %v448
    %v619 = vpop.f32.mrf.mxu0
    %v620 = vadd.f32 %v430, %v619
    %v621 = vpop.f32.mrf.mxu0
    %622 = vmatprep.mubr.f32.mxu0 0.0
    %623 = vmatmul.mubr.f32.gmra.mxu0 %v451
    %v624 = vpop.f32.mrf.mxu0
    %v625 = vadd.f32 %v430, %v624
    %v626 = vpop.f32.mrf.mxu0
    %627 = vmatprep.mubr.f32.mxu0 0.0
    %628 = vmatmul.mubr.f32.gmra.mxu0 %v454
    %v629 = vpop.f32.mrf.mxu0
    %v630 = vadd.f32 %v430, %v629
    %v631 = vpop.f32.mrf.mxu0
    %632 = vmatprep.mubr.f32.mxu0 0.0
    %633 = vmatmul.mubr.f32.gmra.mxu0 %v457
    %v634 = vpop.f32.mrf.mxu0
    %v635 = vadd.f32 %v430, %v634
    %v636 = vpop.f32.mrf.mxu0
    %637 = vmatprep.mubr.f32.mxu0 0.0
    %638 = vmatmul.mubr.f32.gmra.mxu0 %v460
    %v639 = vpop.f32.mrf.mxu0
    %v640 = vadd.f32 %v430, %v639
    %v641 = vpop.f32.mrf.mxu0
    %642 = vmatprep.mubr.f32.mxu0 0.0
    %643 = vmatmul.mubr.f32.gmra.mxu0 %v463
    %v644 = vpop.f32.mrf.mxu0
    %v645 = vadd.f32 %v430, %v644
    %v646 = vpop.f32.mrf.mxu0
    %647 = vmatprep.mubr.f32.mxu0 0.0
    %648 = vmatmul.mubr.f32.gmra.mxu0 %v466
    %v649 = vpop.f32.mrf.mxu0
    %v650 = vadd.f32 %v430, %v649
    %v651 = vpop.f32.mrf.mxu0
    %652 = vmatprep.mubr.f32.mxu0 0.0
    %653 = vmatmul.mubr.f32.gmra.mxu0 %v469
    %v654 = vpop.f32.mrf.mxu0
    %v655 = vadd.f32 %v430, %v654
    %v656 = vpop.f32.mrf.mxu0
    %657 = vmatprep.mubr.f32.mxu0 0.0
    %658 = vmatmul.mubr.f32.gmra.mxu0 %v472
    %v659 = vpop.f32.mrf.mxu0
    %v660 = vadd.f32 %v430, %v659
    %v661 = vpop.f32.mrf.mxu0
    %662 = vmatprep.mubr.f32.mxu0 0.0
    %663 = vmatmul.mubr.f32.gmra.mxu0 %v475
    %v664 = vpop.f32.mrf.mxu0
    %v665 = vadd.f32 %v430, %v664
    %v666 = vpop.f32.mrf.mxu0
    %667 = vmatprep.mubr.f32.mxu0 0.0
    %668 = vmatmul.mubr.f32.gmra.mxu0 %v478
    %v669 = vpop.f32.mrf.mxu0
    %v670 = vadd.f32 %v430, %v669
    %v671 = vpop.f32.mrf.mxu0
    %672 = vmatprep.mubr.f32.mxu0 0.0
    %673 = vmatmul.mubr.f32.gmra.mxu0 %v481
    %v674 = vpop.f32.mrf.mxu0
    %v675 = vadd.f32 %v430, %v674
    %v676 = vpop.f32.mrf.mxu0
    %677 = vmatprep.mubr.f32.mxu0 0.0
    %678 = vmatmul.mubr.f32.gmra.mxu0 %v484
    %v679 = vpop.f32.mrf.mxu0
    %v680 = vadd.f32 %v430, %v679
    %v681 = vpop.f32.mrf.mxu0
    %682 = vmatprep.mubr.f32.mxu0 0.0
    %683 = vmatmul.mubr.f32.gmra.mxu0 %v487
    %v684 = vpop.f32.mrf.mxu0
    %v685 = vadd.f32 %v430, %v684
    %v686 = vpop.f32.mrf.mxu0
    %687 = vmatprep.mubr.f32.mxu0 0.0
    %688 = vmatmul.mubr.f32.gmra.mxu0 %v490
    %v689 = vpop.f32.mrf.mxu0
    %v690 = vadd.f32 %v430, %v689
    %v691 = vpop.f32.mrf.mxu0
    %692 = vmatprep.mubr.f32.mxu0 0.0
    %693 = vmatmul.mubr.f32.gmra.mxu0 %v493
    %v694 = vpop.f32.mrf.mxu0
    %v695 = vadd.f32 %v430, %v694
    %v696 = vpop.f32.mrf.mxu0
    %697 = vmatprep.mubr.f32.mxu0 0.0
    %698 = vmatmul.mubr.f32.gmra.mxu0 %v496
    %v699 = vpop.f32.mrf.mxu0
    %v700 = vadd.f32 %v430, %v699
    %v701 = vpop.f32.mrf.mxu0
    %702 = vmatprep.mubr.f32.mxu0 0.0
    %703 = vmatmul.mubr.f32.gmra.mxu0 %v499
    %v704 = vpop.f32.mrf.mxu0
    %v705 = vadd.f32 %v430, %v704
    %v706 = vpop.f32.mrf.mxu0
    %707 = vmatprep.mubr.f32.mxu0 0.0
    %708 = vmatmul.mubr.f32.gmra.mxu0 %v502
    %v709 = vpop.f32.mrf.mxu0
    %v710 = vadd.f32 %v430, %v709
    %v711 = vpop.f32.mrf.mxu0
    %712 = vmatprep.mubr.f32.mxu0 0.0
    %713 = vmatmul.mubr.f32.gmra.mxu0 %v505
    %v714 = vpop.f32.mrf.mxu0
    %v715 = vadd.f32 %v430, %v714
    %v716 = vpop.f32.mrf.mxu0
    %717 = vmatprep.mubr.f32.mxu0 0.0
    %718 = vmatmul.mubr.f32.gmra.mxu0 %v508
    %v719 = vpop.f32.mrf.mxu0
    %v720 = vadd.f32 %v430, %v719
    %v721 = vpop.f32.mrf.mxu0
    %722 = vmatprep.mubr.f32.mxu0 0.0
    %723 = vmatmul.mubr.f32.gmra.mxu0 %v511
    %v724 = vpop.f32.mrf.mxu0
    %v725 = vadd.f32 %v430, %v724
    %v726 = vpop.f32.mrf.mxu0
    %727 = vmatprep.mubr.f32.mxu0 0.0
    %728 = vmatmul.mubr.f32.gmra.mxu0 %v514
    %v729 = vpop.f32.mrf.mxu0
    %v730 = vadd.f32 %v430, %v729
    %v731 = vpop.f32.mrf.mxu0
    %732 = vmatprep.mubr.f32.mxu0 0.0
    %733 = vmatmul.mubr.f32.gmra.mxu0 %v517
    %v734 = vpop.f32.mrf.mxu0
    %v735 = vadd.f32 %v430, %v734
    %v736 = vpop.f32.mrf.mxu0
    %737 = vmatprep.mubr.f32.mxu0 0.0
    %738 = vmatmul.mubr.f32.gmra.mxu0 %v520
    %v739 = vpop.f32.mrf.mxu0
    %v740 = vadd.f32 %v430, %v739
    %v741 = vpop.f32.mrf.mxu0
    %742 = vmatprep.mubr.f32.mxu0 0.0
    %743 = vmatmul.mubr.f32.gmra.mxu0 %v523
    %v744 = vpop.f32.mrf.mxu0
    %v745 = vadd.f32 %v430, %v744
    %v746 = vpop.f32.mrf.mxu0
    %747 = vmatprep.mubr.f32.mxu0 0.0
    %748 = vmatmul.mubr.f32.gmra.mxu0 %v526
    %v749 = vpop.f32.mrf.mxu0
    %v750 = vadd.f32 %v430, %v749
    %v751 = vpop.f32.mrf.mxu0
    %752 = vdwg.mxu0
    %v753 = vmax.f32 %v595, 0.0
    %v754 = vmax.f32 %v600, 0.0
    %v755 = vmax.f32 %v605, 0.0
    %v756 = vmax.f32 %v610, 0.0
    %v757 = vmax.f32 %v615, 0.0
    %v758 = vmax.f32 %v620, 0.0
    %v759 = vmax.f32 %v625, 0.0
    %v760 = vmax.f32 %v630, 0.0
    %v761 = vmax.f32 %v635, 0.0
    %v762 = vmax.f32 %v640, 0.0
    %v763 = vmax.f32 %v645, 0.0
    %v764 = vmax.f32 %v650, 0.0
    %v765 = vmax.f32 %v655, 0.0
    %v766 = vmax.f32 %v660, 0.0
    %v767 = vmax.f32 %v665, 0.0
    %v768 = vmax.f32 %v670, 0.0
    %v769 = vmax.f32 %v675, 0.0
    %v770 = vmax.f32 %v680, 0.0
    %v771 = vmax.f32 %v685, 0.0
    %v772 = vmax.f32 %v690, 0.0
    %v773 = vmax.f32 %v695, 0.0
    %v774 = vmax.f32 %v700, 0.0
    %v775 = vmax.f32 %v705, 0.0
    %v776 = vmax.f32 %v710, 0.0
    %v777 = vmax.f32 %v715, 0.0
    %v778 = vmax.f32 %v720, 0.0
    %v779 = vmax.f32 %v725, 0.0
    %v780 = vmax.f32 %v730, 0.0
    %v781 = vmax.f32 %v735, 0.0
    %v782 = vmax.f32 %v740, 0.0
    %v783 = vmax.f32 %v745, 0.0
    %v784 = vmax.f32 %v750, 0.0
    %v785 = vld [vmem:[%s1] sm:$0xff]
    %v786 = vld [vmem:[%s1 + $0x8] sm:$0xff]
    %v787 = vld [vmem:[%s1 + $0x10] sm:$0xff]
    %v788 = vld [vmem:[%s1 + $0x18] sm:$0xff]
    %v789 = vld [vmem:[%s1 + $0x20] sm:$0xff]
    %v790 = vld [vmem:[%s1 + $0x28] sm:$0xff]
    %v791 = vld [vmem:[%s1 + $0x30] sm:$0xff]
    %v792 = vld [vmem:[%s1 + $0x38] sm:$0xff]
    %v793 = vld [vmem:[%s1 + $0x40] sm:$0xff]
    %v794 = vld [vmem:[%s1 + $0x48] sm:$0xff]
    %v795 = vld [vmem:[%s1 + $0x50] sm:$0xff]
    %v796 = vld [vmem:[%s1 + $0x58] sm:$0xff]
    %v797 = vld [vmem:[%s1 + $0x60] sm:$0xff]
    %v798 = vld [vmem:[%s1 + $0x68] sm:$0xff]
    %v799 = vld [vmem:[%s1 + $0x70] sm:$0xff]
    %v800 = vld [vmem:[%s1 + $0x78] sm:$0xff]
    %v801 = vld [vmem:[%s1 + $0x80] sm:$0xff]
    %v802 = vld [vmem:[%s1 + $0x88] sm:$0xff]
    %v803 = vld [vmem:[%s1 + $0x90] sm:$0xff]
    %v804 = vld [vmem:[%s1 + $0x98] sm:$0xff]
    %v805 = vld [vmem:[%s1 + $0xa0] sm:$0xff]
    %v806 = vld [vmem:[%s1 + $0xa8] sm:$0xff]
    %v807 = vld [vmem:[%s1 + $0xb0] sm:$0xff]
    %v808 = vld [vmem:[%s1 + $0xb8] sm:$0xff]
    %v809 = vld [vmem:[%s1 + $0xc0] sm:$0xff]
    %v810 = vld [vmem:[%s1 + $0xc8] sm:$0xff]
    %v811 = vld [vmem:[%s1 + $0xd0] sm:$0xff]
    %v812 = vld [vmem:[%s1 + $0xd8] sm:$0xff]
    %v813 = vld [vmem:[%s1 + $0xe0] sm:$0xff]
    %v814 = vld [vmem:[%s1 + $0xe8] sm:$0xff]
    %v815 = vld [vmem:[%s1 + $0xf0] sm:$0xff]
    %v816 = vld [vmem:[%s1 + $0xf8] sm:$0xff]
    %v818 = vsel %vm73, %v785, 0
    %v821 = vsel %vm73, %v786, 0
    %v824 = vsel %vm73, %v787, 0
    %v827 = vsel %vm73, %v788, 0
    %v830 = vsel %vm73, %v789, 0
    %v833 = vsel %vm73, %v790, 0
    %v836 = vsel %vm73, %v791, 0
    %v839 = vsel %vm73, %v792, 0
    %v842 = vsel %vm73, %v793, 0
    %v845 = vsel %vm73, %v794, 0
    %v848 = vsel %vm73, %v795, 0
    %v851 = vsel %vm73, %v796, 0
    %v854 = vsel %vm73, %v797, 0
    %v857 = vsel %vm73, %v798, 0
    %v860 = vsel %vm73, %v799, 0
    %v863 = vsel %vm73, %v800, 0
    %v866 = vsel %vm73, %v801, 0
    %v869 = vsel %vm73, %v802, 0
    %v872 = vsel %vm73, %v803, 0
    %v875 = vsel %vm73, %v804, 0
    %v878 = vsel %vm73, %v805, 0
    %v881 = vsel %vm73, %v806, 0
    %v884 = vsel %vm73, %v807, 0
    %v887 = vsel %vm73, %v808, 0
    %v890 = vsel %vm73, %v809, 0
    %v893 = vsel %vm73, %v810, 0
    %v896 = vsel %vm73, %v811, 0
    %v899 = vsel %vm73, %v812, 0
    %v902 = vsel %vm73, %v813, 0
    %v905 = vsel %vm73, %v814, 0
    %v908 = vsel %vm73, %v815, 0
    %v911 = vsel %vm73, %v816, 0
    %913 = vmatprep.subr.mxu0 0.0
    %914 = vmatpush1.msra.mxu0 0.0
    %915 = vmatprep.subr.mxu0 0.0
    %916 = vmatpush1.msra.mxu0 0.0
    %917 = vmatprep.subr.mxu0 0.0
    %918 = vmatpush1.msra.mxu0 0.0
    %919 = vmatprep.subr.mxu0 0.0
    %920 = vmatpush1.msra.mxu0 0.0
    %921 = vmatprep.subr.mxu0 0.0
    %922 = vmatpush1.msra.mxu0 0.0
    %923 = vmatprep.subr.mxu0 0.0
    %924 = vmatpush1.msra.mxu0 0.0
    %925 = vmatprep.subr.mxu0 0.0
    %926 = vmatpush1.msra.mxu0 0.0
    %927 = vmatprep.subr.mxu0 0.0
    %928 = vmatpush1.msra.mxu0 0.0
    %929 = vmatprep.subr.mxu0 0.0
    %930 = vmatpush1.msra.mxu0 0.0
    %931 = vmatprep.subr.mxu0 0.0
    %932 = vmatpush1.msra.mxu0 0.0
    %933 = vmatprep.subr.mxu0 0.0
    %934 = vmatpush1.msra.mxu0 0.0
    %935 = vmatprep.subr.mxu0 0.0
    %936 = vmatpush1.msra.mxu0 0.0
    %937 = vmatprep.subr.mxu0 0.0
    %938 = vmatpush1.msra.mxu0 %v28
    %939 = vmatprep.subr.mxu0 0.0
    %940 = vmatpush1.msra.mxu0 %v27
    %941 = vmatprep.subr.mxu0 0.0
    %942 = vmatpush1.msra.mxu0 %v26
    %943 = vmatprep.subr.mxu0 0.0
    %944 = vmatpush1.msra.mxu0 %v25
    %945 = vmatprep.subr.mxu0 0.0
    %946 = vmatpush2.msra.mxu0 0.0
    %947 = vmatprep.subr.mxu0 0.0
    %948 = vmatpush2.msra.mxu0 0.0
    %949 = vmatprep.subr.mxu0 0.0
    %950 = vmatpush2.msra.mxu0 0.0
    %951 = vmatprep.subr.mxu0 0.0
    %952 = vmatpush2.msra.mxu0 0.0
    %953 = vmatprep.subr.mxu0 0.0
    %954 = vmatpush2.msra.mxu0 0.0
    %955 = vmatprep.subr.mxu0 0.0
    %956 = vmatpush2.msra.mxu0 0.0
    %957 = vmatprep.subr.mxu0 0.0
    %958 = vmatpush2.msra.mxu0 0.0
    %959 = vmatprep.subr.mxu0 0.0
    %960 = vmatpush2.msra.mxu0 0.0
    %961 = vmatprep.subr.mxu0 0.0
    %962 = vmatpush2.msra.mxu0 0.0
    %963 = vmatprep.subr.mxu0 0.0
    %964 = vmatpush2.msra.mxu0 0.0
    %965 = vmatprep.subr.mxu0 0.0
    %966 = vmatpush2.msra.mxu0 0.0
    %967 = vmatprep.subr.mxu0 0.0
    %968 = vmatpush2.msra.mxu0 0.0
    %969 = vmatprep.subr.mxu0 0.0
    %970 = vmatpush2.msra.mxu0 0.0
    %971 = vmatprep.subr.mxu0 0.0
    %972 = vmatpush2.msra.mxu0 0.0
    %973 = vmatprep.subr.mxu0 0.0
    %974 = vmatpush2.msra.mxu0 0.0
    %975 = vmatprep.subr.mxu0 0.0
    %976 = vmatpush2.msra.mxu0 0.0
    %977 = vmatprep.mubr.f32.mxu0 0.0
    %978 = vmatmul.mubr.f32.gmra.mxu0 %v818
    %v979 = vpop.f32.mrf.mxu0
    %v980 = vadd.f32 %v72, %v979
    %v981 = vpop.f32.mrf.mxu0
    %982 = vmatprep.mubr.f32.mxu0 0.0
    %983 = vmatmul.mubr.f32.gmra.mxu0 %v821
    %v984 = vpop.f32.mrf.mxu0
    %v985 = vadd.f32 %v72, %v984
    %v986 = vpop.f32.mrf.mxu0
    %987 = vmatprep.mubr.f32.mxu0 0.0
    %988 = vmatmul.mubr.f32.gmra.mxu0 %v824
    %v989 = vpop.f32.mrf.mxu0
    %v990 = vadd.f32 %v72, %v989
    %v991 = vpop.f32.mrf.mxu0
    %992 = vmatprep.mubr.f32.mxu0 0.0
    %993 = vmatmul.mubr.f32.gmra.mxu0 %v827
    %v994 = vpop.f32.mrf.mxu0
    %v995 = vadd.f32 %v72, %v994
    %v996 = vpop.f32.mrf.mxu0
    %997 = vmatprep.mubr.f32.mxu0 0.0
    %998 = vmatmul.mubr.f32.gmra.mxu0 %v830
    %v999 = vpop.f32.mrf.mxu0
    %v1000 = vadd.f32 %v72, %v999
    %v1001 = vpop.f32.mrf.mxu0
    %1002 = vmatprep.mubr.f32.mxu0 0.0
    %1003 = vmatmul.mubr.f32.gmra.mxu0 %v833
    %v1004 = vpop.f32.mrf.mxu0
    %v1005 = vadd.f32 %v72, %v1004
    %v1006 = vpop.f32.mrf.mxu0
    %1007 = vmatprep.mubr.f32.mxu0 0.0
    %1008 = vmatmul.mubr.f32.gmra.mxu0 %v836
    %v1009 = vpop.f32.mrf.mxu0
    %v1010 = vadd.f32 %v72, %v1009
    %v1011 = vpop.f32.mrf.mxu0
    %1012 = vmatprep.mubr.f32.mxu0 0.0
    %1013 = vmatmul.mubr.f32.gmra.mxu0 %v839
    %v1014 = vpop.f32.mrf.mxu0
    %v1015 = vadd.f32 %v72, %v1014
    %v1016 = vpop.f32.mrf.mxu0
    %1017 = vmatprep.mubr.f32.mxu0 0.0
    %1018 = vmatmul.mubr.f32.gmra.mxu0 %v842
    %v1019 = vpop.f32.mrf.mxu0
    %v1020 = vadd.f32 %v72, %v1019
    %v1021 = vpop.f32.mrf.mxu0
    %1022 = vmatprep.mubr.f32.mxu0 0.0
    %1023 = vmatmul.mubr.f32.gmra.mxu0 %v845
    %v1024 = vpop.f32.mrf.mxu0
    %v1025 = vadd.f32 %v72, %v1024
    %v1026 = vpop.f32.mrf.mxu0
    %1027 = vmatprep.mubr.f32.mxu0 0.0
    %1028 = vmatmul.mubr.f32.gmra.mxu0 %v848
    %v1029 = vpop.f32.mrf.mxu0
    %v1030 = vadd.f32 %v72, %v1029
    %v1031 = vpop.f32.mrf.mxu0
    %1032 = vmatprep.mubr.f32.mxu0 0.0
    %1033 = vmatmul.mubr.f32.gmra.mxu0 %v851
    %v1034 = vpop.f32.mrf.mxu0
    %v1035 = vadd.f32 %v72, %v1034
    %v1036 = vpop.f32.mrf.mxu0
    %1037 = vmatprep.mubr.f32.mxu0 0.0
    %1038 = vmatmul.mubr.f32.gmra.mxu0 %v854
    %v1039 = vpop.f32.mrf.mxu0
    %v1040 = vadd.f32 %v72, %v1039
    %v1041 = vpop.f32.mrf.mxu0
    %1042 = vmatprep.mubr.f32.mxu0 0.0
    %1043 = vmatmul.mubr.f32.gmra.mxu0 %v857
    %v1044 = vpop.f32.mrf.mxu0
    %v1045 = vadd.f32 %v72, %v1044
    %v1046 = vpop.f32.mrf.mxu0
    %1047 = vmatprep.mubr.f32.mxu0 0.0
    %1048 = vmatmul.mubr.f32.gmra.mxu0 %v860
    %v1049 = vpop.f32.mrf.mxu0
    %v1050 = vadd.f32 %v72, %v1049
    %v1051 = vpop.f32.mrf.mxu0
    %1052 = vmatprep.mubr.f32.mxu0 0.0
    %1053 = vmatmul.mubr.f32.gmra.mxu0 %v863
    %v1054 = vpop.f32.mrf.mxu0
    %v1055 = vadd.f32 %v72, %v1054
    %v1056 = vpop.f32.mrf.mxu0
    %1057 = vmatprep.mubr.f32.mxu0 0.0
    %1058 = vmatmul.mubr.f32.gmra.mxu0 %v866
    %v1059 = vpop.f32.mrf.mxu0
    %v1060 = vadd.f32 %v72, %v1059
    %v1061 = vpop.f32.mrf.mxu0
    %1062 = vmatprep.mubr.f32.mxu0 0.0
    %1063 = vmatmul.mubr.f32.gmra.mxu0 %v869
    %v1064 = vpop.f32.mrf.mxu0
    %v1065 = vadd.f32 %v72, %v1064
    %v1066 = vpop.f32.mrf.mxu0
    %1067 = vmatprep.mubr.f32.mxu0 0.0
    %1068 = vmatmul.mubr.f32.gmra.mxu0 %v872
    %v1069 = vpop.f32.mrf.mxu0
    %v1070 = vadd.f32 %v72, %v1069
    %v1071 = vpop.f32.mrf.mxu0
    %1072 = vmatprep.mubr.f32.mxu0 0.0
    %1073 = vmatmul.mubr.f32.gmra.mxu0 %v875
    %v1074 = vpop.f32.mrf.mxu0
    %v1075 = vadd.f32 %v72, %v1074
    %v1076 = vpop.f32.mrf.mxu0
    %1077 = vmatprep.mubr.f32.mxu0 0.0
    %1078 = vmatmul.mubr.f32.gmra.mxu0 %v878
    %v1079 = vpop.f32.mrf.mxu0
    %v1080 = vadd.f32 %v72, %v1079
    %v1081 = vpop.f32.mrf.mxu0
    %1082 = vmatprep.mubr.f32.mxu0 0.0
    %1083 = vmatmul.mubr.f32.gmra.mxu0 %v881
    %v1084 = vpop.f32.mrf.mxu0
    %v1085 = vadd.f32 %v72, %v1084
    %v1086 = vpop.f32.mrf.mxu0
    %1087 = vmatprep.mubr.f32.mxu0 0.0
    %1088 = vmatmul.mubr.f32.gmra.mxu0 %v884
    %v1089 = vpop.f32.mrf.mxu0
    %v1090 = vadd.f32 %v72, %v1089
    %v1091 = vpop.f32.mrf.mxu0
    %1092 = vmatprep.mubr.f32.mxu0 0.0
    %1093 = vmatmul.mubr.f32.gmra.mxu0 %v887
    %v1094 = vpop.f32.mrf.mxu0
    %v1095 = vadd.f32 %v72, %v1094
    %v1096 = vpop.f32.mrf.mxu0
    %1097 = vmatprep.mubr.f32.mxu0 0.0
    %1098 = vmatmul.mubr.f32.gmra.mxu0 %v890
    %v1099 = vpop.f32.mrf.mxu0
    %v1100 = vadd.f32 %v72, %v1099
    %v1101 = vpop.f32.mrf.mxu0
    %1102 = vmatprep.mubr.f32.mxu0 0.0
    %1103 = vmatmul.mubr.f32.gmra.mxu0 %v893
    %v1104 = vpop.f32.mrf.mxu0
    %v1105 = vadd.f32 %v72, %v1104
    %v1106 = vpop.f32.mrf.mxu0
    %1107 = vmatprep.mubr.f32.mxu0 0.0
    %1108 = vmatmul.mubr.f32.gmra.mxu0 %v896
    %v1109 = vpop.f32.mrf.mxu0
    %v1110 = vadd.f32 %v72, %v1109
    %v1111 = vpop.f32.mrf.mxu0
    %1112 = vmatprep.mubr.f32.mxu0 0.0
    %1113 = vmatmul.mubr.f32.gmra.mxu0 %v899
    %v1114 = vpop.f32.mrf.mxu0
    %v1115 = vadd.f32 %v72, %v1114
    %v1116 = vpop.f32.mrf.mxu0
    %1117 = vmatprep.mubr.f32.mxu0 0.0
    %1118 = vmatmul.mubr.f32.gmra.mxu0 %v902
    %v1119 = vpop.f32.mrf.mxu0
    %v1120 = vadd.f32 %v72, %v1119
    %v1121 = vpop.f32.mrf.mxu0
    %1122 = vmatprep.mubr.f32.mxu0 0.0
    %1123 = vmatmul.mubr.f32.gmra.mxu0 %v905
    %v1124 = vpop.f32.mrf.mxu0
    %v1125 = vadd.f32 %v72, %v1124
    %v1126 = vpop.f32.mrf.mxu0
    %1127 = vmatprep.mubr.f32.mxu0 0.0
    %1128 = vmatmul.mubr.f32.gmra.mxu0 %v908
    %v1129 = vpop.f32.mrf.mxu0
    %v1130 = vadd.f32 %v72, %v1129
    %v1131 = vpop.f32.mrf.mxu0
    %1132 = vmatprep.mubr.f32.mxu0 0.0
    %1133 = vmatmul.mubr.f32.gmra.mxu0 %v911
    %v1134 = vpop.f32.mrf.mxu0
    %v1135 = vadd.f32 %v72, %v1134
    %v1136 = vpop.f32.mrf.mxu0
    %1137 = vdwg.mxu0
    %v1138 = vmax.f32 %v980, 0.0
    %v1139 = vmax.f32 %v985, 0.0
    %v1140 = vmax.f32 %v990, 0.0
    %v1141 = vmax.f32 %v995, 0.0
    %v1142 = vmax.f32 %v1000, 0.0
    %v1143 = vmax.f32 %v1005, 0.0
    %v1144 = vmax.f32 %v1010, 0.0
    %v1145 = vmax.f32 %v1015, 0.0
    %v1146 = vmax.f32 %v1020, 0.0
    %v1147 = vmax.f32 %v1025, 0.0
    %v1148 = vmax.f32 %v1030, 0.0
    %v1149 = vmax.f32 %v1035, 0.0
    %v1150 = vmax.f32 %v1040, 0.0
    %v1151 = vmax.f32 %v1045, 0.0
    %v1152 = vmax.f32 %v1050, 0.0
    %v1153 = vmax.f32 %v1055, 0.0
    %v1154 = vmax.f32 %v1060, 0.0
    %v1155 = vmax.f32 %v1065, 0.0
    %v1156 = vmax.f32 %v1070, 0.0
    %v1157 = vmax.f32 %v1075, 0.0
    %v1158 = vmax.f32 %v1080, 0.0
    %v1159 = vmax.f32 %v1085, 0.0
    %v1160 = vmax.f32 %v1090, 0.0
    %v1161 = vmax.f32 %v1095, 0.0
    %v1162 = vmax.f32 %v1100, 0.0
    %v1163 = vmax.f32 %v1105, 0.0
    %v1164 = vmax.f32 %v1110, 0.0
    %v1165 = vmax.f32 %v1115, 0.0
    %v1166 = vmax.f32 %v1120, 0.0
    %v1167 = vmax.f32 %v1125, 0.0
    %v1168 = vmax.f32 %v1130, 0.0
    %v1169 = vmax.f32 %v1135, 0.0
    %v1171 = vsel %vm431, %v1138, 0
    %v1174 = vsel %vm431, %v1139, 0
    %v1177 = vsel %vm431, %v1140, 0
    %v1180 = vsel %vm431, %v1141, 0
    %v1183 = vsel %vm431, %v1142, 0
    %v1186 = vsel %vm431, %v1143, 0
    %v1189 = vsel %vm431, %v1144, 0
    %v1192 = vsel %vm431, %v1145, 0
    %v1195 = vsel %vm431, %v1146, 0
    %v1198 = vsel %vm431, %v1147, 0
    %v1201 = vsel %vm431, %v1148, 0
    %v1204 = vsel %vm431, %v1149, 0
    %v1207 = vsel %vm431, %v1150, 0
    %v1210 = vsel %vm431, %v1151, 0
    %v1213 = vsel %vm431, %v1152, 0
    %v1216 = vsel %vm431, %v1153, 0
    %v1219 = vsel %vm431, %v1154, 0
    %v1222 = vsel %vm431, %v1155, 0
    %v1225 = vsel %vm431, %v1156, 0
    %v1228 = vsel %vm431, %v1157, 0
    %v1231 = vsel %vm431, %v1158, 0
    %v1234 = vsel %vm431, %v1159, 0
    %v1237 = vsel %vm431, %v1160, 0
    %v1240 = vsel %vm431, %v1161, 0
    %v1243 = vsel %vm431, %v1162, 0
    %v1246 = vsel %vm431, %v1163, 0
    %v1249 = vsel %vm431, %v1164, 0
    %v1252 = vsel %vm431, %v1165, 0
    %v1255 = vsel %vm431, %v1166, 0
    %v1258 = vsel %vm431, %v1167, 0
    %v1261 = vsel %vm431, %v1168, 0
    %v1264 = vsel %vm431, %v1169, 0
    %1266 = vmatprep.subr.mxu0 0.0
    %1267 = vmatpush1.msra.mxu0 0.0
    %1268 = vmatprep.subr.mxu0 0.0
    %1269 = vmatpush1.msra.mxu0 0.0
    %1270 = vmatprep.subr.mxu0 0.0
    %1271 = vmatpush1.msra.mxu0 0.0
    %1272 = vmatprep.subr.mxu0 0.0
    %1273 = vmatpush1.msra.mxu0 0.0
    %1274 = vmatprep.subr.mxu0 0.0
    %1275 = vmatpush1.msra.mxu0 0.0
    %1276 = vmatprep.subr.mxu0 0.0
    %1277 = vmatpush1.msra.mxu0 0.0
    %1278 = vmatprep.subr.mxu0 0.0
    %1279 = vmatpush1.msra.mxu0 0.0
    %1280 = vmatprep.subr.mxu0 0.0
    %1281 = vmatpush1.msra.mxu0 0.0
    %1282 = vmatprep.subr.mxu0 0.0
    %1283 = vmatpush1.msra.mxu0 %v36
    %1284 = vmatprep.subr.mxu0 0.0
    %1285 = vmatpush1.msra.mxu0 %v35
    %1286 = vmatprep.subr.mxu0 0.0
    %1287 = vmatpush1.msra.mxu0 %v34
    %1288 = vmatprep.subr.mxu0 0.0
    %1289 = vmatpush1.msra.mxu0 %v33
    %1290 = vmatprep.subr.mxu0 0.0
    %1291 = vmatpush1.msra.mxu0 %v32
    %1292 = vmatprep.subr.mxu0 0.0
    %1293 = vmatpush1.msra.mxu0 %v31
    %1294 = vmatprep.subr.mxu0 0.0
    %1295 = vmatpush1.msra.mxu0 %v30
    %1296 = vmatprep.subr.mxu0 0.0
    %1297 = vmatpush1.msra.mxu0 %v29
    %1298 = vmatprep.subr.mxu0 0.0
    %1299 = vmatpush2.msra.mxu0 0.0
    %1300 = vmatprep.subr.mxu0 0.0
    %1301 = vmatpush2.msra.mxu0 0.0
    %1302 = vmatprep.subr.mxu0 0.0
    %1303 = vmatpush2.msra.mxu0 0.0
    %1304 = vmatprep.subr.mxu0 0.0
    %1305 = vmatpush2.msra.mxu0 0.0
    %1306 = vmatprep.subr.mxu0 0.0
    %1307 = vmatpush2.msra.mxu0 0.0
    %1308 = vmatprep.subr.mxu0 0.0
    %1309 = vmatpush2.msra.mxu0 0.0
    %1310 = vmatprep.subr.mxu0 0.0
    %1311 = vmatpush2.msra.mxu0 0.0
    %1312 = vmatprep.subr.mxu0 0.0
    %1313 = vmatpush2.msra.mxu0 0.0
    %1314 = vmatprep.subr.mxu0 0.0
    %1315 = vmatpush2.msra.mxu0 0.0
    %1316 = vmatprep.subr.mxu0 0.0
    %1317 = vmatpush2.msra.mxu0 0.0
    %1318 = vmatprep.subr.mxu0 0.0
    %1319 = vmatpush2.msra.mxu0 0.0
    %1320 = vmatprep.subr.mxu0 0.0
    %1321 = vmatpush2.msra.mxu0 0.0
    %1322 = vmatprep.subr.mxu0 0.0
    %1323 = vmatpush2.msra.mxu0 0.0
    %1324 = vmatprep.subr.mxu0 0.0
    %1325 = vmatpush2.msra.mxu0 0.0
    %1326 = vmatprep.subr.mxu0 0.0
    %1327 = vmatpush2.msra.mxu0 0.0
    %1328 = vmatprep.subr.mxu0 0.0
    %1329 = vmatpush2.msra.mxu0 0.0
    %1330 = vmatprep.mubr.f32.mxu0 0.0
    %1331 = vmatmul.mubr.f32.gmra.mxu0 %v1171
    %v1332 = vpop.f32.mrf.mxu0
    %v1333 = vadd.f32 %v430, %v1332
    %v1334 = vpop.f32.mrf.mxu0
    %1335 = vmatprep.mubr.f32.mxu0 0.0
    %1336 = vmatmul.mubr.f32.gmra.mxu0 %v1174
    %v1337 = vpop.f32.mrf.mxu0
    %v1338 = vadd.f32 %v430, %v1337
    %v1339 = vpop.f32.mrf.mxu0
    %1340 = vmatprep.mubr.f32.mxu0 0.0
    %1341 = vmatmul.mubr.f32.gmra.mxu0 %v1177
    %v1342 = vpop.f32.mrf.mxu0
    %v1343 = vadd.f32 %v430, %v1342
    %v1344 = vpop.f32.mrf.mxu0
    %1345 = vmatprep.mubr.f32.mxu0 0.0
    %1346 = vmatmul.mubr.f32.gmra.mxu0 %v1180
    %v1347 = vpop.f32.mrf.mxu0
    %v1348 = vadd.f32 %v430, %v1347
    %v1349 = vpop.f32.mrf.mxu0
    %1350 = vmatprep.mubr.f32.mxu0 0.0
    %1351 = vmatmul.mubr.f32.gmra.mxu0 %v1183
    %v1352 = vpop.f32.mrf.mxu0
    %v1353 = vadd.f32 %v430, %v1352
    %v1354 = vpop.f32.mrf.mxu0
    %1355 = vmatprep.mubr.f32.mxu0 0.0
    %1356 = vmatmul.mubr.f32.gmra.mxu0 %v1186
    %v1357 = vpop.f32.mrf.mxu0
    %v1358 = vadd.f32 %v430, %v1357
    %v1359 = vpop.f32.mrf.mxu0
    %1360 = vmatprep.mubr.f32.mxu0 0.0
    %1361 = vmatmul.mubr.f32.gmra.mxu0 %v1189
    %v1362 = vpop.f32.mrf.mxu0
    %v1363 = vadd.f32 %v430, %v1362
    %v1364 = vpop.f32.mrf.mxu0
    %1365 = vmatprep.mubr.f32.mxu0 0.0
    %1366 = vmatmul.mubr.f32.gmra.mxu0 %v1192
    %v1367 = vpop.f32.mrf.mxu0
    %v1368 = vadd.f32 %v430, %v1367
    %v1369 = vpop.f32.mrf.mxu0
    %1370 = vmatprep.mubr.f32.mxu0 0.0
    %1371 = vmatmul.mubr.f32.gmra.mxu0 %v1195
    %v1372 = vpop.f32.mrf.mxu0
    %v1373 = vadd.f32 %v430, %v1372
    %v1374 = vpop.f32.mrf.mxu0
    %1375 = vmatprep.mubr.f32.mxu0 0.0
    %1376 = vmatmul.mubr.f32.gmra.mxu0 %v1198
    %v1377 = vpop.f32.mrf.mxu0
    %v1378 = vadd.f32 %v430, %v1377
    %v1379 = vpop.f32.mrf.mxu0
    %1380 = vmatprep.mubr.f32.mxu0 0.0
    %1381 = vmatmul.mubr.f32.gmra.mxu0 %v1201
    %v1382 = vpop.f32.mrf.mxu0
    %v1383 = vadd.f32 %v430, %v1382
    %v1384 = vpop.f32.mrf.mxu0
    %1385 = vmatprep.mubr.f32.mxu0 0.0
    %1386 = vmatmul.mubr.f32.gmra.mxu0 %v1204
    %v1387 = vpop.f32.mrf.mxu0
    %v1388 = vadd.f32 %v430, %v1387
    %v1389 = vpop.f32.mrf.mxu0
    %1390 = vmatprep.mubr.f32.mxu0 0.0
    %1391 = vmatmul.mubr.f32.gmra.mxu0 %v1207
    %v1392 = vpop.f32.mrf.mxu0
    %v1393 = vadd.f32 %v430, %v1392
    %v1394 = vpop.f32.mrf.mxu0
    %1395 = vmatprep.mubr.f32.mxu0 0.0
    %1396 = vmatmul.mubr.f32.gmra.mxu0 %v1210
    %v1397 = vpop.f32.mrf.mxu0
    %v1398 = vadd.f32 %v430, %v1397
    %v1399 = vpop.f32.mrf.mxu0
    %1400 = vmatprep.mubr.f32.mxu0 0.0
    %1401 = vmatmul.mubr.f32.gmra.mxu0 %v1213
    %v1402 = vpop.f32.mrf.mxu0
    %v1403 = vadd.f32 %v430, %v1402
    %v1404 = vpop.f32.mrf.mxu0
    %1405 = vmatprep.mubr.f32.mxu0 0.0
    %1406 = vmatmul.mubr.f32.gmra.mxu0 %v1216
    %v1407 = vpop.f32.mrf.mxu0
    %v1408 = vadd.f32 %v430, %v1407
    %v1409 = vpop.f32.mrf.mxu0
    %1410 = vmatprep.mubr.f32.mxu0 0.0
    %1411 = vmatmul.mubr.f32.gmra.mxu0 %v1219
    %v1412 = vpop.f32.mrf.mxu0
    %v1413 = vadd.f32 %v430, %v1412
    %v1414 = vpop.f32.mrf.mxu0
    %1415 = vmatprep.mubr.f32.mxu0 0.0
    %1416 = vmatmul.mubr.f32.gmra.mxu0 %v1222
    %v1417 = vpop.f32.mrf.mxu0
    %v1418 = vadd.f32 %v430, %v1417
    %v1419 = vpop.f32.mrf.mxu0
    %1420 = vmatprep.mubr.f32.mxu0 0.0
    %1421 = vmatmul.mubr.f32.gmra.mxu0 %v1225
    %v1422 = vpop.f32.mrf.mxu0
    %v1423 = vadd.f32 %v430, %v1422
    %v1424 = vpop.f32.mrf.mxu0
    %1425 = vmatprep.mubr.f32.mxu0 0.0
    %1426 = vmatmul.mubr.f32.gmra.mxu0 %v1228
    %v1427 = vpop.f32.mrf.mxu0
    %v1428 = vadd.f32 %v430, %v1427
    %v1429 = vpop.f32.mrf.mxu0
    %1430 = vmatprep.mubr.f32.mxu0 0.0
    %1431 = vmatmul.mubr.f32.gmra.mxu0 %v1231
    %v1432 = vpop.f32.mrf.mxu0
    %v1433 = vadd.f32 %v430, %v1432
    %v1434 = vpop.f32.mrf.mxu0
    %1435 = vmatprep.mubr.f32.mxu0 0.0
    %1436 = vmatmul.mubr.f32.gmra.mxu0 %v1234
    %v1437 = vpop.f32.mrf.mxu0
    %v1438 = vadd.f32 %v430, %v1437
    %v1439 = vpop.f32.mrf.mxu0
    %1440 = vmatprep.mubr.f32.mxu0 0.0
    %1441 = vmatmul.mubr.f32.gmra.mxu0 %v1237
    %v1442 = vpop.f32.mrf.mxu0
    %v1443 = vadd.f32 %v430, %v1442
    %v1444 = vpop.f32.mrf.mxu0
    %1445 = vmatprep.mubr.f32.mxu0 0.0
    %1446 = vmatmul.mubr.f32.gmra.mxu0 %v1240
    %v1447 = vpop.f32.mrf.mxu0
    %v1448 = vadd.f32 %v430, %v1447
    %v1449 = vpop.f32.mrf.mxu0
    %1450 = vmatprep.mubr.f32.mxu0 0.0
    %1451 = vmatmul.mubr.f32.gmra.mxu0 %v1243
    %v1452 = vpop.f32.mrf.mxu0
    %v1453 = vadd.f32 %v430, %v1452
    %v1454 = vpop.f32.mrf.mxu0
    %1455 = vmatprep.mubr.f32.mxu0 0.0
    %1456 = vmatmul.mubr.f32.gmra.mxu0 %v1246
    %v1457 = vpop.f32.mrf.mxu0
    %v1458 = vadd.f32 %v430, %v1457
    %v1459 = vpop.f32.mrf.mxu0
    %1460 = vmatprep.mubr.f32.mxu0 0.0
    %1461 = vmatmul.mubr.f32.gmra.mxu0 %v1249
    %v1462 = vpop.f32.mrf.mxu0
    %v1463 = vadd.f32 %v430, %v1462
    %v1464 = vpop.f32.mrf.mxu0
    %1465 = vmatprep.mubr.f32.mxu0 0.0
    %1466 = vmatmul.mubr.f32.gmra.mxu0 %v1252
    %v1467 = vpop.f32.mrf.mxu0
    %v1468 = vadd.f32 %v430, %v1467
    %v1469 = vpop.f32.mrf.mxu0
    %1470 = vmatprep.mubr.f32.mxu0 0.0
    %1471 = vmatmul.mubr.f32.gmra.mxu0 %v1255
    %v1472 = vpop.f32.mrf.mxu0
    %v1473 = vadd.f32 %v430, %v1472
    %v1474 = vpop.f32.mrf.mxu0
    %1475 = vmatprep.mubr.f32.mxu0 0.0
    %1476 = vmatmul.mubr.f32.gmra.mxu0 %v1258
    %v1477 = vpop.f32.mrf.mxu0
    %v1478 = vadd.f32 %v430, %v1477
    %v1479 = vpop.f32.mrf.mxu0
    %1480 = vmatprep.mubr.f32.mxu0 0.0
    %1481 = vmatmul.mubr.f32.gmra.mxu0 %v1261
    %v1482 = vpop.f32.mrf.mxu0
    %v1483 = vadd.f32 %v430, %v1482
    %v1484 = vpop.f32.mrf.mxu0
    %1485 = vmatprep.mubr.f32.mxu0 0.0
    %1486 = vmatmul.mubr.f32.gmra.mxu0 %v1264
    %v1487 = vpop.f32.mrf.mxu0
    %v1488 = vadd.f32 %v430, %v1487
    %v1489 = vpop.f32.mrf.mxu0
    %1490 = vdwg.mxu0
    %v1491 = vmax.f32 %v1333, 0.0
    %v1492 = vmax.f32 %v1338, 0.0
    %v1493 = vmax.f32 %v1343, 0.0
    %v1494 = vmax.f32 %v1348, 0.0
    %v1495 = vmax.f32 %v1353, 0.0
    %v1496 = vmax.f32 %v1358, 0.0
    %v1497 = vmax.f32 %v1363, 0.0
    %v1498 = vmax.f32 %v1368, 0.0
    %v1499 = vmax.f32 %v1373, 0.0
    %v1500 = vmax.f32 %v1378, 0.0
    %v1501 = vmax.f32 %v1383, 0.0
    %v1502 = vmax.f32 %v1388, 0.0
    %v1503 = vmax.f32 %v1393, 0.0
    %v1504 = vmax.f32 %v1398, 0.0
    %v1505 = vmax.f32 %v1403, 0.0
    %v1506 = vmax.f32 %v1408, 0.0
    %v1507 = vmax.f32 %v1413, 0.0
    %v1508 = vmax.f32 %v1418, 0.0
    %v1509 = vmax.f32 %v1423, 0.0
    %v1510 = vmax.f32 %v1428, 0.0
    %v1511 = vmax.f32 %v1433, 0.0
    %v1512 = vmax.f32 %v1438, 0.0
    %v1513 = vmax.f32 %v1443, 0.0
    %v1514 = vmax.f32 %v1448, 0.0
    %v1515 = vmax.f32 %v1453, 0.0
    %v1516 = vmax.f32 %v1458, 0.0
    %v1517 = vmax.f32 %v1463, 0.0
    %v1518 = vmax.f32 %v1468, 0.0
    %v1519 = vmax.f32 %v1473, 0.0
    %v1520 = vmax.f32 %v1478, 0.0
    %v1521 = vmax.f32 %v1483, 0.0
    %v1522 = vmax.f32 %v1488, 0.0
    %v1523 = vld [vmem:[%s2] sm:$0xff]
    %v1524 = vld [vmem:[%s2 + $0x8] sm:$0xff]
    %v1525 = vlaneseq
    %v1526 = vshrl.u32 %v1525, 7
    %v1527 = vsub.s32 3, %v1526
    %v1528 = vrot.slane %v24, %v1527
    %v1529 = vlaneseq
    %v1530 = vshrl.u32 %v1529, 7
    %v1531 = vsub.s32 2, %v1530
    %v1532 = vrot.slane %v24, %v1531
    %v1533 = vmul.f32 %v753, %v1532
    %v1534 = vmul.f32 %v754, %v1532
    %v1535 = vmul.f32 %v755, %v1532
    %v1536 = vmul.f32 %v756, %v1532
    %v1537 = vmul.f32 %v757, %v1532
    %v1538 = vmul.f32 %v758, %v1532
    %v1539 = vmul.f32 %v759, %v1532
    %v1540 = vmul.f32 %v760, %v1532
    %v1541 = vmul.f32 %v761, %v1532
    %v1542 = vmul.f32 %v762, %v1532
    %v1543 = vmul.f32 %v763, %v1532
    %v1544 = vmul.f32 %v764, %v1532
    %v1545 = vmul.f32 %v765, %v1532
    %v1546 = vmul.f32 %v766, %v1532
    %v1547 = vmul.f32 %v767, %v1532
    %v1548 = vmul.f32 %v768, %v1532
    %v1549 = vmul.f32 %v769, %v1532
    %v1550 = vmul.f32 %v770, %v1532
    %v1551 = vmul.f32 %v771, %v1532
    %v1552 = vmul.f32 %v772, %v1532
    %v1553 = vmul.f32 %v773, %v1532
    %v1554 = vmul.f32 %v774, %v1532
    %v1555 = vmul.f32 %v775, %v1532
    %v1556 = vmul.f32 %v776, %v1532
    %v1557 = vmul.f32 %v777, %v1532
    %v1558 = vmul.f32 %v778, %v1532
    %v1559 = vmul.f32 %v779, %v1532
    %v1560 = vmul.f32 %v780, %v1532
    %v1561 = vmul.f32 %v781, %v1532
    %v1562 = vmul.f32 %v782, %v1532
    %v1563 = vmul.f32 %v783, %v1532
    %v1564 = vmul.f32 %v784, %v1532
    %v1565 = vsel %vm431, %v1533, 0.0
    %1566 = vadd.xlane.f32.xlu0 %v1565
    %v1567 = vpop.xlane.xlu0 %1566
    %v1568 = vsel %vm431, %v1534, 0.0
    %1569 = vadd.xlane.f32.xlu0 %v1568
    %v1570 = vpop.xlane.xlu0 %1569
    %v1571 = vsel %vm431, %v1535, 0.0
    %1572 = vadd.xlane.f32.xlu0 %v1571
    %v1573 = vpop.xlane.xlu0 %1572
    %v1574 = vsel %vm431, %v1536, 0.0
    %1575 = vadd.xlane.f32.xlu0 %v1574
    %v1576 = vpop.xlane.xlu0 %1575
    %v1577 = vsel %vm431, %v1537, 0.0
    %1578 = vadd.xlane.f32.xlu0 %v1577
    %v1579 = vpop.xlane.xlu0 %1578
    %v1580 = vsel %vm431, %v1538, 0.0
    %1581 = vadd.xlane.f32.xlu0 %v1580
    %v1582 = vpop.xlane.xlu0 %1581
    %v1583 = vsel %vm431, %v1539, 0.0
    %1584 = vadd.xlane.f32.xlu0 %v1583
    %v1585 = vpop.xlane.xlu0 %1584
    %v1586 = vsel %vm431, %v1540, 0.0
    %1587 = vadd.xlane.f32.xlu0 %v1586
    %v1588 = vpop.xlane.xlu0 %1587
    %v1589 = vsel %vm431, %v1541, 0.0
    %1590 = vadd.xlane.f32.xlu0 %v1589
    %v1591 = vpop.xlane.xlu0 %1590
    %v1592 = vsel %vm431, %v1542, 0.0
    %1593 = vadd.xlane.f32.xlu0 %v1592
    %v1594 = vpop.xlane.xlu0 %1593
    %v1595 = vsel %vm431, %v1543, 0.0
    %1596 = vadd.xlane.f32.xlu0 %v1595
    %v1597 = vpop.xlane.xlu0 %1596
    %v1598 = vsel %vm431, %v1544, 0.0
    %1599 = vadd.xlane.f32.xlu0 %v1598
    %v1600 = vpop.xlane.xlu0 %1599
    %v1601 = vsel %vm431, %v1545, 0.0
    %1602 = vadd.xlane.f32.xlu0 %v1601
    %v1603 = vpop.xlane.xlu0 %1602
    %v1604 = vsel %vm431, %v1546, 0.0
    %1605 = vadd.xlane.f32.xlu0 %v1604
    %v1606 = vpop.xlane.xlu0 %1605
    %v1607 = vsel %vm431, %v1547, 0.0
    %1608 = vadd.xlane.f32.xlu0 %v1607
    %v1609 = vpop.xlane.xlu0 %1608
    %v1610 = vsel %vm431, %v1548, 0.0
    %1611 = vadd.xlane.f32.xlu0 %v1610
    %v1612 = vpop.xlane.xlu0 %1611
    %v1613 = vsel %vm431, %v1549, 0.0
    %1614 = vadd.xlane.f32.xlu0 %v1613
    %v1615 = vpop.xlane.xlu0 %1614
    %v1616 = vsel %vm431, %v1550, 0.0
    %1617 = vadd.xlane.f32.xlu0 %v1616
    %v1618 = vpop.xlane.xlu0 %1617
    %v1619 = vsel %vm431, %v1551, 0.0
    %1620 = vadd.xlane.f32.xlu0 %v1619
    %v1621 = vpop.xlane.xlu0 %1620
    %v1622 = vsel %vm431, %v1552, 0.0
    %1623 = vadd.xlane.f32.xlu0 %v1622
    %v1624 = vpop.xlane.xlu0 %1623
    %v1625 = vsel %vm431, %v1553, 0.0
    %1626 = vadd.xlane.f32.xlu0 %v1625
    %v1627 = vpop.xlane.xlu0 %1626
    %v1628 = vsel %vm431, %v1554, 0.0
    %1629 = vadd.xlane.f32.xlu0 %v1628
    %v1630 = vpop.xlane.xlu0 %1629
    %v1631 = vsel %vm431, %v1555, 0.0
    %1632 = vadd.xlane.f32.xlu0 %v1631
    %v1633 = vpop.xlane.xlu0 %1632
    %v1634 = vsel %vm431, %v1556, 0.0
    %1635 = vadd.xlane.f32.xlu0 %v1634
    %v1636 = vpop.xlane.xlu0 %1635
    %v1637 = vsel %vm431, %v1557, 0.0
    %1638 = vadd.xlane.f32.xlu0 %v1637
    %v1639 = vpop.xlane.xlu0 %1638
    %v1640 = vsel %vm431, %v1558, 0.0
    %1641 = vadd.xlane.f32.xlu0 %v1640
    %v1642 = vpop.xlane.xlu0 %1641
    %v1643 = vsel %vm431, %v1559, 0.0
    %1644 = vadd.xlane.f32.xlu0 %v1643
    %v1645 = vpop.xlane.xlu0 %1644
    %v1646 = vsel %vm431, %v1560, 0.0
    %1647 = vadd.xlane.f32.xlu0 %v1646
    %v1648 = vpop.xlane.xlu0 %1647
    %v1649 = vsel %vm431, %v1561, 0.0
    %1650 = vadd.xlane.f32.xlu0 %v1649
    %v1651 = vpop.xlane.xlu0 %1650
    %v1652 = vsel %vm431, %v1562, 0.0
    %1653 = vadd.xlane.f32.xlu0 %v1652
    %v1654 = vpop.xlane.xlu0 %1653
    %v1655 = vsel %vm431, %v1563, 0.0
    %1656 = vadd.xlane.f32.xlu0 %v1655
    %v1657 = vpop.xlane.xlu0 %1656
    %v1658 = vsel %vm431, %v1564, 0.0
    %1659 = vadd.xlane.f32.xlu0 %v1658
    %v1660 = vpop.xlane.xlu0 %1659
    %v1662 = vrot.slane %v24, 3
    %s1663 = vtos %v1662
    %v1664 = vstv %s1663
    %v1666 = vadd.f32 %v1567, %v1664
    %v1667 = vadd.f32 %v1570, %v1664
    %v1668 = vadd.f32 %v1573, %v1664
    %v1669 = vadd.f32 %v1576, %v1664
    %v1670 = vadd.f32 %v1579, %v1664
    %v1671 = vadd.f32 %v1582, %v1664
    %v1672 = vadd.f32 %v1585, %v1664
    %v1673 = vadd.f32 %v1588, %v1664
    %v1674 = vadd.f32 %v1591, %v1664
    %v1675 = vadd.f32 %v1594, %v1664
    %v1676 = vadd.f32 %v1597, %v1664
    %v1677 = vadd.f32 %v1600, %v1664
    %v1678 = vadd.f32 %v1603, %v1664
    %v1679 = vadd.f32 %v1606, %v1664
    %v1680 = vadd.f32 %v1609, %v1664
    %v1681 = vadd.f32 %v1612, %v1664
    %v1682 = vadd.f32 %v1615, %v1664
    %v1683 = vadd.f32 %v1618, %v1664
    %v1684 = vadd.f32 %v1621, %v1664
    %v1685 = vadd.f32 %v1624, %v1664
    %v1686 = vadd.f32 %v1627, %v1664
    %v1687 = vadd.f32 %v1630, %v1664
    %v1688 = vadd.f32 %v1633, %v1664
    %v1689 = vadd.f32 %v1636, %v1664
    %v1690 = vadd.f32 %v1639, %v1664
    %v1691 = vadd.f32 %v1642, %v1664
    %v1692 = vadd.f32 %v1645, %v1664
    %v1693 = vadd.f32 %v1648, %v1664
    %v1694 = vadd.f32 %v1651, %v1664
    %v1695 = vadd.f32 %v1654, %v1664
    %v1696 = vadd.f32 %v1657, %v1664
    %v1697 = vadd.f32 %v1660, %v1664
    %v1700 = vlaneseq
    %v1701 = vshrl.u32 %v1700, 7
    %v1702 = vsub.s32 0, %v1701
    %v1703 = vrot.slane %v1523, %v1702
    %1705 = vbcast.lane.b32.xlu0 %v1703, 256
    %v1706 = vpop.permute.xlu0 %1705
    %s1708 = sor.u32 256, 8
    %1709 = vbcast.lane.b32.xlu0 %v1703, %s1708
    %v1710 = vpop.permute.xlu0 %1709
    %v1711 = vlaneseq
    %v1712 = vshrl.u32 %v1711, 7
    %v1713 = vsub.s32 1, %v1712
    %v1714 = vrot.slane %v1523, %v1713
    %1716 = vbcast.lane.b32.xlu0 %v1714, 256
    %v1717 = vpop.permute.xlu0 %1716
    %s1719 = sor.u32 256, 8
    %1720 = vbcast.lane.b32.xlu0 %v1714, %s1719
    %v1721 = vpop.permute.xlu0 %1720
    %v1722 = vlaneseq
    %v1723 = vshrl.u32 %v1722, 7
    %v1724 = vsub.s32 2, %v1723
    %v1725 = vrot.slane %v1523, %v1724
    %1727 = vbcast.lane.b32.xlu0 %v1725, 256
    %v1728 = vpop.permute.xlu0 %1727
    %s1730 = sor.u32 256, 8
    %1731 = vbcast.lane.b32.xlu0 %v1725, %s1730
    %v1732 = vpop.permute.xlu0 %1731
    %v1733 = vlaneseq
    %v1734 = vshrl.u32 %v1733, 7
    %v1735 = vsub.s32 3, %v1734
    %v1736 = vrot.slane %v1523, %v1735
    %1738 = vbcast.lane.b32.xlu0 %v1736, 256
    %v1739 = vpop.permute.xlu0 %1738
    %s1741 = sor.u32 256, 8
    %1742 = vbcast.lane.b32.xlu0 %v1736, %s1741
    %v1743 = vpop.permute.xlu0 %1742
    %v1744 = vlaneseq
    %v1745 = vshrl.u32 %v1744, 7
    %v1746 = vsub.s32 4, %v1745
    %v1747 = vrot.slane %v1523, %v1746
    %1749 = vbcast.lane.b32.xlu0 %v1747, 256
    %v1750 = vpop.permute.xlu0 %1749
    %s1752 = sor.u32 256, 8
    %1753 = vbcast.lane.b32.xlu0 %v1747, %s1752
    %v1754 = vpop.permute.xlu0 %1753
    %v1755 = vlaneseq
    %v1756 = vshrl.u32 %v1755, 7
    %v1757 = vsub.s32 5, %v1756
    %v1758 = vrot.slane %v1523, %v1757
    %1760 = vbcast.lane.b32.xlu0 %v1758, 256
    %v1761 = vpop.permute.xlu0 %1760
    %s1763 = sor.u32 256, 8
    %1764 = vbcast.lane.b32.xlu0 %v1758, %s1763
    %v1765 = vpop.permute.xlu0 %1764
    %v1766 = vlaneseq
    %v1767 = vshrl.u32 %v1766, 7
    %v1768 = vsub.s32 6, %v1767
    %v1769 = vrot.slane %v1523, %v1768
    %1771 = vbcast.lane.b32.xlu0 %v1769, 256
    %v1772 = vpop.permute.xlu0 %1771
    %s1774 = sor.u32 256, 8
    %1775 = vbcast.lane.b32.xlu0 %v1769, %s1774
    %v1776 = vpop.permute.xlu0 %1775
    %v1777 = vlaneseq
    %v1778 = vshrl.u32 %v1777, 7
    %v1779 = vsub.s32 7, %v1778
    %v1780 = vrot.slane %v1523, %v1779
    %1782 = vbcast.lane.b32.xlu0 %v1780, 256
    %v1783 = vpop.permute.xlu0 %1782
    %s1785 = sor.u32 256, 8
    %1786 = vbcast.lane.b32.xlu0 %v1780, %s1785
    %v1787 = vpop.permute.xlu0 %1786
    %v1788 = vlaneseq
    %v1789 = vshrl.u32 %v1788, 7
    %v1790 = vsub.s32 0, %v1789
    %v1791 = vrot.slane %v1524, %v1790
    %1793 = vbcast.lane.b32.xlu0 %v1791, 256
    %v1794 = vpop.permute.xlu0 %1793
    %s1796 = sor.u32 256, 8
    %1797 = vbcast.lane.b32.xlu0 %v1791, %s1796
    %v1798 = vpop.permute.xlu0 %1797
    %v1799 = vlaneseq
    %v1800 = vshrl.u32 %v1799, 7
    %v1801 = vsub.s32 1, %v1800
    %v1802 = vrot.slane %v1524, %v1801
    %1804 = vbcast.lane.b32.xlu0 %v1802, 256
    %v1805 = vpop.permute.xlu0 %1804
    %s1807 = sor.u32 256, 8
    %1808 = vbcast.lane.b32.xlu0 %v1802, %s1807
    %v1809 = vpop.permute.xlu0 %1808
    %v1810 = vlaneseq
    %v1811 = vshrl.u32 %v1810, 7
    %v1812 = vsub.s32 2, %v1811
    %v1813 = vrot.slane %v1524, %v1812
    %1815 = vbcast.lane.b32.xlu0 %v1813, 256
    %v1816 = vpop.permute.xlu0 %1815
    %s1818 = sor.u32 256, 8
    %1819 = vbcast.lane.b32.xlu0 %v1813, %s1818
    %v1820 = vpop.permute.xlu0 %1819
    %v1821 = vlaneseq
    %v1822 = vshrl.u32 %v1821, 7
    %v1823 = vsub.s32 3, %v1822
    %v1824 = vrot.slane %v1524, %v1823
    %1826 = vbcast.lane.b32.xlu0 %v1824, 256
    %v1827 = vpop.permute.xlu0 %1826
    %s1829 = sor.u32 256, 8
    %1830 = vbcast.lane.b32.xlu0 %v1824, %s1829
    %v1831 = vpop.permute.xlu0 %1830
    %v1832 = vlaneseq
    %v1833 = vshrl.u32 %v1832, 7
    %v1834 = vsub.s32 4, %v1833
    %v1835 = vrot.slane %v1524, %v1834
    %1837 = vbcast.lane.b32.xlu0 %v1835, 256
    %v1838 = vpop.permute.xlu0 %1837
    %s1840 = sor.u32 256, 8
    %1841 = vbcast.lane.b32.xlu0 %v1835, %s1840
    %v1842 = vpop.permute.xlu0 %1841
    %v1843 = vlaneseq
    %v1844 = vshrl.u32 %v1843, 7
    %v1845 = vsub.s32 5, %v1844
    %v1846 = vrot.slane %v1524, %v1845
    %1848 = vbcast.lane.b32.xlu0 %v1846, 256
    %v1849 = vpop.permute.xlu0 %1848
    %s1851 = sor.u32 256, 8
    %1852 = vbcast.lane.b32.xlu0 %v1846, %s1851
    %v1853 = vpop.permute.xlu0 %1852
    %v1854 = vlaneseq
    %v1855 = vshrl.u32 %v1854, 7
    %v1856 = vsub.s32 6, %v1855
    %v1857 = vrot.slane %v1524, %v1856
    %1859 = vbcast.lane.b32.xlu0 %v1857, 256
    %v1860 = vpop.permute.xlu0 %1859
    %s1862 = sor.u32 256, 8
    %1863 = vbcast.lane.b32.xlu0 %v1857, %s1862
    %v1864 = vpop.permute.xlu0 %1863
    %v1865 = vlaneseq
    %v1866 = vshrl.u32 %v1865, 7
    %v1867 = vsub.s32 7, %v1866
    %v1868 = vrot.slane %v1524, %v1867
    %1870 = vbcast.lane.b32.xlu0 %v1868, 256
    %v1871 = vpop.permute.xlu0 %1870
    %s1873 = sor.u32 256, 8
    %1874 = vbcast.lane.b32.xlu0 %v1868, %s1873
    %v1875 = vpop.permute.xlu0 %1874
    %v1908 = vsub.f32 %v1666, %v1706
    %v1909 = vsub.f32 %v1667, %v1710
    %v1910 = vsub.f32 %v1668, %v1717
    %v1911 = vsub.f32 %v1669, %v1721
    %v1912 = vsub.f32 %v1670, %v1728
    %v1913 = vsub.f32 %v1671, %v1732
    %v1914 = vsub.f32 %v1672, %v1739
    %v1915 = vsub.f32 %v1673, %v1743
    %v1916 = vsub.f32 %v1674, %v1750
    %v1917 = vsub.f32 %v1675, %v1754
    %v1918 = vsub.f32 %v1676, %v1761
    %v1919 = vsub.f32 %v1677, %v1765
    %v1920 = vsub.f32 %v1678, %v1772
    %v1921 = vsub.f32 %v1679, %v1776
    %v1922 = vsub.f32 %v1680, %v1783
    %v1923 = vsub.f32 %v1681, %v1787
    %v1924 = vsub.f32 %v1682, %v1794
    %v1925 = vsub.f32 %v1683, %v1798
    %v1926 = vsub.f32 %v1684, %v1805
    %v1927 = vsub.f32 %v1685, %v1809
    %v1928 = vsub.f32 %v1686, %v1816
    %v1929 = vsub.f32 %v1687, %v1820
    %v1930 = vsub.f32 %v1688, %v1827
    %v1931 = vsub.f32 %v1689, %v1831
    %v1932 = vsub.f32 %v1690, %v1838
    %v1933 = vsub.f32 %v1691, %v1842
    %v1934 = vsub.f32 %v1692, %v1849
    %v1935 = vsub.f32 %v1693, %v1853
    %v1936 = vsub.f32 %v1694, %v1860
    %v1937 = vsub.f32 %v1695, %v1864
    %v1938 = vsub.f32 %v1696, %v1871
    %v1939 = vsub.f32 %v1697, %v1875
    %v1940 = vmul.f32 %v1908, 0.125
    %v1941 = vmul.f32 %v1909, 0.125
    %v1942 = vmul.f32 %v1910, 0.125
    %v1943 = vmul.f32 %v1911, 0.125
    %v1944 = vmul.f32 %v1912, 0.125
    %v1945 = vmul.f32 %v1913, 0.125
    %v1946 = vmul.f32 %v1914, 0.125
    %v1947 = vmul.f32 %v1915, 0.125
    %v1948 = vmul.f32 %v1916, 0.125
    %v1949 = vmul.f32 %v1917, 0.125
    %v1950 = vmul.f32 %v1918, 0.125
    %v1951 = vmul.f32 %v1919, 0.125
    %v1952 = vmul.f32 %v1920, 0.125
    %v1953 = vmul.f32 %v1921, 0.125
    %v1954 = vmul.f32 %v1922, 0.125
    %v1955 = vmul.f32 %v1923, 0.125
    %v1956 = vmul.f32 %v1924, 0.125
    %v1957 = vmul.f32 %v1925, 0.125
    %v1958 = vmul.f32 %v1926, 0.125
    %v1959 = vmul.f32 %v1927, 0.125
    %v1960 = vmul.f32 %v1928, 0.125
    %v1961 = vmul.f32 %v1929, 0.125
    %v1962 = vmul.f32 %v1930, 0.125
    %v1963 = vmul.f32 %v1931, 0.125
    %v1964 = vmul.f32 %v1932, 0.125
    %v1965 = vmul.f32 %v1933, 0.125
    %v1966 = vmul.f32 %v1934, 0.125
    %v1967 = vmul.f32 %v1935, 0.125
    %v1968 = vmul.f32 %v1936, 0.125
    %v1969 = vmul.f32 %v1937, 0.125
    %v1970 = vmul.f32 %v1938, 0.125
    %v1971 = vmul.f32 %v1939, 0.125
    %1973 = vset.pattern.permute.xlu0 0
    %1974 = vperm.xlu0 %1973, %v1940
    %v1975 = vpop.permute.xlu0 %1974
    %1978 = vset.pattern.permute.xlu0 0
    %1979 = vperm.xlu0 %1978, %v1941
    %v1980 = vpop.permute.xlu0 %1979
    %1983 = vset.pattern.permute.xlu0 0
    %1984 = vperm.xlu0 %1983, %v1942
    %v1985 = vpop.permute.xlu0 %1984
    %1988 = vset.pattern.permute.xlu0 0
    %1989 = vperm.xlu0 %1988, %v1943
    %v1990 = vpop.permute.xlu0 %1989
    %1993 = vset.pattern.permute.xlu0 0
    %1994 = vperm.xlu0 %1993, %v1944
    %v1995 = vpop.permute.xlu0 %1994
    %1998 = vset.pattern.permute.xlu0 0
    %1999 = vperm.xlu0 %1998, %v1945
    %v2000 = vpop.permute.xlu0 %1999
    %2003 = vset.pattern.permute.xlu0 0
    %2004 = vperm.xlu0 %2003, %v1946
    %v2005 = vpop.permute.xlu0 %2004
    %2008 = vset.pattern.permute.xlu0 0
    %2009 = vperm.xlu0 %2008, %v1947
    %v2010 = vpop.permute.xlu0 %2009
    %2013 = vset.pattern.permute.xlu0 0
    %2014 = vperm.xlu0 %2013, %v1948
    %v2015 = vpop.permute.xlu0 %2014
    %2018 = vset.pattern.permute.xlu0 0
    %2019 = vperm.xlu0 %2018, %v1949
    %v2020 = vpop.permute.xlu0 %2019
    %2023 = vset.pattern.permute.xlu0 0
    %2024 = vperm.xlu0 %2023, %v1950
    %v2025 = vpop.permute.xlu0 %2024
    %2028 = vset.pattern.permute.xlu0 0
    %2029 = vperm.xlu0 %2028, %v1951
    %v2030 = vpop.permute.xlu0 %2029
    %2033 = vset.pattern.permute.xlu0 0
    %2034 = vperm.xlu0 %2033, %v1952
    %v2035 = vpop.permute.xlu0 %2034
    %2038 = vset.pattern.permute.xlu0 0
    %2039 = vperm.xlu0 %2038, %v1953
    %v2040 = vpop.permute.xlu0 %2039
    %2043 = vset.pattern.permute.xlu0 0
    %2044 = vperm.xlu0 %2043, %v1954
    %v2045 = vpop.permute.xlu0 %2044
    %2048 = vset.pattern.permute.xlu0 0
    %2049 = vperm.xlu0 %2048, %v1955
    %v2050 = vpop.permute.xlu0 %2049
    %2053 = vset.pattern.permute.xlu0 0
    %2054 = vperm.xlu0 %2053, %v1956
    %v2055 = vpop.permute.xlu0 %2054
    %2058 = vset.pattern.permute.xlu0 0
    %2059 = vperm.xlu0 %2058, %v1957
    %v2060 = vpop.permute.xlu0 %2059
    %2063 = vset.pattern.permute.xlu0 0
    %2064 = vperm.xlu0 %2063, %v1958
    %v2065 = vpop.permute.xlu0 %2064
    %2068 = vset.pattern.permute.xlu0 0
    %2069 = vperm.xlu0 %2068, %v1959
    %v2070 = vpop.permute.xlu0 %2069
    %2073 = vset.pattern.permute.xlu0 0
    %2074 = vperm.xlu0 %2073, %v1960
    %v2075 = vpop.permute.xlu0 %2074
    %2078 = vset.pattern.permute.xlu0 0
    %2079 = vperm.xlu0 %2078, %v1961
    %v2080 = vpop.permute.xlu0 %2079
    %2083 = vset.pattern.permute.xlu0 0
    %2084 = vperm.xlu0 %2083, %v1962
    %v2085 = vpop.permute.xlu0 %2084
    %2088 = vset.pattern.permute.xlu0 0
    %2089 = vperm.xlu0 %2088, %v1963
    %v2090 = vpop.permute.xlu0 %2089
    %2093 = vset.pattern.permute.xlu0 0
    %2094 = vperm.xlu0 %2093, %v1964
    %v2095 = vpop.permute.xlu0 %2094
    %2098 = vset.pattern.permute.xlu0 0
    %2099 = vperm.xlu0 %2098, %v1965
    %v2100 = vpop.permute.xlu0 %2099
    %2103 = vset.pattern.permute.xlu0 0
    %2104 = vperm.xlu0 %2103, %v1966
    %v2105 = vpop.permute.xlu0 %2104
    %2108 = vset.pattern.permute.xlu0 0
    %2109 = vperm.xlu0 %2108, %v1967
    %v2110 = vpop.permute.xlu0 %2109
    %2113 = vset.pattern.permute.xlu0 0
    %2114 = vperm.xlu0 %2113, %v1968
    %v2115 = vpop.permute.xlu0 %2114
    %2118 = vset.pattern.permute.xlu0 0
    %2119 = vperm.xlu0 %2118, %v1969
    %v2120 = vpop.permute.xlu0 %2119
    %2123 = vset.pattern.permute.xlu0 0
    %2124 = vperm.xlu0 %2123, %v1970
    %v2125 = vpop.permute.xlu0 %2124
    %2128 = vset.pattern.permute.xlu0 0
    %2129 = vperm.xlu0 %2128, %v1971
    %v2130 = vpop.permute.xlu0 %2129
    %v2132 = vmul.f32 %v753, %v1975
    %v2133 = vmul.f32 %v754, %v1980
    %v2134 = vmul.f32 %v755, %v1985
    %v2135 = vmul.f32 %v756, %v1990
    %v2136 = vmul.f32 %v757, %v1995
    %v2137 = vmul.f32 %v758, %v2000
    %v2138 = vmul.f32 %v759, %v2005
    %v2139 = vmul.f32 %v760, %v2010
    %v2140 = vmul.f32 %v761, %v2015
    %v2141 = vmul.f32 %v762, %v2020
    %v2142 = vmul.f32 %v763, %v2025
    %v2143 = vmul.f32 %v764, %v2030
    %v2144 = vmul.f32 %v765, %v2035
    %v2145 = vmul.f32 %v766, %v2040
    %v2146 = vmul.f32 %v767, %v2045
    %v2147 = vmul.f32 %v768, %v2050
    %v2148 = vmul.f32 %v769, %v2055
    %v2149 = vmul.f32 %v770, %v2060
    %v2150 = vmul.f32 %v771, %v2065
    %v2151 = vmul.f32 %v772, %v2070
    %v2152 = vmul.f32 %v773, %v2075
    %v2153 = vmul.f32 %v774, %v2080
    %v2154 = vmul.f32 %v775, %v2085
    %v2155 = vmul.f32 %v776, %v2090
    %v2156 = vmul.f32 %v777, %v2095
    %v2157 = vmul.f32 %v778, %v2100
    %v2158 = vmul.f32 %v779, %v2105
    %v2159 = vmul.f32 %v780, %v2110
    %v2160 = vmul.f32 %v781, %v2115
    %v2161 = vmul.f32 %v782, %v2120
    %v2162 = vmul.f32 %v783, %v2125
    %v2163 = vmul.f32 %v784, %v2130
    %v2164 = vsel %vm431, %v2132, 0.0
    %v2165 = vsel %vm431, %v2133, 0.0
    %v2166 = vadd.f32 %v2164, %v2165
    %v2167 = vrot.slane %v2166, 4
    %v2168 = vadd.f32 %v2166, %v2167
    %v2169 = vrot.slane %v2168, 2
    %v2170 = vadd.f32 %v2168, %v2169
    %v2171 = vrot.slane %v2170, 1
    %v2172 = vadd.f32 %v2170, %v2171
    %v2173 = vsel %vm431, %v2134, 0.0
    %v2174 = vsel %vm431, %v2135, 0.0
    %v2175 = vadd.f32 %v2173, %v2174
    %v2176 = vrot.slane %v2175, 4
    %v2177 = vadd.f32 %v2175, %v2176
    %v2178 = vrot.slane %v2177, 2
    %v2179 = vadd.f32 %v2177, %v2178
    %v2180 = vrot.slane %v2179, 1
    %v2181 = vadd.f32 %v2179, %v2180
    %v2182 = vsel %vm431, %v2136, 0.0
    %v2183 = vsel %vm431, %v2137, 0.0
    %v2184 = vadd.f32 %v2182, %v2183
    %v2185 = vrot.slane %v2184, 4
    %v2186 = vadd.f32 %v2184, %v2185
    %v2187 = vrot.slane %v2186, 2
    %v2188 = vadd.f32 %v2186, %v2187
    %v2189 = vrot.slane %v2188, 1
    %v2190 = vadd.f32 %v2188, %v2189
    %v2191 = vsel %vm431, %v2138, 0.0
    %v2192 = vsel %vm431, %v2139, 0.0
    %v2193 = vadd.f32 %v2191, %v2192
    %v2194 = vrot.slane %v2193, 4
    %v2195 = vadd.f32 %v2193, %v2194
    %v2196 = vrot.slane %v2195, 2
    %v2197 = vadd.f32 %v2195, %v2196
    %v2198 = vrot.slane %v2197, 1
    %v2199 = vadd.f32 %v2197, %v2198
    %v2200 = vsel %vm431, %v2140, 0.0
    %v2201 = vsel %vm431, %v2141, 0.0
    %v2202 = vadd.f32 %v2200, %v2201
    %v2203 = vrot.slane %v2202, 4
    %v2204 = vadd.f32 %v2202, %v2203
    %v2205 = vrot.slane %v2204, 2
    %v2206 = vadd.f32 %v2204, %v2205
    %v2207 = vrot.slane %v2206, 1
    %v2208 = vadd.f32 %v2206, %v2207
    %v2209 = vsel %vm431, %v2142, 0.0
    %v2210 = vsel %vm431, %v2143, 0.0
    %v2211 = vadd.f32 %v2209, %v2210
    %v2212 = vrot.slane %v2211, 4
    %v2213 = vadd.f32 %v2211, %v2212
    %v2214 = vrot.slane %v2213, 2
    %v2215 = vadd.f32 %v2213, %v2214
    %v2216 = vrot.slane %v2215, 1
    %v2217 = vadd.f32 %v2215, %v2216
    %v2218 = vsel %vm431, %v2144, 0.0
    %v2219 = vsel %vm431, %v2145, 0.0
    %v2220 = vadd.f32 %v2218, %v2219
    %v2221 = vrot.slane %v2220, 4
    %v2222 = vadd.f32 %v2220, %v2221
    %v2223 = vrot.slane %v2222, 2
    %v2224 = vadd.f32 %v2222, %v2223
    %v2225 = vrot.slane %v2224, 1
    %v2226 = vadd.f32 %v2224, %v2225
    %v2227 = vsel %vm431, %v2146, 0.0
    %v2228 = vsel %vm431, %v2147, 0.0
    %v2229 = vadd.f32 %v2227, %v2228
    %v2230 = vrot.slane %v2229, 4
    %v2231 = vadd.f32 %v2229, %v2230
    %v2232 = vrot.slane %v2231, 2
    %v2233 = vadd.f32 %v2231, %v2232
    %v2234 = vrot.slane %v2233, 1
    %v2235 = vadd.f32 %v2233, %v2234
    %v2236 = vsel %vm431, %v2148, 0.0
    %v2237 = vsel %vm431, %v2149, 0.0
    %v2238 = vadd.f32 %v2236, %v2237
    %v2239 = vrot.slane %v2238, 4
    %v2240 = vadd.f32 %v2238, %v2239
    %v2241 = vrot.slane %v2240, 2
    %v2242 = vadd.f32 %v2240, %v2241
    %v2243 = vrot.slane %v2242, 1
    %v2244 = vadd.f32 %v2242, %v2243
    %v2245 = vsel %vm431, %v2150, 0.0
    %v2246 = vsel %vm431, %v2151, 0.0
    %v2247 = vadd.f32 %v2245, %v2246
    %v2248 = vrot.slane %v2247, 4
    %v2249 = vadd.f32 %v2247, %v2248
    %v2250 = vrot.slane %v2249, 2
    %v2251 = vadd.f32 %v2249, %v2250
    %v2252 = vrot.slane %v2251, 1
    %v2253 = vadd.f32 %v2251, %v2252
    %v2254 = vsel %vm431, %v2152, 0.0
    %v2255 = vsel %vm431, %v2153, 0.0
    %v2256 = vadd.f32 %v2254, %v2255
    %v2257 = vrot.slane %v2256, 4
    %v2258 = vadd.f32 %v2256, %v2257
    %v2259 = vrot.slane %v2258, 2
    %v2260 = vadd.f32 %v2258, %v2259
    %v2261 = vrot.slane %v2260, 1
    %v2262 = vadd.f32 %v2260, %v2261
    %v2263 = vsel %vm431, %v2154, 0.0
    %v2264 = vsel %vm431, %v2155, 0.0
    %v2265 = vadd.f32 %v2263, %v2264
    %v2266 = vrot.slane %v2265, 4
    %v2267 = vadd.f32 %v2265, %v2266
    %v2268 = vrot.slane %v2267, 2
    %v2269 = vadd.f32 %v2267, %v2268
    %v2270 = vrot.slane %v2269, 1
    %v2271 = vadd.f32 %v2269, %v2270
    %v2272 = vsel %vm431, %v2156, 0.0
    %v2273 = vsel %vm431, %v2157, 0.0
    %v2274 = vadd.f32 %v2272, %v2273
    %v2275 = vrot.slane %v2274, 4
    %v2276 = vadd.f32 %v2274, %v2275
    %v2277 = vrot.slane %v2276, 2
    %v2278 = vadd.f32 %v2276, %v2277
    %v2279 = vrot.slane %v2278, 1
    %v2280 = vadd.f32 %v2278, %v2279
    %v2281 = vsel %vm431, %v2158, 0.0
    %v2282 = vsel %vm431, %v2159, 0.0
    %v2283 = vadd.f32 %v2281, %v2282
    %v2284 = vrot.slane %v2283, 4
    %v2285 = vadd.f32 %v2283, %v2284
    %v2286 = vrot.slane %v2285, 2
    %v2287 = vadd.f32 %v2285, %v2286
    %v2288 = vrot.slane %v2287, 1
    %v2289 = vadd.f32 %v2287, %v2288
    %v2290 = vsel %vm431, %v2160, 0.0
    %v2291 = vsel %vm431, %v2161, 0.0
    %v2292 = vadd.f32 %v2290, %v2291
    %v2293 = vrot.slane %v2292, 4
    %v2294 = vadd.f32 %v2292, %v2293
    %v2295 = vrot.slane %v2294, 2
    %v2296 = vadd.f32 %v2294, %v2295
    %v2297 = vrot.slane %v2296, 1
    %v2298 = vadd.f32 %v2296, %v2297
    %v2299 = vsel %vm431, %v2162, 0.0
    %v2300 = vsel %vm431, %v2163, 0.0
    %v2301 = vadd.f32 %v2299, %v2300
    %v2302 = vrot.slane %v2301, 4
    %v2303 = vadd.f32 %v2301, %v2302
    %v2304 = vrot.slane %v2303, 2
    %v2305 = vadd.f32 %v2303, %v2304
    %v2306 = vrot.slane %v2305, 1
    %v2307 = vadd.f32 %v2305, %v2306
    %v2308 = vlaneseq
    %v2309 = vand.u32 %v2308, 127
    %v2310 = vlaneseq
    %v2311 = vshrl.u32 %v2310, 7
    %v2312 = vsub.s32 %v2309, %v2311
    %v2313 = vrot.slane %v1975, %v2312
    %v2314 = vadd.s32 %v2309, 4294967288
    %v2315 = vlaneseq
    %v2316 = vshrl.u32 %v2315, 7
    %v2317 = vsub.s32 %v2314, %v2316
    %v2318 = vrot.slane %v1980, %v2317
    %vm2319 = vcmask 130112
    %v2320 = vsel %vm2319, %v2318, %v2313
    %v2321 = vlaneseq
    %v2322 = vshrl.u32 %v2321, 7
    %v2323 = vsub.s32 %v2309, %v2322
    %v2324 = vrot.slane %v1985, %v2323
    %v2325 = vlaneseq
    %v2326 = vshrl.u32 %v2325, 7
    %v2327 = vsub.s32 %v2314, %v2326
    %v2328 = vrot.slane %v1990, %v2327
    %v2329 = vsel %vm2319, %v2328, %v2324
    %v2330 = vlaneseq
    %v2331 = vshrl.u32 %v2330, 7
    %v2332 = vsub.s32 %v2309, %v2331
    %v2333 = vrot.slane %v1995, %v2332
    %v2334 = vlaneseq
    %v2335 = vshrl.u32 %v2334, 7
    %v2336 = vsub.s32 %v2314, %v2335
    %v2337 = vrot.slane %v2000, %v2336
    %v2338 = vsel %vm2319, %v2337, %v2333
    %v2339 = vlaneseq
    %v2340 = vshrl.u32 %v2339, 7
    %v2341 = vsub.s32 %v2309, %v2340
    %v2342 = vrot.slane %v2005, %v2341
    %v2343 = vlaneseq
    %v2344 = vshrl.u32 %v2343, 7
    %v2345 = vsub.s32 %v2314, %v2344
    %v2346 = vrot.slane %v2010, %v2345
    %v2347 = vsel %vm2319, %v2346, %v2342
    %v2348 = vlaneseq
    %v2349 = vshrl.u32 %v2348, 7
    %v2350 = vsub.s32 %v2309, %v2349
    %v2351 = vrot.slane %v2015, %v2350
    %v2352 = vlaneseq
    %v2353 = vshrl.u32 %v2352, 7
    %v2354 = vsub.s32 %v2314, %v2353
    %v2355 = vrot.slane %v2020, %v2354
    %v2356 = vsel %vm2319, %v2355, %v2351
    %v2357 = vlaneseq
    %v2358 = vshrl.u32 %v2357, 7
    %v2359 = vsub.s32 %v2309, %v2358
    %v2360 = vrot.slane %v2025, %v2359
    %v2361 = vlaneseq
    %v2362 = vshrl.u32 %v2361, 7
    %v2363 = vsub.s32 %v2314, %v2362
    %v2364 = vrot.slane %v2030, %v2363
    %v2365 = vsel %vm2319, %v2364, %v2360
    %v2366 = vlaneseq
    %v2367 = vshrl.u32 %v2366, 7
    %v2368 = vsub.s32 %v2309, %v2367
    %v2369 = vrot.slane %v2035, %v2368
    %v2370 = vlaneseq
    %v2371 = vshrl.u32 %v2370, 7
    %v2372 = vsub.s32 %v2314, %v2371
    %v2373 = vrot.slane %v2040, %v2372
    %v2374 = vsel %vm2319, %v2373, %v2369
    %v2375 = vlaneseq
    %v2376 = vshrl.u32 %v2375, 7
    %v2377 = vsub.s32 %v2309, %v2376
    %v2378 = vrot.slane %v2045, %v2377
    %v2379 = vlaneseq
    %v2380 = vshrl.u32 %v2379, 7
    %v2381 = vsub.s32 %v2314, %v2380
    %v2382 = vrot.slane %v2050, %v2381
    %v2383 = vsel %vm2319, %v2382, %v2378
    %v2384 = vlaneseq
    %v2385 = vshrl.u32 %v2384, 7
    %v2386 = vsub.s32 %v2309, %v2385
    %v2387 = vrot.slane %v2055, %v2386
    %v2388 = vlaneseq
    %v2389 = vshrl.u32 %v2388, 7
    %v2390 = vsub.s32 %v2314, %v2389
    %v2391 = vrot.slane %v2060, %v2390
    %v2392 = vsel %vm2319, %v2391, %v2387
    %v2393 = vlaneseq
    %v2394 = vshrl.u32 %v2393, 7
    %v2395 = vsub.s32 %v2309, %v2394
    %v2396 = vrot.slane %v2065, %v2395
    %v2397 = vlaneseq
    %v2398 = vshrl.u32 %v2397, 7
    %v2399 = vsub.s32 %v2314, %v2398
    %v2400 = vrot.slane %v2070, %v2399
    %v2401 = vsel %vm2319, %v2400, %v2396
    %v2402 = vlaneseq
    %v2403 = vshrl.u32 %v2402, 7
    %v2404 = vsub.s32 %v2309, %v2403
    %v2405 = vrot.slane %v2075, %v2404
    %v2406 = vlaneseq
    %v2407 = vshrl.u32 %v2406, 7
    %v2408 = vsub.s32 %v2314, %v2407
    %v2409 = vrot.slane %v2080, %v2408
    %v2410 = vsel %vm2319, %v2409, %v2405
    %v2411 = vlaneseq
    %v2412 = vshrl.u32 %v2411, 7
    %v2413 = vsub.s32 %v2309, %v2412
    %v2414 = vrot.slane %v2085, %v2413
    %v2415 = vlaneseq
    %v2416 = vshrl.u32 %v2415, 7
    %v2417 = vsub.s32 %v2314, %v2416
    %v2418 = vrot.slane %v2090, %v2417
    %v2419 = vsel %vm2319, %v2418, %v2414
    %v2420 = vlaneseq
    %v2421 = vshrl.u32 %v2420, 7
    %v2422 = vsub.s32 %v2309, %v2421
    %v2423 = vrot.slane %v2095, %v2422
    %v2424 = vlaneseq
    %v2425 = vshrl.u32 %v2424, 7
    %v2426 = vsub.s32 %v2314, %v2425
    %v2427 = vrot.slane %v2100, %v2426
    %v2428 = vsel %vm2319, %v2427, %v2423
    %v2429 = vlaneseq
    %v2430 = vshrl.u32 %v2429, 7
    %v2431 = vsub.s32 %v2309, %v2430
    %v2432 = vrot.slane %v2105, %v2431
    %v2433 = vlaneseq
    %v2434 = vshrl.u32 %v2433, 7
    %v2435 = vsub.s32 %v2314, %v2434
    %v2436 = vrot.slane %v2110, %v2435
    %v2437 = vsel %vm2319, %v2436, %v2432
    %v2438 = vlaneseq
    %v2439 = vshrl.u32 %v2438, 7
    %v2440 = vsub.s32 %v2309, %v2439
    %v2441 = vrot.slane %v2115, %v2440
    %v2442 = vlaneseq
    %v2443 = vshrl.u32 %v2442, 7
    %v2444 = vsub.s32 %v2314, %v2443
    %v2445 = vrot.slane %v2120, %v2444
    %v2446 = vsel %vm2319, %v2445, %v2441
    %v2447 = vlaneseq
    %v2448 = vshrl.u32 %v2447, 7
    %v2449 = vsub.s32 %v2309, %v2448
    %v2450 = vrot.slane %v2125, %v2449
    %v2451 = vlaneseq
    %v2452 = vshrl.u32 %v2451, 7
    %v2453 = vsub.s32 %v2314, %v2452
    %v2454 = vrot.slane %v2130, %v2453
    %v2455 = vsel %vm2319, %v2454, %v2450
    %vm2456 = vcmask 1041409
    %v2457 = vsel %vm2456, %v2329, %v2320
    %vm2458 = vcmask 1042434
    %v2459 = vsel %vm2458, %v2338, %v2457
    %vm2460 = vcmask 1043459
    %v2461 = vsel %vm2460, %v2347, %v2459
    %vm2462 = vcmask 1044484
    %v2463 = vsel %vm2462, %v2356, %v2461
    %vm2464 = vcmask 1045509
    %v2465 = vsel %vm2464, %v2365, %v2463
    %vm2466 = vcmask 1046534
    %v2467 = vsel %vm2466, %v2374, %v2465
    %vm2468 = vcmask 1047559
    %v2469 = vsel %vm2468, %v2383, %v2467
    %v2470 = vsel %vm2456, %v2401, %v2392
    %v2471 = vsel %vm2458, %v2410, %v2470
    %v2472 = vsel %vm2460, %v2419, %v2471
    %v2473 = vsel %vm2462, %v2428, %v2472
    %v2474 = vsel %vm2464, %v2437, %v2473
    %v2475 = vsel %vm2466, %v2446, %v2474
    %v2476 = vsel %vm2468, %v2455, %v2475
    %vm2479 = vcmask 130048
    %v2480 = vsel %vm2479, %v2469, 0.0
    %2481 = vadd.xlane.f32.xlu0 %v2480
    %v2482 = vpop.xlane.xlu0 %2481
    %v2483 = vsel %vm2479, %v2476, 0.0
    %2484 = vadd.xlane.f32.xlu0 %v2483
    %v2485 = vpop.xlane.xlu0 %2484
    %v2486 = vmul.f32 %v2172, 0.01
    %v2487 = vmul.f32 %v2181, 0.01
    %v2488 = vmul.f32 %v2190, 0.01
    %v2489 = vmul.f32 %v2199, 0.01
    %v2490 = vmul.f32 %v2208, 0.01
    %v2491 = vmul.f32 %v2217, 0.01
    %v2492 = vmul.f32 %v2226, 0.01
    %v2493 = vmul.f32 %v2235, 0.01
    %v2494 = vmul.f32 %v2244, 0.01
    %v2495 = vmul.f32 %v2253, 0.01
    %v2496 = vmul.f32 %v2262, 0.01
    %v2497 = vmul.f32 %v2271, 0.01
    %v2498 = vmul.f32 %v2280, 0.01
    %v2499 = vmul.f32 %v2289, 0.01
    %v2500 = vmul.f32 %v2298, 0.01
    %v2501 = vmul.f32 %v2307, 0.01
    %v2502 = vsub.f32 %v24, %v2486
    %v2503 = vsub.f32 %v24, %v2487
    %v2504 = vsub.f32 %v24, %v2488
    %v2505 = vsub.f32 %v24, %v2489
    %v2506 = vsub.f32 %v24, %v2490
    %v2507 = vsub.f32 %v24, %v2491
    %v2508 = vsub.f32 %v24, %v2492
    %v2509 = vsub.f32 %v24, %v2493
    %v2510 = vsub.f32 %v24, %v2494
    %v2511 = vsub.f32 %v24, %v2495
    %v2512 = vsub.f32 %v24, %v2496
    %v2513 = vsub.f32 %v24, %v2497
    %v2514 = vsub.f32 %v24, %v2498
    %v2515 = vsub.f32 %v24, %v2499
    %v2516 = vsub.f32 %v24, %v2500
    %v2517 = vsub.f32 %v24, %v2501
    %v2518 = vmul.f32 %v2482, 0.01
    %v2519 = vmul.f32 %v2485, 0.01
    %v2520 = vsub.f32 %v1528, %v2518
    %v2521 = vsub.f32 %v1528, %v2519
    %v2522 = vlaneseq
    %v2523 = vshrl.u32 %v2522, 7
    %v2524 = vsub.s32 2, %v2523
    %v2525 = vrot.slane %v2502, %v2524
    %v2526 = vlaneseq
    %v2527 = vshrl.u32 %v2526, 7
    %v2528 = vsub.s32 2, %v2527
    %v2529 = vrot.slane %v2503, %v2528
    %v2530 = vlaneseq
    %v2531 = vshrl.u32 %v2530, 7
    %v2532 = vsub.s32 2, %v2531
    %v2533 = vrot.slane %v2504, %v2532
    %v2534 = vlaneseq
    %v2535 = vshrl.u32 %v2534, 7
    %v2536 = vsub.s32 2, %v2535
    %v2537 = vrot.slane %v2505, %v2536
    %v2538 = vlaneseq
    %v2539 = vshrl.u32 %v2538, 7
    %v2540 = vsub.s32 2, %v2539
    %v2541 = vrot.slane %v2506, %v2540
    %v2542 = vlaneseq
    %v2543 = vshrl.u32 %v2542, 7
    %v2544 = vsub.s32 2, %v2543
    %v2545 = vrot.slane %v2507, %v2544
    %v2546 = vlaneseq
    %v2547 = vshrl.u32 %v2546, 7
    %v2548 = vsub.s32 2, %v2547
    %v2549 = vrot.slane %v2508, %v2548
    %v2550 = vlaneseq
    %v2551 = vshrl.u32 %v2550, 7
    %v2552 = vsub.s32 2, %v2551
    %v2553 = vrot.slane %v2509, %v2552
    %v2554 = vlaneseq
    %v2555 = vshrl.u32 %v2554, 7
    %v2556 = vsub.s32 2, %v2555
    %v2557 = vrot.slane %v2510, %v2556
    %v2558 = vlaneseq
    %v2559 = vshrl.u32 %v2558, 7
    %v2560 = vsub.s32 2, %v2559
    %v2561 = vrot.slane %v2511, %v2560
    %v2562 = vlaneseq
    %v2563 = vshrl.u32 %v2562, 7
    %v2564 = vsub.s32 2, %v2563
    %v2565 = vrot.slane %v2512, %v2564
    %v2566 = vlaneseq
    %v2567 = vshrl.u32 %v2566, 7
    %v2568 = vsub.s32 2, %v2567
    %v2569 = vrot.slane %v2513, %v2568
    %v2570 = vlaneseq
    %v2571 = vshrl.u32 %v2570, 7
    %v2572 = vsub.s32 2, %v2571
    %v2573 = vrot.slane %v2514, %v2572
    %v2574 = vlaneseq
    %v2575 = vshrl.u32 %v2574, 7
    %v2576 = vsub.s32 2, %v2575
    %v2577 = vrot.slane %v2515, %v2576
    %v2578 = vlaneseq
    %v2579 = vshrl.u32 %v2578, 7
    %v2580 = vsub.s32 2, %v2579
    %v2581 = vrot.slane %v2516, %v2580
    %v2582 = vlaneseq
    %v2583 = vshrl.u32 %v2582, 7
    %v2584 = vsub.s32 2, %v2583
    %v2585 = vrot.slane %v2517, %v2584
    %v2586 = vmul.f32 %v753, %v2525
    %v2587 = vmul.f32 %v754, %v2525
    %v2588 = vmul.f32 %v755, %v2529
    %v2589 = vmul.f32 %v756, %v2529
    %v2590 = vmul.f32 %v757, %v2533
    %v2591 = vmul.f32 %v758, %v2533
    %v2592 = vmul.f32 %v759, %v2537
    %v2593 = vmul.f32 %v760, %v2537
    %v2594 = vmul.f32 %v761, %v2541
    %v2595 = vmul.f32 %v762, %v2541
    %v2596 = vmul.f32 %v763, %v2545
    %v2597 = vmul.f32 %v764, %v2545
    %v2598 = vmul.f32 %v765, %v2549
    %v2599 = vmul.f32 %v766, %v2549
    %v2600 = vmul.f32 %v767, %v2553
    %v2601 = vmul.f32 %v768, %v2553
    %v2602 = vmul.f32 %v769, %v2557
    %v2603 = vmul.f32 %v770, %v2557
    %v2604 = vmul.f32 %v771, %v2561
    %v2605 = vmul.f32 %v772, %v2561
    %v2606 = vmul.f32 %v773, %v2565
    %v2607 = vmul.f32 %v774, %v2565
    %v2608 = vmul.f32 %v775, %v2569
    %v2609 = vmul.f32 %v776, %v2569
    %v2610 = vmul.f32 %v777, %v2573
    %v2611 = vmul.f32 %v778, %v2573
    %v2612 = vmul.f32 %v779, %v2577
    %v2613 = vmul.f32 %v780, %v2577
    %v2614 = vmul.f32 %v781, %v2581
    %v2615 = vmul.f32 %v782, %v2581
    %v2616 = vmul.f32 %v783, %v2585
    %v2617 = vmul.f32 %v784, %v2585
    %v2618 = vsel %vm431, %v2586, 0.0
    %2619 = vadd.xlane.f32.xlu0 %v2618
    %v2620 = vpop.xlane.xlu0 %2619
    %v2621 = vsel %vm431, %v2587, 0.0
    %2622 = vadd.xlane.f32.xlu0 %v2621
    %v2623 = vpop.xlane.xlu0 %2622
    %v2624 = vsel %vm431, %v2588, 0.0
    %2625 = vadd.xlane.f32.xlu0 %v2624
    %v2626 = vpop.xlane.xlu0 %2625
    %v2627 = vsel %vm431, %v2589, 0.0
    %2628 = vadd.xlane.f32.xlu0 %v2627
    %v2629 = vpop.xlane.xlu0 %2628
    %v2630 = vsel %vm431, %v2590, 0.0
    %2631 = vadd.xlane.f32.xlu0 %v2630
    %v2632 = vpop.xlane.xlu0 %2631
    %v2633 = vsel %vm431, %v2591, 0.0
    %2634 = vadd.xlane.f32.xlu0 %v2633
    %v2635 = vpop.xlane.xlu0 %2634
    %v2636 = vsel %vm431, %v2592, 0.0
    %2637 = vadd.xlane.f32.xlu0 %v2636
    %v2638 = vpop.xlane.xlu0 %2637
    %v2639 = vsel %vm431, %v2593, 0.0
    %2640 = vadd.xlane.f32.xlu0 %v2639
    %v2641 = vpop.xlane.xlu0 %2640
    %v2642 = vsel %vm431, %v2594, 0.0
    %2643 = vadd.xlane.f32.xlu0 %v2642
    %v2644 = vpop.xlane.xlu0 %2643
    %v2645 = vsel %vm431, %v2595, 0.0
    %2646 = vadd.xlane.f32.xlu0 %v2645
    %v2647 = vpop.xlane.xlu0 %2646
    %v2648 = vsel %vm431, %v2596, 0.0
    %2649 = vadd.xlane.f32.xlu0 %v2648
    %v2650 = vpop.xlane.xlu0 %2649
    %v2651 = vsel %vm431, %v2597, 0.0
    %2652 = vadd.xlane.f32.xlu0 %v2651
    %v2653 = vpop.xlane.xlu0 %2652
    %v2654 = vsel %vm431, %v2598, 0.0
    %2655 = vadd.xlane.f32.xlu0 %v2654
    %v2656 = vpop.xlane.xlu0 %2655
    %v2657 = vsel %vm431, %v2599, 0.0
    %2658 = vadd.xlane.f32.xlu0 %v2657
    %v2659 = vpop.xlane.xlu0 %2658
    %v2660 = vsel %vm431, %v2600, 0.0
    %2661 = vadd.xlane.f32.xlu0 %v2660
    %v2662 = vpop.xlane.xlu0 %2661
    %v2663 = vsel %vm431, %v2601, 0.0
    %2664 = vadd.xlane.f32.xlu0 %v2663
    %v2665 = vpop.xlane.xlu0 %2664
    %v2666 = vsel %vm431, %v2602, 0.0
    %2667 = vadd.xlane.f32.xlu0 %v2666
    %v2668 = vpop.xlane.xlu0 %2667
    %v2669 = vsel %vm431, %v2603, 0.0
    %2670 = vadd.xlane.f32.xlu0 %v2669
    %v2671 = vpop.xlane.xlu0 %2670
    %v2672 = vsel %vm431, %v2604, 0.0
    %2673 = vadd.xlane.f32.xlu0 %v2672
    %v2674 = vpop.xlane.xlu0 %2673
    %v2675 = vsel %vm431, %v2605, 0.0
    %2676 = vadd.xlane.f32.xlu0 %v2675
    %v2677 = vpop.xlane.xlu0 %2676
    %v2678 = vsel %vm431, %v2606, 0.0
    %2679 = vadd.xlane.f32.xlu0 %v2678
    %v2680 = vpop.xlane.xlu0 %2679
    %v2681 = vsel %vm431, %v2607, 0.0
    %2682 = vadd.xlane.f32.xlu0 %v2681
    %v2683 = vpop.xlane.xlu0 %2682
    %v2684 = vsel %vm431, %v2608, 0.0
    %2685 = vadd.xlane.f32.xlu0 %v2684
    %v2686 = vpop.xlane.xlu0 %2685
    %v2687 = vsel %vm431, %v2609, 0.0
    %2688 = vadd.xlane.f32.xlu0 %v2687
    %v2689 = vpop.xlane.xlu0 %2688
    %v2690 = vsel %vm431, %v2610, 0.0
    %2691 = vadd.xlane.f32.xlu0 %v2690
    %v2692 = vpop.xlane.xlu0 %2691
    %v2693 = vsel %vm431, %v2611, 0.0
    %2694 = vadd.xlane.f32.xlu0 %v2693
    %v2695 = vpop.xlane.xlu0 %2694
    %v2696 = vsel %vm431, %v2612, 0.0
    %2697 = vadd.xlane.f32.xlu0 %v2696
    %v2698 = vpop.xlane.xlu0 %2697
    %v2699 = vsel %vm431, %v2613, 0.0
    %2700 = vadd.xlane.f32.xlu0 %v2699
    %v2701 = vpop.xlane.xlu0 %2700
    %v2702 = vsel %vm431, %v2614, 0.0
    %2703 = vadd.xlane.f32.xlu0 %v2702
    %v2704 = vpop.xlane.xlu0 %2703
    %v2705 = vsel %vm431, %v2615, 0.0
    %2706 = vadd.xlane.f32.xlu0 %v2705
    %v2707 = vpop.xlane.xlu0 %2706
    %v2708 = vsel %vm431, %v2616, 0.0
    %2709 = vadd.xlane.f32.xlu0 %v2708
    %v2710 = vpop.xlane.xlu0 %2709
    %v2711 = vsel %vm431, %v2617, 0.0
    %2712 = vadd.xlane.f32.xlu0 %v2711
    %v2713 = vpop.xlane.xlu0 %2712
    %2715 = vset.pattern.permute.xlu0 0
    %2716 = vperm.xlu0 %2715, %v2520
    %v2717 = vpop.permute.xlu0 %2716
    %2719 = vset.pattern.permute.xlu0 0
    %2720 = vperm.xlu0 %2719, %v2521
    %v2721 = vpop.permute.xlu0 %2720
    %v2722 = vlaneseq
    %v2723 = vshrl.u32 %v2722, 7
    %v2724 = vsub.s32 0, %v2723
    %v2725 = vrot.slane %v2717, %v2724
    %v2726 = vlaneseq
    %v2727 = vshrl.u32 %v2726, 7
    %v2728 = vsub.s32 1, %v2727
    %v2729 = vrot.slane %v2717, %v2728
    %v2730 = vlaneseq
    %v2731 = vshrl.u32 %v2730, 7
    %v2732 = vsub.s32 2, %v2731
    %v2733 = vrot.slane %v2717, %v2732
    %v2734 = vlaneseq
    %v2735 = vshrl.u32 %v2734, 7
    %v2736 = vsub.s32 3, %v2735
    %v2737 = vrot.slane %v2717, %v2736
    %v2738 = vlaneseq
    %v2739 = vshrl.u32 %v2738, 7
    %v2740 = vsub.s32 4, %v2739
    %v2741 = vrot.slane %v2717, %v2740
    %v2742 = vlaneseq
    %v2743 = vshrl.u32 %v2742, 7
    %v2744 = vsub.s32 5, %v2743
    %v2745 = vrot.slane %v2717, %v2744
    %v2746 = vlaneseq
    %v2747 = vshrl.u32 %v2746, 7
    %v2748 = vsub.s32 6, %v2747
    %v2749 = vrot.slane %v2717, %v2748
    %v2750 = vlaneseq
    %v2751 = vshrl.u32 %v2750, 7
    %v2752 = vsub.s32 7, %v2751
    %v2753 = vrot.slane %v2717, %v2752
    %v2754 = vlaneseq
    %v2755 = vshrl.u32 %v2754, 7
    %v2756 = vsub.s32 0, %v2755
    %v2757 = vrot.slane %v2721, %v2756
    %v2758 = vlaneseq
    %v2759 = vshrl.u32 %v2758, 7
    %v2760 = vsub.s32 1, %v2759
    %v2761 = vrot.slane %v2721, %v2760
    %v2762 = vlaneseq
    %v2763 = vshrl.u32 %v2762, 7
    %v2764 = vsub.s32 2, %v2763
    %v2765 = vrot.slane %v2721, %v2764
    %v2766 = vlaneseq
    %v2767 = vshrl.u32 %v2766, 7
    %v2768 = vsub.s32 3, %v2767
    %v2769 = vrot.slane %v2721, %v2768
    %v2770 = vlaneseq
    %v2771 = vshrl.u32 %v2770, 7
    %v2772 = vsub.s32 4, %v2771
    %v2773 = vrot.slane %v2721, %v2772
    %v2774 = vlaneseq
    %v2775 = vshrl.u32 %v2774, 7
    %v2776 = vsub.s32 5, %v2775
    %v2777 = vrot.slane %v2721, %v2776
    %v2778 = vlaneseq
    %v2779 = vshrl.u32 %v2778, 7
    %v2780 = vsub.s32 6, %v2779
    %v2781 = vrot.slane %v2721, %v2780
    %v2782 = vlaneseq
    %v2783 = vshrl.u32 %v2782, 7
    %v2784 = vsub.s32 7, %v2783
    %v2785 = vrot.slane %v2721, %v2784
    %v2802 = vadd.f32 %v2620, %v2725
    %v2803 = vadd.f32 %v2623, %v2725
    %v2804 = vadd.f32 %v2626, %v2729
    %v2805 = vadd.f32 %v2629, %v2729
    %v2806 = vadd.f32 %v2632, %v2733
    %v2807 = vadd.f32 %v2635, %v2733
    %v2808 = vadd.f32 %v2638, %v2737
    %v2809 = vadd.f32 %v2641, %v2737
    %v2810 = vadd.f32 %v2644, %v2741
    %v2811 = vadd.f32 %v2647, %v2741
    %v2812 = vadd.f32 %v2650, %v2745
    %v2813 = vadd.f32 %v2653, %v2745
    %v2814 = vadd.f32 %v2656, %v2749
    %v2815 = vadd.f32 %v2659, %v2749
    %v2816 = vadd.f32 %v2662, %v2753
    %v2817 = vadd.f32 %v2665, %v2753
    %v2818 = vadd.f32 %v2668, %v2757
    %v2819 = vadd.f32 %v2671, %v2757
    %v2820 = vadd.f32 %v2674, %v2761
    %v2821 = vadd.f32 %v2677, %v2761
    %v2822 = vadd.f32 %v2680, %v2765
    %v2823 = vadd.f32 %v2683, %v2765
    %v2824 = vadd.f32 %v2686, %v2769
    %v2825 = vadd.f32 %v2689, %v2769
    %v2826 = vadd.f32 %v2692, %v2773
    %v2827 = vadd.f32 %v2695, %v2773
    %v2828 = vadd.f32 %v2698, %v2777
    %v2829 = vadd.f32 %v2701, %v2777
    %v2830 = vadd.f32 %v2704, %v2781
    %v2831 = vadd.f32 %v2707, %v2781
    %v2832 = vadd.f32 %v2710, %v2785
    %v2833 = vadd.f32 %v2713, %v2785
    %v2834 = vsub.f32 %v2802, %v1706
    %v2835 = vsub.f32 %v2803, %v1710
    %v2836 = vsub.f32 %v2804, %v1717
    %v2837 = vsub.f32 %v2805, %v1721
    %v2838 = vsub.f32 %v2806, %v1728
    %v2839 = vsub.f32 %v2807, %v1732
    %v2840 = vsub.f32 %v2808, %v1739
    %v2841 = vsub.f32 %v2809, %v1743
    %v2842 = vsub.f32 %v2810, %v1750
    %v2843 = vsub.f32 %v2811, %v1754
    %v2844 = vsub.f32 %v2812, %v1761
    %v2845 = vsub.f32 %v2813, %v1765
    %v2846 = vsub.f32 %v2814, %v1772
    %v2847 = vsub.f32 %v2815, %v1776
    %v2848 = vsub.f32 %v2816, %v1783
    %v2849 = vsub.f32 %v2817, %v1787
    %v2850 = vsub.f32 %v2818, %v1794
    %v2851 = vsub.f32 %v2819, %v1798
    %v2852 = vsub.f32 %v2820, %v1805
    %v2853 = vsub.f32 %v2821, %v1809
    %v2854 = vsub.f32 %v2822, %v1816
    %v2855 = vsub.f32 %v2823, %v1820
    %v2856 = vsub.f32 %v2824, %v1827
    %v2857 = vsub.f32 %v2825, %v1831
    %v2858 = vsub.f32 %v2826, %v1838
    %v2859 = vsub.f32 %v2827, %v1842
    %v2860 = vsub.f32 %v2828, %v1849
    %v2861 = vsub.f32 %v2829, %v1853
    %v2862 = vsub.f32 %v2830, %v1860
    %v2863 = vsub.f32 %v2831, %v1864
    %v2864 = vsub.f32 %v2832, %v1871
    %v2865 = vsub.f32 %v2833, %v1875
    %v2866 = vmul.f32 %v2834, 0.125
    %v2867 = vmul.f32 %v2835, 0.125
    %v2868 = vmul.f32 %v2836, 0.125
    %v2869 = vmul.f32 %v2837, 0.125
    %v2870 = vmul.f32 %v2838, 0.125
    %v2871 = vmul.f32 %v2839, 0.125
    %v2872 = vmul.f32 %v2840, 0.125
    %v2873 = vmul.f32 %v2841, 0.125
    %v2874 = vmul.f32 %v2842, 0.125
    %v2875 = vmul.f32 %v2843, 0.125
    %v2876 = vmul.f32 %v2844, 0.125
    %v2877 = vmul.f32 %v2845, 0.125
    %v2878 = vmul.f32 %v2846, 0.125
    %v2879 = vmul.f32 %v2847, 0.125
    %v2880 = vmul.f32 %v2848, 0.125
    %v2881 = vmul.f32 %v2849, 0.125
    %v2882 = vmul.f32 %v2850, 0.125
    %v2883 = vmul.f32 %v2851, 0.125
    %v2884 = vmul.f32 %v2852, 0.125
    %v2885 = vmul.f32 %v2853, 0.125
    %v2886 = vmul.f32 %v2854, 0.125
    %v2887 = vmul.f32 %v2855, 0.125
    %v2888 = vmul.f32 %v2856, 0.125
    %v2889 = vmul.f32 %v2857, 0.125
    %v2890 = vmul.f32 %v2858, 0.125
    %v2891 = vmul.f32 %v2859, 0.125
    %v2892 = vmul.f32 %v2860, 0.125
    %v2893 = vmul.f32 %v2861, 0.125
    %v2894 = vmul.f32 %v2862, 0.125
    %v2895 = vmul.f32 %v2863, 0.125
    %v2896 = vmul.f32 %v2864, 0.125
    %v2897 = vmul.f32 %v2865, 0.125
    %2899 = vset.pattern.permute.xlu0 0
    %2900 = vperm.xlu0 %2899, %v2866
    %v2901 = vpop.permute.xlu0 %2900
    %2904 = vset.pattern.permute.xlu0 0
    %2905 = vperm.xlu0 %2904, %v2867
    %v2906 = vpop.permute.xlu0 %2905
    %2909 = vset.pattern.permute.xlu0 0
    %2910 = vperm.xlu0 %2909, %v2868
    %v2911 = vpop.permute.xlu0 %2910
    %2914 = vset.pattern.permute.xlu0 0
    %2915 = vperm.xlu0 %2914, %v2869
    %v2916 = vpop.permute.xlu0 %2915
    %2919 = vset.pattern.permute.xlu0 0
    %2920 = vperm.xlu0 %2919, %v2870
    %v2921 = vpop.permute.xlu0 %2920
    %2924 = vset.pattern.permute.xlu0 0
    %2925 = vperm.xlu0 %2924, %v2871
    %v2926 = vpop.permute.xlu0 %2925
    %2929 = vset.pattern.permute.xlu0 0
    %2930 = vperm.xlu0 %2929, %v2872
    %v2931 = vpop.permute.xlu0 %2930
    %2934 = vset.pattern.permute.xlu0 0
    %2935 = vperm.xlu0 %2934, %v2873
    %v2936 = vpop.permute.xlu0 %2935
    %2939 = vset.pattern.permute.xlu0 0
    %2940 = vperm.xlu0 %2939, %v2874
    %v2941 = vpop.permute.xlu0 %2940
    %2944 = vset.pattern.permute.xlu0 0
    %2945 = vperm.xlu0 %2944, %v2875
    %v2946 = vpop.permute.xlu0 %2945
    %2949 = vset.pattern.permute.xlu0 0
    %2950 = vperm.xlu0 %2949, %v2876
    %v2951 = vpop.permute.xlu0 %2950
    %2954 = vset.pattern.permute.xlu0 0
    %2955 = vperm.xlu0 %2954, %v2877
    %v2956 = vpop.permute.xlu0 %2955
    %2959 = vset.pattern.permute.xlu0 0
    %2960 = vperm.xlu0 %2959, %v2878
    %v2961 = vpop.permute.xlu0 %2960
    %2964 = vset.pattern.permute.xlu0 0
    %2965 = vperm.xlu0 %2964, %v2879
    %v2966 = vpop.permute.xlu0 %2965
    %2969 = vset.pattern.permute.xlu0 0
    %2970 = vperm.xlu0 %2969, %v2880
    %v2971 = vpop.permute.xlu0 %2970
    %2974 = vset.pattern.permute.xlu0 0
    %2975 = vperm.xlu0 %2974, %v2881
    %v2976 = vpop.permute.xlu0 %2975
    %2979 = vset.pattern.permute.xlu0 0
    %2980 = vperm.xlu0 %2979, %v2882
    %v2981 = vpop.permute.xlu0 %2980
    %2984 = vset.pattern.permute.xlu0 0
    %2985 = vperm.xlu0 %2984, %v2883
    %v2986 = vpop.permute.xlu0 %2985
    %2989 = vset.pattern.permute.xlu0 0
    %2990 = vperm.xlu0 %2989, %v2884
    %v2991 = vpop.permute.xlu0 %2990
    %2994 = vset.pattern.permute.xlu0 0
    %2995 = vperm.xlu0 %2994, %v2885
    %v2996 = vpop.permute.xlu0 %2995
    %2999 = vset.pattern.permute.xlu0 0
    %3000 = vperm.xlu0 %2999, %v2886
    %v3001 = vpop.permute.xlu0 %3000
    %3004 = vset.pattern.permute.xlu0 0
    %3005 = vperm.xlu0 %3004, %v2887
    %v3006 = vpop.permute.xlu0 %3005
    %3009 = vset.pattern.permute.xlu0 0
    %3010 = vperm.xlu0 %3009, %v2888
    %v3011 = vpop.permute.xlu0 %3010
    %3014 = vset.pattern.permute.xlu0 0
    %3015 = vperm.xlu0 %3014, %v2889
    %v3016 = vpop.permute.xlu0 %3015
    %3019 = vset.pattern.permute.xlu0 0
    %3020 = vperm.xlu0 %3019, %v2890
    %v3021 = vpop.permute.xlu0 %3020
    %3024 = vset.pattern.permute.xlu0 0
    %3025 = vperm.xlu0 %3024, %v2891
    %v3026 = vpop.permute.xlu0 %3025
    %3029 = vset.pattern.permute.xlu0 0
    %3030 = vperm.xlu0 %3029, %v2892
    %v3031 = vpop.permute.xlu0 %3030
    %3034 = vset.pattern.permute.xlu0 0
    %3035 = vperm.xlu0 %3034, %v2893
    %v3036 = vpop.permute.xlu0 %3035
    %3039 = vset.pattern.permute.xlu0 0
    %3040 = vperm.xlu0 %3039, %v2894
    %v3041 = vpop.permute.xlu0 %3040
    %3044 = vset.pattern.permute.xlu0 0
    %3045 = vperm.xlu0 %3044, %v2895
    %v3046 = vpop.permute.xlu0 %3045
    %3049 = vset.pattern.permute.xlu0 0
    %3050 = vperm.xlu0 %3049, %v2896
    %v3051 = vpop.permute.xlu0 %3050
    %3054 = vset.pattern.permute.xlu0 0
    %3055 = vperm.xlu0 %3054, %v2897
    %v3056 = vpop.permute.xlu0 %3055
    %v3058 = vmul.f32 %v753, %v2901
    %v3059 = vmul.f32 %v754, %v2906
    %v3060 = vmul.f32 %v755, %v2911
    %v3061 = vmul.f32 %v756, %v2916
    %v3062 = vmul.f32 %v757, %v2921
    %v3063 = vmul.f32 %v758, %v2926
    %v3064 = vmul.f32 %v759, %v2931
    %v3065 = vmul.f32 %v760, %v2936
    %v3066 = vmul.f32 %v761, %v2941
    %v3067 = vmul.f32 %v762, %v2946
    %v3068 = vmul.f32 %v763, %v2951
    %v3069 = vmul.f32 %v764, %v2956
    %v3070 = vmul.f32 %v765, %v2961
    %v3071 = vmul.f32 %v766, %v2966
    %v3072 = vmul.f32 %v767, %v2971
    %v3073 = vmul.f32 %v768, %v2976
    %v3074 = vmul.f32 %v769, %v2981
    %v3075 = vmul.f32 %v770, %v2986
    %v3076 = vmul.f32 %v771, %v2991
    %v3077 = vmul.f32 %v772, %v2996
    %v3078 = vmul.f32 %v773, %v3001
    %v3079 = vmul.f32 %v774, %v3006
    %v3080 = vmul.f32 %v775, %v3011
    %v3081 = vmul.f32 %v776, %v3016
    %v3082 = vmul.f32 %v777, %v3021
    %v3083 = vmul.f32 %v778, %v3026
    %v3084 = vmul.f32 %v779, %v3031
    %v3085 = vmul.f32 %v780, %v3036
    %v3086 = vmul.f32 %v781, %v3041
    %v3087 = vmul.f32 %v782, %v3046
    %v3088 = vmul.f32 %v783, %v3051
    %v3089 = vmul.f32 %v784, %v3056
    %v3090 = vsel %vm431, %v3058, 0.0
    %v3091 = vsel %vm431, %v3059, 0.0
    %v3092 = vadd.f32 %v3090, %v3091
    %v3093 = vrot.slane %v3092, 4
    %v3094 = vadd.f32 %v3092, %v3093
    %v3095 = vrot.slane %v3094, 2
    %v3096 = vadd.f32 %v3094, %v3095
    %v3097 = vrot.slane %v3096, 1
    %v3098 = vadd.f32 %v3096, %v3097
    %v3099 = vsel %vm431, %v3060, 0.0
    %v3100 = vsel %vm431, %v3061, 0.0
    %v3101 = vadd.f32 %v3099, %v3100
    %v3102 = vrot.slane %v3101, 4
    %v3103 = vadd.f32 %v3101, %v3102
    %v3104 = vrot.slane %v3103, 2
    %v3105 = vadd.f32 %v3103, %v3104
    %v3106 = vrot.slane %v3105, 1
    %v3107 = vadd.f32 %v3105, %v3106
    %v3108 = vsel %vm431, %v3062, 0.0
    %v3109 = vsel %vm431, %v3063, 0.0
    %v3110 = vadd.f32 %v3108, %v3109
    %v3111 = vrot.slane %v3110, 4
    %v3112 = vadd.f32 %v3110, %v3111
    %v3113 = vrot.slane %v3112, 2
    %v3114 = vadd.f32 %v3112, %v3113
    %v3115 = vrot.slane %v3114, 1
    %v3116 = vadd.f32 %v3114, %v3115
    %v3117 = vsel %vm431, %v3064, 0.0
    %v3118 = vsel %vm431, %v3065, 0.0
    %v3119 = vadd.f32 %v3117, %v3118
    %v3120 = vrot.slane %v3119, 4
    %v3121 = vadd.f32 %v3119, %v3120
    %v3122 = vrot.slane %v3121, 2
    %v3123 = vadd.f32 %v3121, %v3122
    %v3124 = vrot.slane %v3123, 1
    %v3125 = vadd.f32 %v3123, %v3124
    %v3126 = vsel %vm431, %v3066, 0.0
    %v3127 = vsel %vm431, %v3067, 0.0
    %v3128 = vadd.f32 %v3126, %v3127
    %v3129 = vrot.slane %v3128, 4
    %v3130 = vadd.f32 %v3128, %v3129
    %v3131 = vrot.slane %v3130, 2
    %v3132 = vadd.f32 %v3130, %v3131
    %v3133 = vrot.slane %v3132, 1
    %v3134 = vadd.f32 %v3132, %v3133
    %v3135 = vsel %vm431, %v3068, 0.0
    %v3136 = vsel %vm431, %v3069, 0.0
    %v3137 = vadd.f32 %v3135, %v3136
    %v3138 = vrot.slane %v3137, 4
    %v3139 = vadd.f32 %v3137, %v3138
    %v3140 = vrot.slane %v3139, 2
    %v3141 = vadd.f32 %v3139, %v3140
    %v3142 = vrot.slane %v3141, 1
    %v3143 = vadd.f32 %v3141, %v3142
    %v3144 = vsel %vm431, %v3070, 0.0
    %v3145 = vsel %vm431, %v3071, 0.0
    %v3146 = vadd.f32 %v3144, %v3145
    %v3147 = vrot.slane %v3146, 4
    %v3148 = vadd.f32 %v3146, %v3147
    %v3149 = vrot.slane %v3148, 2
    %v3150 = vadd.f32 %v3148, %v3149
    %v3151 = vrot.slane %v3150, 1
    %v3152 = vadd.f32 %v3150, %v3151
    %v3153 = vsel %vm431, %v3072, 0.0
    %v3154 = vsel %vm431, %v3073, 0.0
    %v3155 = vadd.f32 %v3153, %v3154
    %v3156 = vrot.slane %v3155, 4
    %v3157 = vadd.f32 %v3155, %v3156
    %v3158 = vrot.slane %v3157, 2
    %v3159 = vadd.f32 %v3157, %v3158
    %v3160 = vrot.slane %v3159, 1
    %v3161 = vadd.f32 %v3159, %v3160
    %v3162 = vsel %vm431, %v3074, 0.0
    %v3163 = vsel %vm431, %v3075, 0.0
    %v3164 = vadd.f32 %v3162, %v3163
    %v3165 = vrot.slane %v3164, 4
    %v3166 = vadd.f32 %v3164, %v3165
    %v3167 = vrot.slane %v3166, 2
    %v3168 = vadd.f32 %v3166, %v3167
    %v3169 = vrot.slane %v3168, 1
    %v3170 = vadd.f32 %v3168, %v3169
    %v3171 = vsel %vm431, %v3076, 0.0
    %v3172 = vsel %vm431, %v3077, 0.0
    %v3173 = vadd.f32 %v3171, %v3172
    %v3174 = vrot.slane %v3173, 4
    %v3175 = vadd.f32 %v3173, %v3174
    %v3176 = vrot.slane %v3175, 2
    %v3177 = vadd.f32 %v3175, %v3176
    %v3178 = vrot.slane %v3177, 1
    %v3179 = vadd.f32 %v3177, %v3178
    %v3180 = vsel %vm431, %v3078, 0.0
    %v3181 = vsel %vm431, %v3079, 0.0
    %v3182 = vadd.f32 %v3180, %v3181
    %v3183 = vrot.slane %v3182, 4
    %v3184 = vadd.f32 %v3182, %v3183
    %v3185 = vrot.slane %v3184, 2
    %v3186 = vadd.f32 %v3184, %v3185
    %v3187 = vrot.slane %v3186, 1
    %v3188 = vadd.f32 %v3186, %v3187
    %v3189 = vsel %vm431, %v3080, 0.0
    %v3190 = vsel %vm431, %v3081, 0.0
    %v3191 = vadd.f32 %v3189, %v3190
    %v3192 = vrot.slane %v3191, 4
    %v3193 = vadd.f32 %v3191, %v3192
    %v3194 = vrot.slane %v3193, 2
    %v3195 = vadd.f32 %v3193, %v3194
    %v3196 = vrot.slane %v3195, 1
    %v3197 = vadd.f32 %v3195, %v3196
    %v3198 = vsel %vm431, %v3082, 0.0
    %v3199 = vsel %vm431, %v3083, 0.0
    %v3200 = vadd.f32 %v3198, %v3199
    %v3201 = vrot.slane %v3200, 4
    %v3202 = vadd.f32 %v3200, %v3201
    %v3203 = vrot.slane %v3202, 2
    %v3204 = vadd.f32 %v3202, %v3203
    %v3205 = vrot.slane %v3204, 1
    %v3206 = vadd.f32 %v3204, %v3205
    %v3207 = vsel %vm431, %v3084, 0.0
    %v3208 = vsel %vm431, %v3085, 0.0
    %v3209 = vadd.f32 %v3207, %v3208
    %v3210 = vrot.slane %v3209, 4
    %v3211 = vadd.f32 %v3209, %v3210
    %v3212 = vrot.slane %v3211, 2
    %v3213 = vadd.f32 %v3211, %v3212
    %v3214 = vrot.slane %v3213, 1
    %v3215 = vadd.f32 %v3213, %v3214
    %v3216 = vsel %vm431, %v3086, 0.0
    %v3217 = vsel %vm431, %v3087, 0.0
    %v3218 = vadd.f32 %v3216, %v3217
    %v3219 = vrot.slane %v3218, 4
    %v3220 = vadd.f32 %v3218, %v3219
    %v3221 = vrot.slane %v3220, 2
    %v3222 = vadd.f32 %v3220, %v3221
    %v3223 = vrot.slane %v3222, 1
    %v3224 = vadd.f32 %v3222, %v3223
    %v3225 = vsel %vm431, %v3088, 0.0
    %v3226 = vsel %vm431, %v3089, 0.0
    %v3227 = vadd.f32 %v3225, %v3226
    %v3228 = vrot.slane %v3227, 4
    %v3229 = vadd.f32 %v3227, %v3228
    %v3230 = vrot.slane %v3229, 2
    %v3231 = vadd.f32 %v3229, %v3230
    %v3232 = vrot.slane %v3231, 1
    %v3233 = vadd.f32 %v3231, %v3232
    %v3234 = vlaneseq
    %v3235 = vshrl.u32 %v3234, 7
    %v3236 = vsub.s32 %v2309, %v3235
    %v3237 = vrot.slane %v2901, %v3236
    %v3238 = vlaneseq
    %v3239 = vshrl.u32 %v3238, 7
    %v3240 = vsub.s32 %v2314, %v3239
    %v3241 = vrot.slane %v2906, %v3240
    %v3242 = vsel %vm2319, %v3241, %v3237
    %v3243 = vlaneseq
    %v3244 = vshrl.u32 %v3243, 7
    %v3245 = vsub.s32 %v2309, %v3244
    %v3246 = vrot.slane %v2911, %v3245
    %v3247 = vlaneseq
    %v3248 = vshrl.u32 %v3247, 7
    %v3249 = vsub.s32 %v2314, %v3248
    %v3250 = vrot.slane %v2916, %v3249
    %v3251 = vsel %vm2319, %v3250, %v3246
    %v3252 = vlaneseq
    %v3253 = vshrl.u32 %v3252, 7
    %v3254 = vsub.s32 %v2309, %v3253
    %v3255 = vrot.slane %v2921, %v3254
    %v3256 = vlaneseq
    %v3257 = vshrl.u32 %v3256, 7
    %v3258 = vsub.s32 %v2314, %v3257
    %v3259 = vrot.slane %v2926, %v3258
    %v3260 = vsel %vm2319, %v3259, %v3255
    %v3261 = vlaneseq
    %v3262 = vshrl.u32 %v3261, 7
    %v3263 = vsub.s32 %v2309, %v3262
    %v3264 = vrot.slane %v2931, %v3263
    %v3265 = vlaneseq
    %v3266 = vshrl.u32 %v3265, 7
    %v3267 = vsub.s32 %v2314, %v3266
    %v3268 = vrot.slane %v2936, %v3267
    %v3269 = vsel %vm2319, %v3268, %v3264
    %v3270 = vlaneseq
    %v3271 = vshrl.u32 %v3270, 7
    %v3272 = vsub.s32 %v2309, %v3271
    %v3273 = vrot.slane %v2941, %v3272
    %v3274 = vlaneseq
    %v3275 = vshrl.u32 %v3274, 7
    %v3276 = vsub.s32 %v2314, %v3275
    %v3277 = vrot.slane %v2946, %v3276
    %v3278 = vsel %vm2319, %v3277, %v3273
    %v3279 = vlaneseq
    %v3280 = vshrl.u32 %v3279, 7
    %v3281 = vsub.s32 %v2309, %v3280
    %v3282 = vrot.slane %v2951, %v3281
    %v3283 = vlaneseq
    %v3284 = vshrl.u32 %v3283, 7
    %v3285 = vsub.s32 %v2314, %v3284
    %v3286 = vrot.slane %v2956, %v3285
    %v3287 = vsel %vm2319, %v3286, %v3282
    %v3288 = vlaneseq
    %v3289 = vshrl.u32 %v3288, 7
    %v3290 = vsub.s32 %v2309, %v3289
    %v3291 = vrot.slane %v2961, %v3290
    %v3292 = vlaneseq
    %v3293 = vshrl.u32 %v3292, 7
    %v3294 = vsub.s32 %v2314, %v3293
    %v3295 = vrot.slane %v2966, %v3294
    %v3296 = vsel %vm2319, %v3295, %v3291
    %v3297 = vlaneseq
    %v3298 = vshrl.u32 %v3297, 7
    %v3299 = vsub.s32 %v2309, %v3298
    %v3300 = vrot.slane %v2971, %v3299
    %v3301 = vlaneseq
    %v3302 = vshrl.u32 %v3301, 7
    %v3303 = vsub.s32 %v2314, %v3302
    %v3304 = vrot.slane %v2976, %v3303
    %v3305 = vsel %vm2319, %v3304, %v3300
    %v3306 = vlaneseq
    %v3307 = vshrl.u32 %v3306, 7
    %v3308 = vsub.s32 %v2309, %v3307
    %v3309 = vrot.slane %v2981, %v3308
    %v3310 = vlaneseq
    %v3311 = vshrl.u32 %v3310, 7
    %v3312 = vsub.s32 %v2314, %v3311
    %v3313 = vrot.slane %v2986, %v3312
    %v3314 = vsel %vm2319, %v3313, %v3309
    %v3315 = vlaneseq
    %v3316 = vshrl.u32 %v3315, 7
    %v3317 = vsub.s32 %v2309, %v3316
    %v3318 = vrot.slane %v2991, %v3317
    %v3319 = vlaneseq
    %v3320 = vshrl.u32 %v3319, 7
    %v3321 = vsub.s32 %v2314, %v3320
    %v3322 = vrot.slane %v2996, %v3321
    %v3323 = vsel %vm2319, %v3322, %v3318
    %v3324 = vlaneseq
    %v3325 = vshrl.u32 %v3324, 7
    %v3326 = vsub.s32 %v2309, %v3325
    %v3327 = vrot.slane %v3001, %v3326
    %v3328 = vlaneseq
    %v3329 = vshrl.u32 %v3328, 7
    %v3330 = vsub.s32 %v2314, %v3329
    %v3331 = vrot.slane %v3006, %v3330
    %v3332 = vsel %vm2319, %v3331, %v3327
    %v3333 = vlaneseq
    %v3334 = vshrl.u32 %v3333, 7
    %v3335 = vsub.s32 %v2309, %v3334
    %v3336 = vrot.slane %v3011, %v3335
    %v3337 = vlaneseq
    %v3338 = vshrl.u32 %v3337, 7
    %v3339 = vsub.s32 %v2314, %v3338
    %v3340 = vrot.slane %v3016, %v3339
    %v3341 = vsel %vm2319, %v3340, %v3336
    %v3342 = vlaneseq
    %v3343 = vshrl.u32 %v3342, 7
    %v3344 = vsub.s32 %v2309, %v3343
    %v3345 = vrot.slane %v3021, %v3344
    %v3346 = vlaneseq
    %v3347 = vshrl.u32 %v3346, 7
    %v3348 = vsub.s32 %v2314, %v3347
    %v3349 = vrot.slane %v3026, %v3348
    %v3350 = vsel %vm2319, %v3349, %v3345
    %v3351 = vlaneseq
    %v3352 = vshrl.u32 %v3351, 7
    %v3353 = vsub.s32 %v2309, %v3352
    %v3354 = vrot.slane %v3031, %v3353
    %v3355 = vlaneseq
    %v3356 = vshrl.u32 %v3355, 7
    %v3357 = vsub.s32 %v2314, %v3356
    %v3358 = vrot.slane %v3036, %v3357
    %v3359 = vsel %vm2319, %v3358, %v3354
    %v3360 = vlaneseq
    %v3361 = vshrl.u32 %v3360, 7
    %v3362 = vsub.s32 %v2309, %v3361
    %v3363 = vrot.slane %v3041, %v3362
    %v3364 = vlaneseq
    %v3365 = vshrl.u32 %v3364, 7
    %v3366 = vsub.s32 %v2314, %v3365
    %v3367 = vrot.slane %v3046, %v3366
    %v3368 = vsel %vm2319, %v3367, %v3363
    %v3369 = vlaneseq
    %v3370 = vshrl.u32 %v3369, 7
    %v3371 = vsub.s32 %v2309, %v3370
    %v3372 = vrot.slane %v3051, %v3371
    %v3373 = vlaneseq
    %v3374 = vshrl.u32 %v3373, 7
    %v3375 = vsub.s32 %v2314, %v3374
    %v3376 = vrot.slane %v3056, %v3375
    %v3377 = vsel %vm2319, %v3376, %v3372
    %v3378 = vsel %vm2456, %v3251, %v3242
    %v3379 = vsel %vm2458, %v3260, %v3378
    %v3380 = vsel %vm2460, %v3269, %v3379
    %v3381 = vsel %vm2462, %v3278, %v3380
    %v3382 = vsel %vm2464, %v3287, %v3381
    %v3383 = vsel %vm2466, %v3296, %v3382
    %v3384 = vsel %vm2468, %v3305, %v3383
    %v3385 = vsel %vm2456, %v3323, %v3314
    %v3386 = vsel %vm2458, %v3332, %v3385
    %v3387 = vsel %vm2460, %v3341, %v3386
    %v3388 = vsel %vm2462, %v3350, %v3387
    %v3389 = vsel %vm2464, %v3359, %v3388
    %v3390 = vsel %vm2466, %v3368, %v3389
    %v3391 = vsel %vm2468, %v3377, %v3390
    %v3394 = vsel %vm2479, %v3384, 0.0
    %3395 = vadd.xlane.f32.xlu0 %v3394
    %v3396 = vpop.xlane.xlu0 %3395
    %v3397 = vsel %vm2479, %v3391, 0.0
    %3398 = vadd.xlane.f32.xlu0 %v3397
    %v3399 = vpop.xlane.xlu0 %3398
    %v3400 = vmul.f32 %v3098, 0.01
    %v3401 = vmul.f32 %v3107, 0.01
    %v3402 = vmul.f32 %v3116, 0.01
    %v3403 = vmul.f32 %v3125, 0.01
    %v3404 = vmul.f32 %v3134, 0.01
    %v3405 = vmul.f32 %v3143, 0.01
    %v3406 = vmul.f32 %v3152, 0.01
    %v3407 = vmul.f32 %v3161, 0.01
    %v3408 = vmul.f32 %v3170, 0.01
    %v3409 = vmul.f32 %v3179, 0.01
    %v3410 = vmul.f32 %v3188, 0.01
    %v3411 = vmul.f32 %v3197, 0.01
    %v3412 = vmul.f32 %v3206, 0.01
    %v3413 = vmul.f32 %v3215, 0.01
    %v3414 = vmul.f32 %v3224, 0.01
    %v3415 = vmul.f32 %v3233, 0.01
    %v3416 = vsub.f32 %v2502, %v3400
    %v3417 = vsub.f32 %v2503, %v3401
    %v3418 = vsub.f32 %v2504, %v3402
    %v3419 = vsub.f32 %v2505, %v3403
    %v3420 = vsub.f32 %v2506, %v3404
    %v3421 = vsub.f32 %v2507, %v3405
    %v3422 = vsub.f32 %v2508, %v3406
    %v3423 = vsub.f32 %v2509, %v3407
    %v3424 = vsub.f32 %v2510, %v3408
    %v3425 = vsub.f32 %v2511, %v3409
    %v3426 = vsub.f32 %v2512, %v3410
    %v3427 = vsub.f32 %v2513, %v3411
    %v3428 = vsub.f32 %v2514, %v3412
    %v3429 = vsub.f32 %v2515, %v3413
    %v3430 = vsub.f32 %v2516, %v3414
    %v3431 = vsub.f32 %v2517, %v3415
    %v3432 = vmul.f32 %v3396, 0.01
    %v3433 = vmul.f32 %v3399, 0.01
    %v3434 = vsub.f32 %v2520, %v3432
    %v3435 = vsub.f32 %v2521, %v3433
    %v3436 = vlaneseq
    %v3437 = vshrl.u32 %v3436, 7
    %v3438 = vsub.s32 2, %v3437
    %v3439 = vrot.slane %v3416, %v3438
    %v3440 = vlaneseq
    %v3441 = vshrl.u32 %v3440, 7
    %v3442 = vsub.s32 2, %v3441
    %v3443 = vrot.slane %v3417, %v3442
    %v3444 = vlaneseq
    %v3445 = vshrl.u32 %v3444, 7
    %v3446 = vsub.s32 2, %v3445
    %v3447 = vrot.slane %v3418, %v3446
    %v3448 = vlaneseq
    %v3449 = vshrl.u32 %v3448, 7
    %v3450 = vsub.s32 2, %v3449
    %v3451 = vrot.slane %v3419, %v3450
    %v3452 = vlaneseq
    %v3453 = vshrl.u32 %v3452, 7
    %v3454 = vsub.s32 2, %v3453
    %v3455 = vrot.slane %v3420, %v3454
    %v3456 = vlaneseq
    %v3457 = vshrl.u32 %v3456, 7
    %v3458 = vsub.s32 2, %v3457
    %v3459 = vrot.slane %v3421, %v3458
    %v3460 = vlaneseq
    %v3461 = vshrl.u32 %v3460, 7
    %v3462 = vsub.s32 2, %v3461
    %v3463 = vrot.slane %v3422, %v3462
    %v3464 = vlaneseq
    %v3465 = vshrl.u32 %v3464, 7
    %v3466 = vsub.s32 2, %v3465
    %v3467 = vrot.slane %v3423, %v3466
    %v3468 = vlaneseq
    %v3469 = vshrl.u32 %v3468, 7
    %v3470 = vsub.s32 2, %v3469
    %v3471 = vrot.slane %v3424, %v3470
    %v3472 = vlaneseq
    %v3473 = vshrl.u32 %v3472, 7
    %v3474 = vsub.s32 2, %v3473
    %v3475 = vrot.slane %v3425, %v3474
    %v3476 = vlaneseq
    %v3477 = vshrl.u32 %v3476, 7
    %v3478 = vsub.s32 2, %v3477
    %v3479 = vrot.slane %v3426, %v3478
    %v3480 = vlaneseq
    %v3481 = vshrl.u32 %v3480, 7
    %v3482 = vsub.s32 2, %v3481
    %v3483 = vrot.slane %v3427, %v3482
    %v3484 = vlaneseq
    %v3485 = vshrl.u32 %v3484, 7
    %v3486 = vsub.s32 2, %v3485
    %v3487 = vrot.slane %v3428, %v3486
    %v3488 = vlaneseq
    %v3489 = vshrl.u32 %v3488, 7
    %v3490 = vsub.s32 2, %v3489
    %v3491 = vrot.slane %v3429, %v3490
    %v3492 = vlaneseq
    %v3493 = vshrl.u32 %v3492, 7
    %v3494 = vsub.s32 2, %v3493
    %v3495 = vrot.slane %v3430, %v3494
    %v3496 = vlaneseq
    %v3497 = vshrl.u32 %v3496, 7
    %v3498 = vsub.s32 2, %v3497
    %v3499 = vrot.slane %v3431, %v3498
    %v3500 = vmul.f32 %v753, %v3439
    %v3501 = vmul.f32 %v754, %v3439
    %v3502 = vmul.f32 %v755, %v3443
    %v3503 = vmul.f32 %v756, %v3443
    %v3504 = vmul.f32 %v757, %v3447
    %v3505 = vmul.f32 %v758, %v3447
    %v3506 = vmul.f32 %v759, %v3451
    %v3507 = vmul.f32 %v760, %v3451
    %v3508 = vmul.f32 %v761, %v3455
    %v3509 = vmul.f32 %v762, %v3455
    %v3510 = vmul.f32 %v763, %v3459
    %v3511 = vmul.f32 %v764, %v3459
    %v3512 = vmul.f32 %v765, %v3463
    %v3513 = vmul.f32 %v766, %v3463
    %v3514 = vmul.f32 %v767, %v3467
    %v3515 = vmul.f32 %v768, %v3467
    %v3516 = vmul.f32 %v769, %v3471
    %v3517 = vmul.f32 %v770, %v3471
    %v3518 = vmul.f32 %v771, %v3475
    %v3519 = vmul.f32 %v772, %v3475
    %v3520 = vmul.f32 %v773, %v3479
    %v3521 = vmul.f32 %v774, %v3479
    %v3522 = vmul.f32 %v775, %v3483
    %v3523 = vmul.f32 %v776, %v3483
    %v3524 = vmul.f32 %v777, %v3487
    %v3525 = vmul.f32 %v778, %v3487
    %v3526 = vmul.f32 %v779, %v3491
    %v3527 = vmul.f32 %v780, %v3491
    %v3528 = vmul.f32 %v781, %v3495
    %v3529 = vmul.f32 %v782, %v3495
    %v3530 = vmul.f32 %v783, %v3499
    %v3531 = vmul.f32 %v784, %v3499
    %v3532 = vsel %vm431, %v3500, 0.0
    %3533 = vadd.xlane.f32.xlu0 %v3532
    %v3534 = vpop.xlane.xlu0 %3533
    %v3535 = vsel %vm431, %v3501, 0.0
    %3536 = vadd.xlane.f32.xlu0 %v3535
    %v3537 = vpop.xlane.xlu0 %3536
    %v3538 = vsel %vm431, %v3502, 0.0
    %3539 = vadd.xlane.f32.xlu0 %v3538
    %v3540 = vpop.xlane.xlu0 %3539
    %v3541 = vsel %vm431, %v3503, 0.0
    %3542 = vadd.xlane.f32.xlu0 %v3541
    %v3543 = vpop.xlane.xlu0 %3542
    %v3544 = vsel %vm431, %v3504, 0.0
    %3545 = vadd.xlane.f32.xlu0 %v3544
    %v3546 = vpop.xlane.xlu0 %3545
    %v3547 = vsel %vm431, %v3505, 0.0
    %3548 = vadd.xlane.f32.xlu0 %v3547
    %v3549 = vpop.xlane.xlu0 %3548
    %v3550 = vsel %vm431, %v3506, 0.0
    %3551 = vadd.xlane.f32.xlu0 %v3550
    %v3552 = vpop.xlane.xlu0 %3551
    %v3553 = vsel %vm431, %v3507, 0.0
    %3554 = vadd.xlane.f32.xlu0 %v3553
    %v3555 = vpop.xlane.xlu0 %3554
    %v3556 = vsel %vm431, %v3508, 0.0
    %3557 = vadd.xlane.f32.xlu0 %v3556
    %v3558 = vpop.xlane.xlu0 %3557
    %v3559 = vsel %vm431, %v3509, 0.0
    %3560 = vadd.xlane.f32.xlu0 %v3559
    %v3561 = vpop.xlane.xlu0 %3560
    %v3562 = vsel %vm431, %v3510, 0.0
    %3563 = vadd.xlane.f32.xlu0 %v3562
    %v3564 = vpop.xlane.xlu0 %3563
    %v3565 = vsel %vm431, %v3511, 0.0
    %3566 = vadd.xlane.f32.xlu0 %v3565
    %v3567 = vpop.xlane.xlu0 %3566
    %v3568 = vsel %vm431, %v3512, 0.0
    %3569 = vadd.xlane.f32.xlu0 %v3568
    %v3570 = vpop.xlane.xlu0 %3569
    %v3571 = vsel %vm431, %v3513, 0.0
    %3572 = vadd.xlane.f32.xlu0 %v3571
    %v3573 = vpop.xlane.xlu0 %3572
    %v3574 = vsel %vm431, %v3514, 0.0
    %3575 = vadd.xlane.f32.xlu0 %v3574
    %v3576 = vpop.xlane.xlu0 %3575
    %v3577 = vsel %vm431, %v3515, 0.0
    %3578 = vadd.xlane.f32.xlu0 %v3577
    %v3579 = vpop.xlane.xlu0 %3578
    %v3580 = vsel %vm431, %v3516, 0.0
    %3581 = vadd.xlane.f32.xlu0 %v3580
    %v3582 = vpop.xlane.xlu0 %3581
    %v3583 = vsel %vm431, %v3517, 0.0
    %3584 = vadd.xlane.f32.xlu0 %v3583
    %v3585 = vpop.xlane.xlu0 %3584
    %v3586 = vsel %vm431, %v3518, 0.0
    %3587 = vadd.xlane.f32.xlu0 %v3586
    %v3588 = vpop.xlane.xlu0 %3587
    %v3589 = vsel %vm431, %v3519, 0.0
    %3590 = vadd.xlane.f32.xlu0 %v3589
    %v3591 = vpop.xlane.xlu0 %3590
    %v3592 = vsel %vm431, %v3520, 0.0
    %3593 = vadd.xlane.f32.xlu0 %v3592
    %v3594 = vpop.xlane.xlu0 %3593
    %v3595 = vsel %vm431, %v3521, 0.0
    %3596 = vadd.xlane.f32.xlu0 %v3595
    %v3597 = vpop.xlane.xlu0 %3596
    %v3598 = vsel %vm431, %v3522, 0.0
    %3599 = vadd.xlane.f32.xlu0 %v3598
    %v3600 = vpop.xlane.xlu0 %3599
    %v3601 = vsel %vm431, %v3523, 0.0
    %3602 = vadd.xlane.f32.xlu0 %v3601
    %v3603 = vpop.xlane.xlu0 %3602
    %v3604 = vsel %vm431, %v3524, 0.0
    %3605 = vadd.xlane.f32.xlu0 %v3604
    %v3606 = vpop.xlane.xlu0 %3605
    %v3607 = vsel %vm431, %v3525, 0.0
    %3608 = vadd.xlane.f32.xlu0 %v3607
    %v3609 = vpop.xlane.xlu0 %3608
    %v3610 = vsel %vm431, %v3526, 0.0
    %3611 = vadd.xlane.f32.xlu0 %v3610
    %v3612 = vpop.xlane.xlu0 %3611
    %v3613 = vsel %vm431, %v3527, 0.0
    %3614 = vadd.xlane.f32.xlu0 %v3613
    %v3615 = vpop.xlane.xlu0 %3614
    %v3616 = vsel %vm431, %v3528, 0.0
    %3617 = vadd.xlane.f32.xlu0 %v3616
    %v3618 = vpop.xlane.xlu0 %3617
    %v3619 = vsel %vm431, %v3529, 0.0
    %3620 = vadd.xlane.f32.xlu0 %v3619
    %v3621 = vpop.xlane.xlu0 %3620
    %v3622 = vsel %vm431, %v3530, 0.0
    %3623 = vadd.xlane.f32.xlu0 %v3622
    %v3624 = vpop.xlane.xlu0 %3623
    %v3625 = vsel %vm431, %v3531, 0.0
    %3626 = vadd.xlane.f32.xlu0 %v3625
    %v3627 = vpop.xlane.xlu0 %3626
    %3629 = vset.pattern.permute.xlu0 0
    %3630 = vperm.xlu0 %3629, %v3434
    %v3631 = vpop.permute.xlu0 %3630
    %3633 = vset.pattern.permute.xlu0 0
    %3634 = vperm.xlu0 %3633, %v3435
    %v3635 = vpop.permute.xlu0 %3634
    %v3636 = vlaneseq
    %v3637 = vshrl.u32 %v3636, 7
    %v3638 = vsub.s32 0, %v3637
    %v3639 = vrot.slane %v3631, %v3638
    %v3640 = vlaneseq
    %v3641 = vshrl.u32 %v3640, 7
    %v3642 = vsub.s32 1, %v3641
    %v3643 = vrot.slane %v3631, %v3642
    %v3644 = vlaneseq
    %v3645 = vshrl.u32 %v3644, 7
    %v3646 = vsub.s32 2, %v3645
    %v3647 = vrot.slane %v3631, %v3646
    %v3648 = vlaneseq
    %v3649 = vshrl.u32 %v3648, 7
    %v3650 = vsub.s32 3, %v3649
    %v3651 = vrot.slane %v3631, %v3650
    %v3652 = vlaneseq
    %v3653 = vshrl.u32 %v3652, 7
    %v3654 = vsub.s32 4, %v3653
    %v3655 = vrot.slane %v3631, %v3654
    %v3656 = vlaneseq
    %v3657 = vshrl.u32 %v3656, 7
    %v3658 = vsub.s32 5, %v3657
    %v3659 = vrot.slane %v3631, %v3658
    %v3660 = vlaneseq
    %v3661 = vshrl.u32 %v3660, 7
    %v3662 = vsub.s32 6, %v3661
    %v3663 = vrot.slane %v3631, %v3662
    %v3664 = vlaneseq
    %v3665 = vshrl.u32 %v3664, 7
    %v3666 = vsub.s32 7, %v3665
    %v3667 = vrot.slane %v3631, %v3666
    %v3668 = vlaneseq
    %v3669 = vshrl.u32 %v3668, 7
    %v3670 = vsub.s32 0, %v3669
    %v3671 = vrot.slane %v3635, %v3670
    %v3672 = vlaneseq
    %v3673 = vshrl.u32 %v3672, 7
    %v3674 = vsub.s32 1, %v3673
    %v3675 = vrot.slane %v3635, %v3674
    %v3676 = vlaneseq
    %v3677 = vshrl.u32 %v3676, 7
    %v3678 = vsub.s32 2, %v3677
    %v3679 = vrot.slane %v3635, %v3678
    %v3680 = vlaneseq
    %v3681 = vshrl.u32 %v3680, 7
    %v3682 = vsub.s32 3, %v3681
    %v3683 = vrot.slane %v3635, %v3682
    %v3684 = vlaneseq
    %v3685 = vshrl.u32 %v3684, 7
    %v3686 = vsub.s32 4, %v3685
    %v3687 = vrot.slane %v3635, %v3686
    %v3688 = vlaneseq
    %v3689 = vshrl.u32 %v3688, 7
    %v3690 = vsub.s32 5, %v3689
    %v3691 = vrot.slane %v3635, %v3690
    %v3692 = vlaneseq
    %v3693 = vshrl.u32 %v3692, 7
    %v3694 = vsub.s32 6, %v3693
    %v3695 = vrot.slane %v3635, %v3694
    %v3696 = vlaneseq
    %v3697 = vshrl.u32 %v3696, 7
    %v3698 = vsub.s32 7, %v3697
    %v3699 = vrot.slane %v3635, %v3698
    %v3716 = vadd.f32 %v3534, %v3639
    %v3717 = vadd.f32 %v3537, %v3639
    %v3718 = vadd.f32 %v3540, %v3643
    %v3719 = vadd.f32 %v3543, %v3643
    %v3720 = vadd.f32 %v3546, %v3647
    %v3721 = vadd.f32 %v3549, %v3647
    %v3722 = vadd.f32 %v3552, %v3651
    %v3723 = vadd.f32 %v3555, %v3651
    %v3724 = vadd.f32 %v3558, %v3655
    %v3725 = vadd.f32 %v3561, %v3655
    %v3726 = vadd.f32 %v3564, %v3659
    %v3727 = vadd.f32 %v3567, %v3659
    %v3728 = vadd.f32 %v3570, %v3663
    %v3729 = vadd.f32 %v3573, %v3663
    %v3730 = vadd.f32 %v3576, %v3667
    %v3731 = vadd.f32 %v3579, %v3667
    %v3732 = vadd.f32 %v3582, %v3671
    %v3733 = vadd.f32 %v3585, %v3671
    %v3734 = vadd.f32 %v3588, %v3675
    %v3735 = vadd.f32 %v3591, %v3675
    %v3736 = vadd.f32 %v3594, %v3679
    %v3737 = vadd.f32 %v3597, %v3679
    %v3738 = vadd.f32 %v3600, %v3683
    %v3739 = vadd.f32 %v3603, %v3683
    %v3740 = vadd.f32 %v3606, %v3687
    %v3741 = vadd.f32 %v3609, %v3687
    %v3742 = vadd.f32 %v3612, %v3691
    %v3743 = vadd.f32 %v3615, %v3691
    %v3744 = vadd.f32 %v3618, %v3695
    %v3745 = vadd.f32 %v3621, %v3695
    %v3746 = vadd.f32 %v3624, %v3699
    %v3747 = vadd.f32 %v3627, %v3699
    %v3748 = vsub.f32 %v3716, %v1706
    %v3749 = vsub.f32 %v3717, %v1710
    %v3750 = vsub.f32 %v3718, %v1717
    %v3751 = vsub.f32 %v3719, %v1721
    %v3752 = vsub.f32 %v3720, %v1728
    %v3753 = vsub.f32 %v3721, %v1732
    %v3754 = vsub.f32 %v3722, %v1739
    %v3755 = vsub.f32 %v3723, %v1743
    %v3756 = vsub.f32 %v3724, %v1750
    %v3757 = vsub.f32 %v3725, %v1754
    %v3758 = vsub.f32 %v3726, %v1761
    %v3759 = vsub.f32 %v3727, %v1765
    %v3760 = vsub.f32 %v3728, %v1772
    %v3761 = vsub.f32 %v3729, %v1776
    %v3762 = vsub.f32 %v3730, %v1783
    %v3763 = vsub.f32 %v3731, %v1787
    %v3764 = vsub.f32 %v3732, %v1794
    %v3765 = vsub.f32 %v3733, %v1798
    %v3766 = vsub.f32 %v3734, %v1805
    %v3767 = vsub.f32 %v3735, %v1809
    %v3768 = vsub.f32 %v3736, %v1816
    %v3769 = vsub.f32 %v3737, %v1820
    %v3770 = vsub.f32 %v3738, %v1827
    %v3771 = vsub.f32 %v3739, %v1831
    %v3772 = vsub.f32 %v3740, %v1838
    %v3773 = vsub.f32 %v3741, %v1842
    %v3774 = vsub.f32 %v3742, %v1849
    %v3775 = vsub.f32 %v3743, %v1853
    %v3776 = vsub.f32 %v3744, %v1860
    %v3777 = vsub.f32 %v3745, %v1864
    %v3778 = vsub.f32 %v3746, %v1871
    %v3779 = vsub.f32 %v3747, %v1875
    %v3780 = vmul.f32 %v3748, 0.125
    %v3781 = vmul.f32 %v3749, 0.125
    %v3782 = vmul.f32 %v3750, 0.125
    %v3783 = vmul.f32 %v3751, 0.125
    %v3784 = vmul.f32 %v3752, 0.125
    %v3785 = vmul.f32 %v3753, 0.125
    %v3786 = vmul.f32 %v3754, 0.125
    %v3787 = vmul.f32 %v3755, 0.125
    %v3788 = vmul.f32 %v3756, 0.125
    %v3789 = vmul.f32 %v3757, 0.125
    %v3790 = vmul.f32 %v3758, 0.125
    %v3791 = vmul.f32 %v3759, 0.125
    %v3792 = vmul.f32 %v3760, 0.125
    %v3793 = vmul.f32 %v3761, 0.125
    %v3794 = vmul.f32 %v3762, 0.125
    %v3795 = vmul.f32 %v3763, 0.125
    %v3796 = vmul.f32 %v3764, 0.125
    %v3797 = vmul.f32 %v3765, 0.125
    %v3798 = vmul.f32 %v3766, 0.125
    %v3799 = vmul.f32 %v3767, 0.125
    %v3800 = vmul.f32 %v3768, 0.125
    %v3801 = vmul.f32 %v3769, 0.125
    %v3802 = vmul.f32 %v3770, 0.125
    %v3803 = vmul.f32 %v3771, 0.125
    %v3804 = vmul.f32 %v3772, 0.125
    %v3805 = vmul.f32 %v3773, 0.125
    %v3806 = vmul.f32 %v3774, 0.125
    %v3807 = vmul.f32 %v3775, 0.125
    %v3808 = vmul.f32 %v3776, 0.125
    %v3809 = vmul.f32 %v3777, 0.125
    %v3810 = vmul.f32 %v3778, 0.125
    %v3811 = vmul.f32 %v3779, 0.125
    %3813 = vset.pattern.permute.xlu0 0
    %3814 = vperm.xlu0 %3813, %v3780
    %v3815 = vpop.permute.xlu0 %3814
    %3818 = vset.pattern.permute.xlu0 0
    %3819 = vperm.xlu0 %3818, %v3781
    %v3820 = vpop.permute.xlu0 %3819
    %3823 = vset.pattern.permute.xlu0 0
    %3824 = vperm.xlu0 %3823, %v3782
    %v3825 = vpop.permute.xlu0 %3824
    %3828 = vset.pattern.permute.xlu0 0
    %3829 = vperm.xlu0 %3828, %v3783
    %v3830 = vpop.permute.xlu0 %3829
    %3833 = vset.pattern.permute.xlu0 0
    %3834 = vperm.xlu0 %3833, %v3784
    %v3835 = vpop.permute.xlu0 %3834
    %3838 = vset.pattern.permute.xlu0 0
    %3839 = vperm.xlu0 %3838, %v3785
    %v3840 = vpop.permute.xlu0 %3839
    %3843 = vset.pattern.permute.xlu0 0
    %3844 = vperm.xlu0 %3843, %v3786
    %v3845 = vpop.permute.xlu0 %3844
    %3848 = vset.pattern.permute.xlu0 0
    %3849 = vperm.xlu0 %3848, %v3787
    %v3850 = vpop.permute.xlu0 %3849
    %3853 = vset.pattern.permute.xlu0 0
    %3854 = vperm.xlu0 %3853, %v3788
    %v3855 = vpop.permute.xlu0 %3854
    %3858 = vset.pattern.permute.xlu0 0
    %3859 = vperm.xlu0 %3858, %v3789
    %v3860 = vpop.permute.xlu0 %3859
    %3863 = vset.pattern.permute.xlu0 0
    %3864 = vperm.xlu0 %3863, %v3790
    %v3865 = vpop.permute.xlu0 %3864
    %3868 = vset.pattern.permute.xlu0 0
    %3869 = vperm.xlu0 %3868, %v3791
    %v3870 = vpop.permute.xlu0 %3869
    %3873 = vset.pattern.permute.xlu0 0
    %3874 = vperm.xlu0 %3873, %v3792
    %v3875 = vpop.permute.xlu0 %3874
    %3878 = vset.pattern.permute.xlu0 0
    %3879 = vperm.xlu0 %3878, %v3793
    %v3880 = vpop.permute.xlu0 %3879
    %3883 = vset.pattern.permute.xlu0 0
    %3884 = vperm.xlu0 %3883, %v3794
    %v3885 = vpop.permute.xlu0 %3884
    %3888 = vset.pattern.permute.xlu0 0
    %3889 = vperm.xlu0 %3888, %v3795
    %v3890 = vpop.permute.xlu0 %3889
    %3893 = vset.pattern.permute.xlu0 0
    %3894 = vperm.xlu0 %3893, %v3796
    %v3895 = vpop.permute.xlu0 %3894
    %3898 = vset.pattern.permute.xlu0 0
    %3899 = vperm.xlu0 %3898, %v3797
    %v3900 = vpop.permute.xlu0 %3899
    %3903 = vset.pattern.permute.xlu0 0
    %3904 = vperm.xlu0 %3903, %v3798
    %v3905 = vpop.permute.xlu0 %3904
    %3908 = vset.pattern.permute.xlu0 0
    %3909 = vperm.xlu0 %3908, %v3799
    %v3910 = vpop.permute.xlu0 %3909
    %3913 = vset.pattern.permute.xlu0 0
    %3914 = vperm.xlu0 %3913, %v3800
    %v3915 = vpop.permute.xlu0 %3914
    %3918 = vset.pattern.permute.xlu0 0
    %3919 = vperm.xlu0 %3918, %v3801
    %v3920 = vpop.permute.xlu0 %3919
    %3923 = vset.pattern.permute.xlu0 0
    %3924 = vperm.xlu0 %3923, %v3802
    %v3925 = vpop.permute.xlu0 %3924
    %3928 = vset.pattern.permute.xlu0 0
    %3929 = vperm.xlu0 %3928, %v3803
    %v3930 = vpop.permute.xlu0 %3929
    %3933 = vset.pattern.permute.xlu0 0
    %3934 = vperm.xlu0 %3933, %v3804
    %v3935 = vpop.permute.xlu0 %3934
    %3938 = vset.pattern.permute.xlu0 0
    %3939 = vperm.xlu0 %3938, %v3805
    %v3940 = vpop.permute.xlu0 %3939
    %3943 = vset.pattern.permute.xlu0 0
    %3944 = vperm.xlu0 %3943, %v3806
    %v3945 = vpop.permute.xlu0 %3944
    %3948 = vset.pattern.permute.xlu0 0
    %3949 = vperm.xlu0 %3948, %v3807
    %v3950 = vpop.permute.xlu0 %3949
    %3953 = vset.pattern.permute.xlu0 0
    %3954 = vperm.xlu0 %3953, %v3808
    %v3955 = vpop.permute.xlu0 %3954
    %3958 = vset.pattern.permute.xlu0 0
    %3959 = vperm.xlu0 %3958, %v3809
    %v3960 = vpop.permute.xlu0 %3959
    %3963 = vset.pattern.permute.xlu0 0
    %3964 = vperm.xlu0 %3963, %v3810
    %v3965 = vpop.permute.xlu0 %3964
    %3968 = vset.pattern.permute.xlu0 0
    %3969 = vperm.xlu0 %3968, %v3811
    %v3970 = vpop.permute.xlu0 %3969
    %v3972 = vmul.f32 %v753, %v3815
    %v3973 = vmul.f32 %v754, %v3820
    %v3974 = vmul.f32 %v755, %v3825
    %v3975 = vmul.f32 %v756, %v3830
    %v3976 = vmul.f32 %v757, %v3835
    %v3977 = vmul.f32 %v758, %v3840
    %v3978 = vmul.f32 %v759, %v3845
    %v3979 = vmul.f32 %v760, %v3850
    %v3980 = vmul.f32 %v761, %v3855
    %v3981 = vmul.f32 %v762, %v3860
    %v3982 = vmul.f32 %v763, %v3865
    %v3983 = vmul.f32 %v764, %v3870
    %v3984 = vmul.f32 %v765, %v3875
    %v3985 = vmul.f32 %v766, %v3880
    %v3986 = vmul.f32 %v767, %v3885
    %v3987 = vmul.f32 %v768, %v3890
    %v3988 = vmul.f32 %v769, %v3895
    %v3989 = vmul.f32 %v770, %v3900
    %v3990 = vmul.f32 %v771, %v3905
    %v3991 = vmul.f32 %v772, %v3910
    %v3992 = vmul.f32 %v773, %v3915
    %v3993 = vmul.f32 %v774, %v3920
    %v3994 = vmul.f32 %v775, %v3925
    %v3995 = vmul.f32 %v776, %v3930
    %v3996 = vmul.f32 %v777, %v3935
    %v3997 = vmul.f32 %v778, %v3940
    %v3998 = vmul.f32 %v779, %v3945
    %v3999 = vmul.f32 %v780, %v3950
    %v4000 = vmul.f32 %v781, %v3955
    %v4001 = vmul.f32 %v782, %v3960
    %v4002 = vmul.f32 %v783, %v3965
    %v4003 = vmul.f32 %v784, %v3970
    %v4004 = vsel %vm431, %v3972, 0.0
    %v4005 = vsel %vm431, %v3973, 0.0
    %v4006 = vadd.f32 %v4004, %v4005
    %v4007 = vrot.slane %v4006, 4
    %v4008 = vadd.f32 %v4006, %v4007
    %v4009 = vrot.slane %v4008, 2
    %v4010 = vadd.f32 %v4008, %v4009
    %v4011 = vrot.slane %v4010, 1
    %v4012 = vadd.f32 %v4010, %v4011
    %v4013 = vsel %vm431, %v3974, 0.0
    %v4014 = vsel %vm431, %v3975, 0.0
    %v4015 = vadd.f32 %v4013, %v4014
    %v4016 = vrot.slane %v4015, 4
    %v4017 = vadd.f32 %v4015, %v4016
    %v4018 = vrot.slane %v4017, 2
    %v4019 = vadd.f32 %v4017, %v4018
    %v4020 = vrot.slane %v4019, 1
    %v4021 = vadd.f32 %v4019, %v4020
    %v4022 = vsel %vm431, %v3976, 0.0
    %v4023 = vsel %vm431, %v3977, 0.0
    %v4024 = vadd.f32 %v4022, %v4023
    %v4025 = vrot.slane %v4024, 4
    %v4026 = vadd.f32 %v4024, %v4025
    %v4027 = vrot.slane %v4026, 2
    %v4028 = vadd.f32 %v4026, %v4027
    %v4029 = vrot.slane %v4028, 1
    %v4030 = vadd.f32 %v4028, %v4029
    %v4031 = vsel %vm431, %v3978, 0.0
    %v4032 = vsel %vm431, %v3979, 0.0
    %v4033 = vadd.f32 %v4031, %v4032
    %v4034 = vrot.slane %v4033, 4
    %v4035 = vadd.f32 %v4033, %v4034
    %v4036 = vrot.slane %v4035, 2
    %v4037 = vadd.f32 %v4035, %v4036
    %v4038 = vrot.slane %v4037, 1
    %v4039 = vadd.f32 %v4037, %v4038
    %v4040 = vsel %vm431, %v3980, 0.0
    %v4041 = vsel %vm431, %v3981, 0.0
    %v4042 = vadd.f32 %v4040, %v4041
    %v4043 = vrot.slane %v4042, 4
    %v4044 = vadd.f32 %v4042, %v4043
    %v4045 = vrot.slane %v4044, 2
    %v4046 = vadd.f32 %v4044, %v4045
    %v4047 = vrot.slane %v4046, 1
    %v4048 = vadd.f32 %v4046, %v4047
    %v4049 = vsel %vm431, %v3982, 0.0
    %v4050 = vsel %vm431, %v3983, 0.0
    %v4051 = vadd.f32 %v4049, %v4050
    %v4052 = vrot.slane %v4051, 4
    %v4053 = vadd.f32 %v4051, %v4052
    %v4054 = vrot.slane %v4053, 2
    %v4055 = vadd.f32 %v4053, %v4054
    %v4056 = vrot.slane %v4055, 1
    %v4057 = vadd.f32 %v4055, %v4056
    %v4058 = vsel %vm431, %v3984, 0.0
    %v4059 = vsel %vm431, %v3985, 0.0
    %v4060 = vadd.f32 %v4058, %v4059
    %v4061 = vrot.slane %v4060, 4
    %v4062 = vadd.f32 %v4060, %v4061
    %v4063 = vrot.slane %v4062, 2
    %v4064 = vadd.f32 %v4062, %v4063
    %v4065 = vrot.slane %v4064, 1
    %v4066 = vadd.f32 %v4064, %v4065
    %v4067 = vsel %vm431, %v3986, 0.0
    %v4068 = vsel %vm431, %v3987, 0.0
    %v4069 = vadd.f32 %v4067, %v4068
    %v4070 = vrot.slane %v4069, 4
    %v4071 = vadd.f32 %v4069, %v4070
    %v4072 = vrot.slane %v4071, 2
    %v4073 = vadd.f32 %v4071, %v4072
    %v4074 = vrot.slane %v4073, 1
    %v4075 = vadd.f32 %v4073, %v4074
    %v4076 = vsel %vm431, %v3988, 0.0
    %v4077 = vsel %vm431, %v3989, 0.0
    %v4078 = vadd.f32 %v4076, %v4077
    %v4079 = vrot.slane %v4078, 4
    %v4080 = vadd.f32 %v4078, %v4079
    %v4081 = vrot.slane %v4080, 2
    %v4082 = vadd.f32 %v4080, %v4081
    %v4083 = vrot.slane %v4082, 1
    %v4084 = vadd.f32 %v4082, %v4083
    %v4085 = vsel %vm431, %v3990, 0.0
    %v4086 = vsel %vm431, %v3991, 0.0
    %v4087 = vadd.f32 %v4085, %v4086
    %v4088 = vrot.slane %v4087, 4
    %v4089 = vadd.f32 %v4087, %v4088
    %v4090 = vrot.slane %v4089, 2
    %v4091 = vadd.f32 %v4089, %v4090
    %v4092 = vrot.slane %v4091, 1
    %v4093 = vadd.f32 %v4091, %v4092
    %v4094 = vsel %vm431, %v3992, 0.0
    %v4095 = vsel %vm431, %v3993, 0.0
    %v4096 = vadd.f32 %v4094, %v4095
    %v4097 = vrot.slane %v4096, 4
    %v4098 = vadd.f32 %v4096, %v4097
    %v4099 = vrot.slane %v4098, 2
    %v4100 = vadd.f32 %v4098, %v4099
    %v4101 = vrot.slane %v4100, 1
    %v4102 = vadd.f32 %v4100, %v4101
    %v4103 = vsel %vm431, %v3994, 0.0
    %v4104 = vsel %vm431, %v3995, 0.0
    %v4105 = vadd.f32 %v4103, %v4104
    %v4106 = vrot.slane %v4105, 4
    %v4107 = vadd.f32 %v4105, %v4106
    %v4108 = vrot.slane %v4107, 2
    %v4109 = vadd.f32 %v4107, %v4108
    %v4110 = vrot.slane %v4109, 1
    %v4111 = vadd.f32 %v4109, %v4110
    %v4112 = vsel %vm431, %v3996, 0.0
    %v4113 = vsel %vm431, %v3997, 0.0
    %v4114 = vadd.f32 %v4112, %v4113
    %v4115 = vrot.slane %v4114, 4
    %v4116 = vadd.f32 %v4114, %v4115
    %v4117 = vrot.slane %v4116, 2
    %v4118 = vadd.f32 %v4116, %v4117
    %v4119 = vrot.slane %v4118, 1
    %v4120 = vadd.f32 %v4118, %v4119
    %v4121 = vsel %vm431, %v3998, 0.0
    %v4122 = vsel %vm431, %v3999, 0.0
    %v4123 = vadd.f32 %v4121, %v4122
    %v4124 = vrot.slane %v4123, 4
    %v4125 = vadd.f32 %v4123, %v4124
    %v4126 = vrot.slane %v4125, 2
    %v4127 = vadd.f32 %v4125, %v4126
    %v4128 = vrot.slane %v4127, 1
    %v4129 = vadd.f32 %v4127, %v4128
    %v4130 = vsel %vm431, %v4000, 0.0
    %v4131 = vsel %vm431, %v4001, 0.0
    %v4132 = vadd.f32 %v4130, %v4131
    %v4133 = vrot.slane %v4132, 4
    %v4134 = vadd.f32 %v4132, %v4133
    %v4135 = vrot.slane %v4134, 2
    %v4136 = vadd.f32 %v4134, %v4135
    %v4137 = vrot.slane %v4136, 1
    %v4138 = vadd.f32 %v4136, %v4137
    %v4139 = vsel %vm431, %v4002, 0.0
    %v4140 = vsel %vm431, %v4003, 0.0
    %v4141 = vadd.f32 %v4139, %v4140
    %v4142 = vrot.slane %v4141, 4
    %v4143 = vadd.f32 %v4141, %v4142
    %v4144 = vrot.slane %v4143, 2
    %v4145 = vadd.f32 %v4143, %v4144
    %v4146 = vrot.slane %v4145, 1
    %v4147 = vadd.f32 %v4145, %v4146
    %v4148 = vlaneseq
    %v4149 = vshrl.u32 %v4148, 7
    %v4150 = vsub.s32 %v2309, %v4149
    %v4151 = vrot.slane %v3815, %v4150
    %v4152 = vlaneseq
    %v4153 = vshrl.u32 %v4152, 7
    %v4154 = vsub.s32 %v2314, %v4153
    %v4155 = vrot.slane %v3820, %v4154
    %v4156 = vsel %vm2319, %v4155, %v4151
    %v4157 = vlaneseq
    %v4158 = vshrl.u32 %v4157, 7
    %v4159 = vsub.s32 %v2309, %v4158
    %v4160 = vrot.slane %v3825, %v4159
    %v4161 = vlaneseq
    %v4162 = vshrl.u32 %v4161, 7
    %v4163 = vsub.s32 %v2314, %v4162
    %v4164 = vrot.slane %v3830, %v4163
    %v4165 = vsel %vm2319, %v4164, %v4160
    %v4166 = vlaneseq
    %v4167 = vshrl.u32 %v4166, 7
    %v4168 = vsub.s32 %v2309, %v4167
    %v4169 = vrot.slane %v3835, %v4168
    %v4170 = vlaneseq
    %v4171 = vshrl.u32 %v4170, 7
    %v4172 = vsub.s32 %v2314, %v4171
    %v4173 = vrot.slane %v3840, %v4172
    %v4174 = vsel %vm2319, %v4173, %v4169
    %v4175 = vlaneseq
    %v4176 = vshrl.u32 %v4175, 7
    %v4177 = vsub.s32 %v2309, %v4176
    %v4178 = vrot.slane %v3845, %v4177
    %v4179 = vlaneseq
    %v4180 = vshrl.u32 %v4179, 7
    %v4181 = vsub.s32 %v2314, %v4180
    %v4182 = vrot.slane %v3850, %v4181
    %v4183 = vsel %vm2319, %v4182, %v4178
    %v4184 = vlaneseq
    %v4185 = vshrl.u32 %v4184, 7
    %v4186 = vsub.s32 %v2309, %v4185
    %v4187 = vrot.slane %v3855, %v4186
    %v4188 = vlaneseq
    %v4189 = vshrl.u32 %v4188, 7
    %v4190 = vsub.s32 %v2314, %v4189
    %v4191 = vrot.slane %v3860, %v4190
    %v4192 = vsel %vm2319, %v4191, %v4187
    %v4193 = vlaneseq
    %v4194 = vshrl.u32 %v4193, 7
    %v4195 = vsub.s32 %v2309, %v4194
    %v4196 = vrot.slane %v3865, %v4195
    %v4197 = vlaneseq
    %v4198 = vshrl.u32 %v4197, 7
    %v4199 = vsub.s32 %v2314, %v4198
    %v4200 = vrot.slane %v3870, %v4199
    %v4201 = vsel %vm2319, %v4200, %v4196
    %v4202 = vlaneseq
    %v4203 = vshrl.u32 %v4202, 7
    %v4204 = vsub.s32 %v2309, %v4203
    %v4205 = vrot.slane %v3875, %v4204
    %v4206 = vlaneseq
    %v4207 = vshrl.u32 %v4206, 7
    %v4208 = vsub.s32 %v2314, %v4207
    %v4209 = vrot.slane %v3880, %v4208
    %v4210 = vsel %vm2319, %v4209, %v4205
    %v4211 = vlaneseq
    %v4212 = vshrl.u32 %v4211, 7
    %v4213 = vsub.s32 %v2309, %v4212
    %v4214 = vrot.slane %v3885, %v4213
    %v4215 = vlaneseq
    %v4216 = vshrl.u32 %v4215, 7
    %v4217 = vsub.s32 %v2314, %v4216
    %v4218 = vrot.slane %v3890, %v4217
    %v4219 = vsel %vm2319, %v4218, %v4214
    %v4220 = vlaneseq
    %v4221 = vshrl.u32 %v4220, 7
    %v4222 = vsub.s32 %v2309, %v4221
    %v4223 = vrot.slane %v3895, %v4222
    %v4224 = vlaneseq
    %v4225 = vshrl.u32 %v4224, 7
    %v4226 = vsub.s32 %v2314, %v4225
    %v4227 = vrot.slane %v3900, %v4226
    %v4228 = vsel %vm2319, %v4227, %v4223
    %v4229 = vlaneseq
    %v4230 = vshrl.u32 %v4229, 7
    %v4231 = vsub.s32 %v2309, %v4230
    %v4232 = vrot.slane %v3905, %v4231
    %v4233 = vlaneseq
    %v4234 = vshrl.u32 %v4233, 7
    %v4235 = vsub.s32 %v2314, %v4234
    %v4236 = vrot.slane %v3910, %v4235
    %v4237 = vsel %vm2319, %v4236, %v4232
    %v4238 = vlaneseq
    %v4239 = vshrl.u32 %v4238, 7
    %v4240 = vsub.s32 %v2309, %v4239
    %v4241 = vrot.slane %v3915, %v4240
    %v4242 = vlaneseq
    %v4243 = vshrl.u32 %v4242, 7
    %v4244 = vsub.s32 %v2314, %v4243
    %v4245 = vrot.slane %v3920, %v4244
    %v4246 = vsel %vm2319, %v4245, %v4241
    %v4247 = vlaneseq
    %v4248 = vshrl.u32 %v4247, 7
    %v4249 = vsub.s32 %v2309, %v4248
    %v4250 = vrot.slane %v3925, %v4249
    %v4251 = vlaneseq
    %v4252 = vshrl.u32 %v4251, 7
    %v4253 = vsub.s32 %v2314, %v4252
    %v4254 = vrot.slane %v3930, %v4253
    %v4255 = vsel %vm2319, %v4254, %v4250
    %v4256 = vlaneseq
    %v4257 = vshrl.u32 %v4256, 7
    %v4258 = vsub.s32 %v2309, %v4257
    %v4259 = vrot.slane %v3935, %v4258
    %v4260 = vlaneseq
    %v4261 = vshrl.u32 %v4260, 7
    %v4262 = vsub.s32 %v2314, %v4261
    %v4263 = vrot.slane %v3940, %v4262
    %v4264 = vsel %vm2319, %v4263, %v4259
    %v4265 = vlaneseq
    %v4266 = vshrl.u32 %v4265, 7
    %v4267 = vsub.s32 %v2309, %v4266
    %v4268 = vrot.slane %v3945, %v4267
    %v4269 = vlaneseq
    %v4270 = vshrl.u32 %v4269, 7
    %v4271 = vsub.s32 %v2314, %v4270
    %v4272 = vrot.slane %v3950, %v4271
    %v4273 = vsel %vm2319, %v4272, %v4268
    %v4274 = vlaneseq
    %v4275 = vshrl.u32 %v4274, 7
    %v4276 = vsub.s32 %v2309, %v4275
    %v4277 = vrot.slane %v3955, %v4276
    %v4278 = vlaneseq
    %v4279 = vshrl.u32 %v4278, 7
    %v4280 = vsub.s32 %v2314, %v4279
    %v4281 = vrot.slane %v3960, %v4280
    %v4282 = vsel %vm2319, %v4281, %v4277
    %v4283 = vlaneseq
    %v4284 = vshrl.u32 %v4283, 7
    %v4285 = vsub.s32 %v2309, %v4284
    %v4286 = vrot.slane %v3965, %v4285
    %v4287 = vlaneseq
    %v4288 = vshrl.u32 %v4287, 7
    %v4289 = vsub.s32 %v2314, %v4288
    %v4290 = vrot.slane %v3970, %v4289
    %v4291 = vsel %vm2319, %v4290, %v4286
    %v4292 = vsel %vm2456, %v4165, %v4156
    %v4293 = vsel %vm2458, %v4174, %v4292
    %v4294 = vsel %vm2460, %v4183, %v4293
    %v4295 = vsel %vm2462, %v4192, %v4294
    %v4296 = vsel %vm2464, %v4201, %v4295
    %v4297 = vsel %vm2466, %v4210, %v4296
    %v4298 = vsel %vm2468, %v4219, %v4297
    %v4299 = vsel %vm2456, %v4237, %v4228
    %v4300 = vsel %vm2458, %v4246, %v4299
    %v4301 = vsel %vm2460, %v4255, %v4300
    %v4302 = vsel %vm2462, %v4264, %v4301
    %v4303 = vsel %vm2464, %v4273, %v4302
    %v4304 = vsel %vm2466, %v4282, %v4303
    %v4305 = vsel %vm2468, %v4291, %v4304
    %v4308 = vsel %vm2479, %v4298, 0.0
    %4309 = vadd.xlane.f32.xlu0 %v4308
    %v4310 = vpop.xlane.xlu0 %4309
    %v4311 = vsel %vm2479, %v4305, 0.0
    %4312 = vadd.xlane.f32.xlu0 %v4311
    %v4313 = vpop.xlane.xlu0 %4312
    %v4314 = vmul.f32 %v4012, 0.01
    %v4315 = vmul.f32 %v4021, 0.01
    %v4316 = vmul.f32 %v4030, 0.01
    %v4317 = vmul.f32 %v4039, 0.01
    %v4318 = vmul.f32 %v4048, 0.01
    %v4319 = vmul.f32 %v4057, 0.01
    %v4320 = vmul.f32 %v4066, 0.01
    %v4321 = vmul.f32 %v4075, 0.01
    %v4322 = vmul.f32 %v4084, 0.01
    %v4323 = vmul.f32 %v4093, 0.01
    %v4324 = vmul.f32 %v4102, 0.01
    %v4325 = vmul.f32 %v4111, 0.01
    %v4326 = vmul.f32 %v4120, 0.01
    %v4327 = vmul.f32 %v4129, 0.01
    %v4328 = vmul.f32 %v4138, 0.01
    %v4329 = vmul.f32 %v4147, 0.01
    %v4330 = vsub.f32 %v3416, %v4314
    %v4331 = vsub.f32 %v3417, %v4315
    %v4332 = vsub.f32 %v3418, %v4316
    %v4333 = vsub.f32 %v3419, %v4317
    %v4334 = vsub.f32 %v3420, %v4318
    %v4335 = vsub.f32 %v3421, %v4319
    %v4336 = vsub.f32 %v3422, %v4320
    %v4337 = vsub.f32 %v3423, %v4321
    %v4338 = vsub.f32 %v3424, %v4322
    %v4339 = vsub.f32 %v3425, %v4323
    %v4340 = vsub.f32 %v3426, %v4324
    %v4341 = vsub.f32 %v3427, %v4325
    %v4342 = vsub.f32 %v3428, %v4326
    %v4343 = vsub.f32 %v3429, %v4327
    %v4344 = vsub.f32 %v3430, %v4328
    %v4345 = vsub.f32 %v3431, %v4329
    %v4346 = vmul.f32 %v4310, 0.01
    %v4347 = vmul.f32 %v4313, 0.01
    %v4348 = vsub.f32 %v3434, %v4346
    %v4349 = vsub.f32 %v3435, %v4347
    %v4350 = vlaneseq
    %v4351 = vshrl.u32 %v4350, 7
    %v4352 = vsub.s32 2, %v4351
    %v4353 = vrot.slane %v4330, %v4352
    %v4354 = vlaneseq
    %v4355 = vshrl.u32 %v4354, 7
    %v4356 = vsub.s32 2, %v4355
    %v4357 = vrot.slane %v4331, %v4356
    %v4358 = vlaneseq
    %v4359 = vshrl.u32 %v4358, 7
    %v4360 = vsub.s32 2, %v4359
    %v4361 = vrot.slane %v4332, %v4360
    %v4362 = vlaneseq
    %v4363 = vshrl.u32 %v4362, 7
    %v4364 = vsub.s32 2, %v4363
    %v4365 = vrot.slane %v4333, %v4364
    %v4366 = vlaneseq
    %v4367 = vshrl.u32 %v4366, 7
    %v4368 = vsub.s32 2, %v4367
    %v4369 = vrot.slane %v4334, %v4368
    %v4370 = vlaneseq
    %v4371 = vshrl.u32 %v4370, 7
    %v4372 = vsub.s32 2, %v4371
    %v4373 = vrot.slane %v4335, %v4372
    %v4374 = vlaneseq
    %v4375 = vshrl.u32 %v4374, 7
    %v4376 = vsub.s32 2, %v4375
    %v4377 = vrot.slane %v4336, %v4376
    %v4378 = vlaneseq
    %v4379 = vshrl.u32 %v4378, 7
    %v4380 = vsub.s32 2, %v4379
    %v4381 = vrot.slane %v4337, %v4380
    %v4382 = vlaneseq
    %v4383 = vshrl.u32 %v4382, 7
    %v4384 = vsub.s32 2, %v4383
    %v4385 = vrot.slane %v4338, %v4384
    %v4386 = vlaneseq
    %v4387 = vshrl.u32 %v4386, 7
    %v4388 = vsub.s32 2, %v4387
    %v4389 = vrot.slane %v4339, %v4388
    %v4390 = vlaneseq
    %v4391 = vshrl.u32 %v4390, 7
    %v4392 = vsub.s32 2, %v4391
    %v4393 = vrot.slane %v4340, %v4392
    %v4394 = vlaneseq
    %v4395 = vshrl.u32 %v4394, 7
    %v4396 = vsub.s32 2, %v4395
    %v4397 = vrot.slane %v4341, %v4396
    %v4398 = vlaneseq
    %v4399 = vshrl.u32 %v4398, 7
    %v4400 = vsub.s32 2, %v4399
    %v4401 = vrot.slane %v4342, %v4400
    %v4402 = vlaneseq
    %v4403 = vshrl.u32 %v4402, 7
    %v4404 = vsub.s32 2, %v4403
    %v4405 = vrot.slane %v4343, %v4404
    %v4406 = vlaneseq
    %v4407 = vshrl.u32 %v4406, 7
    %v4408 = vsub.s32 2, %v4407
    %v4409 = vrot.slane %v4344, %v4408
    %v4410 = vlaneseq
    %v4411 = vshrl.u32 %v4410, 7
    %v4412 = vsub.s32 2, %v4411
    %v4413 = vrot.slane %v4345, %v4412
    %v4414 = vmul.f32 %v753, %v4353
    %v4415 = vmul.f32 %v754, %v4353
    %v4416 = vmul.f32 %v755, %v4357
    %v4417 = vmul.f32 %v756, %v4357
    %v4418 = vmul.f32 %v757, %v4361
    %v4419 = vmul.f32 %v758, %v4361
    %v4420 = vmul.f32 %v759, %v4365
    %v4421 = vmul.f32 %v760, %v4365
    %v4422 = vmul.f32 %v761, %v4369
    %v4423 = vmul.f32 %v762, %v4369
    %v4424 = vmul.f32 %v763, %v4373
    %v4425 = vmul.f32 %v764, %v4373
    %v4426 = vmul.f32 %v765, %v4377
    %v4427 = vmul.f32 %v766, %v4377
    %v4428 = vmul.f32 %v767, %v4381
    %v4429 = vmul.f32 %v768, %v4381
    %v4430 = vmul.f32 %v769, %v4385
    %v4431 = vmul.f32 %v770, %v4385
    %v4432 = vmul.f32 %v771, %v4389
    %v4433 = vmul.f32 %v772, %v4389
    %v4434 = vmul.f32 %v773, %v4393
    %v4435 = vmul.f32 %v774, %v4393
    %v4436 = vmul.f32 %v775, %v4397
    %v4437 = vmul.f32 %v776, %v4397
    %v4438 = vmul.f32 %v777, %v4401
    %v4439 = vmul.f32 %v778, %v4401
    %v4440 = vmul.f32 %v779, %v4405
    %v4441 = vmul.f32 %v780, %v4405
    %v4442 = vmul.f32 %v781, %v4409
    %v4443 = vmul.f32 %v782, %v4409
    %v4444 = vmul.f32 %v783, %v4413
    %v4445 = vmul.f32 %v784, %v4413
    %v4446 = vsel %vm431, %v4414, 0.0
    %4447 = vadd.xlane.f32.xlu0 %v4446
    %v4448 = vpop.xlane.xlu0 %4447
    %v4449 = vsel %vm431, %v4415, 0.0
    %4450 = vadd.xlane.f32.xlu0 %v4449
    %v4451 = vpop.xlane.xlu0 %4450
    %v4452 = vsel %vm431, %v4416, 0.0
    %4453 = vadd.xlane.f32.xlu0 %v4452
    %v4454 = vpop.xlane.xlu0 %4453
    %v4455 = vsel %vm431, %v4417, 0.0
    %4456 = vadd.xlane.f32.xlu0 %v4455
    %v4457 = vpop.xlane.xlu0 %4456
    %v4458 = vsel %vm431, %v4418, 0.0
    %4459 = vadd.xlane.f32.xlu0 %v4458
    %v4460 = vpop.xlane.xlu0 %4459
    %v4461 = vsel %vm431, %v4419, 0.0
    %4462 = vadd.xlane.f32.xlu0 %v4461
    %v4463 = vpop.xlane.xlu0 %4462
    %v4464 = vsel %vm431, %v4420, 0.0
    %4465 = vadd.xlane.f32.xlu0 %v4464
    %v4466 = vpop.xlane.xlu0 %4465
    %v4467 = vsel %vm431, %v4421, 0.0
    %4468 = vadd.xlane.f32.xlu0 %v4467
    %v4469 = vpop.xlane.xlu0 %4468
    %v4470 = vsel %vm431, %v4422, 0.0
    %4471 = vadd.xlane.f32.xlu0 %v4470
    %v4472 = vpop.xlane.xlu0 %4471
    %v4473 = vsel %vm431, %v4423, 0.0
    %4474 = vadd.xlane.f32.xlu0 %v4473
    %v4475 = vpop.xlane.xlu0 %4474
    %v4476 = vsel %vm431, %v4424, 0.0
    %4477 = vadd.xlane.f32.xlu0 %v4476
    %v4478 = vpop.xlane.xlu0 %4477
    %v4479 = vsel %vm431, %v4425, 0.0
    %4480 = vadd.xlane.f32.xlu0 %v4479
    %v4481 = vpop.xlane.xlu0 %4480
    %v4482 = vsel %vm431, %v4426, 0.0
    %4483 = vadd.xlane.f32.xlu0 %v4482
    %v4484 = vpop.xlane.xlu0 %4483
    %v4485 = vsel %vm431, %v4427, 0.0
    %4486 = vadd.xlane.f32.xlu0 %v4485
    %v4487 = vpop.xlane.xlu0 %4486
    %v4488 = vsel %vm431, %v4428, 0.0
    %4489 = vadd.xlane.f32.xlu0 %v4488
    %v4490 = vpop.xlane.xlu0 %4489
    %v4491 = vsel %vm431, %v4429, 0.0
    %4492 = vadd.xlane.f32.xlu0 %v4491
    %v4493 = vpop.xlane.xlu0 %4492
    %v4494 = vsel %vm431, %v4430, 0.0
    %4495 = vadd.xlane.f32.xlu0 %v4494
    %v4496 = vpop.xlane.xlu0 %4495
    %v4497 = vsel %vm431, %v4431, 0.0
    %4498 = vadd.xlane.f32.xlu0 %v4497
    %v4499 = vpop.xlane.xlu0 %4498
    %v4500 = vsel %vm431, %v4432, 0.0
    %4501 = vadd.xlane.f32.xlu0 %v4500
    %v4502 = vpop.xlane.xlu0 %4501
    %v4503 = vsel %vm431, %v4433, 0.0
    %4504 = vadd.xlane.f32.xlu0 %v4503
    %v4505 = vpop.xlane.xlu0 %4504
    %v4506 = vsel %vm431, %v4434, 0.0
    %4507 = vadd.xlane.f32.xlu0 %v4506
    %v4508 = vpop.xlane.xlu0 %4507
    %v4509 = vsel %vm431, %v4435, 0.0
    %4510 = vadd.xlane.f32.xlu0 %v4509
    %v4511 = vpop.xlane.xlu0 %4510
    %v4512 = vsel %vm431, %v4436, 0.0
    %4513 = vadd.xlane.f32.xlu0 %v4512
    %v4514 = vpop.xlane.xlu0 %4513
    %v4515 = vsel %vm431, %v4437, 0.0
    %4516 = vadd.xlane.f32.xlu0 %v4515
    %v4517 = vpop.xlane.xlu0 %4516
    %v4518 = vsel %vm431, %v4438, 0.0
    %4519 = vadd.xlane.f32.xlu0 %v4518
    %v4520 = vpop.xlane.xlu0 %4519
    %v4521 = vsel %vm431, %v4439, 0.0
    %4522 = vadd.xlane.f32.xlu0 %v4521
    %v4523 = vpop.xlane.xlu0 %4522
    %v4524 = vsel %vm431, %v4440, 0.0
    %4525 = vadd.xlane.f32.xlu0 %v4524
    %v4526 = vpop.xlane.xlu0 %4525
    %v4527 = vsel %vm431, %v4441, 0.0
    %4528 = vadd.xlane.f32.xlu0 %v4527
    %v4529 = vpop.xlane.xlu0 %4528
    %v4530 = vsel %vm431, %v4442, 0.0
    %4531 = vadd.xlane.f32.xlu0 %v4530
    %v4532 = vpop.xlane.xlu0 %4531
    %v4533 = vsel %vm431, %v4443, 0.0
    %4534 = vadd.xlane.f32.xlu0 %v4533
    %v4535 = vpop.xlane.xlu0 %4534
    %v4536 = vsel %vm431, %v4444, 0.0
    %4537 = vadd.xlane.f32.xlu0 %v4536
    %v4538 = vpop.xlane.xlu0 %4537
    %v4539 = vsel %vm431, %v4445, 0.0
    %4540 = vadd.xlane.f32.xlu0 %v4539
    %v4541 = vpop.xlane.xlu0 %4540
    %4543 = vset.pattern.permute.xlu0 0
    %4544 = vperm.xlu0 %4543, %v4348
    %v4545 = vpop.permute.xlu0 %4544
    %4547 = vset.pattern.permute.xlu0 0
    %4548 = vperm.xlu0 %4547, %v4349
    %v4549 = vpop.permute.xlu0 %4548
    %v4550 = vlaneseq
    %v4551 = vshrl.u32 %v4550, 7
    %v4552 = vsub.s32 0, %v4551
    %v4553 = vrot.slane %v4545, %v4552
    %v4554 = vlaneseq
    %v4555 = vshrl.u32 %v4554, 7
    %v4556 = vsub.s32 1, %v4555
    %v4557 = vrot.slane %v4545, %v4556
    %v4558 = vlaneseq
    %v4559 = vshrl.u32 %v4558, 7
    %v4560 = vsub.s32 2, %v4559
    %v4561 = vrot.slane %v4545, %v4560
    %v4562 = vlaneseq
    %v4563 = vshrl.u32 %v4562, 7
    %v4564 = vsub.s32 3, %v4563
    %v4565 = vrot.slane %v4545, %v4564
    %v4566 = vlaneseq
    %v4567 = vshrl.u32 %v4566, 7
    %v4568 = vsub.s32 4, %v4567
    %v4569 = vrot.slane %v4545, %v4568
    %v4570 = vlaneseq
    %v4571 = vshrl.u32 %v4570, 7
    %v4572 = vsub.s32 5, %v4571
    %v4573 = vrot.slane %v4545, %v4572
    %v4574 = vlaneseq
    %v4575 = vshrl.u32 %v4574, 7
    %v4576 = vsub.s32 6, %v4575
    %v4577 = vrot.slane %v4545, %v4576
    %v4578 = vlaneseq
    %v4579 = vshrl.u32 %v4578, 7
    %v4580 = vsub.s32 7, %v4579
    %v4581 = vrot.slane %v4545, %v4580
    %v4582 = vlaneseq
    %v4583 = vshrl.u32 %v4582, 7
    %v4584 = vsub.s32 0, %v4583
    %v4585 = vrot.slane %v4549, %v4584
    %v4586 = vlaneseq
    %v4587 = vshrl.u32 %v4586, 7
    %v4588 = vsub.s32 1, %v4587
    %v4589 = vrot.slane %v4549, %v4588
    %v4590 = vlaneseq
    %v4591 = vshrl.u32 %v4590, 7
    %v4592 = vsub.s32 2, %v4591
    %v4593 = vrot.slane %v4549, %v4592
    %v4594 = vlaneseq
    %v4595 = vshrl.u32 %v4594, 7
    %v4596 = vsub.s32 3, %v4595
    %v4597 = vrot.slane %v4549, %v4596
    %v4598 = vlaneseq
    %v4599 = vshrl.u32 %v4598, 7
    %v4600 = vsub.s32 4, %v4599
    %v4601 = vrot.slane %v4549, %v4600
    %v4602 = vlaneseq
    %v4603 = vshrl.u32 %v4602, 7
    %v4604 = vsub.s32 5, %v4603
    %v4605 = vrot.slane %v4549, %v4604
    %v4606 = vlaneseq
    %v4607 = vshrl.u32 %v4606, 7
    %v4608 = vsub.s32 6, %v4607
    %v4609 = vrot.slane %v4549, %v4608
    %v4610 = vlaneseq
    %v4611 = vshrl.u32 %v4610, 7
    %v4612 = vsub.s32 7, %v4611
    %v4613 = vrot.slane %v4549, %v4612
    %v4630 = vadd.f32 %v4448, %v4553
    %v4631 = vadd.f32 %v4451, %v4553
    %v4632 = vadd.f32 %v4454, %v4557
    %v4633 = vadd.f32 %v4457, %v4557
    %v4634 = vadd.f32 %v4460, %v4561
    %v4635 = vadd.f32 %v4463, %v4561
    %v4636 = vadd.f32 %v4466, %v4565
    %v4637 = vadd.f32 %v4469, %v4565
    %v4638 = vadd.f32 %v4472, %v4569
    %v4639 = vadd.f32 %v4475, %v4569
    %v4640 = vadd.f32 %v4478, %v4573
    %v4641 = vadd.f32 %v4481, %v4573
    %v4642 = vadd.f32 %v4484, %v4577
    %v4643 = vadd.f32 %v4487, %v4577
    %v4644 = vadd.f32 %v4490, %v4581
    %v4645 = vadd.f32 %v4493, %v4581
    %v4646 = vadd.f32 %v4496, %v4585
    %v4647 = vadd.f32 %v4499, %v4585
    %v4648 = vadd.f32 %v4502, %v4589
    %v4649 = vadd.f32 %v4505, %v4589
    %v4650 = vadd.f32 %v4508, %v4593
    %v4651 = vadd.f32 %v4511, %v4593
    %v4652 = vadd.f32 %v4514, %v4597
    %v4653 = vadd.f32 %v4517, %v4597
    %v4654 = vadd.f32 %v4520, %v4601
    %v4655 = vadd.f32 %v4523, %v4601
    %v4656 = vadd.f32 %v4526, %v4605
    %v4657 = vadd.f32 %v4529, %v4605
    %v4658 = vadd.f32 %v4532, %v4609
    %v4659 = vadd.f32 %v4535, %v4609
    %v4660 = vadd.f32 %v4538, %v4613
    %v4661 = vadd.f32 %v4541, %v4613
    %v4662 = vsub.f32 %v4630, %v1706
    %v4663 = vsub.f32 %v4631, %v1710
    %v4664 = vsub.f32 %v4632, %v1717
    %v4665 = vsub.f32 %v4633, %v1721
    %v4666 = vsub.f32 %v4634, %v1728
    %v4667 = vsub.f32 %v4635, %v1732
    %v4668 = vsub.f32 %v4636, %v1739
    %v4669 = vsub.f32 %v4637, %v1743
    %v4670 = vsub.f32 %v4638, %v1750
    %v4671 = vsub.f32 %v4639, %v1754
    %v4672 = vsub.f32 %v4640, %v1761
    %v4673 = vsub.f32 %v4641, %v1765
    %v4674 = vsub.f32 %v4642, %v1772
    %v4675 = vsub.f32 %v4643, %v1776
    %v4676 = vsub.f32 %v4644, %v1783
    %v4677 = vsub.f32 %v4645, %v1787
    %v4678 = vsub.f32 %v4646, %v1794
    %v4679 = vsub.f32 %v4647, %v1798
    %v4680 = vsub.f32 %v4648, %v1805
    %v4681 = vsub.f32 %v4649, %v1809
    %v4682 = vsub.f32 %v4650, %v1816
    %v4683 = vsub.f32 %v4651, %v1820
    %v4684 = vsub.f32 %v4652, %v1827
    %v4685 = vsub.f32 %v4653, %v1831
    %v4686 = vsub.f32 %v4654, %v1838
    %v4687 = vsub.f32 %v4655, %v1842
    %v4688 = vsub.f32 %v4656, %v1849
    %v4689 = vsub.f32 %v4657, %v1853
    %v4690 = vsub.f32 %v4658, %v1860
    %v4691 = vsub.f32 %v4659, %v1864
    %v4692 = vsub.f32 %v4660, %v1871
    %v4693 = vsub.f32 %v4661, %v1875
    %v4694 = vmul.f32 %v4662, 0.125
    %v4695 = vmul.f32 %v4663, 0.125
    %v4696 = vmul.f32 %v4664, 0.125
    %v4697 = vmul.f32 %v4665, 0.125
    %v4698 = vmul.f32 %v4666, 0.125
    %v4699 = vmul.f32 %v4667, 0.125
    %v4700 = vmul.f32 %v4668, 0.125
    %v4701 = vmul.f32 %v4669, 0.125
    %v4702 = vmul.f32 %v4670, 0.125
    %v4703 = vmul.f32 %v4671, 0.125
    %v4704 = vmul.f32 %v4672, 0.125
    %v4705 = vmul.f32 %v4673, 0.125
    %v4706 = vmul.f32 %v4674, 0.125
    %v4707 = vmul.f32 %v4675, 0.125
    %v4708 = vmul.f32 %v4676, 0.125
    %v4709 = vmul.f32 %v4677, 0.125
    %v4710 = vmul.f32 %v4678, 0.125
    %v4711 = vmul.f32 %v4679, 0.125
    %v4712 = vmul.f32 %v4680, 0.125
    %v4713 = vmul.f32 %v4681, 0.125
    %v4714 = vmul.f32 %v4682, 0.125
    %v4715 = vmul.f32 %v4683, 0.125
    %v4716 = vmul.f32 %v4684, 0.125
    %v4717 = vmul.f32 %v4685, 0.125
    %v4718 = vmul.f32 %v4686, 0.125
    %v4719 = vmul.f32 %v4687, 0.125
    %v4720 = vmul.f32 %v4688, 0.125
    %v4721 = vmul.f32 %v4689, 0.125
    %v4722 = vmul.f32 %v4690, 0.125
    %v4723 = vmul.f32 %v4691, 0.125
    %v4724 = vmul.f32 %v4692, 0.125
    %v4725 = vmul.f32 %v4693, 0.125
    %4727 = vset.pattern.permute.xlu0 0
    %4728 = vperm.xlu0 %4727, %v4694
    %v4729 = vpop.permute.xlu0 %4728
    %4732 = vset.pattern.permute.xlu0 0
    %4733 = vperm.xlu0 %4732, %v4695
    %v4734 = vpop.permute.xlu0 %4733
    %4737 = vset.pattern.permute.xlu0 0
    %4738 = vperm.xlu0 %4737, %v4696
    %v4739 = vpop.permute.xlu0 %4738
    %4742 = vset.pattern.permute.xlu0 0
    %4743 = vperm.xlu0 %4742, %v4697
    %v4744 = vpop.permute.xlu0 %4743
    %4747 = vset.pattern.permute.xlu0 0
    %4748 = vperm.xlu0 %4747, %v4698
    %v4749 = vpop.permute.xlu0 %4748
    %4752 = vset.pattern.permute.xlu0 0
    %4753 = vperm.xlu0 %4752, %v4699
    %v4754 = vpop.permute.xlu0 %4753
    %4757 = vset.pattern.permute.xlu0 0
    %4758 = vperm.xlu0 %4757, %v4700
    %v4759 = vpop.permute.xlu0 %4758
    %4762 = vset.pattern.permute.xlu0 0
    %4763 = vperm.xlu0 %4762, %v4701
    %v4764 = vpop.permute.xlu0 %4763
    %4767 = vset.pattern.permute.xlu0 0
    %4768 = vperm.xlu0 %4767, %v4702
    %v4769 = vpop.permute.xlu0 %4768
    %4772 = vset.pattern.permute.xlu0 0
    %4773 = vperm.xlu0 %4772, %v4703
    %v4774 = vpop.permute.xlu0 %4773
    %4777 = vset.pattern.permute.xlu0 0
    %4778 = vperm.xlu0 %4777, %v4704
    %v4779 = vpop.permute.xlu0 %4778
    %4782 = vset.pattern.permute.xlu0 0
    %4783 = vperm.xlu0 %4782, %v4705
    %v4784 = vpop.permute.xlu0 %4783
    %4787 = vset.pattern.permute.xlu0 0
    %4788 = vperm.xlu0 %4787, %v4706
    %v4789 = vpop.permute.xlu0 %4788
    %4792 = vset.pattern.permute.xlu0 0
    %4793 = vperm.xlu0 %4792, %v4707
    %v4794 = vpop.permute.xlu0 %4793
    %4797 = vset.pattern.permute.xlu0 0
    %4798 = vperm.xlu0 %4797, %v4708
    %v4799 = vpop.permute.xlu0 %4798
    %4802 = vset.pattern.permute.xlu0 0
    %4803 = vperm.xlu0 %4802, %v4709
    %v4804 = vpop.permute.xlu0 %4803
    %4807 = vset.pattern.permute.xlu0 0
    %4808 = vperm.xlu0 %4807, %v4710
    %v4809 = vpop.permute.xlu0 %4808
    %4812 = vset.pattern.permute.xlu0 0
    %4813 = vperm.xlu0 %4812, %v4711
    %v4814 = vpop.permute.xlu0 %4813
    %4817 = vset.pattern.permute.xlu0 0
    %4818 = vperm.xlu0 %4817, %v4712
    %v4819 = vpop.permute.xlu0 %4818
    %4822 = vset.pattern.permute.xlu0 0
    %4823 = vperm.xlu0 %4822, %v4713
    %v4824 = vpop.permute.xlu0 %4823
    %4827 = vset.pattern.permute.xlu0 0
    %4828 = vperm.xlu0 %4827, %v4714
    %v4829 = vpop.permute.xlu0 %4828
    %4832 = vset.pattern.permute.xlu0 0
    %4833 = vperm.xlu0 %4832, %v4715
    %v4834 = vpop.permute.xlu0 %4833
    %4837 = vset.pattern.permute.xlu0 0
    %4838 = vperm.xlu0 %4837, %v4716
    %v4839 = vpop.permute.xlu0 %4838
    %4842 = vset.pattern.permute.xlu0 0
    %4843 = vperm.xlu0 %4842, %v4717
    %v4844 = vpop.permute.xlu0 %4843
    %4847 = vset.pattern.permute.xlu0 0
    %4848 = vperm.xlu0 %4847, %v4718
    %v4849 = vpop.permute.xlu0 %4848
    %4852 = vset.pattern.permute.xlu0 0
    %4853 = vperm.xlu0 %4852, %v4719
    %v4854 = vpop.permute.xlu0 %4853
    %4857 = vset.pattern.permute.xlu0 0
    %4858 = vperm.xlu0 %4857, %v4720
    %v4859 = vpop.permute.xlu0 %4858
    %4862 = vset.pattern.permute.xlu0 0
    %4863 = vperm.xlu0 %4862, %v4721
    %v4864 = vpop.permute.xlu0 %4863
    %4867 = vset.pattern.permute.xlu0 0
    %4868 = vperm.xlu0 %4867, %v4722
    %v4869 = vpop.permute.xlu0 %4868
    %4872 = vset.pattern.permute.xlu0 0
    %4873 = vperm.xlu0 %4872, %v4723
    %v4874 = vpop.permute.xlu0 %4873
    %4877 = vset.pattern.permute.xlu0 0
    %4878 = vperm.xlu0 %4877, %v4724
    %v4879 = vpop.permute.xlu0 %4878
    %4882 = vset.pattern.permute.xlu0 0
    %4883 = vperm.xlu0 %4882, %v4725
    %v4884 = vpop.permute.xlu0 %4883
    %v4886 = vmul.f32 %v753, %v4729
    %v4887 = vmul.f32 %v754, %v4734
    %v4888 = vmul.f32 %v755, %v4739
    %v4889 = vmul.f32 %v756, %v4744
    %v4890 = vmul.f32 %v757, %v4749
    %v4891 = vmul.f32 %v758, %v4754
    %v4892 = vmul.f32 %v759, %v4759
    %v4893 = vmul.f32 %v760, %v4764
    %v4894 = vmul.f32 %v761, %v4769
    %v4895 = vmul.f32 %v762, %v4774
    %v4896 = vmul.f32 %v763, %v4779
    %v4897 = vmul.f32 %v764, %v4784
    %v4898 = vmul.f32 %v765, %v4789
    %v4899 = vmul.f32 %v766, %v4794
    %v4900 = vmul.f32 %v767, %v4799
    %v4901 = vmul.f32 %v768, %v4804
    %v4902 = vmul.f32 %v769, %v4809
    %v4903 = vmul.f32 %v770, %v4814
    %v4904 = vmul.f32 %v771, %v4819
    %v4905 = vmul.f32 %v772, %v4824
    %v4906 = vmul.f32 %v773, %v4829
    %v4907 = vmul.f32 %v774, %v4834
    %v4908 = vmul.f32 %v775, %v4839
    %v4909 = vmul.f32 %v776, %v4844
    %v4910 = vmul.f32 %v777, %v4849
    %v4911 = vmul.f32 %v778, %v4854
    %v4912 = vmul.f32 %v779, %v4859
    %v4913 = vmul.f32 %v780, %v4864
    %v4914 = vmul.f32 %v781, %v4869
    %v4915 = vmul.f32 %v782, %v4874
    %v4916 = vmul.f32 %v783, %v4879
    %v4917 = vmul.f32 %v784, %v4884
    %v4918 = vsel %vm431, %v4886, 0.0
    %v4919 = vsel %vm431, %v4887, 0.0
    %v4920 = vadd.f32 %v4918, %v4919
    %v4921 = vrot.slane %v4920, 4
    %v4922 = vadd.f32 %v4920, %v4921
    %v4923 = vrot.slane %v4922, 2
    %v4924 = vadd.f32 %v4922, %v4923
    %v4925 = vrot.slane %v4924, 1
    %v4926 = vadd.f32 %v4924, %v4925
    %v4927 = vsel %vm431, %v4888, 0.0
    %v4928 = vsel %vm431, %v4889, 0.0
    %v4929 = vadd.f32 %v4927, %v4928
    %v4930 = vrot.slane %v4929, 4
    %v4931 = vadd.f32 %v4929, %v4930
    %v4932 = vrot.slane %v4931, 2
    %v4933 = vadd.f32 %v4931, %v4932
    %v4934 = vrot.slane %v4933, 1
    %v4935 = vadd.f32 %v4933, %v4934
    %v4936 = vsel %vm431, %v4890, 0.0
    %v4937 = vsel %vm431, %v4891, 0.0
    %v4938 = vadd.f32 %v4936, %v4937
    %v4939 = vrot.slane %v4938, 4
    %v4940 = vadd.f32 %v4938, %v4939
    %v4941 = vrot.slane %v4940, 2
    %v4942 = vadd.f32 %v4940, %v4941
    %v4943 = vrot.slane %v4942, 1
    %v4944 = vadd.f32 %v4942, %v4943
    %v4945 = vsel %vm431, %v4892, 0.0
    %v4946 = vsel %vm431, %v4893, 0.0
    %v4947 = vadd.f32 %v4945, %v4946
    %v4948 = vrot.slane %v4947, 4
    %v4949 = vadd.f32 %v4947, %v4948
    %v4950 = vrot.slane %v4949, 2
    %v4951 = vadd.f32 %v4949, %v4950
    %v4952 = vrot.slane %v4951, 1
    %v4953 = vadd.f32 %v4951, %v4952
    %v4954 = vsel %vm431, %v4894, 0.0
    %v4955 = vsel %vm431, %v4895, 0.0
    %v4956 = vadd.f32 %v4954, %v4955
    %v4957 = vrot.slane %v4956, 4
    %v4958 = vadd.f32 %v4956, %v4957
    %v4959 = vrot.slane %v4958, 2
    %v4960 = vadd.f32 %v4958, %v4959
    %v4961 = vrot.slane %v4960, 1
    %v4962 = vadd.f32 %v4960, %v4961
    %v4963 = vsel %vm431, %v4896, 0.0
    %v4964 = vsel %vm431, %v4897, 0.0
    %v4965 = vadd.f32 %v4963, %v4964
    %v4966 = vrot.slane %v4965, 4
    %v4967 = vadd.f32 %v4965, %v4966
    %v4968 = vrot.slane %v4967, 2
    %v4969 = vadd.f32 %v4967, %v4968
    %v4970 = vrot.slane %v4969, 1
    %v4971 = vadd.f32 %v4969, %v4970
    %v4972 = vsel %vm431, %v4898, 0.0
    %v4973 = vsel %vm431, %v4899, 0.0
    %v4974 = vadd.f32 %v4972, %v4973
    %v4975 = vrot.slane %v4974, 4
    %v4976 = vadd.f32 %v4974, %v4975
    %v4977 = vrot.slane %v4976, 2
    %v4978 = vadd.f32 %v4976, %v4977
    %v4979 = vrot.slane %v4978, 1
    %v4980 = vadd.f32 %v4978, %v4979
    %v4981 = vsel %vm431, %v4900, 0.0
    %v4982 = vsel %vm431, %v4901, 0.0
    %v4983 = vadd.f32 %v4981, %v4982
    %v4984 = vrot.slane %v4983, 4
    %v4985 = vadd.f32 %v4983, %v4984
    %v4986 = vrot.slane %v4985, 2
    %v4987 = vadd.f32 %v4985, %v4986
    %v4988 = vrot.slane %v4987, 1
    %v4989 = vadd.f32 %v4987, %v4988
    %v4990 = vsel %vm431, %v4902, 0.0
    %v4991 = vsel %vm431, %v4903, 0.0
    %v4992 = vadd.f32 %v4990, %v4991
    %v4993 = vrot.slane %v4992, 4
    %v4994 = vadd.f32 %v4992, %v4993
    %v4995 = vrot.slane %v4994, 2
    %v4996 = vadd.f32 %v4994, %v4995
    %v4997 = vrot.slane %v4996, 1
    %v4998 = vadd.f32 %v4996, %v4997
    %v4999 = vsel %vm431, %v4904, 0.0
    %v5000 = vsel %vm431, %v4905, 0.0
    %v5001 = vadd.f32 %v4999, %v5000
    %v5002 = vrot.slane %v5001, 4
    %v5003 = vadd.f32 %v5001, %v5002
    %v5004 = vrot.slane %v5003, 2
    %v5005 = vadd.f32 %v5003, %v5004
    %v5006 = vrot.slane %v5005, 1
    %v5007 = vadd.f32 %v5005, %v5006
    %v5008 = vsel %vm431, %v4906, 0.0
    %v5009 = vsel %vm431, %v4907, 0.0
    %v5010 = vadd.f32 %v5008, %v5009
    %v5011 = vrot.slane %v5010, 4
    %v5012 = vadd.f32 %v5010, %v5011
    %v5013 = vrot.slane %v5012, 2
    %v5014 = vadd.f32 %v5012, %v5013
    %v5015 = vrot.slane %v5014, 1
    %v5016 = vadd.f32 %v5014, %v5015
    %v5017 = vsel %vm431, %v4908, 0.0
    %v5018 = vsel %vm431, %v4909, 0.0
    %v5019 = vadd.f32 %v5017, %v5018
    %v5020 = vrot.slane %v5019, 4
    %v5021 = vadd.f32 %v5019, %v5020
    %v5022 = vrot.slane %v5021, 2
    %v5023 = vadd.f32 %v5021, %v5022
    %v5024 = vrot.slane %v5023, 1
    %v5025 = vadd.f32 %v5023, %v5024
    %v5026 = vsel %vm431, %v4910, 0.0
    %v5027 = vsel %vm431, %v4911, 0.0
    %v5028 = vadd.f32 %v5026, %v5027
    %v5029 = vrot.slane %v5028, 4
    %v5030 = vadd.f32 %v5028, %v5029
    %v5031 = vrot.slane %v5030, 2
    %v5032 = vadd.f32 %v5030, %v5031
    %v5033 = vrot.slane %v5032, 1
    %v5034 = vadd.f32 %v5032, %v5033
    %v5035 = vsel %vm431, %v4912, 0.0
    %v5036 = vsel %vm431, %v4913, 0.0
    %v5037 = vadd.f32 %v5035, %v5036
    %v5038 = vrot.slane %v5037, 4
    %v5039 = vadd.f32 %v5037, %v5038
    %v5040 = vrot.slane %v5039, 2
    %v5041 = vadd.f32 %v5039, %v5040
    %v5042 = vrot.slane %v5041, 1
    %v5043 = vadd.f32 %v5041, %v5042
    %v5044 = vsel %vm431, %v4914, 0.0
    %v5045 = vsel %vm431, %v4915, 0.0
    %v5046 = vadd.f32 %v5044, %v5045
    %v5047 = vrot.slane %v5046, 4
    %v5048 = vadd.f32 %v5046, %v5047
    %v5049 = vrot.slane %v5048, 2
    %v5050 = vadd.f32 %v5048, %v5049
    %v5051 = vrot.slane %v5050, 1
    %v5052 = vadd.f32 %v5050, %v5051
    %v5053 = vsel %vm431, %v4916, 0.0
    %v5054 = vsel %vm431, %v4917, 0.0
    %v5055 = vadd.f32 %v5053, %v5054
    %v5056 = vrot.slane %v5055, 4
    %v5057 = vadd.f32 %v5055, %v5056
    %v5058 = vrot.slane %v5057, 2
    %v5059 = vadd.f32 %v5057, %v5058
    %v5060 = vrot.slane %v5059, 1
    %v5061 = vadd.f32 %v5059, %v5060
    %v5062 = vlaneseq
    %v5063 = vshrl.u32 %v5062, 7
    %v5064 = vsub.s32 %v2309, %v5063
    %v5065 = vrot.slane %v4729, %v5064
    %v5066 = vlaneseq
    %v5067 = vshrl.u32 %v5066, 7
    %v5068 = vsub.s32 %v2314, %v5067
    %v5069 = vrot.slane %v4734, %v5068
    %v5070 = vsel %vm2319, %v5069, %v5065
    %v5071 = vlaneseq
    %v5072 = vshrl.u32 %v5071, 7
    %v5073 = vsub.s32 %v2309, %v5072
    %v5074 = vrot.slane %v4739, %v5073
    %v5075 = vlaneseq
    %v5076 = vshrl.u32 %v5075, 7
    %v5077 = vsub.s32 %v2314, %v5076
    %v5078 = vrot.slane %v4744, %v5077
    %v5079 = vsel %vm2319, %v5078, %v5074
    %v5080 = vlaneseq
    %v5081 = vshrl.u32 %v5080, 7
    %v5082 = vsub.s32 %v2309, %v5081
    %v5083 = vrot.slane %v4749, %v5082
    %v5084 = vlaneseq
    %v5085 = vshrl.u32 %v5084, 7
    %v5086 = vsub.s32 %v2314, %v5085
    %v5087 = vrot.slane %v4754, %v5086
    %v5088 = vsel %vm2319, %v5087, %v5083
    %v5089 = vlaneseq
    %v5090 = vshrl.u32 %v5089, 7
    %v5091 = vsub.s32 %v2309, %v5090
    %v5092 = vrot.slane %v4759, %v5091
    %v5093 = vlaneseq
    %v5094 = vshrl.u32 %v5093, 7
    %v5095 = vsub.s32 %v2314, %v5094
    %v5096 = vrot.slane %v4764, %v5095
    %v5097 = vsel %vm2319, %v5096, %v5092
    %v5098 = vlaneseq
    %v5099 = vshrl.u32 %v5098, 7
    %v5100 = vsub.s32 %v2309, %v5099
    %v5101 = vrot.slane %v4769, %v5100
    %v5102 = vlaneseq
    %v5103 = vshrl.u32 %v5102, 7
    %v5104 = vsub.s32 %v2314, %v5103
    %v5105 = vrot.slane %v4774, %v5104
    %v5106 = vsel %vm2319, %v5105, %v5101
    %v5107 = vlaneseq
    %v5108 = vshrl.u32 %v5107, 7
    %v5109 = vsub.s32 %v2309, %v5108
    %v5110 = vrot.slane %v4779, %v5109
    %v5111 = vlaneseq
    %v5112 = vshrl.u32 %v5111, 7
    %v5113 = vsub.s32 %v2314, %v5112
    %v5114 = vrot.slane %v4784, %v5113
    %v5115 = vsel %vm2319, %v5114, %v5110
    %v5116 = vlaneseq
    %v5117 = vshrl.u32 %v5116, 7
    %v5118 = vsub.s32 %v2309, %v5117
    %v5119 = vrot.slane %v4789, %v5118
    %v5120 = vlaneseq
    %v5121 = vshrl.u32 %v5120, 7
    %v5122 = vsub.s32 %v2314, %v5121
    %v5123 = vrot.slane %v4794, %v5122
    %v5124 = vsel %vm2319, %v5123, %v5119
    %v5125 = vlaneseq
    %v5126 = vshrl.u32 %v5125, 7
    %v5127 = vsub.s32 %v2309, %v5126
    %v5128 = vrot.slane %v4799, %v5127
    %v5129 = vlaneseq
    %v5130 = vshrl.u32 %v5129, 7
    %v5131 = vsub.s32 %v2314, %v5130
    %v5132 = vrot.slane %v4804, %v5131
    %v5133 = vsel %vm2319, %v5132, %v5128
    %v5134 = vlaneseq
    %v5135 = vshrl.u32 %v5134, 7
    %v5136 = vsub.s32 %v2309, %v5135
    %v5137 = vrot.slane %v4809, %v5136
    %v5138 = vlaneseq
    %v5139 = vshrl.u32 %v5138, 7
    %v5140 = vsub.s32 %v2314, %v5139
    %v5141 = vrot.slane %v4814, %v5140
    %v5142 = vsel %vm2319, %v5141, %v5137
    %v5143 = vlaneseq
    %v5144 = vshrl.u32 %v5143, 7
    %v5145 = vsub.s32 %v2309, %v5144
    %v5146 = vrot.slane %v4819, %v5145
    %v5147 = vlaneseq
    %v5148 = vshrl.u32 %v5147, 7
    %v5149 = vsub.s32 %v2314, %v5148
    %v5150 = vrot.slane %v4824, %v5149
    %v5151 = vsel %vm2319, %v5150, %v5146
    %v5152 = vlaneseq
    %v5153 = vshrl.u32 %v5152, 7
    %v5154 = vsub.s32 %v2309, %v5153
    %v5155 = vrot.slane %v4829, %v5154
    %v5156 = vlaneseq
    %v5157 = vshrl.u32 %v5156, 7
    %v5158 = vsub.s32 %v2314, %v5157
    %v5159 = vrot.slane %v4834, %v5158
    %v5160 = vsel %vm2319, %v5159, %v5155
    %v5161 = vlaneseq
    %v5162 = vshrl.u32 %v5161, 7
    %v5163 = vsub.s32 %v2309, %v5162
    %v5164 = vrot.slane %v4839, %v5163
    %v5165 = vlaneseq
    %v5166 = vshrl.u32 %v5165, 7
    %v5167 = vsub.s32 %v2314, %v5166
    %v5168 = vrot.slane %v4844, %v5167
    %v5169 = vsel %vm2319, %v5168, %v5164
    %v5170 = vlaneseq
    %v5171 = vshrl.u32 %v5170, 7
    %v5172 = vsub.s32 %v2309, %v5171
    %v5173 = vrot.slane %v4849, %v5172
    %v5174 = vlaneseq
    %v5175 = vshrl.u32 %v5174, 7
    %v5176 = vsub.s32 %v2314, %v5175
    %v5177 = vrot.slane %v4854, %v5176
    %v5178 = vsel %vm2319, %v5177, %v5173
    %v5179 = vlaneseq
    %v5180 = vshrl.u32 %v5179, 7
    %v5181 = vsub.s32 %v2309, %v5180
    %v5182 = vrot.slane %v4859, %v5181
    %v5183 = vlaneseq
    %v5184 = vshrl.u32 %v5183, 7
    %v5185 = vsub.s32 %v2314, %v5184
    %v5186 = vrot.slane %v4864, %v5185
    %v5187 = vsel %vm2319, %v5186, %v5182
    %v5188 = vlaneseq
    %v5189 = vshrl.u32 %v5188, 7
    %v5190 = vsub.s32 %v2309, %v5189
    %v5191 = vrot.slane %v4869, %v5190
    %v5192 = vlaneseq
    %v5193 = vshrl.u32 %v5192, 7
    %v5194 = vsub.s32 %v2314, %v5193
    %v5195 = vrot.slane %v4874, %v5194
    %v5196 = vsel %vm2319, %v5195, %v5191
    %v5197 = vlaneseq
    %v5198 = vshrl.u32 %v5197, 7
    %v5199 = vsub.s32 %v2309, %v5198
    %v5200 = vrot.slane %v4879, %v5199
    %v5201 = vlaneseq
    %v5202 = vshrl.u32 %v5201, 7
    %v5203 = vsub.s32 %v2314, %v5202
    %v5204 = vrot.slane %v4884, %v5203
    %v5205 = vsel %vm2319, %v5204, %v5200
    %v5206 = vsel %vm2456, %v5079, %v5070
    %v5207 = vsel %vm2458, %v5088, %v5206
    %v5208 = vsel %vm2460, %v5097, %v5207
    %v5209 = vsel %vm2462, %v5106, %v5208
    %v5210 = vsel %vm2464, %v5115, %v5209
    %v5211 = vsel %vm2466, %v5124, %v5210
    %v5212 = vsel %vm2468, %v5133, %v5211
    %v5213 = vsel %vm2456, %v5151, %v5142
    %v5214 = vsel %vm2458, %v5160, %v5213
    %v5215 = vsel %vm2460, %v5169, %v5214
    %v5216 = vsel %vm2462, %v5178, %v5215
    %v5217 = vsel %vm2464, %v5187, %v5216
    %v5218 = vsel %vm2466, %v5196, %v5217
    %v5219 = vsel %vm2468, %v5205, %v5218
    %v5222 = vsel %vm2479, %v5212, 0.0
    %5223 = vadd.xlane.f32.xlu0 %v5222
    %v5224 = vpop.xlane.xlu0 %5223
    %v5225 = vsel %vm2479, %v5219, 0.0
    %5226 = vadd.xlane.f32.xlu0 %v5225
    %v5227 = vpop.xlane.xlu0 %5226
    %v5228 = vmul.f32 %v4926, 0.01
    %v5229 = vmul.f32 %v4935, 0.01
    %v5230 = vmul.f32 %v4944, 0.01
    %v5231 = vmul.f32 %v4953, 0.01
    %v5232 = vmul.f32 %v4962, 0.01
    %v5233 = vmul.f32 %v4971, 0.01
    %v5234 = vmul.f32 %v4980, 0.01
    %v5235 = vmul.f32 %v4989, 0.01
    %v5236 = vmul.f32 %v4998, 0.01
    %v5237 = vmul.f32 %v5007, 0.01
    %v5238 = vmul.f32 %v5016, 0.01
    %v5239 = vmul.f32 %v5025, 0.01
    %v5240 = vmul.f32 %v5034, 0.01
    %v5241 = vmul.f32 %v5043, 0.01
    %v5242 = vmul.f32 %v5052, 0.01
    %v5243 = vmul.f32 %v5061, 0.01
    %v5244 = vsub.f32 %v4330, %v5228
    %v5245 = vsub.f32 %v4331, %v5229
    %v5246 = vsub.f32 %v4332, %v5230
    %v5247 = vsub.f32 %v4333, %v5231
    %v5248 = vsub.f32 %v4334, %v5232
    %v5249 = vsub.f32 %v4335, %v5233
    %v5250 = vsub.f32 %v4336, %v5234
    %v5251 = vsub.f32 %v4337, %v5235
    %v5252 = vsub.f32 %v4338, %v5236
    %v5253 = vsub.f32 %v4339, %v5237
    %v5254 = vsub.f32 %v4340, %v5238
    %v5255 = vsub.f32 %v4341, %v5239
    %v5256 = vsub.f32 %v4342, %v5240
    %v5257 = vsub.f32 %v4343, %v5241
    %v5258 = vsub.f32 %v4344, %v5242
    %v5259 = vsub.f32 %v4345, %v5243
    %v5260 = vmul.f32 %v5224, 0.01
    %v5261 = vmul.f32 %v5227, 0.01
    %v5262 = vsub.f32 %v4348, %v5260
    %v5263 = vsub.f32 %v4349, %v5261
    %v5264 = vlaneseq
    %v5265 = vshrl.u32 %v5264, 7
    %v5266 = vsub.s32 2, %v5265
    %v5267 = vrot.slane %v5244, %v5266
    %v5268 = vlaneseq
    %v5269 = vshrl.u32 %v5268, 7
    %v5270 = vsub.s32 2, %v5269
    %v5271 = vrot.slane %v5245, %v5270
    %v5272 = vlaneseq
    %v5273 = vshrl.u32 %v5272, 7
    %v5274 = vsub.s32 2, %v5273
    %v5275 = vrot.slane %v5246, %v5274
    %v5276 = vlaneseq
    %v5277 = vshrl.u32 %v5276, 7
    %v5278 = vsub.s32 2, %v5277
    %v5279 = vrot.slane %v5247, %v5278
    %v5280 = vlaneseq
    %v5281 = vshrl.u32 %v5280, 7
    %v5282 = vsub.s32 2, %v5281
    %v5283 = vrot.slane %v5248, %v5282
    %v5284 = vlaneseq
    %v5285 = vshrl.u32 %v5284, 7
    %v5286 = vsub.s32 2, %v5285
    %v5287 = vrot.slane %v5249, %v5286
    %v5288 = vlaneseq
    %v5289 = vshrl.u32 %v5288, 7
    %v5290 = vsub.s32 2, %v5289
    %v5291 = vrot.slane %v5250, %v5290
    %v5292 = vlaneseq
    %v5293 = vshrl.u32 %v5292, 7
    %v5294 = vsub.s32 2, %v5293
    %v5295 = vrot.slane %v5251, %v5294
    %v5296 = vlaneseq
    %v5297 = vshrl.u32 %v5296, 7
    %v5298 = vsub.s32 2, %v5297
    %v5299 = vrot.slane %v5252, %v5298
    %v5300 = vlaneseq
    %v5301 = vshrl.u32 %v5300, 7
    %v5302 = vsub.s32 2, %v5301
    %v5303 = vrot.slane %v5253, %v5302
    %v5304 = vlaneseq
    %v5305 = vshrl.u32 %v5304, 7
    %v5306 = vsub.s32 2, %v5305
    %v5307 = vrot.slane %v5254, %v5306
    %v5308 = vlaneseq
    %v5309 = vshrl.u32 %v5308, 7
    %v5310 = vsub.s32 2, %v5309
    %v5311 = vrot.slane %v5255, %v5310
    %v5312 = vlaneseq
    %v5313 = vshrl.u32 %v5312, 7
    %v5314 = vsub.s32 2, %v5313
    %v5315 = vrot.slane %v5256, %v5314
    %v5316 = vlaneseq
    %v5317 = vshrl.u32 %v5316, 7
    %v5318 = vsub.s32 2, %v5317
    %v5319 = vrot.slane %v5257, %v5318
    %v5320 = vlaneseq
    %v5321 = vshrl.u32 %v5320, 7
    %v5322 = vsub.s32 2, %v5321
    %v5323 = vrot.slane %v5258, %v5322
    %v5324 = vlaneseq
    %v5325 = vshrl.u32 %v5324, 7
    %v5326 = vsub.s32 2, %v5325
    %v5327 = vrot.slane %v5259, %v5326
    %v5328 = vmul.f32 %v753, %v5267
    %v5329 = vmul.f32 %v754, %v5267
    %v5330 = vmul.f32 %v755, %v5271
    %v5331 = vmul.f32 %v756, %v5271
    %v5332 = vmul.f32 %v757, %v5275
    %v5333 = vmul.f32 %v758, %v5275
    %v5334 = vmul.f32 %v759, %v5279
    %v5335 = vmul.f32 %v760, %v5279
    %v5336 = vmul.f32 %v761, %v5283
    %v5337 = vmul.f32 %v762, %v5283
    %v5338 = vmul.f32 %v763, %v5287
    %v5339 = vmul.f32 %v764, %v5287
    %v5340 = vmul.f32 %v765, %v5291
    %v5341 = vmul.f32 %v766, %v5291
    %v5342 = vmul.f32 %v767, %v5295
    %v5343 = vmul.f32 %v768, %v5295
    %v5344 = vmul.f32 %v769, %v5299
    %v5345 = vmul.f32 %v770, %v5299
    %v5346 = vmul.f32 %v771, %v5303
    %v5347 = vmul.f32 %v772, %v5303
    %v5348 = vmul.f32 %v773, %v5307
    %v5349 = vmul.f32 %v774, %v5307
    %v5350 = vmul.f32 %v775, %v5311
    %v5351 = vmul.f32 %v776, %v5311
    %v5352 = vmul.f32 %v777, %v5315
    %v5353 = vmul.f32 %v778, %v5315
    %v5354 = vmul.f32 %v779, %v5319
    %v5355 = vmul.f32 %v780, %v5319
    %v5356 = vmul.f32 %v781, %v5323
    %v5357 = vmul.f32 %v782, %v5323
    %v5358 = vmul.f32 %v783, %v5327
    %v5359 = vmul.f32 %v784, %v5327
    %v5360 = vsel %vm431, %v5328, 0.0
    %5361 = vadd.xlane.f32.xlu0 %v5360
    %v5362 = vpop.xlane.xlu0 %5361
    %v5363 = vsel %vm431, %v5329, 0.0
    %5364 = vadd.xlane.f32.xlu0 %v5363
    %v5365 = vpop.xlane.xlu0 %5364
    %v5366 = vsel %vm431, %v5330, 0.0
    %5367 = vadd.xlane.f32.xlu0 %v5366
    %v5368 = vpop.xlane.xlu0 %5367
    %v5369 = vsel %vm431, %v5331, 0.0
    %5370 = vadd.xlane.f32.xlu0 %v5369
    %v5371 = vpop.xlane.xlu0 %5370
    %v5372 = vsel %vm431, %v5332, 0.0
    %5373 = vadd.xlane.f32.xlu0 %v5372
    %v5374 = vpop.xlane.xlu0 %5373
    %v5375 = vsel %vm431, %v5333, 0.0
    %5376 = vadd.xlane.f32.xlu0 %v5375
    %v5377 = vpop.xlane.xlu0 %5376
    %v5378 = vsel %vm431, %v5334, 0.0
    %5379 = vadd.xlane.f32.xlu0 %v5378
    %v5380 = vpop.xlane.xlu0 %5379
    %v5381 = vsel %vm431, %v5335, 0.0
    %5382 = vadd.xlane.f32.xlu0 %v5381
    %v5383 = vpop.xlane.xlu0 %5382
    %v5384 = vsel %vm431, %v5336, 0.0
    %5385 = vadd.xlane.f32.xlu0 %v5384
    %v5386 = vpop.xlane.xlu0 %5385
    %v5387 = vsel %vm431, %v5337, 0.0
    %5388 = vadd.xlane.f32.xlu0 %v5387
    %v5389 = vpop.xlane.xlu0 %5388
    %v5390 = vsel %vm431, %v5338, 0.0
    %5391 = vadd.xlane.f32.xlu0 %v5390
    %v5392 = vpop.xlane.xlu0 %5391
    %v5393 = vsel %vm431, %v5339, 0.0
    %5394 = vadd.xlane.f32.xlu0 %v5393
    %v5395 = vpop.xlane.xlu0 %5394
    %v5396 = vsel %vm431, %v5340, 0.0
    %5397 = vadd.xlane.f32.xlu0 %v5396
    %v5398 = vpop.xlane.xlu0 %5397
    %v5399 = vsel %vm431, %v5341, 0.0
    %5400 = vadd.xlane.f32.xlu0 %v5399
    %v5401 = vpop.xlane.xlu0 %5400
    %v5402 = vsel %vm431, %v5342, 0.0
    %5403 = vadd.xlane.f32.xlu0 %v5402
    %v5404 = vpop.xlane.xlu0 %5403
    %v5405 = vsel %vm431, %v5343, 0.0
    %5406 = vadd.xlane.f32.xlu0 %v5405
    %v5407 = vpop.xlane.xlu0 %5406
    %v5408 = vsel %vm431, %v5344, 0.0
    %5409 = vadd.xlane.f32.xlu0 %v5408
    %v5410 = vpop.xlane.xlu0 %5409
    %v5411 = vsel %vm431, %v5345, 0.0
    %5412 = vadd.xlane.f32.xlu0 %v5411
    %v5413 = vpop.xlane.xlu0 %5412
    %v5414 = vsel %vm431, %v5346, 0.0
    %5415 = vadd.xlane.f32.xlu0 %v5414
    %v5416 = vpop.xlane.xlu0 %5415
    %v5417 = vsel %vm431, %v5347, 0.0
    %5418 = vadd.xlane.f32.xlu0 %v5417
    %v5419 = vpop.xlane.xlu0 %5418
    %v5420 = vsel %vm431, %v5348, 0.0
    %5421 = vadd.xlane.f32.xlu0 %v5420
    %v5422 = vpop.xlane.xlu0 %5421
    %v5423 = vsel %vm431, %v5349, 0.0
    %5424 = vadd.xlane.f32.xlu0 %v5423
    %v5425 = vpop.xlane.xlu0 %5424
    %v5426 = vsel %vm431, %v5350, 0.0
    %5427 = vadd.xlane.f32.xlu0 %v5426
    %v5428 = vpop.xlane.xlu0 %5427
    %v5429 = vsel %vm431, %v5351, 0.0
    %5430 = vadd.xlane.f32.xlu0 %v5429
    %v5431 = vpop.xlane.xlu0 %5430
    %v5432 = vsel %vm431, %v5352, 0.0
    %5433 = vadd.xlane.f32.xlu0 %v5432
    %v5434 = vpop.xlane.xlu0 %5433
    %v5435 = vsel %vm431, %v5353, 0.0
    %5436 = vadd.xlane.f32.xlu0 %v5435
    %v5437 = vpop.xlane.xlu0 %5436
    %v5438 = vsel %vm431, %v5354, 0.0
    %5439 = vadd.xlane.f32.xlu0 %v5438
    %v5440 = vpop.xlane.xlu0 %5439
    %v5441 = vsel %vm431, %v5355, 0.0
    %5442 = vadd.xlane.f32.xlu0 %v5441
    %v5443 = vpop.xlane.xlu0 %5442
    %v5444 = vsel %vm431, %v5356, 0.0
    %5445 = vadd.xlane.f32.xlu0 %v5444
    %v5446 = vpop.xlane.xlu0 %5445
    %v5447 = vsel %vm431, %v5357, 0.0
    %5448 = vadd.xlane.f32.xlu0 %v5447
    %v5449 = vpop.xlane.xlu0 %5448
    %v5450 = vsel %vm431, %v5358, 0.0
    %5451 = vadd.xlane.f32.xlu0 %v5450
    %v5452 = vpop.xlane.xlu0 %5451
    %v5453 = vsel %vm431, %v5359, 0.0
    %5454 = vadd.xlane.f32.xlu0 %v5453
    %v5455 = vpop.xlane.xlu0 %5454
    %5457 = vset.pattern.permute.xlu0 0
    %5458 = vperm.xlu0 %5457, %v5262
    %v5459 = vpop.permute.xlu0 %5458
    %5461 = vset.pattern.permute.xlu0 0
    %5462 = vperm.xlu0 %5461, %v5263
    %v5463 = vpop.permute.xlu0 %5462
    %v5464 = vlaneseq
    %v5465 = vshrl.u32 %v5464, 7
    %v5466 = vsub.s32 0, %v5465
    %v5467 = vrot.slane %v5459, %v5466
    %v5468 = vlaneseq
    %v5469 = vshrl.u32 %v5468, 7
    %v5470 = vsub.s32 1, %v5469
    %v5471 = vrot.slane %v5459, %v5470
    %v5472 = vlaneseq
    %v5473 = vshrl.u32 %v5472, 7
    %v5474 = vsub.s32 2, %v5473
    %v5475 = vrot.slane %v5459, %v5474
    %v5476 = vlaneseq
    %v5477 = vshrl.u32 %v5476, 7
    %v5478 = vsub.s32 3, %v5477
    %v5479 = vrot.slane %v5459, %v5478
    %v5480 = vlaneseq
    %v5481 = vshrl.u32 %v5480, 7
    %v5482 = vsub.s32 4, %v5481
    %v5483 = vrot.slane %v5459, %v5482
    %v5484 = vlaneseq
    %v5485 = vshrl.u32 %v5484, 7
    %v5486 = vsub.s32 5, %v5485
    %v5487 = vrot.slane %v5459, %v5486
    %v5488 = vlaneseq
    %v5489 = vshrl.u32 %v5488, 7
    %v5490 = vsub.s32 6, %v5489
    %v5491 = vrot.slane %v5459, %v5490
    %v5492 = vlaneseq
    %v5493 = vshrl.u32 %v5492, 7
    %v5494 = vsub.s32 7, %v5493
    %v5495 = vrot.slane %v5459, %v5494
    %v5496 = vlaneseq
    %v5497 = vshrl.u32 %v5496, 7
    %v5498 = vsub.s32 0, %v5497
    %v5499 = vrot.slane %v5463, %v5498
    %v5500 = vlaneseq
    %v5501 = vshrl.u32 %v5500, 7
    %v5502 = vsub.s32 1, %v5501
    %v5503 = vrot.slane %v5463, %v5502
    %v5504 = vlaneseq
    %v5505 = vshrl.u32 %v5504, 7
    %v5506 = vsub.s32 2, %v5505
    %v5507 = vrot.slane %v5463, %v5506
    %v5508 = vlaneseq
    %v5509 = vshrl.u32 %v5508, 7
    %v5510 = vsub.s32 3, %v5509
    %v5511 = vrot.slane %v5463, %v5510
    %v5512 = vlaneseq
    %v5513 = vshrl.u32 %v5512, 7
    %v5514 = vsub.s32 4, %v5513
    %v5515 = vrot.slane %v5463, %v5514
    %v5516 = vlaneseq
    %v5517 = vshrl.u32 %v5516, 7
    %v5518 = vsub.s32 5, %v5517
    %v5519 = vrot.slane %v5463, %v5518
    %v5520 = vlaneseq
    %v5521 = vshrl.u32 %v5520, 7
    %v5522 = vsub.s32 6, %v5521
    %v5523 = vrot.slane %v5463, %v5522
    %v5524 = vlaneseq
    %v5525 = vshrl.u32 %v5524, 7
    %v5526 = vsub.s32 7, %v5525
    %v5527 = vrot.slane %v5463, %v5526
    %v5544 = vadd.f32 %v5362, %v5467
    %v5545 = vadd.f32 %v5365, %v5467
    %v5546 = vadd.f32 %v5368, %v5471
    %v5547 = vadd.f32 %v5371, %v5471
    %v5548 = vadd.f32 %v5374, %v5475
    %v5549 = vadd.f32 %v5377, %v5475
    %v5550 = vadd.f32 %v5380, %v5479
    %v5551 = vadd.f32 %v5383, %v5479
    %v5552 = vadd.f32 %v5386, %v5483
    %v5553 = vadd.f32 %v5389, %v5483
    %v5554 = vadd.f32 %v5392, %v5487
    %v5555 = vadd.f32 %v5395, %v5487
    %v5556 = vadd.f32 %v5398, %v5491
    %v5557 = vadd.f32 %v5401, %v5491
    %v5558 = vadd.f32 %v5404, %v5495
    %v5559 = vadd.f32 %v5407, %v5495
    %v5560 = vadd.f32 %v5410, %v5499
    %v5561 = vadd.f32 %v5413, %v5499
    %v5562 = vadd.f32 %v5416, %v5503
    %v5563 = vadd.f32 %v5419, %v5503
    %v5564 = vadd.f32 %v5422, %v5507
    %v5565 = vadd.f32 %v5425, %v5507
    %v5566 = vadd.f32 %v5428, %v5511
    %v5567 = vadd.f32 %v5431, %v5511
    %v5568 = vadd.f32 %v5434, %v5515
    %v5569 = vadd.f32 %v5437, %v5515
    %v5570 = vadd.f32 %v5440, %v5519
    %v5571 = vadd.f32 %v5443, %v5519
    %v5572 = vadd.f32 %v5446, %v5523
    %v5573 = vadd.f32 %v5449, %v5523
    %v5574 = vadd.f32 %v5452, %v5527
    %v5575 = vadd.f32 %v5455, %v5527
    %v5576 = vsub.f32 %v5544, %v1706
    %v5577 = vsub.f32 %v5545, %v1710
    %v5578 = vsub.f32 %v5546, %v1717
    %v5579 = vsub.f32 %v5547, %v1721
    %v5580 = vsub.f32 %v5548, %v1728
    %v5581 = vsub.f32 %v5549, %v1732
    %v5582 = vsub.f32 %v5550, %v1739
    %v5583 = vsub.f32 %v5551, %v1743
    %v5584 = vsub.f32 %v5552, %v1750
    %v5585 = vsub.f32 %v5553, %v1754
    %v5586 = vsub.f32 %v5554, %v1761
    %v5587 = vsub.f32 %v5555, %v1765
    %v5588 = vsub.f32 %v5556, %v1772
    %v5589 = vsub.f32 %v5557, %v1776
    %v5590 = vsub.f32 %v5558, %v1783
    %v5591 = vsub.f32 %v5559, %v1787
    %v5592 = vsub.f32 %v5560, %v1794
    %v5593 = vsub.f32 %v5561, %v1798
    %v5594 = vsub.f32 %v5562, %v1805
    %v5595 = vsub.f32 %v5563, %v1809
    %v5596 = vsub.f32 %v5564, %v1816
    %v5597 = vsub.f32 %v5565, %v1820
    %v5598 = vsub.f32 %v5566, %v1827
    %v5599 = vsub.f32 %v5567, %v1831
    %v5600 = vsub.f32 %v5568, %v1838
    %v5601 = vsub.f32 %v5569, %v1842
    %v5602 = vsub.f32 %v5570, %v1849
    %v5603 = vsub.f32 %v5571, %v1853
    %v5604 = vsub.f32 %v5572, %v1860
    %v5605 = vsub.f32 %v5573, %v1864
    %v5606 = vsub.f32 %v5574, %v1871
    %v5607 = vsub.f32 %v5575, %v1875
    %v5608 = vmul.f32 %v5576, 0.125
    %v5609 = vmul.f32 %v5577, 0.125
    %v5610 = vmul.f32 %v5578, 0.125
    %v5611 = vmul.f32 %v5579, 0.125
    %v5612 = vmul.f32 %v5580, 0.125
    %v5613 = vmul.f32 %v5581, 0.125
    %v5614 = vmul.f32 %v5582, 0.125
    %v5615 = vmul.f32 %v5583, 0.125
    %v5616 = vmul.f32 %v5584, 0.125
    %v5617 = vmul.f32 %v5585, 0.125
    %v5618 = vmul.f32 %v5586, 0.125
    %v5619 = vmul.f32 %v5587, 0.125
    %v5620 = vmul.f32 %v5588, 0.125
    %v5621 = vmul.f32 %v5589, 0.125
    %v5622 = vmul.f32 %v5590, 0.125
    %v5623 = vmul.f32 %v5591, 0.125
    %v5624 = vmul.f32 %v5592, 0.125
    %v5625 = vmul.f32 %v5593, 0.125
    %v5626 = vmul.f32 %v5594, 0.125
    %v5627 = vmul.f32 %v5595, 0.125
    %v5628 = vmul.f32 %v5596, 0.125
    %v5629 = vmul.f32 %v5597, 0.125
    %v5630 = vmul.f32 %v5598, 0.125
    %v5631 = vmul.f32 %v5599, 0.125
    %v5632 = vmul.f32 %v5600, 0.125
    %v5633 = vmul.f32 %v5601, 0.125
    %v5634 = vmul.f32 %v5602, 0.125
    %v5635 = vmul.f32 %v5603, 0.125
    %v5636 = vmul.f32 %v5604, 0.125
    %v5637 = vmul.f32 %v5605, 0.125
    %v5638 = vmul.f32 %v5606, 0.125
    %v5639 = vmul.f32 %v5607, 0.125
    %5641 = vset.pattern.permute.xlu0 0
    %5642 = vperm.xlu0 %5641, %v5608
    %v5643 = vpop.permute.xlu0 %5642
    %5646 = vset.pattern.permute.xlu0 0
    %5647 = vperm.xlu0 %5646, %v5609
    %v5648 = vpop.permute.xlu0 %5647
    %5651 = vset.pattern.permute.xlu0 0
    %5652 = vperm.xlu0 %5651, %v5610
    %v5653 = vpop.permute.xlu0 %5652
    %5656 = vset.pattern.permute.xlu0 0
    %5657 = vperm.xlu0 %5656, %v5611
    %v5658 = vpop.permute.xlu0 %5657
    %5661 = vset.pattern.permute.xlu0 0
    %5662 = vperm.xlu0 %5661, %v5612
    %v5663 = vpop.permute.xlu0 %5662
    %5666 = vset.pattern.permute.xlu0 0
    %5667 = vperm.xlu0 %5666, %v5613
    %v5668 = vpop.permute.xlu0 %5667
    %5671 = vset.pattern.permute.xlu0 0
    %5672 = vperm.xlu0 %5671, %v5614
    %v5673 = vpop.permute.xlu0 %5672
    %5676 = vset.pattern.permute.xlu0 0
    %5677 = vperm.xlu0 %5676, %v5615
    %v5678 = vpop.permute.xlu0 %5677
    %5681 = vset.pattern.permute.xlu0 0
    %5682 = vperm.xlu0 %5681, %v5616
    %v5683 = vpop.permute.xlu0 %5682
    %5686 = vset.pattern.permute.xlu0 0
    %5687 = vperm.xlu0 %5686, %v5617
    %v5688 = vpop.permute.xlu0 %5687
    %5691 = vset.pattern.permute.xlu0 0
    %5692 = vperm.xlu0 %5691, %v5618
    %v5693 = vpop.permute.xlu0 %5692
    %5696 = vset.pattern.permute.xlu0 0
    %5697 = vperm.xlu0 %5696, %v5619
    %v5698 = vpop.permute.xlu0 %5697
    %5701 = vset.pattern.permute.xlu0 0
    %5702 = vperm.xlu0 %5701, %v5620
    %v5703 = vpop.permute.xlu0 %5702
    %5706 = vset.pattern.permute.xlu0 0
    %5707 = vperm.xlu0 %5706, %v5621
    %v5708 = vpop.permute.xlu0 %5707
    %5711 = vset.pattern.permute.xlu0 0
    %5712 = vperm.xlu0 %5711, %v5622
    %v5713 = vpop.permute.xlu0 %5712
    %5716 = vset.pattern.permute.xlu0 0
    %5717 = vperm.xlu0 %5716, %v5623
    %v5718 = vpop.permute.xlu0 %5717
    %5721 = vset.pattern.permute.xlu0 0
    %5722 = vperm.xlu0 %5721, %v5624
    %v5723 = vpop.permute.xlu0 %5722
    %5726 = vset.pattern.permute.xlu0 0
    %5727 = vperm.xlu0 %5726, %v5625
    %v5728 = vpop.permute.xlu0 %5727
    %5731 = vset.pattern.permute.xlu0 0
    %5732 = vperm.xlu0 %5731, %v5626
    %v5733 = vpop.permute.xlu0 %5732
    %5736 = vset.pattern.permute.xlu0 0
    %5737 = vperm.xlu0 %5736, %v5627
    %v5738 = vpop.permute.xlu0 %5737
    %5741 = vset.pattern.permute.xlu0 0
    %5742 = vperm.xlu0 %5741, %v5628
    %v5743 = vpop.permute.xlu0 %5742
    %5746 = vset.pattern.permute.xlu0 0
    %5747 = vperm.xlu0 %5746, %v5629
    %v5748 = vpop.permute.xlu0 %5747
    %5751 = vset.pattern.permute.xlu0 0
    %5752 = vperm.xlu0 %5751, %v5630
    %v5753 = vpop.permute.xlu0 %5752
    %5756 = vset.pattern.permute.xlu0 0
    %5757 = vperm.xlu0 %5756, %v5631
    %v5758 = vpop.permute.xlu0 %5757
    %5761 = vset.pattern.permute.xlu0 0
    %5762 = vperm.xlu0 %5761, %v5632
    %v5763 = vpop.permute.xlu0 %5762
    %5766 = vset.pattern.permute.xlu0 0
    %5767 = vperm.xlu0 %5766, %v5633
    %v5768 = vpop.permute.xlu0 %5767
    %5771 = vset.pattern.permute.xlu0 0
    %5772 = vperm.xlu0 %5771, %v5634
    %v5773 = vpop.permute.xlu0 %5772
    %5776 = vset.pattern.permute.xlu0 0
    %5777 = vperm.xlu0 %5776, %v5635
    %v5778 = vpop.permute.xlu0 %5777
    %5781 = vset.pattern.permute.xlu0 0
    %5782 = vperm.xlu0 %5781, %v5636
    %v5783 = vpop.permute.xlu0 %5782
    %5786 = vset.pattern.permute.xlu0 0
    %5787 = vperm.xlu0 %5786, %v5637
    %v5788 = vpop.permute.xlu0 %5787
    %5791 = vset.pattern.permute.xlu0 0
    %5792 = vperm.xlu0 %5791, %v5638
    %v5793 = vpop.permute.xlu0 %5792
    %5796 = vset.pattern.permute.xlu0 0
    %5797 = vperm.xlu0 %5796, %v5639
    %v5798 = vpop.permute.xlu0 %5797
    %v5800 = vmul.f32 %v753, %v5643
    %v5801 = vmul.f32 %v754, %v5648
    %v5802 = vmul.f32 %v755, %v5653
    %v5803 = vmul.f32 %v756, %v5658
    %v5804 = vmul.f32 %v757, %v5663
    %v5805 = vmul.f32 %v758, %v5668
    %v5806 = vmul.f32 %v759, %v5673
    %v5807 = vmul.f32 %v760, %v5678
    %v5808 = vmul.f32 %v761, %v5683
    %v5809 = vmul.f32 %v762, %v5688
    %v5810 = vmul.f32 %v763, %v5693
    %v5811 = vmul.f32 %v764, %v5698
    %v5812 = vmul.f32 %v765, %v5703
    %v5813 = vmul.f32 %v766, %v5708
    %v5814 = vmul.f32 %v767, %v5713
    %v5815 = vmul.f32 %v768, %v5718
    %v5816 = vmul.f32 %v769, %v5723
    %v5817 = vmul.f32 %v770, %v5728
    %v5818 = vmul.f32 %v771, %v5733
    %v5819 = vmul.f32 %v772, %v5738
    %v5820 = vmul.f32 %v773, %v5743
    %v5821 = vmul.f32 %v774, %v5748
    %v5822 = vmul.f32 %v775, %v5753
    %v5823 = vmul.f32 %v776, %v5758
    %v5824 = vmul.f32 %v777, %v5763
    %v5825 = vmul.f32 %v778, %v5768
    %v5826 = vmul.f32 %v779, %v5773
    %v5827 = vmul.f32 %v780, %v5778
    %v5828 = vmul.f32 %v781, %v5783
    %v5829 = vmul.f32 %v782, %v5788
    %v5830 = vmul.f32 %v783, %v5793
    %v5831 = vmul.f32 %v784, %v5798
    %v5832 = vsel %vm431, %v5800, 0.0
    %v5833 = vsel %vm431, %v5801, 0.0
    %v5834 = vadd.f32 %v5832, %v5833
    %v5835 = vrot.slane %v5834, 4
    %v5836 = vadd.f32 %v5834, %v5835
    %v5837 = vrot.slane %v5836, 2
    %v5838 = vadd.f32 %v5836, %v5837
    %v5839 = vrot.slane %v5838, 1
    %v5840 = vadd.f32 %v5838, %v5839
    %v5841 = vsel %vm431, %v5802, 0.0
    %v5842 = vsel %vm431, %v5803, 0.0
    %v5843 = vadd.f32 %v5841, %v5842
    %v5844 = vrot.slane %v5843, 4
    %v5845 = vadd.f32 %v5843, %v5844
    %v5846 = vrot.slane %v5845, 2
    %v5847 = vadd.f32 %v5845, %v5846
    %v5848 = vrot.slane %v5847, 1
    %v5849 = vadd.f32 %v5847, %v5848
    %v5850 = vsel %vm431, %v5804, 0.0
    %v5851 = vsel %vm431, %v5805, 0.0
    %v5852 = vadd.f32 %v5850, %v5851
    %v5853 = vrot.slane %v5852, 4
    %v5854 = vadd.f32 %v5852, %v5853
    %v5855 = vrot.slane %v5854, 2
    %v5856 = vadd.f32 %v5854, %v5855
    %v5857 = vrot.slane %v5856, 1
    %v5858 = vadd.f32 %v5856, %v5857
    %v5859 = vsel %vm431, %v5806, 0.0
    %v5860 = vsel %vm431, %v5807, 0.0
    %v5861 = vadd.f32 %v5859, %v5860
    %v5862 = vrot.slane %v5861, 4
    %v5863 = vadd.f32 %v5861, %v5862
    %v5864 = vrot.slane %v5863, 2
    %v5865 = vadd.f32 %v5863, %v5864
    %v5866 = vrot.slane %v5865, 1
    %v5867 = vadd.f32 %v5865, %v5866
    %v5868 = vsel %vm431, %v5808, 0.0
    %v5869 = vsel %vm431, %v5809, 0.0
    %v5870 = vadd.f32 %v5868, %v5869
    %v5871 = vrot.slane %v5870, 4
    %v5872 = vadd.f32 %v5870, %v5871
    %v5873 = vrot.slane %v5872, 2
    %v5874 = vadd.f32 %v5872, %v5873
    %v5875 = vrot.slane %v5874, 1
    %v5876 = vadd.f32 %v5874, %v5875
    %v5877 = vsel %vm431, %v5810, 0.0
    %v5878 = vsel %vm431, %v5811, 0.0
    %v5879 = vadd.f32 %v5877, %v5878
    %v5880 = vrot.slane %v5879, 4
    %v5881 = vadd.f32 %v5879, %v5880
    %v5882 = vrot.slane %v5881, 2
    %v5883 = vadd.f32 %v5881, %v5882
    %v5884 = vrot.slane %v5883, 1
    %v5885 = vadd.f32 %v5883, %v5884
    %v5886 = vsel %vm431, %v5812, 0.0
    %v5887 = vsel %vm431, %v5813, 0.0
    %v5888 = vadd.f32 %v5886, %v5887
    %v5889 = vrot.slane %v5888, 4
    %v5890 = vadd.f32 %v5888, %v5889
    %v5891 = vrot.slane %v5890, 2
    %v5892 = vadd.f32 %v5890, %v5891
    %v5893 = vrot.slane %v5892, 1
    %v5894 = vadd.f32 %v5892, %v5893
    %v5895 = vsel %vm431, %v5814, 0.0
    %v5896 = vsel %vm431, %v5815, 0.0
    %v5897 = vadd.f32 %v5895, %v5896
    %v5898 = vrot.slane %v5897, 4
    %v5899 = vadd.f32 %v5897, %v5898
    %v5900 = vrot.slane %v5899, 2
    %v5901 = vadd.f32 %v5899, %v5900
    %v5902 = vrot.slane %v5901, 1
    %v5903 = vadd.f32 %v5901, %v5902
    %v5904 = vsel %vm431, %v5816, 0.0
    %v5905 = vsel %vm431, %v5817, 0.0
    %v5906 = vadd.f32 %v5904, %v5905
    %v5907 = vrot.slane %v5906, 4
    %v5908 = vadd.f32 %v5906, %v5907
    %v5909 = vrot.slane %v5908, 2
    %v5910 = vadd.f32 %v5908, %v5909
    %v5911 = vrot.slane %v5910, 1
    %v5912 = vadd.f32 %v5910, %v5911
    %v5913 = vsel %vm431, %v5818, 0.0
    %v5914 = vsel %vm431, %v5819, 0.0
    %v5915 = vadd.f32 %v5913, %v5914
    %v5916 = vrot.slane %v5915, 4
    %v5917 = vadd.f32 %v5915, %v5916
    %v5918 = vrot.slane %v5917, 2
    %v5919 = vadd.f32 %v5917, %v5918
    %v5920 = vrot.slane %v5919, 1
    %v5921 = vadd.f32 %v5919, %v5920
    %v5922 = vsel %vm431, %v5820, 0.0
    %v5923 = vsel %vm431, %v5821, 0.0
    %v5924 = vadd.f32 %v5922, %v5923
    %v5925 = vrot.slane %v5924, 4
    %v5926 = vadd.f32 %v5924, %v5925
    %v5927 = vrot.slane %v5926, 2
    %v5928 = vadd.f32 %v5926, %v5927
    %v5929 = vrot.slane %v5928, 1
    %v5930 = vadd.f32 %v5928, %v5929
    %v5931 = vsel %vm431, %v5822, 0.0
    %v5932 = vsel %vm431, %v5823, 0.0
    %v5933 = vadd.f32 %v5931, %v5932
    %v5934 = vrot.slane %v5933, 4
    %v5935 = vadd.f32 %v5933, %v5934
    %v5936 = vrot.slane %v5935, 2
    %v5937 = vadd.f32 %v5935, %v5936
    %v5938 = vrot.slane %v5937, 1
    %v5939 = vadd.f32 %v5937, %v5938
    %v5940 = vsel %vm431, %v5824, 0.0
    %v5941 = vsel %vm431, %v5825, 0.0
    %v5942 = vadd.f32 %v5940, %v5941
    %v5943 = vrot.slane %v5942, 4
    %v5944 = vadd.f32 %v5942, %v5943
    %v5945 = vrot.slane %v5944, 2
    %v5946 = vadd.f32 %v5944, %v5945
    %v5947 = vrot.slane %v5946, 1
    %v5948 = vadd.f32 %v5946, %v5947
    %v5949 = vsel %vm431, %v5826, 0.0
    %v5950 = vsel %vm431, %v5827, 0.0
    %v5951 = vadd.f32 %v5949, %v5950
    %v5952 = vrot.slane %v5951, 4
    %v5953 = vadd.f32 %v5951, %v5952
    %v5954 = vrot.slane %v5953, 2
    %v5955 = vadd.f32 %v5953, %v5954
    %v5956 = vrot.slane %v5955, 1
    %v5957 = vadd.f32 %v5955, %v5956
    %v5958 = vsel %vm431, %v5828, 0.0
    %v5959 = vsel %vm431, %v5829, 0.0
    %v5960 = vadd.f32 %v5958, %v5959
    %v5961 = vrot.slane %v5960, 4
    %v5962 = vadd.f32 %v5960, %v5961
    %v5963 = vrot.slane %v5962, 2
    %v5964 = vadd.f32 %v5962, %v5963
    %v5965 = vrot.slane %v5964, 1
    %v5966 = vadd.f32 %v5964, %v5965
    %v5967 = vsel %vm431, %v5830, 0.0
    %v5968 = vsel %vm431, %v5831, 0.0
    %v5969 = vadd.f32 %v5967, %v5968
    %v5970 = vrot.slane %v5969, 4
    %v5971 = vadd.f32 %v5969, %v5970
    %v5972 = vrot.slane %v5971, 2
    %v5973 = vadd.f32 %v5971, %v5972
    %v5974 = vrot.slane %v5973, 1
    %v5975 = vadd.f32 %v5973, %v5974
    %v5976 = vlaneseq
    %v5977 = vshrl.u32 %v5976, 7
    %v5978 = vsub.s32 %v2309, %v5977
    %v5979 = vrot.slane %v5643, %v5978
    %v5980 = vlaneseq
    %v5981 = vshrl.u32 %v5980, 7
    %v5982 = vsub.s32 %v2314, %v5981
    %v5983 = vrot.slane %v5648, %v5982
    %v5984 = vsel %vm2319, %v5983, %v5979
    %v5985 = vlaneseq
    %v5986 = vshrl.u32 %v5985, 7
    %v5987 = vsub.s32 %v2309, %v5986
    %v5988 = vrot.slane %v5653, %v5987
    %v5989 = vlaneseq
    %v5990 = vshrl.u32 %v5989, 7
    %v5991 = vsub.s32 %v2314, %v5990
    %v5992 = vrot.slane %v5658, %v5991
    %v5993 = vsel %vm2319, %v5992, %v5988
    %v5994 = vlaneseq
    %v5995 = vshrl.u32 %v5994, 7
    %v5996 = vsub.s32 %v2309, %v5995
    %v5997 = vrot.slane %v5663, %v5996
    %v5998 = vlaneseq
    %v5999 = vshrl.u32 %v5998, 7
    %v6000 = vsub.s32 %v2314, %v5999
    %v6001 = vrot.slane %v5668, %v6000
    %v6002 = vsel %vm2319, %v6001, %v5997
    %v6003 = vlaneseq
    %v6004 = vshrl.u32 %v6003, 7
    %v6005 = vsub.s32 %v2309, %v6004
    %v6006 = vrot.slane %v5673, %v6005
    %v6007 = vlaneseq
    %v6008 = vshrl.u32 %v6007, 7
    %v6009 = vsub.s32 %v2314, %v6008
    %v6010 = vrot.slane %v5678, %v6009
    %v6011 = vsel %vm2319, %v6010, %v6006
    %v6012 = vlaneseq
    %v6013 = vshrl.u32 %v6012, 7
    %v6014 = vsub.s32 %v2309, %v6013
    %v6015 = vrot.slane %v5683, %v6014
    %v6016 = vlaneseq
    %v6017 = vshrl.u32 %v6016, 7
    %v6018 = vsub.s32 %v2314, %v6017
    %v6019 = vrot.slane %v5688, %v6018
    %v6020 = vsel %vm2319, %v6019, %v6015
    %v6021 = vlaneseq
    %v6022 = vshrl.u32 %v6021, 7
    %v6023 = vsub.s32 %v2309, %v6022
    %v6024 = vrot.slane %v5693, %v6023
    %v6025 = vlaneseq
    %v6026 = vshrl.u32 %v6025, 7
    %v6027 = vsub.s32 %v2314, %v6026
    %v6028 = vrot.slane %v5698, %v6027
    %v6029 = vsel %vm2319, %v6028, %v6024
    %v6030 = vlaneseq
    %v6031 = vshrl.u32 %v6030, 7
    %v6032 = vsub.s32 %v2309, %v6031
    %v6033 = vrot.slane %v5703, %v6032
    %v6034 = vlaneseq
    %v6035 = vshrl.u32 %v6034, 7
    %v6036 = vsub.s32 %v2314, %v6035
    %v6037 = vrot.slane %v5708, %v6036
    %v6038 = vsel %vm2319, %v6037, %v6033
    %v6039 = vlaneseq
    %v6040 = vshrl.u32 %v6039, 7
    %v6041 = vsub.s32 %v2309, %v6040
    %v6042 = vrot.slane %v5713, %v6041
    %v6043 = vlaneseq
    %v6044 = vshrl.u32 %v6043, 7
    %v6045 = vsub.s32 %v2314, %v6044
    %v6046 = vrot.slane %v5718, %v6045
    %v6047 = vsel %vm2319, %v6046, %v6042
    %v6048 = vlaneseq
    %v6049 = vshrl.u32 %v6048, 7
    %v6050 = vsub.s32 %v2309, %v6049
    %v6051 = vrot.slane %v5723, %v6050
    %v6052 = vlaneseq
    %v6053 = vshrl.u32 %v6052, 7
    %v6054 = vsub.s32 %v2314, %v6053
    %v6055 = vrot.slane %v5728, %v6054
    %v6056 = vsel %vm2319, %v6055, %v6051
    %v6057 = vlaneseq
    %v6058 = vshrl.u32 %v6057, 7
    %v6059 = vsub.s32 %v2309, %v6058
    %v6060 = vrot.slane %v5733, %v6059
    %v6061 = vlaneseq
    %v6062 = vshrl.u32 %v6061, 7
    %v6063 = vsub.s32 %v2314, %v6062
    %v6064 = vrot.slane %v5738, %v6063
    %v6065 = vsel %vm2319, %v6064, %v6060
    %v6066 = vlaneseq
    %v6067 = vshrl.u32 %v6066, 7
    %v6068 = vsub.s32 %v2309, %v6067
    %v6069 = vrot.slane %v5743, %v6068
    %v6070 = vlaneseq
    %v6071 = vshrl.u32 %v6070, 7
    %v6072 = vsub.s32 %v2314, %v6071
    %v6073 = vrot.slane %v5748, %v6072
    %v6074 = vsel %vm2319, %v6073, %v6069
    %v6075 = vlaneseq
    %v6076 = vshrl.u32 %v6075, 7
    %v6077 = vsub.s32 %v2309, %v6076
    %v6078 = vrot.slane %v5753, %v6077
    %v6079 = vlaneseq
    %v6080 = vshrl.u32 %v6079, 7
    %v6081 = vsub.s32 %v2314, %v6080
    %v6082 = vrot.slane %v5758, %v6081
    %v6083 = vsel %vm2319, %v6082, %v6078
    %v6084 = vlaneseq
    %v6085 = vshrl.u32 %v6084, 7
    %v6086 = vsub.s32 %v2309, %v6085
    %v6087 = vrot.slane %v5763, %v6086
    %v6088 = vlaneseq
    %v6089 = vshrl.u32 %v6088, 7
    %v6090 = vsub.s32 %v2314, %v6089
    %v6091 = vrot.slane %v5768, %v6090
    %v6092 = vsel %vm2319, %v6091, %v6087
    %v6093 = vlaneseq
    %v6094 = vshrl.u32 %v6093, 7
    %v6095 = vsub.s32 %v2309, %v6094
    %v6096 = vrot.slane %v5773, %v6095
    %v6097 = vlaneseq
    %v6098 = vshrl.u32 %v6097, 7
    %v6099 = vsub.s32 %v2314, %v6098
    %v6100 = vrot.slane %v5778, %v6099
    %v6101 = vsel %vm2319, %v6100, %v6096
    %v6102 = vlaneseq
    %v6103 = vshrl.u32 %v6102, 7
    %v6104 = vsub.s32 %v2309, %v6103
    %v6105 = vrot.slane %v5783, %v6104
    %v6106 = vlaneseq
    %v6107 = vshrl.u32 %v6106, 7
    %v6108 = vsub.s32 %v2314, %v6107
    %v6109 = vrot.slane %v5788, %v6108
    %v6110 = vsel %vm2319, %v6109, %v6105
    %v6111 = vlaneseq
    %v6112 = vshrl.u32 %v6111, 7
    %v6113 = vsub.s32 %v2309, %v6112
    %v6114 = vrot.slane %v5793, %v6113
    %v6115 = vlaneseq
    %v6116 = vshrl.u32 %v6115, 7
    %v6117 = vsub.s32 %v2314, %v6116
    %v6118 = vrot.slane %v5798, %v6117
    %v6119 = vsel %vm2319, %v6118, %v6114
    %v6120 = vsel %vm2456, %v5993, %v5984
    %v6121 = vsel %vm2458, %v6002, %v6120
    %v6122 = vsel %vm2460, %v6011, %v6121
    %v6123 = vsel %vm2462, %v6020, %v6122
    %v6124 = vsel %vm2464, %v6029, %v6123
    %v6125 = vsel %vm2466, %v6038, %v6124
    %v6126 = vsel %vm2468, %v6047, %v6125
    %v6127 = vsel %vm2456, %v6065, %v6056
    %v6128 = vsel %vm2458, %v6074, %v6127
    %v6129 = vsel %vm2460, %v6083, %v6128
    %v6130 = vsel %vm2462, %v6092, %v6129
    %v6131 = vsel %vm2464, %v6101, %v6130
    %v6132 = vsel %vm2466, %v6110, %v6131
    %v6133 = vsel %vm2468, %v6119, %v6132
    %v6136 = vsel %vm2479, %v6126, 0.0
    %6137 = vadd.xlane.f32.xlu0 %v6136
    %v6138 = vpop.xlane.xlu0 %6137
    %v6139 = vsel %vm2479, %v6133, 0.0
    %6140 = vadd.xlane.f32.xlu0 %v6139
    %v6141 = vpop.xlane.xlu0 %6140
    %v6142 = vmul.f32 %v5840, 0.01
    %v6143 = vmul.f32 %v5849, 0.01
    %v6144 = vmul.f32 %v5858, 0.01
    %v6145 = vmul.f32 %v5867, 0.01
    %v6146 = vmul.f32 %v5876, 0.01
    %v6147 = vmul.f32 %v5885, 0.01
    %v6148 = vmul.f32 %v5894, 0.01
    %v6149 = vmul.f32 %v5903, 0.01
    %v6150 = vmul.f32 %v5912, 0.01
    %v6151 = vmul.f32 %v5921, 0.01
    %v6152 = vmul.f32 %v5930, 0.01
    %v6153 = vmul.f32 %v5939, 0.01
    %v6154 = vmul.f32 %v5948, 0.01
    %v6155 = vmul.f32 %v5957, 0.01
    %v6156 = vmul.f32 %v5966, 0.01
    %v6157 = vmul.f32 %v5975, 0.01
    %v6158 = vsub.f32 %v5244, %v6142
    %v6159 = vsub.f32 %v5245, %v6143
    %v6160 = vsub.f32 %v5246, %v6144
    %v6161 = vsub.f32 %v5247, %v6145
    %v6162 = vsub.f32 %v5248, %v6146
    %v6163 = vsub.f32 %v5249, %v6147
    %v6164 = vsub.f32 %v5250, %v6148
    %v6165 = vsub.f32 %v5251, %v6149
    %v6166 = vsub.f32 %v5252, %v6150
    %v6167 = vsub.f32 %v5253, %v6151
    %v6168 = vsub.f32 %v5254, %v6152
    %v6169 = vsub.f32 %v5255, %v6153
    %v6170 = vsub.f32 %v5256, %v6154
    %v6171 = vsub.f32 %v5257, %v6155
    %v6172 = vsub.f32 %v5258, %v6156
    %v6173 = vsub.f32 %v5259, %v6157
    %v6174 = vmul.f32 %v6138, 0.01
    %v6175 = vmul.f32 %v6141, 0.01
    %v6176 = vsub.f32 %v5262, %v6174
    %v6177 = vsub.f32 %v5263, %v6175
    %v6178 = vlaneseq
    %v6179 = vshrl.u32 %v6178, 7
    %v6180 = vsub.s32 2, %v6179
    %v6181 = vrot.slane %v6158, %v6180
    %v6182 = vlaneseq
    %v6183 = vshrl.u32 %v6182, 7
    %v6184 = vsub.s32 2, %v6183
    %v6185 = vrot.slane %v6159, %v6184
    %v6186 = vlaneseq
    %v6187 = vshrl.u32 %v6186, 7
    %v6188 = vsub.s32 2, %v6187
    %v6189 = vrot.slane %v6160, %v6188
    %v6190 = vlaneseq
    %v6191 = vshrl.u32 %v6190, 7
    %v6192 = vsub.s32 2, %v6191
    %v6193 = vrot.slane %v6161, %v6192
    %v6194 = vlaneseq
    %v6195 = vshrl.u32 %v6194, 7
    %v6196 = vsub.s32 2, %v6195
    %v6197 = vrot.slane %v6162, %v6196
    %v6198 = vlaneseq
    %v6199 = vshrl.u32 %v6198, 7
    %v6200 = vsub.s32 2, %v6199
    %v6201 = vrot.slane %v6163, %v6200
    %v6202 = vlaneseq
    %v6203 = vshrl.u32 %v6202, 7
    %v6204 = vsub.s32 2, %v6203
    %v6205 = vrot.slane %v6164, %v6204
    %v6206 = vlaneseq
    %v6207 = vshrl.u32 %v6206, 7
    %v6208 = vsub.s32 2, %v6207
    %v6209 = vrot.slane %v6165, %v6208
    %v6210 = vlaneseq
    %v6211 = vshrl.u32 %v6210, 7
    %v6212 = vsub.s32 2, %v6211
    %v6213 = vrot.slane %v6166, %v6212
    %v6214 = vlaneseq
    %v6215 = vshrl.u32 %v6214, 7
    %v6216 = vsub.s32 2, %v6215
    %v6217 = vrot.slane %v6167, %v6216
    %v6218 = vlaneseq
    %v6219 = vshrl.u32 %v6218, 7
    %v6220 = vsub.s32 2, %v6219
    %v6221 = vrot.slane %v6168, %v6220
    %v6222 = vlaneseq
    %v6223 = vshrl.u32 %v6222, 7
    %v6224 = vsub.s32 2, %v6223
    %v6225 = vrot.slane %v6169, %v6224
    %v6226 = vlaneseq
    %v6227 = vshrl.u32 %v6226, 7
    %v6228 = vsub.s32 2, %v6227
    %v6229 = vrot.slane %v6170, %v6228
    %v6230 = vlaneseq
    %v6231 = vshrl.u32 %v6230, 7
    %v6232 = vsub.s32 2, %v6231
    %v6233 = vrot.slane %v6171, %v6232
    %v6234 = vlaneseq
    %v6235 = vshrl.u32 %v6234, 7
    %v6236 = vsub.s32 2, %v6235
    %v6237 = vrot.slane %v6172, %v6236
    %v6238 = vlaneseq
    %v6239 = vshrl.u32 %v6238, 7
    %v6240 = vsub.s32 2, %v6239
    %v6241 = vrot.slane %v6173, %v6240
    %v6242 = vmul.f32 %v1491, %v6181
    %v6243 = vmul.f32 %v1492, %v6181
    %v6244 = vmul.f32 %v1493, %v6185
    %v6245 = vmul.f32 %v1494, %v6185
    %v6246 = vmul.f32 %v1495, %v6189
    %v6247 = vmul.f32 %v1496, %v6189
    %v6248 = vmul.f32 %v1497, %v6193
    %v6249 = vmul.f32 %v1498, %v6193
    %v6250 = vmul.f32 %v1499, %v6197
    %v6251 = vmul.f32 %v1500, %v6197
    %v6252 = vmul.f32 %v1501, %v6201
    %v6253 = vmul.f32 %v1502, %v6201
    %v6254 = vmul.f32 %v1503, %v6205
    %v6255 = vmul.f32 %v1504, %v6205
    %v6256 = vmul.f32 %v1505, %v6209
    %v6257 = vmul.f32 %v1506, %v6209
    %v6258 = vmul.f32 %v1507, %v6213
    %v6259 = vmul.f32 %v1508, %v6213
    %v6260 = vmul.f32 %v1509, %v6217
    %v6261 = vmul.f32 %v1510, %v6217
    %v6262 = vmul.f32 %v1511, %v6221
    %v6263 = vmul.f32 %v1512, %v6221
    %v6264 = vmul.f32 %v1513, %v6225
    %v6265 = vmul.f32 %v1514, %v6225
    %v6266 = vmul.f32 %v1515, %v6229
    %v6267 = vmul.f32 %v1516, %v6229
    %v6268 = vmul.f32 %v1517, %v6233
    %v6269 = vmul.f32 %v1518, %v6233
    %v6270 = vmul.f32 %v1519, %v6237
    %v6271 = vmul.f32 %v1520, %v6237
    %v6272 = vmul.f32 %v1521, %v6241
    %v6273 = vmul.f32 %v1522, %v6241
    %v6274 = vsel %vm431, %v6242, 0.0
    %6275 = vadd.xlane.f32.xlu0 %v6274
    %v6276 = vpop.xlane.xlu0 %6275
    %v6277 = vsel %vm431, %v6243, 0.0
    %6278 = vadd.xlane.f32.xlu0 %v6277
    %v6279 = vpop.xlane.xlu0 %6278
    %v6280 = vsel %vm431, %v6244, 0.0
    %6281 = vadd.xlane.f32.xlu0 %v6280
    %v6282 = vpop.xlane.xlu0 %6281
    %v6283 = vsel %vm431, %v6245, 0.0
    %6284 = vadd.xlane.f32.xlu0 %v6283
    %v6285 = vpop.xlane.xlu0 %6284
    %v6286 = vsel %vm431, %v6246, 0.0
    %6287 = vadd.xlane.f32.xlu0 %v6286
    %v6288 = vpop.xlane.xlu0 %6287
    %v6289 = vsel %vm431, %v6247, 0.0
    %6290 = vadd.xlane.f32.xlu0 %v6289
    %v6291 = vpop.xlane.xlu0 %6290
    %v6292 = vsel %vm431, %v6248, 0.0
    %6293 = vadd.xlane.f32.xlu0 %v6292
    %v6294 = vpop.xlane.xlu0 %6293
    %v6295 = vsel %vm431, %v6249, 0.0
    %6296 = vadd.xlane.f32.xlu0 %v6295
    %v6297 = vpop.xlane.xlu0 %6296
    %v6298 = vsel %vm431, %v6250, 0.0
    %6299 = vadd.xlane.f32.xlu0 %v6298
    %v6300 = vpop.xlane.xlu0 %6299
    %v6301 = vsel %vm431, %v6251, 0.0
    %6302 = vadd.xlane.f32.xlu0 %v6301
    %v6303 = vpop.xlane.xlu0 %6302
    %v6304 = vsel %vm431, %v6252, 0.0
    %6305 = vadd.xlane.f32.xlu0 %v6304
    %v6306 = vpop.xlane.xlu0 %6305
    %v6307 = vsel %vm431, %v6253, 0.0
    %6308 = vadd.xlane.f32.xlu0 %v6307
    %v6309 = vpop.xlane.xlu0 %6308
    %v6310 = vsel %vm431, %v6254, 0.0
    %6311 = vadd.xlane.f32.xlu0 %v6310
    %v6312 = vpop.xlane.xlu0 %6311
    %v6313 = vsel %vm431, %v6255, 0.0
    %6314 = vadd.xlane.f32.xlu0 %v6313
    %v6315 = vpop.xlane.xlu0 %6314
    %v6316 = vsel %vm431, %v6256, 0.0
    %6317 = vadd.xlane.f32.xlu0 %v6316
    %v6318 = vpop.xlane.xlu0 %6317
    %v6319 = vsel %vm431, %v6257, 0.0
    %6320 = vadd.xlane.f32.xlu0 %v6319
    %v6321 = vpop.xlane.xlu0 %6320
    %v6322 = vsel %vm431, %v6258, 0.0
    %6323 = vadd.xlane.f32.xlu0 %v6322
    %v6324 = vpop.xlane.xlu0 %6323
    %v6325 = vsel %vm431, %v6259, 0.0
    %6326 = vadd.xlane.f32.xlu0 %v6325
    %v6327 = vpop.xlane.xlu0 %6326
    %v6328 = vsel %vm431, %v6260, 0.0
    %6329 = vadd.xlane.f32.xlu0 %v6328
    %v6330 = vpop.xlane.xlu0 %6329
    %v6331 = vsel %vm431, %v6261, 0.0
    %6332 = vadd.xlane.f32.xlu0 %v6331
    %v6333 = vpop.xlane.xlu0 %6332
    %v6334 = vsel %vm431, %v6262, 0.0
    %6335 = vadd.xlane.f32.xlu0 %v6334
    %v6336 = vpop.xlane.xlu0 %6335
    %v6337 = vsel %vm431, %v6263, 0.0
    %6338 = vadd.xlane.f32.xlu0 %v6337
    %v6339 = vpop.xlane.xlu0 %6338
    %v6340 = vsel %vm431, %v6264, 0.0
    %6341 = vadd.xlane.f32.xlu0 %v6340
    %v6342 = vpop.xlane.xlu0 %6341
    %v6343 = vsel %vm431, %v6265, 0.0
    %6344 = vadd.xlane.f32.xlu0 %v6343
    %v6345 = vpop.xlane.xlu0 %6344
    %v6346 = vsel %vm431, %v6266, 0.0
    %6347 = vadd.xlane.f32.xlu0 %v6346
    %v6348 = vpop.xlane.xlu0 %6347
    %v6349 = vsel %vm431, %v6267, 0.0
    %6350 = vadd.xlane.f32.xlu0 %v6349
    %v6351 = vpop.xlane.xlu0 %6350
    %v6352 = vsel %vm431, %v6268, 0.0
    %6353 = vadd.xlane.f32.xlu0 %v6352
    %v6354 = vpop.xlane.xlu0 %6353
    %v6355 = vsel %vm431, %v6269, 0.0
    %6356 = vadd.xlane.f32.xlu0 %v6355
    %v6357 = vpop.xlane.xlu0 %6356
    %v6358 = vsel %vm431, %v6270, 0.0
    %6359 = vadd.xlane.f32.xlu0 %v6358
    %v6360 = vpop.xlane.xlu0 %6359
    %v6361 = vsel %vm431, %v6271, 0.0
    %6362 = vadd.xlane.f32.xlu0 %v6361
    %v6363 = vpop.xlane.xlu0 %6362
    %v6364 = vsel %vm431, %v6272, 0.0
    %6365 = vadd.xlane.f32.xlu0 %v6364
    %v6366 = vpop.xlane.xlu0 %6365
    %v6367 = vsel %vm431, %v6273, 0.0
    %6368 = vadd.xlane.f32.xlu0 %v6367
    %v6369 = vpop.xlane.xlu0 %6368
    %6371 = vset.pattern.permute.xlu0 0
    %6372 = vperm.xlu0 %6371, %v6176
    %v6373 = vpop.permute.xlu0 %6372
    %6375 = vset.pattern.permute.xlu0 0
    %6376 = vperm.xlu0 %6375, %v6177
    %v6377 = vpop.permute.xlu0 %6376
    %v6378 = vlaneseq
    %v6379 = vshrl.u32 %v6378, 7
    %v6380 = vsub.s32 0, %v6379
    %v6381 = vrot.slane %v6373, %v6380
    %v6382 = vlaneseq
    %v6383 = vshrl.u32 %v6382, 7
    %v6384 = vsub.s32 1, %v6383
    %v6385 = vrot.slane %v6373, %v6384
    %v6386 = vlaneseq
    %v6387 = vshrl.u32 %v6386, 7
    %v6388 = vsub.s32 2, %v6387
    %v6389 = vrot.slane %v6373, %v6388
    %v6390 = vlaneseq
    %v6391 = vshrl.u32 %v6390, 7
    %v6392 = vsub.s32 3, %v6391
    %v6393 = vrot.slane %v6373, %v6392
    %v6394 = vlaneseq
    %v6395 = vshrl.u32 %v6394, 7
    %v6396 = vsub.s32 4, %v6395
    %v6397 = vrot.slane %v6373, %v6396
    %v6398 = vlaneseq
    %v6399 = vshrl.u32 %v6398, 7
    %v6400 = vsub.s32 5, %v6399
    %v6401 = vrot.slane %v6373, %v6400
    %v6402 = vlaneseq
    %v6403 = vshrl.u32 %v6402, 7
    %v6404 = vsub.s32 6, %v6403
    %v6405 = vrot.slane %v6373, %v6404
    %v6406 = vlaneseq
    %v6407 = vshrl.u32 %v6406, 7
    %v6408 = vsub.s32 7, %v6407
    %v6409 = vrot.slane %v6373, %v6408
    %v6410 = vlaneseq
    %v6411 = vshrl.u32 %v6410, 7
    %v6412 = vsub.s32 0, %v6411
    %v6413 = vrot.slane %v6377, %v6412
    %v6414 = vlaneseq
    %v6415 = vshrl.u32 %v6414, 7
    %v6416 = vsub.s32 1, %v6415
    %v6417 = vrot.slane %v6377, %v6416
    %v6418 = vlaneseq
    %v6419 = vshrl.u32 %v6418, 7
    %v6420 = vsub.s32 2, %v6419
    %v6421 = vrot.slane %v6377, %v6420
    %v6422 = vlaneseq
    %v6423 = vshrl.u32 %v6422, 7
    %v6424 = vsub.s32 3, %v6423
    %v6425 = vrot.slane %v6377, %v6424
    %v6426 = vlaneseq
    %v6427 = vshrl.u32 %v6426, 7
    %v6428 = vsub.s32 4, %v6427
    %v6429 = vrot.slane %v6377, %v6428
    %v6430 = vlaneseq
    %v6431 = vshrl.u32 %v6430, 7
    %v6432 = vsub.s32 5, %v6431
    %v6433 = vrot.slane %v6377, %v6432
    %v6434 = vlaneseq
    %v6435 = vshrl.u32 %v6434, 7
    %v6436 = vsub.s32 6, %v6435
    %v6437 = vrot.slane %v6377, %v6436
    %v6438 = vlaneseq
    %v6439 = vshrl.u32 %v6438, 7
    %v6440 = vsub.s32 7, %v6439
    %v6441 = vrot.slane %v6377, %v6440
    %v6458 = vadd.f32 %v6276, %v6381
    %v6459 = vadd.f32 %v6279, %v6381
    %v6460 = vadd.f32 %v6282, %v6385
    %v6461 = vadd.f32 %v6285, %v6385
    %v6462 = vadd.f32 %v6288, %v6389
    %v6463 = vadd.f32 %v6291, %v6389
    %v6464 = vadd.f32 %v6294, %v6393
    %v6465 = vadd.f32 %v6297, %v6393
    %v6466 = vadd.f32 %v6300, %v6397
    %v6467 = vadd.f32 %v6303, %v6397
    %v6468 = vadd.f32 %v6306, %v6401
    %v6469 = vadd.f32 %v6309, %v6401
    %v6470 = vadd.f32 %v6312, %v6405
    %v6471 = vadd.f32 %v6315, %v6405
    %v6472 = vadd.f32 %v6318, %v6409
    %v6473 = vadd.f32 %v6321, %v6409
    %v6474 = vadd.f32 %v6324, %v6413
    %v6475 = vadd.f32 %v6327, %v6413
    %v6476 = vadd.f32 %v6330, %v6417
    %v6477 = vadd.f32 %v6333, %v6417
    %v6478 = vadd.f32 %v6336, %v6421
    %v6479 = vadd.f32 %v6339, %v6421
    %v6480 = vadd.f32 %v6342, %v6425
    %v6481 = vadd.f32 %v6345, %v6425
    %v6482 = vadd.f32 %v6348, %v6429
    %v6483 = vadd.f32 %v6351, %v6429
    %v6484 = vadd.f32 %v6354, %v6433
    %v6485 = vadd.f32 %v6357, %v6433
    %v6486 = vadd.f32 %v6360, %v6437
    %v6487 = vadd.f32 %v6363, %v6437
    %v6488 = vadd.f32 %v6366, %v6441
    %v6489 = vadd.f32 %v6369, %v6441
    %v6522 = vcombine.high %v6458, %v6458
    %v6524 = vunpack.c.l.s4 1966171168
    %v6525 = vunpack.c.0.s8 %v6524
    %v6526 = vlaneseq
    %v6527 = vshrl.u32 %v6526, 7
    %v6528 = vsub.s32 %v6525, %v6527
    %v6529 = vrot.slane %v6458, %v6528
    %v6531 = vunpack.c.l.s4 1966171168
    %v6532 = vunpack.c.0.s8 %v6531
    %v6533 = vlaneseq
    %v6534 = vshrl.u32 %v6533, 7
    %v6535 = vsub.s32 %v6532, %v6534
    %v6536 = vrot.slane %v6522, %v6535
    %v6537 = vcombine.high %v6529, %v6529
    %v6538 = vcombine.high %v6536, %v6536
    %v6540 = vunpack.c.l.s4 1966171168
    %v6541 = vunpack.c.0.s8 %v6540
    %v6542 = vlaneseq
    %v6543 = vshrl.u32 %v6542, 7
    %v6544 = vsub.s32 %v6541, %v6543
    %v6545 = vrot.slane %v6529, %v6544
    %v6547 = vunpack.c.l.s4 1966171168
    %v6548 = vunpack.c.0.s8 %v6547
    %v6549 = vlaneseq
    %v6550 = vshrl.u32 %v6549, 7
    %v6551 = vsub.s32 %v6548, %v6550
    %v6552 = vrot.slane %v6536, %v6551
    %v6554 = vunpack.c.l.s4 1966171168
    %v6555 = vunpack.c.0.s8 %v6554
    %v6556 = vlaneseq
    %v6557 = vshrl.u32 %v6556, 7
    %v6558 = vsub.s32 %v6555, %v6557
    %v6559 = vrot.slane %v6537, %v6558
    %v6561 = vunpack.c.l.s4 1966171168
    %v6562 = vunpack.c.0.s8 %v6561
    %v6563 = vlaneseq
    %v6564 = vshrl.u32 %v6563, 7
    %v6565 = vsub.s32 %v6562, %v6564
    %v6566 = vrot.slane %v6538, %v6565
    %v6567 = vcombine.high %v6545, %v6545
    %v6568 = vcombine.high %v6552, %v6552
    %v6569 = vcombine.high %v6559, %v6559
    %v6570 = vcombine.high %v6566, %v6566
    %v6571 = vcombine.high %v6459, %v6459
    %v6573 = vunpack.c.l.s4 1966171168
    %v6574 = vunpack.c.0.s8 %v6573
    %v6575 = vlaneseq
    %v6576 = vshrl.u32 %v6575, 7
    %v6577 = vsub.s32 %v6574, %v6576
    %v6578 = vrot.slane %v6459, %v6577
    %v6580 = vunpack.c.l.s4 1966171168
    %v6581 = vunpack.c.0.s8 %v6580
    %v6582 = vlaneseq
    %v6583 = vshrl.u32 %v6582, 7
    %v6584 = vsub.s32 %v6581, %v6583
    %v6585 = vrot.slane %v6571, %v6584
    %v6586 = vcombine.high %v6578, %v6578
    %v6587 = vcombine.high %v6585, %v6585
    %v6589 = vunpack.c.l.s4 1966171168
    %v6590 = vunpack.c.0.s8 %v6589
    %v6591 = vlaneseq
    %v6592 = vshrl.u32 %v6591, 7
    %v6593 = vsub.s32 %v6590, %v6592
    %v6594 = vrot.slane %v6578, %v6593
    %v6596 = vunpack.c.l.s4 1966171168
    %v6597 = vunpack.c.0.s8 %v6596
    %v6598 = vlaneseq
    %v6599 = vshrl.u32 %v6598, 7
    %v6600 = vsub.s32 %v6597, %v6599
    %v6601 = vrot.slane %v6585, %v6600
    %v6603 = vunpack.c.l.s4 1966171168
    %v6604 = vunpack.c.0.s8 %v6603
    %v6605 = vlaneseq
    %v6606 = vshrl.u32 %v6605, 7
    %v6607 = vsub.s32 %v6604, %v6606
    %v6608 = vrot.slane %v6586, %v6607
    %v6610 = vunpack.c.l.s4 1966171168
    %v6611 = vunpack.c.0.s8 %v6610
    %v6612 = vlaneseq
    %v6613 = vshrl.u32 %v6612, 7
    %v6614 = vsub.s32 %v6611, %v6613
    %v6615 = vrot.slane %v6587, %v6614
    %v6616 = vcombine.high %v6594, %v6594
    %v6617 = vcombine.high %v6601, %v6601
    %v6618 = vcombine.high %v6608, %v6608
    %v6619 = vcombine.high %v6615, %v6615
    %v6620 = vcombine.high %v6460, %v6460
    %v6622 = vunpack.c.l.s4 1966171168
    %v6623 = vunpack.c.0.s8 %v6622
    %v6624 = vlaneseq
    %v6625 = vshrl.u32 %v6624, 7
    %v6626 = vsub.s32 %v6623, %v6625
    %v6627 = vrot.slane %v6460, %v6626
    %v6629 = vunpack.c.l.s4 1966171168
    %v6630 = vunpack.c.0.s8 %v6629
    %v6631 = vlaneseq
    %v6632 = vshrl.u32 %v6631, 7
    %v6633 = vsub.s32 %v6630, %v6632
    %v6634 = vrot.slane %v6620, %v6633
    %v6635 = vcombine.high %v6627, %v6627
    %v6636 = vcombine.high %v6634, %v6634
    %v6638 = vunpack.c.l.s4 1966171168
    %v6639 = vunpack.c.0.s8 %v6638
    %v6640 = vlaneseq
    %v6641 = vshrl.u32 %v6640, 7
    %v6642 = vsub.s32 %v6639, %v6641
    %v6643 = vrot.slane %v6627, %v6642
    %v6645 = vunpack.c.l.s4 1966171168
    %v6646 = vunpack.c.0.s8 %v6645
    %v6647 = vlaneseq
    %v6648 = vshrl.u32 %v6647, 7
    %v6649 = vsub.s32 %v6646, %v6648
    %v6650 = vrot.slane %v6634, %v6649
    %v6652 = vunpack.c.l.s4 1966171168
    %v6653 = vunpack.c.0.s8 %v6652
    %v6654 = vlaneseq
    %v6655 = vshrl.u32 %v6654, 7
    %v6656 = vsub.s32 %v6653, %v6655
    %v6657 = vrot.slane %v6635, %v6656
    %v6659 = vunpack.c.l.s4 1966171168
    %v6660 = vunpack.c.0.s8 %v6659
    %v6661 = vlaneseq
    %v6662 = vshrl.u32 %v6661, 7
    %v6663 = vsub.s32 %v6660, %v6662
    %v6664 = vrot.slane %v6636, %v6663
    %v6665 = vcombine.high %v6643, %v6643
    %v6666 = vcombine.high %v6650, %v6650
    %v6667 = vcombine.high %v6657, %v6657
    %v6668 = vcombine.high %v6664, %v6664
    %v6669 = vcombine.high %v6461, %v6461
    %v6671 = vunpack.c.l.s4 1966171168
    %v6672 = vunpack.c.0.s8 %v6671
    %v6673 = vlaneseq
    %v6674 = vshrl.u32 %v6673, 7
    %v6675 = vsub.s32 %v6672, %v6674
    %v6676 = vrot.slane %v6461, %v6675
    %v6678 = vunpack.c.l.s4 1966171168
    %v6679 = vunpack.c.0.s8 %v6678
    %v6680 = vlaneseq
    %v6681 = vshrl.u32 %v6680, 7
    %v6682 = vsub.s32 %v6679, %v6681
    %v6683 = vrot.slane %v6669, %v6682
    %v6684 = vcombine.high %v6676, %v6676
    %v6685 = vcombine.high %v6683, %v6683
    %v6687 = vunpack.c.l.s4 1966171168
    %v6688 = vunpack.c.0.s8 %v6687
    %v6689 = vlaneseq
    %v6690 = vshrl.u32 %v6689, 7
    %v6691 = vsub.s32 %v6688, %v6690
    %v6692 = vrot.slane %v6676, %v6691
    %v6694 = vunpack.c.l.s4 1966171168
    %v6695 = vunpack.c.0.s8 %v6694
    %v6696 = vlaneseq
    %v6697 = vshrl.u32 %v6696, 7
    %v6698 = vsub.s32 %v6695, %v6697
    %v6699 = vrot.slane %v6683, %v6698
    %v6701 = vunpack.c.l.s4 1966171168
    %v6702 = vunpack.c.0.s8 %v6701
    %v6703 = vlaneseq
    %v6704 = vshrl.u32 %v6703, 7
    %v6705 = vsub.s32 %v6702, %v6704
    %v6706 = vrot.slane %v6684, %v6705
    %v6708 = vunpack.c.l.s4 1966171168
    %v6709 = vunpack.c.0.s8 %v6708
    %v6710 = vlaneseq
    %v6711 = vshrl.u32 %v6710, 7
    %v6712 = vsub.s32 %v6709, %v6711
    %v6713 = vrot.slane %v6685, %v6712
    %v6714 = vcombine.high %v6692, %v6692
    %v6715 = vcombine.high %v6699, %v6699
    %v6716 = vcombine.high %v6706, %v6706
    %v6717 = vcombine.high %v6713, %v6713
    %v6718 = vcombine.high %v6462, %v6462
    %v6720 = vunpack.c.l.s4 1966171168
    %v6721 = vunpack.c.0.s8 %v6720
    %v6722 = vlaneseq
    %v6723 = vshrl.u32 %v6722, 7
    %v6724 = vsub.s32 %v6721, %v6723
    %v6725 = vrot.slane %v6462, %v6724
    %v6727 = vunpack.c.l.s4 1966171168
    %v6728 = vunpack.c.0.s8 %v6727
    %v6729 = vlaneseq
    %v6730 = vshrl.u32 %v6729, 7
    %v6731 = vsub.s32 %v6728, %v6730
    %v6732 = vrot.slane %v6718, %v6731
    %v6733 = vcombine.high %v6725, %v6725
    %v6734 = vcombine.high %v6732, %v6732
    %v6736 = vunpack.c.l.s4 1966171168
    %v6737 = vunpack.c.0.s8 %v6736
    %v6738 = vlaneseq
    %v6739 = vshrl.u32 %v6738, 7
    %v6740 = vsub.s32 %v6737, %v6739
    %v6741 = vrot.slane %v6725, %v6740
    %v6743 = vunpack.c.l.s4 1966171168
    %v6744 = vunpack.c.0.s8 %v6743
    %v6745 = vlaneseq
    %v6746 = vshrl.u32 %v6745, 7
    %v6747 = vsub.s32 %v6744, %v6746
    %v6748 = vrot.slane %v6732, %v6747
    %v6750 = vunpack.c.l.s4 1966171168
    %v6751 = vunpack.c.0.s8 %v6750
    %v6752 = vlaneseq
    %v6753 = vshrl.u32 %v6752, 7
    %v6754 = vsub.s32 %v6751, %v6753
    %v6755 = vrot.slane %v6733, %v6754
    %v6757 = vunpack.c.l.s4 1966171168
    %v6758 = vunpack.c.0.s8 %v6757
    %v6759 = vlaneseq
    %v6760 = vshrl.u32 %v6759, 7
    %v6761 = vsub.s32 %v6758, %v6760
    %v6762 = vrot.slane %v6734, %v6761
    %v6763 = vcombine.high %v6741, %v6741
    %v6764 = vcombine.high %v6748, %v6748
    %v6765 = vcombine.high %v6755, %v6755
    %v6766 = vcombine.high %v6762, %v6762
    %v6767 = vcombine.high %v6463, %v6463
    %v6769 = vunpack.c.l.s4 1966171168
    %v6770 = vunpack.c.0.s8 %v6769
    %v6771 = vlaneseq
    %v6772 = vshrl.u32 %v6771, 7
    %v6773 = vsub.s32 %v6770, %v6772
    %v6774 = vrot.slane %v6463, %v6773
    %v6776 = vunpack.c.l.s4 1966171168
    %v6777 = vunpack.c.0.s8 %v6776
    %v6778 = vlaneseq
    %v6779 = vshrl.u32 %v6778, 7
    %v6780 = vsub.s32 %v6777, %v6779
    %v6781 = vrot.slane %v6767, %v6780
    %v6782 = vcombine.high %v6774, %v6774
    %v6783 = vcombine.high %v6781, %v6781
    %v6785 = vunpack.c.l.s4 1966171168
    %v6786 = vunpack.c.0.s8 %v6785
    %v6787 = vlaneseq
    %v6788 = vshrl.u32 %v6787, 7
    %v6789 = vsub.s32 %v6786, %v6788
    %v6790 = vrot.slane %v6774, %v6789
    %v6792 = vunpack.c.l.s4 1966171168
    %v6793 = vunpack.c.0.s8 %v6792
    %v6794 = vlaneseq
    %v6795 = vshrl.u32 %v6794, 7
    %v6796 = vsub.s32 %v6793, %v6795
    %v6797 = vrot.slane %v6781, %v6796
    %v6799 = vunpack.c.l.s4 1966171168
    %v6800 = vunpack.c.0.s8 %v6799
    %v6801 = vlaneseq
    %v6802 = vshrl.u32 %v6801, 7
    %v6803 = vsub.s32 %v6800, %v6802
    %v6804 = vrot.slane %v6782, %v6803
    %v6806 = vunpack.c.l.s4 1966171168
    %v6807 = vunpack.c.0.s8 %v6806
    %v6808 = vlaneseq
    %v6809 = vshrl.u32 %v6808, 7
    %v6810 = vsub.s32 %v6807, %v6809
    %v6811 = vrot.slane %v6783, %v6810
    %v6812 = vcombine.high %v6790, %v6790
    %v6813 = vcombine.high %v6797, %v6797
    %v6814 = vcombine.high %v6804, %v6804
    %v6815 = vcombine.high %v6811, %v6811
    %v6816 = vcombine.high %v6464, %v6464
    %v6818 = vunpack.c.l.s4 1966171168
    %v6819 = vunpack.c.0.s8 %v6818
    %v6820 = vlaneseq
    %v6821 = vshrl.u32 %v6820, 7
    %v6822 = vsub.s32 %v6819, %v6821
    %v6823 = vrot.slane %v6464, %v6822
    %v6825 = vunpack.c.l.s4 1966171168
    %v6826 = vunpack.c.0.s8 %v6825
    %v6827 = vlaneseq
    %v6828 = vshrl.u32 %v6827, 7
    %v6829 = vsub.s32 %v6826, %v6828
    %v6830 = vrot.slane %v6816, %v6829
    %v6831 = vcombine.high %v6823, %v6823
    %v6832 = vcombine.high %v6830, %v6830
    %v6834 = vunpack.c.l.s4 1966171168
    %v6835 = vunpack.c.0.s8 %v6834
    %v6836 = vlaneseq
    %v6837 = vshrl.u32 %v6836, 7
    %v6838 = vsub.s32 %v6835, %v6837
    %v6839 = vrot.slane %v6823, %v6838
    %v6841 = vunpack.c.l.s4 1966171168
    %v6842 = vunpack.c.0.s8 %v6841
    %v6843 = vlaneseq
    %v6844 = vshrl.u32 %v6843, 7
    %v6845 = vsub.s32 %v6842, %v6844
    %v6846 = vrot.slane %v6830, %v6845
    %v6848 = vunpack.c.l.s4 1966171168
    %v6849 = vunpack.c.0.s8 %v6848
    %v6850 = vlaneseq
    %v6851 = vshrl.u32 %v6850, 7
    %v6852 = vsub.s32 %v6849, %v6851
    %v6853 = vrot.slane %v6831, %v6852
    %v6855 = vunpack.c.l.s4 1966171168
    %v6856 = vunpack.c.0.s8 %v6855
    %v6857 = vlaneseq
    %v6858 = vshrl.u32 %v6857, 7
    %v6859 = vsub.s32 %v6856, %v6858
    %v6860 = vrot.slane %v6832, %v6859
    %v6861 = vcombine.high %v6839, %v6839
    %v6862 = vcombine.high %v6846, %v6846
    %v6863 = vcombine.high %v6853, %v6853
    %v6864 = vcombine.high %v6860, %v6860
    %v6865 = vcombine.high %v6465, %v6465
    %v6867 = vunpack.c.l.s4 1966171168
    %v6868 = vunpack.c.0.s8 %v6867
    %v6869 = vlaneseq
    %v6870 = vshrl.u32 %v6869, 7
    %v6871 = vsub.s32 %v6868, %v6870
    %v6872 = vrot.slane %v6465, %v6871
    %v6874 = vunpack.c.l.s4 1966171168
    %v6875 = vunpack.c.0.s8 %v6874
    %v6876 = vlaneseq
    %v6877 = vshrl.u32 %v6876, 7
    %v6878 = vsub.s32 %v6875, %v6877
    %v6879 = vrot.slane %v6865, %v6878
    %v6880 = vcombine.high %v6872, %v6872
    %v6881 = vcombine.high %v6879, %v6879
    %v6883 = vunpack.c.l.s4 1966171168
    %v6884 = vunpack.c.0.s8 %v6883
    %v6885 = vlaneseq
    %v6886 = vshrl.u32 %v6885, 7
    %v6887 = vsub.s32 %v6884, %v6886
    %v6888 = vrot.slane %v6872, %v6887
    %v6890 = vunpack.c.l.s4 1966171168
    %v6891 = vunpack.c.0.s8 %v6890
    %v6892 = vlaneseq
    %v6893 = vshrl.u32 %v6892, 7
    %v6894 = vsub.s32 %v6891, %v6893
    %v6895 = vrot.slane %v6879, %v6894
    %v6897 = vunpack.c.l.s4 1966171168
    %v6898 = vunpack.c.0.s8 %v6897
    %v6899 = vlaneseq
    %v6900 = vshrl.u32 %v6899, 7
    %v6901 = vsub.s32 %v6898, %v6900
    %v6902 = vrot.slane %v6880, %v6901
    %v6904 = vunpack.c.l.s4 1966171168
    %v6905 = vunpack.c.0.s8 %v6904
    %v6906 = vlaneseq
    %v6907 = vshrl.u32 %v6906, 7
    %v6908 = vsub.s32 %v6905, %v6907
    %v6909 = vrot.slane %v6881, %v6908
    %v6910 = vcombine.high %v6888, %v6888
    %v6911 = vcombine.high %v6895, %v6895
    %v6912 = vcombine.high %v6902, %v6902
    %v6913 = vcombine.high %v6909, %v6909
    %v6914 = vcombine.high %v6466, %v6466
    %v6916 = vunpack.c.l.s4 1966171168
    %v6917 = vunpack.c.0.s8 %v6916
    %v6918 = vlaneseq
    %v6919 = vshrl.u32 %v6918, 7
    %v6920 = vsub.s32 %v6917, %v6919
    %v6921 = vrot.slane %v6466, %v6920
    %v6923 = vunpack.c.l.s4 1966171168
    %v6924 = vunpack.c.0.s8 %v6923
    %v6925 = vlaneseq
    %v6926 = vshrl.u32 %v6925, 7
    %v6927 = vsub.s32 %v6924, %v6926
    %v6928 = vrot.slane %v6914, %v6927
    %v6929 = vcombine.high %v6921, %v6921
    %v6930 = vcombine.high %v6928, %v6928
    %v6932 = vunpack.c.l.s4 1966171168
    %v6933 = vunpack.c.0.s8 %v6932
    %v6934 = vlaneseq
    %v6935 = vshrl.u32 %v6934, 7
    %v6936 = vsub.s32 %v6933, %v6935
    %v6937 = vrot.slane %v6921, %v6936
    %v6939 = vunpack.c.l.s4 1966171168
    %v6940 = vunpack.c.0.s8 %v6939
    %v6941 = vlaneseq
    %v6942 = vshrl.u32 %v6941, 7
    %v6943 = vsub.s32 %v6940, %v6942
    %v6944 = vrot.slane %v6928, %v6943
    %v6946 = vunpack.c.l.s4 1966171168
    %v6947 = vunpack.c.0.s8 %v6946
    %v6948 = vlaneseq
    %v6949 = vshrl.u32 %v6948, 7
    %v6950 = vsub.s32 %v6947, %v6949
    %v6951 = vrot.slane %v6929, %v6950
    %v6953 = vunpack.c.l.s4 1966171168
    %v6954 = vunpack.c.0.s8 %v6953
    %v6955 = vlaneseq
    %v6956 = vshrl.u32 %v6955, 7
    %v6957 = vsub.s32 %v6954, %v6956
    %v6958 = vrot.slane %v6930, %v6957
    %v6959 = vcombine.high %v6937, %v6937
    %v6960 = vcombine.high %v6944, %v6944
    %v6961 = vcombine.high %v6951, %v6951
    %v6962 = vcombine.high %v6958, %v6958
    %v6963 = vcombine.high %v6467, %v6467
    %v6965 = vunpack.c.l.s4 1966171168
    %v6966 = vunpack.c.0.s8 %v6965
    %v6967 = vlaneseq
    %v6968 = vshrl.u32 %v6967, 7
    %v6969 = vsub.s32 %v6966, %v6968
    %v6970 = vrot.slane %v6467, %v6969
    %v6972 = vunpack.c.l.s4 1966171168
    %v6973 = vunpack.c.0.s8 %v6972
    %v6974 = vlaneseq
    %v6975 = vshrl.u32 %v6974, 7
    %v6976 = vsub.s32 %v6973, %v6975
    %v6977 = vrot.slane %v6963, %v6976
    %v6978 = vcombine.high %v6970, %v6970
    %v6979 = vcombine.high %v6977, %v6977
    %v6981 = vunpack.c.l.s4 1966171168
    %v6982 = vunpack.c.0.s8 %v6981
    %v6983 = vlaneseq
    %v6984 = vshrl.u32 %v6983, 7
    %v6985 = vsub.s32 %v6982, %v6984
    %v6986 = vrot.slane %v6970, %v6985
    %v6988 = vunpack.c.l.s4 1966171168
    %v6989 = vunpack.c.0.s8 %v6988
    %v6990 = vlaneseq
    %v6991 = vshrl.u32 %v6990, 7
    %v6992 = vsub.s32 %v6989, %v6991
    %v6993 = vrot.slane %v6977, %v6992
    %v6995 = vunpack.c.l.s4 1966171168
    %v6996 = vunpack.c.0.s8 %v6995
    %v6997 = vlaneseq
    %v6998 = vshrl.u32 %v6997, 7
    %v6999 = vsub.s32 %v6996, %v6998
    %v7000 = vrot.slane %v6978, %v6999
    %v7002 = vunpack.c.l.s4 1966171168
    %v7003 = vunpack.c.0.s8 %v7002
    %v7004 = vlaneseq
    %v7005 = vshrl.u32 %v7004, 7
    %v7006 = vsub.s32 %v7003, %v7005
    %v7007 = vrot.slane %v6979, %v7006
    %v7008 = vcombine.high %v6986, %v6986
    %v7009 = vcombine.high %v6993, %v6993
    %v7010 = vcombine.high %v7000, %v7000
    %v7011 = vcombine.high %v7007, %v7007
    %v7012 = vcombine.high %v6468, %v6468
    %v7014 = vunpack.c.l.s4 1966171168
    %v7015 = vunpack.c.0.s8 %v7014
    %v7016 = vlaneseq
    %v7017 = vshrl.u32 %v7016, 7
    %v7018 = vsub.s32 %v7015, %v7017
    %v7019 = vrot.slane %v6468, %v7018
    %v7021 = vunpack.c.l.s4 1966171168
    %v7022 = vunpack.c.0.s8 %v7021
    %v7023 = vlaneseq
    %v7024 = vshrl.u32 %v7023, 7
    %v7025 = vsub.s32 %v7022, %v7024
    %v7026 = vrot.slane %v7012, %v7025
    %v7027 = vcombine.high %v7019, %v7019
    %v7028 = vcombine.high %v7026, %v7026
    %v7030 = vunpack.c.l.s4 1966171168
    %v7031 = vunpack.c.0.s8 %v7030
    %v7032 = vlaneseq
    %v7033 = vshrl.u32 %v7032, 7
    %v7034 = vsub.s32 %v7031, %v7033
    %v7035 = vrot.slane %v7019, %v7034
    %v7037 = vunpack.c.l.s4 1966171168
    %v7038 = vunpack.c.0.s8 %v7037
    %v7039 = vlaneseq
    %v7040 = vshrl.u32 %v7039, 7
    %v7041 = vsub.s32 %v7038, %v7040
    %v7042 = vrot.slane %v7026, %v7041
    %v7044 = vunpack.c.l.s4 1966171168
    %v7045 = vunpack.c.0.s8 %v7044
    %v7046 = vlaneseq
    %v7047 = vshrl.u32 %v7046, 7
    %v7048 = vsub.s32 %v7045, %v7047
    %v7049 = vrot.slane %v7027, %v7048
    %v7051 = vunpack.c.l.s4 1966171168
    %v7052 = vunpack.c.0.s8 %v7051
    %v7053 = vlaneseq
    %v7054 = vshrl.u32 %v7053, 7
    %v7055 = vsub.s32 %v7052, %v7054
    %v7056 = vrot.slane %v7028, %v7055
    %v7057 = vcombine.high %v7035, %v7035
    %v7058 = vcombine.high %v7042, %v7042
    %v7059 = vcombine.high %v7049, %v7049
    %v7060 = vcombine.high %v7056, %v7056
    %v7061 = vcombine.high %v6469, %v6469
    %v7063 = vunpack.c.l.s4 1966171168
    %v7064 = vunpack.c.0.s8 %v7063
    %v7065 = vlaneseq
    %v7066 = vshrl.u32 %v7065, 7
    %v7067 = vsub.s32 %v7064, %v7066
    %v7068 = vrot.slane %v6469, %v7067
    %v7070 = vunpack.c.l.s4 1966171168
    %v7071 = vunpack.c.0.s8 %v7070
    %v7072 = vlaneseq
    %v7073 = vshrl.u32 %v7072, 7
    %v7074 = vsub.s32 %v7071, %v7073
    %v7075 = vrot.slane %v7061, %v7074
    %v7076 = vcombine.high %v7068, %v7068
    %v7077 = vcombine.high %v7075, %v7075
    %v7079 = vunpack.c.l.s4 1966171168
    %v7080 = vunpack.c.0.s8 %v7079
    %v7081 = vlaneseq
    %v7082 = vshrl.u32 %v7081, 7
    %v7083 = vsub.s32 %v7080, %v7082
    %v7084 = vrot.slane %v7068, %v7083
    %v7086 = vunpack.c.l.s4 1966171168
    %v7087 = vunpack.c.0.s8 %v7086
    %v7088 = vlaneseq
    %v7089 = vshrl.u32 %v7088, 7
    %v7090 = vsub.s32 %v7087, %v7089
    %v7091 = vrot.slane %v7075, %v7090
    %v7093 = vunpack.c.l.s4 1966171168
    %v7094 = vunpack.c.0.s8 %v7093
    %v7095 = vlaneseq
    %v7096 = vshrl.u32 %v7095, 7
    %v7097 = vsub.s32 %v7094, %v7096
    %v7098 = vrot.slane %v7076, %v7097
    %v7100 = vunpack.c.l.s4 1966171168
    %v7101 = vunpack.c.0.s8 %v7100
    %v7102 = vlaneseq
    %v7103 = vshrl.u32 %v7102, 7
    %v7104 = vsub.s32 %v7101, %v7103
    %v7105 = vrot.slane %v7077, %v7104
    %v7106 = vcombine.high %v7084, %v7084
    %v7107 = vcombine.high %v7091, %v7091
    %v7108 = vcombine.high %v7098, %v7098
    %v7109 = vcombine.high %v7105, %v7105
    %v7110 = vcombine.high %v6470, %v6470
    %v7112 = vunpack.c.l.s4 1966171168
    %v7113 = vunpack.c.0.s8 %v7112
    %v7114 = vlaneseq
    %v7115 = vshrl.u32 %v7114, 7
    %v7116 = vsub.s32 %v7113, %v7115
    %v7117 = vrot.slane %v6470, %v7116
    %v7119 = vunpack.c.l.s4 1966171168
    %v7120 = vunpack.c.0.s8 %v7119
    %v7121 = vlaneseq
    %v7122 = vshrl.u32 %v7121, 7
    %v7123 = vsub.s32 %v7120, %v7122
    %v7124 = vrot.slane %v7110, %v7123
    %v7125 = vcombine.high %v7117, %v7117
    %v7126 = vcombine.high %v7124, %v7124
    %v7128 = vunpack.c.l.s4 1966171168
    %v7129 = vunpack.c.0.s8 %v7128
    %v7130 = vlaneseq
    %v7131 = vshrl.u32 %v7130, 7
    %v7132 = vsub.s32 %v7129, %v7131
    %v7133 = vrot.slane %v7117, %v7132
    %v7135 = vunpack.c.l.s4 1966171168
    %v7136 = vunpack.c.0.s8 %v7135
    %v7137 = vlaneseq
    %v7138 = vshrl.u32 %v7137, 7
    %v7139 = vsub.s32 %v7136, %v7138
    %v7140 = vrot.slane %v7124, %v7139
    %v7142 = vunpack.c.l.s4 1966171168
    %v7143 = vunpack.c.0.s8 %v7142
    %v7144 = vlaneseq
    %v7145 = vshrl.u32 %v7144, 7
    %v7146 = vsub.s32 %v7143, %v7145
    %v7147 = vrot.slane %v7125, %v7146
    %v7149 = vunpack.c.l.s4 1966171168
    %v7150 = vunpack.c.0.s8 %v7149
    %v7151 = vlaneseq
    %v7152 = vshrl.u32 %v7151, 7
    %v7153 = vsub.s32 %v7150, %v7152
    %v7154 = vrot.slane %v7126, %v7153
    %v7155 = vcombine.high %v7133, %v7133
    %v7156 = vcombine.high %v7140, %v7140
    %v7157 = vcombine.high %v7147, %v7147
    %v7158 = vcombine.high %v7154, %v7154
    %v7159 = vcombine.high %v6471, %v6471
    %v7161 = vunpack.c.l.s4 1966171168
    %v7162 = vunpack.c.0.s8 %v7161
    %v7163 = vlaneseq
    %v7164 = vshrl.u32 %v7163, 7
    %v7165 = vsub.s32 %v7162, %v7164
    %v7166 = vrot.slane %v6471, %v7165
    %v7168 = vunpack.c.l.s4 1966171168
    %v7169 = vunpack.c.0.s8 %v7168
    %v7170 = vlaneseq
    %v7171 = vshrl.u32 %v7170, 7
    %v7172 = vsub.s32 %v7169, %v7171
    %v7173 = vrot.slane %v7159, %v7172
    %v7174 = vcombine.high %v7166, %v7166
    %v7175 = vcombine.high %v7173, %v7173
    %v7177 = vunpack.c.l.s4 1966171168
    %v7178 = vunpack.c.0.s8 %v7177
    %v7179 = vlaneseq
    %v7180 = vshrl.u32 %v7179, 7
    %v7181 = vsub.s32 %v7178, %v7180
    %v7182 = vrot.slane %v7166, %v7181
    %v7184 = vunpack.c.l.s4 1966171168
    %v7185 = vunpack.c.0.s8 %v7184
    %v7186 = vlaneseq
    %v7187 = vshrl.u32 %v7186, 7
    %v7188 = vsub.s32 %v7185, %v7187
    %v7189 = vrot.slane %v7173, %v7188
    %v7191 = vunpack.c.l.s4 1966171168
    %v7192 = vunpack.c.0.s8 %v7191
    %v7193 = vlaneseq
    %v7194 = vshrl.u32 %v7193, 7
    %v7195 = vsub.s32 %v7192, %v7194
    %v7196 = vrot.slane %v7174, %v7195
    %v7198 = vunpack.c.l.s4 1966171168
    %v7199 = vunpack.c.0.s8 %v7198
    %v7200 = vlaneseq
    %v7201 = vshrl.u32 %v7200, 7
    %v7202 = vsub.s32 %v7199, %v7201
    %v7203 = vrot.slane %v7175, %v7202
    %v7204 = vcombine.high %v7182, %v7182
    %v7205 = vcombine.high %v7189, %v7189
    %v7206 = vcombine.high %v7196, %v7196
    %v7207 = vcombine.high %v7203, %v7203
    %v7208 = vcombine.high %v6472, %v6472
    %v7210 = vunpack.c.l.s4 1966171168
    %v7211 = vunpack.c.0.s8 %v7210
    %v7212 = vlaneseq
    %v7213 = vshrl.u32 %v7212, 7
    %v7214 = vsub.s32 %v7211, %v7213
    %v7215 = vrot.slane %v6472, %v7214
    %v7217 = vunpack.c.l.s4 1966171168
    %v7218 = vunpack.c.0.s8 %v7217
    %v7219 = vlaneseq
    %v7220 = vshrl.u32 %v7219, 7
    %v7221 = vsub.s32 %v7218, %v7220
    %v7222 = vrot.slane %v7208, %v7221
    %v7223 = vcombine.high %v7215, %v7215
    %v7224 = vcombine.high %v7222, %v7222
    %v7226 = vunpack.c.l.s4 1966171168
    %v7227 = vunpack.c.0.s8 %v7226
    %v7228 = vlaneseq
    %v7229 = vshrl.u32 %v7228, 7
    %v7230 = vsub.s32 %v7227, %v7229
    %v7231 = vrot.slane %v7215, %v7230
    %v7233 = vunpack.c.l.s4 1966171168
    %v7234 = vunpack.c.0.s8 %v7233
    %v7235 = vlaneseq
    %v7236 = vshrl.u32 %v7235, 7
    %v7237 = vsub.s32 %v7234, %v7236
    %v7238 = vrot.slane %v7222, %v7237
    %v7240 = vunpack.c.l.s4 1966171168
    %v7241 = vunpack.c.0.s8 %v7240
    %v7242 = vlaneseq
    %v7243 = vshrl.u32 %v7242, 7
    %v7244 = vsub.s32 %v7241, %v7243
    %v7245 = vrot.slane %v7223, %v7244
    %v7247 = vunpack.c.l.s4 1966171168
    %v7248 = vunpack.c.0.s8 %v7247
    %v7249 = vlaneseq
    %v7250 = vshrl.u32 %v7249, 7
    %v7251 = vsub.s32 %v7248, %v7250
    %v7252 = vrot.slane %v7224, %v7251
    %v7253 = vcombine.high %v7231, %v7231
    %v7254 = vcombine.high %v7238, %v7238
    %v7255 = vcombine.high %v7245, %v7245
    %v7256 = vcombine.high %v7252, %v7252
    %v7257 = vcombine.high %v6473, %v6473
    %v7259 = vunpack.c.l.s4 1966171168
    %v7260 = vunpack.c.0.s8 %v7259
    %v7261 = vlaneseq
    %v7262 = vshrl.u32 %v7261, 7
    %v7263 = vsub.s32 %v7260, %v7262
    %v7264 = vrot.slane %v6473, %v7263
    %v7266 = vunpack.c.l.s4 1966171168
    %v7267 = vunpack.c.0.s8 %v7266
    %v7268 = vlaneseq
    %v7269 = vshrl.u32 %v7268, 7
    %v7270 = vsub.s32 %v7267, %v7269
    %v7271 = vrot.slane %v7257, %v7270
    %v7272 = vcombine.high %v7264, %v7264
    %v7273 = vcombine.high %v7271, %v7271
    %v7275 = vunpack.c.l.s4 1966171168
    %v7276 = vunpack.c.0.s8 %v7275
    %v7277 = vlaneseq
    %v7278 = vshrl.u32 %v7277, 7
    %v7279 = vsub.s32 %v7276, %v7278
    %v7280 = vrot.slane %v7264, %v7279
    %v7282 = vunpack.c.l.s4 1966171168
    %v7283 = vunpack.c.0.s8 %v7282
    %v7284 = vlaneseq
    %v7285 = vshrl.u32 %v7284, 7
    %v7286 = vsub.s32 %v7283, %v7285
    %v7287 = vrot.slane %v7271, %v7286
    %v7289 = vunpack.c.l.s4 1966171168
    %v7290 = vunpack.c.0.s8 %v7289
    %v7291 = vlaneseq
    %v7292 = vshrl.u32 %v7291, 7
    %v7293 = vsub.s32 %v7290, %v7292
    %v7294 = vrot.slane %v7272, %v7293
    %v7296 = vunpack.c.l.s4 1966171168
    %v7297 = vunpack.c.0.s8 %v7296
    %v7298 = vlaneseq
    %v7299 = vshrl.u32 %v7298, 7
    %v7300 = vsub.s32 %v7297, %v7299
    %v7301 = vrot.slane %v7273, %v7300
    %v7302 = vcombine.high %v7280, %v7280
    %v7303 = vcombine.high %v7287, %v7287
    %v7304 = vcombine.high %v7294, %v7294
    %v7305 = vcombine.high %v7301, %v7301
    %v7306 = vcombine.high %v6474, %v6474
    %v7308 = vunpack.c.l.s4 1966171168
    %v7309 = vunpack.c.0.s8 %v7308
    %v7310 = vlaneseq
    %v7311 = vshrl.u32 %v7310, 7
    %v7312 = vsub.s32 %v7309, %v7311
    %v7313 = vrot.slane %v6474, %v7312
    %v7315 = vunpack.c.l.s4 1966171168
    %v7316 = vunpack.c.0.s8 %v7315
    %v7317 = vlaneseq
    %v7318 = vshrl.u32 %v7317, 7
    %v7319 = vsub.s32 %v7316, %v7318
    %v7320 = vrot.slane %v7306, %v7319
    %v7321 = vcombine.high %v7313, %v7313
    %v7322 = vcombine.high %v7320, %v7320
    %v7324 = vunpack.c.l.s4 1966171168
    %v7325 = vunpack.c.0.s8 %v7324
    %v7326 = vlaneseq
    %v7327 = vshrl.u32 %v7326, 7
    %v7328 = vsub.s32 %v7325, %v7327
    %v7329 = vrot.slane %v7313, %v7328
    %v7331 = vunpack.c.l.s4 1966171168
    %v7332 = vunpack.c.0.s8 %v7331
    %v7333 = vlaneseq
    %v7334 = vshrl.u32 %v7333, 7
    %v7335 = vsub.s32 %v7332, %v7334
    %v7336 = vrot.slane %v7320, %v7335
    %v7338 = vunpack.c.l.s4 1966171168
    %v7339 = vunpack.c.0.s8 %v7338
    %v7340 = vlaneseq
    %v7341 = vshrl.u32 %v7340, 7
    %v7342 = vsub.s32 %v7339, %v7341
    %v7343 = vrot.slane %v7321, %v7342
    %v7345 = vunpack.c.l.s4 1966171168
    %v7346 = vunpack.c.0.s8 %v7345
    %v7347 = vlaneseq
    %v7348 = vshrl.u32 %v7347, 7
    %v7349 = vsub.s32 %v7346, %v7348
    %v7350 = vrot.slane %v7322, %v7349
    %v7351 = vcombine.high %v7329, %v7329
    %v7352 = vcombine.high %v7336, %v7336
    %v7353 = vcombine.high %v7343, %v7343
    %v7354 = vcombine.high %v7350, %v7350
    %v7355 = vcombine.high %v6475, %v6475
    %v7357 = vunpack.c.l.s4 1966171168
    %v7358 = vunpack.c.0.s8 %v7357
    %v7359 = vlaneseq
    %v7360 = vshrl.u32 %v7359, 7
    %v7361 = vsub.s32 %v7358, %v7360
    %v7362 = vrot.slane %v6475, %v7361
    %v7364 = vunpack.c.l.s4 1966171168
    %v7365 = vunpack.c.0.s8 %v7364
    %v7366 = vlaneseq
    %v7367 = vshrl.u32 %v7366, 7
    %v7368 = vsub.s32 %v7365, %v7367
    %v7369 = vrot.slane %v7355, %v7368
    %v7370 = vcombine.high %v7362, %v7362
    %v7371 = vcombine.high %v7369, %v7369
    %v7373 = vunpack.c.l.s4 1966171168
    %v7374 = vunpack.c.0.s8 %v7373
    %v7375 = vlaneseq
    %v7376 = vshrl.u32 %v7375, 7
    %v7377 = vsub.s32 %v7374, %v7376
    %v7378 = vrot.slane %v7362, %v7377
    %v7380 = vunpack.c.l.s4 1966171168
    %v7381 = vunpack.c.0.s8 %v7380
    %v7382 = vlaneseq
    %v7383 = vshrl.u32 %v7382, 7
    %v7384 = vsub.s32 %v7381, %v7383
    %v7385 = vrot.slane %v7369, %v7384
    %v7387 = vunpack.c.l.s4 1966171168
    %v7388 = vunpack.c.0.s8 %v7387
    %v7389 = vlaneseq
    %v7390 = vshrl.u32 %v7389, 7
    %v7391 = vsub.s32 %v7388, %v7390
    %v7392 = vrot.slane %v7370, %v7391
    %v7394 = vunpack.c.l.s4 1966171168
    %v7395 = vunpack.c.0.s8 %v7394
    %v7396 = vlaneseq
    %v7397 = vshrl.u32 %v7396, 7
    %v7398 = vsub.s32 %v7395, %v7397
    %v7399 = vrot.slane %v7371, %v7398
    %v7400 = vcombine.high %v7378, %v7378
    %v7401 = vcombine.high %v7385, %v7385
    %v7402 = vcombine.high %v7392, %v7392
    %v7403 = vcombine.high %v7399, %v7399
    %v7404 = vcombine.high %v6476, %v6476
    %v7406 = vunpack.c.l.s4 1966171168
    %v7407 = vunpack.c.0.s8 %v7406
    %v7408 = vlaneseq
    %v7409 = vshrl.u32 %v7408, 7
    %v7410 = vsub.s32 %v7407, %v7409
    %v7411 = vrot.slane %v6476, %v7410
    %v7413 = vunpack.c.l.s4 1966171168
    %v7414 = vunpack.c.0.s8 %v7413
    %v7415 = vlaneseq
    %v7416 = vshrl.u32 %v7415, 7
    %v7417 = vsub.s32 %v7414, %v7416
    %v7418 = vrot.slane %v7404, %v7417
    %v7419 = vcombine.high %v7411, %v7411
    %v7420 = vcombine.high %v7418, %v7418
    %v7422 = vunpack.c.l.s4 1966171168
    %v7423 = vunpack.c.0.s8 %v7422
    %v7424 = vlaneseq
    %v7425 = vshrl.u32 %v7424, 7
    %v7426 = vsub.s32 %v7423, %v7425
    %v7427 = vrot.slane %v7411, %v7426
    %v7429 = vunpack.c.l.s4 1966171168
    %v7430 = vunpack.c.0.s8 %v7429
    %v7431 = vlaneseq
    %v7432 = vshrl.u32 %v7431, 7
    %v7433 = vsub.s32 %v7430, %v7432
    %v7434 = vrot.slane %v7418, %v7433
    %v7436 = vunpack.c.l.s4 1966171168
    %v7437 = vunpack.c.0.s8 %v7436
    %v7438 = vlaneseq
    %v7439 = vshrl.u32 %v7438, 7
    %v7440 = vsub.s32 %v7437, %v7439
    %v7441 = vrot.slane %v7419, %v7440
    %v7443 = vunpack.c.l.s4 1966171168
    %v7444 = vunpack.c.0.s8 %v7443
    %v7445 = vlaneseq
    %v7446 = vshrl.u32 %v7445, 7
    %v7447 = vsub.s32 %v7444, %v7446
    %v7448 = vrot.slane %v7420, %v7447
    %v7449 = vcombine.high %v7427, %v7427
    %v7450 = vcombine.high %v7434, %v7434
    %v7451 = vcombine.high %v7441, %v7441
    %v7452 = vcombine.high %v7448, %v7448
    %v7453 = vcombine.high %v6477, %v6477
    %v7455 = vunpack.c.l.s4 1966171168
    %v7456 = vunpack.c.0.s8 %v7455
    %v7457 = vlaneseq
    %v7458 = vshrl.u32 %v7457, 7
    %v7459 = vsub.s32 %v7456, %v7458
    %v7460 = vrot.slane %v6477, %v7459
    %v7462 = vunpack.c.l.s4 1966171168
    %v7463 = vunpack.c.0.s8 %v7462
    %v7464 = vlaneseq
    %v7465 = vshrl.u32 %v7464, 7
    %v7466 = vsub.s32 %v7463, %v7465
    %v7467 = vrot.slane %v7453, %v7466
    %v7468 = vcombine.high %v7460, %v7460
    %v7469 = vcombine.high %v7467, %v7467
    %v7471 = vunpack.c.l.s4 1966171168
    %v7472 = vunpack.c.0.s8 %v7471
    %v7473 = vlaneseq
    %v7474 = vshrl.u32 %v7473, 7
    %v7475 = vsub.s32 %v7472, %v7474
    %v7476 = vrot.slane %v7460, %v7475
    %v7478 = vunpack.c.l.s4 1966171168
    %v7479 = vunpack.c.0.s8 %v7478
    %v7480 = vlaneseq
    %v7481 = vshrl.u32 %v7480, 7
    %v7482 = vsub.s32 %v7479, %v7481
    %v7483 = vrot.slane %v7467, %v7482
    %v7485 = vunpack.c.l.s4 1966171168
    %v7486 = vunpack.c.0.s8 %v7485
    %v7487 = vlaneseq
    %v7488 = vshrl.u32 %v7487, 7
    %v7489 = vsub.s32 %v7486, %v7488
    %v7490 = vrot.slane %v7468, %v7489
    %v7492 = vunpack.c.l.s4 1966171168
    %v7493 = vunpack.c.0.s8 %v7492
    %v7494 = vlaneseq
    %v7495 = vshrl.u32 %v7494, 7
    %v7496 = vsub.s32 %v7493, %v7495
    %v7497 = vrot.slane %v7469, %v7496
    %v7498 = vcombine.high %v7476, %v7476
    %v7499 = vcombine.high %v7483, %v7483
    %v7500 = vcombine.high %v7490, %v7490
    %v7501 = vcombine.high %v7497, %v7497
    %v7502 = vcombine.high %v6478, %v6478
    %v7504 = vunpack.c.l.s4 1966171168
    %v7505 = vunpack.c.0.s8 %v7504
    %v7506 = vlaneseq
    %v7507 = vshrl.u32 %v7506, 7
    %v7508 = vsub.s32 %v7505, %v7507
    %v7509 = vrot.slane %v6478, %v7508
    %v7511 = vunpack.c.l.s4 1966171168
    %v7512 = vunpack.c.0.s8 %v7511
    %v7513 = vlaneseq
    %v7514 = vshrl.u32 %v7513, 7
    %v7515 = vsub.s32 %v7512, %v7514
    %v7516 = vrot.slane %v7502, %v7515
    %v7517 = vcombine.high %v7509, %v7509
    %v7518 = vcombine.high %v7516, %v7516
    %v7520 = vunpack.c.l.s4 1966171168
    %v7521 = vunpack.c.0.s8 %v7520
    %v7522 = vlaneseq
    %v7523 = vshrl.u32 %v7522, 7
    %v7524 = vsub.s32 %v7521, %v7523
    %v7525 = vrot.slane %v7509, %v7524
    %v7527 = vunpack.c.l.s4 1966171168
    %v7528 = vunpack.c.0.s8 %v7527
    %v7529 = vlaneseq
    %v7530 = vshrl.u32 %v7529, 7
    %v7531 = vsub.s32 %v7528, %v7530
    %v7532 = vrot.slane %v7516, %v7531
    %v7534 = vunpack.c.l.s4 1966171168
    %v7535 = vunpack.c.0.s8 %v7534
    %v7536 = vlaneseq
    %v7537 = vshrl.u32 %v7536, 7
    %v7538 = vsub.s32 %v7535, %v7537
    %v7539 = vrot.slane %v7517, %v7538
    %v7541 = vunpack.c.l.s4 1966171168
    %v7542 = vunpack.c.0.s8 %v7541
    %v7543 = vlaneseq
    %v7544 = vshrl.u32 %v7543, 7
    %v7545 = vsub.s32 %v7542, %v7544
    %v7546 = vrot.slane %v7518, %v7545
    %v7547 = vcombine.high %v7525, %v7525
    %v7548 = vcombine.high %v7532, %v7532
    %v7549 = vcombine.high %v7539, %v7539
    %v7550 = vcombine.high %v7546, %v7546
    %v7551 = vcombine.high %v6479, %v6479
    %v7553 = vunpack.c.l.s4 1966171168
    %v7554 = vunpack.c.0.s8 %v7553
    %v7555 = vlaneseq
    %v7556 = vshrl.u32 %v7555, 7
    %v7557 = vsub.s32 %v7554, %v7556
    %v7558 = vrot.slane %v6479, %v7557
    %v7560 = vunpack.c.l.s4 1966171168
    %v7561 = vunpack.c.0.s8 %v7560
    %v7562 = vlaneseq
    %v7563 = vshrl.u32 %v7562, 7
    %v7564 = vsub.s32 %v7561, %v7563
    %v7565 = vrot.slane %v7551, %v7564
    %v7566 = vcombine.high %v7558, %v7558
    %v7567 = vcombine.high %v7565, %v7565
    %v7569 = vunpack.c.l.s4 1966171168
    %v7570 = vunpack.c.0.s8 %v7569
    %v7571 = vlaneseq
    %v7572 = vshrl.u32 %v7571, 7
    %v7573 = vsub.s32 %v7570, %v7572
    %v7574 = vrot.slane %v7558, %v7573
    %v7576 = vunpack.c.l.s4 1966171168
    %v7577 = vunpack.c.0.s8 %v7576
    %v7578 = vlaneseq
    %v7579 = vshrl.u32 %v7578, 7
    %v7580 = vsub.s32 %v7577, %v7579
    %v7581 = vrot.slane %v7565, %v7580
    %v7583 = vunpack.c.l.s4 1966171168
    %v7584 = vunpack.c.0.s8 %v7583
    %v7585 = vlaneseq
    %v7586 = vshrl.u32 %v7585, 7
    %v7587 = vsub.s32 %v7584, %v7586
    %v7588 = vrot.slane %v7566, %v7587
    %v7590 = vunpack.c.l.s4 1966171168
    %v7591 = vunpack.c.0.s8 %v7590
    %v7592 = vlaneseq
    %v7593 = vshrl.u32 %v7592, 7
    %v7594 = vsub.s32 %v7591, %v7593
    %v7595 = vrot.slane %v7567, %v7594
    %v7596 = vcombine.high %v7574, %v7574
    %v7597 = vcombine.high %v7581, %v7581
    %v7598 = vcombine.high %v7588, %v7588
    %v7599 = vcombine.high %v7595, %v7595
    %v7600 = vcombine.high %v6480, %v6480
    %v7602 = vunpack.c.l.s4 1966171168
    %v7603 = vunpack.c.0.s8 %v7602
    %v7604 = vlaneseq
    %v7605 = vshrl.u32 %v7604, 7
    %v7606 = vsub.s32 %v7603, %v7605
    %v7607 = vrot.slane %v6480, %v7606
    %v7609 = vunpack.c.l.s4 1966171168
    %v7610 = vunpack.c.0.s8 %v7609
    %v7611 = vlaneseq
    %v7612 = vshrl.u32 %v7611, 7
    %v7613 = vsub.s32 %v7610, %v7612
    %v7614 = vrot.slane %v7600, %v7613
    %v7615 = vcombine.high %v7607, %v7607
    %v7616 = vcombine.high %v7614, %v7614
    %v7618 = vunpack.c.l.s4 1966171168
    %v7619 = vunpack.c.0.s8 %v7618
    %v7620 = vlaneseq
    %v7621 = vshrl.u32 %v7620, 7
    %v7622 = vsub.s32 %v7619, %v7621
    %v7623 = vrot.slane %v7607, %v7622
    %v7625 = vunpack.c.l.s4 1966171168
    %v7626 = vunpack.c.0.s8 %v7625
    %v7627 = vlaneseq
    %v7628 = vshrl.u32 %v7627, 7
    %v7629 = vsub.s32 %v7626, %v7628
    %v7630 = vrot.slane %v7614, %v7629
    %v7632 = vunpack.c.l.s4 1966171168
    %v7633 = vunpack.c.0.s8 %v7632
    %v7634 = vlaneseq
    %v7635 = vshrl.u32 %v7634, 7
    %v7636 = vsub.s32 %v7633, %v7635
    %v7637 = vrot.slane %v7615, %v7636
    %v7639 = vunpack.c.l.s4 1966171168
    %v7640 = vunpack.c.0.s8 %v7639
    %v7641 = vlaneseq
    %v7642 = vshrl.u32 %v7641, 7
    %v7643 = vsub.s32 %v7640, %v7642
    %v7644 = vrot.slane %v7616, %v7643
    %v7645 = vcombine.high %v7623, %v7623
    %v7646 = vcombine.high %v7630, %v7630
    %v7647 = vcombine.high %v7637, %v7637
    %v7648 = vcombine.high %v7644, %v7644
    %v7649 = vcombine.high %v6481, %v6481
    %v7651 = vunpack.c.l.s4 1966171168
    %v7652 = vunpack.c.0.s8 %v7651
    %v7653 = vlaneseq
    %v7654 = vshrl.u32 %v7653, 7
    %v7655 = vsub.s32 %v7652, %v7654
    %v7656 = vrot.slane %v6481, %v7655
    %v7658 = vunpack.c.l.s4 1966171168
    %v7659 = vunpack.c.0.s8 %v7658
    %v7660 = vlaneseq
    %v7661 = vshrl.u32 %v7660, 7
    %v7662 = vsub.s32 %v7659, %v7661
    %v7663 = vrot.slane %v7649, %v7662
    %v7664 = vcombine.high %v7656, %v7656
    %v7665 = vcombine.high %v7663, %v7663
    %v7667 = vunpack.c.l.s4 1966171168
    %v7668 = vunpack.c.0.s8 %v7667
    %v7669 = vlaneseq
    %v7670 = vshrl.u32 %v7669, 7
    %v7671 = vsub.s32 %v7668, %v7670
    %v7672 = vrot.slane %v7656, %v7671
    %v7674 = vunpack.c.l.s4 1966171168
    %v7675 = vunpack.c.0.s8 %v7674
    %v7676 = vlaneseq
    %v7677 = vshrl.u32 %v7676, 7
    %v7678 = vsub.s32 %v7675, %v7677
    %v7679 = vrot.slane %v7663, %v7678
    %v7681 = vunpack.c.l.s4 1966171168
    %v7682 = vunpack.c.0.s8 %v7681
    %v7683 = vlaneseq
    %v7684 = vshrl.u32 %v7683, 7
    %v7685 = vsub.s32 %v7682, %v7684
    %v7686 = vrot.slane %v7664, %v7685
    %v7688 = vunpack.c.l.s4 1966171168
    %v7689 = vunpack.c.0.s8 %v7688
    %v7690 = vlaneseq
    %v7691 = vshrl.u32 %v7690, 7
    %v7692 = vsub.s32 %v7689, %v7691
    %v7693 = vrot.slane %v7665, %v7692
    %v7694 = vcombine.high %v7672, %v7672
    %v7695 = vcombine.high %v7679, %v7679
    %v7696 = vcombine.high %v7686, %v7686
    %v7697 = vcombine.high %v7693, %v7693
    %v7698 = vcombine.high %v6482, %v6482
    %v7700 = vunpack.c.l.s4 1966171168
    %v7701 = vunpack.c.0.s8 %v7700
    %v7702 = vlaneseq
    %v7703 = vshrl.u32 %v7702, 7
    %v7704 = vsub.s32 %v7701, %v7703
    %v7705 = vrot.slane %v6482, %v7704
    %v7707 = vunpack.c.l.s4 1966171168
    %v7708 = vunpack.c.0.s8 %v7707
    %v7709 = vlaneseq
    %v7710 = vshrl.u32 %v7709, 7
    %v7711 = vsub.s32 %v7708, %v7710
    %v7712 = vrot.slane %v7698, %v7711
    %v7713 = vcombine.high %v7705, %v7705
    %v7714 = vcombine.high %v7712, %v7712
    %v7716 = vunpack.c.l.s4 1966171168
    %v7717 = vunpack.c.0.s8 %v7716
    %v7718 = vlaneseq
    %v7719 = vshrl.u32 %v7718, 7
    %v7720 = vsub.s32 %v7717, %v7719
    %v7721 = vrot.slane %v7705, %v7720
    %v7723 = vunpack.c.l.s4 1966171168
    %v7724 = vunpack.c.0.s8 %v7723
    %v7725 = vlaneseq
    %v7726 = vshrl.u32 %v7725, 7
    %v7727 = vsub.s32 %v7724, %v7726
    %v7728 = vrot.slane %v7712, %v7727
    %v7730 = vunpack.c.l.s4 1966171168
    %v7731 = vunpack.c.0.s8 %v7730
    %v7732 = vlaneseq
    %v7733 = vshrl.u32 %v7732, 7
    %v7734 = vsub.s32 %v7731, %v7733
    %v7735 = vrot.slane %v7713, %v7734
    %v7737 = vunpack.c.l.s4 1966171168
    %v7738 = vunpack.c.0.s8 %v7737
    %v7739 = vlaneseq
    %v7740 = vshrl.u32 %v7739, 7
    %v7741 = vsub.s32 %v7738, %v7740
    %v7742 = vrot.slane %v7714, %v7741
    %v7743 = vcombine.high %v7721, %v7721
    %v7744 = vcombine.high %v7728, %v7728
    %v7745 = vcombine.high %v7735, %v7735
    %v7746 = vcombine.high %v7742, %v7742
    %v7747 = vcombine.high %v6483, %v6483
    %v7749 = vunpack.c.l.s4 1966171168
    %v7750 = vunpack.c.0.s8 %v7749
    %v7751 = vlaneseq
    %v7752 = vshrl.u32 %v7751, 7
    %v7753 = vsub.s32 %v7750, %v7752
    %v7754 = vrot.slane %v6483, %v7753
    %v7756 = vunpack.c.l.s4 1966171168
    %v7757 = vunpack.c.0.s8 %v7756
    %v7758 = vlaneseq
    %v7759 = vshrl.u32 %v7758, 7
    %v7760 = vsub.s32 %v7757, %v7759
    %v7761 = vrot.slane %v7747, %v7760
    %v7762 = vcombine.high %v7754, %v7754
    %v7763 = vcombine.high %v7761, %v7761
    %v7765 = vunpack.c.l.s4 1966171168
    %v7766 = vunpack.c.0.s8 %v7765
    %v7767 = vlaneseq
    %v7768 = vshrl.u32 %v7767, 7
    %v7769 = vsub.s32 %v7766, %v7768
    %v7770 = vrot.slane %v7754, %v7769
    %v7772 = vunpack.c.l.s4 1966171168
    %v7773 = vunpack.c.0.s8 %v7772
    %v7774 = vlaneseq
    %v7775 = vshrl.u32 %v7774, 7
    %v7776 = vsub.s32 %v7773, %v7775
    %v7777 = vrot.slane %v7761, %v7776
    %v7779 = vunpack.c.l.s4 1966171168
    %v7780 = vunpack.c.0.s8 %v7779
    %v7781 = vlaneseq
    %v7782 = vshrl.u32 %v7781, 7
    %v7783 = vsub.s32 %v7780, %v7782
    %v7784 = vrot.slane %v7762, %v7783
    %v7786 = vunpack.c.l.s4 1966171168
    %v7787 = vunpack.c.0.s8 %v7786
    %v7788 = vlaneseq
    %v7789 = vshrl.u32 %v7788, 7
    %v7790 = vsub.s32 %v7787, %v7789
    %v7791 = vrot.slane %v7763, %v7790
    %v7792 = vcombine.high %v7770, %v7770
    %v7793 = vcombine.high %v7777, %v7777
    %v7794 = vcombine.high %v7784, %v7784
    %v7795 = vcombine.high %v7791, %v7791
    %v7796 = vcombine.high %v6484, %v6484
    %v7798 = vunpack.c.l.s4 1966171168
    %v7799 = vunpack.c.0.s8 %v7798
    %v7800 = vlaneseq
    %v7801 = vshrl.u32 %v7800, 7
    %v7802 = vsub.s32 %v7799, %v7801
    %v7803 = vrot.slane %v6484, %v7802
    %v7805 = vunpack.c.l.s4 1966171168
    %v7806 = vunpack.c.0.s8 %v7805
    %v7807 = vlaneseq
    %v7808 = vshrl.u32 %v7807, 7
    %v7809 = vsub.s32 %v7806, %v7808
    %v7810 = vrot.slane %v7796, %v7809
    %v7811 = vcombine.high %v7803, %v7803
    %v7812 = vcombine.high %v7810, %v7810
    %v7814 = vunpack.c.l.s4 1966171168
    %v7815 = vunpack.c.0.s8 %v7814
    %v7816 = vlaneseq
    %v7817 = vshrl.u32 %v7816, 7
    %v7818 = vsub.s32 %v7815, %v7817
    %v7819 = vrot.slane %v7803, %v7818
    %v7821 = vunpack.c.l.s4 1966171168
    %v7822 = vunpack.c.0.s8 %v7821
    %v7823 = vlaneseq
    %v7824 = vshrl.u32 %v7823, 7
    %v7825 = vsub.s32 %v7822, %v7824
    %v7826 = vrot.slane %v7810, %v7825
    %v7828 = vunpack.c.l.s4 1966171168
    %v7829 = vunpack.c.0.s8 %v7828
    %v7830 = vlaneseq
    %v7831 = vshrl.u32 %v7830, 7
    %v7832 = vsub.s32 %v7829, %v7831
    %v7833 = vrot.slane %v7811, %v7832
    %v7835 = vunpack.c.l.s4 1966171168
    %v7836 = vunpack.c.0.s8 %v7835
    %v7837 = vlaneseq
    %v7838 = vshrl.u32 %v7837, 7
    %v7839 = vsub.s32 %v7836, %v7838
    %v7840 = vrot.slane %v7812, %v7839
    %v7841 = vcombine.high %v7819, %v7819
    %v7842 = vcombine.high %v7826, %v7826
    %v7843 = vcombine.high %v7833, %v7833
    %v7844 = vcombine.high %v7840, %v7840
    %v7845 = vcombine.high %v6485, %v6485
    %v7847 = vunpack.c.l.s4 1966171168
    %v7848 = vunpack.c.0.s8 %v7847
    %v7849 = vlaneseq
    %v7850 = vshrl.u32 %v7849, 7
    %v7851 = vsub.s32 %v7848, %v7850
    %v7852 = vrot.slane %v6485, %v7851
    %v7854 = vunpack.c.l.s4 1966171168
    %v7855 = vunpack.c.0.s8 %v7854
    %v7856 = vlaneseq
    %v7857 = vshrl.u32 %v7856, 7
    %v7858 = vsub.s32 %v7855, %v7857
    %v7859 = vrot.slane %v7845, %v7858
    %v7860 = vcombine.high %v7852, %v7852
    %v7861 = vcombine.high %v7859, %v7859
    %v7863 = vunpack.c.l.s4 1966171168
    %v7864 = vunpack.c.0.s8 %v7863
    %v7865 = vlaneseq
    %v7866 = vshrl.u32 %v7865, 7
    %v7867 = vsub.s32 %v7864, %v7866
    %v7868 = vrot.slane %v7852, %v7867
    %v7870 = vunpack.c.l.s4 1966171168
    %v7871 = vunpack.c.0.s8 %v7870
    %v7872 = vlaneseq
    %v7873 = vshrl.u32 %v7872, 7
    %v7874 = vsub.s32 %v7871, %v7873
    %v7875 = vrot.slane %v7859, %v7874
    %v7877 = vunpack.c.l.s4 1966171168
    %v7878 = vunpack.c.0.s8 %v7877
    %v7879 = vlaneseq
    %v7880 = vshrl.u32 %v7879, 7
    %v7881 = vsub.s32 %v7878, %v7880
    %v7882 = vrot.slane %v7860, %v7881
    %v7884 = vunpack.c.l.s4 1966171168
    %v7885 = vunpack.c.0.s8 %v7884
    %v7886 = vlaneseq
    %v7887 = vshrl.u32 %v7886, 7
    %v7888 = vsub.s32 %v7885, %v7887
    %v7889 = vrot.slane %v7861, %v7888
    %v7890 = vcombine.high %v7868, %v7868
    %v7891 = vcombine.high %v7875, %v7875
    %v7892 = vcombine.high %v7882, %v7882
    %v7893 = vcombine.high %v7889, %v7889
    %v7894 = vcombine.high %v6486, %v6486
    %v7896 = vunpack.c.l.s4 1966171168
    %v7897 = vunpack.c.0.s8 %v7896
    %v7898 = vlaneseq
    %v7899 = vshrl.u32 %v7898, 7
    %v7900 = vsub.s32 %v7897, %v7899
    %v7901 = vrot.slane %v6486, %v7900
    %v7903 = vunpack.c.l.s4 1966171168
    %v7904 = vunpack.c.0.s8 %v7903
    %v7905 = vlaneseq
    %v7906 = vshrl.u32 %v7905, 7
    %v7907 = vsub.s32 %v7904, %v7906
    %v7908 = vrot.slane %v7894, %v7907
    %v7909 = vcombine.high %v7901, %v7901
    %v7910 = vcombine.high %v7908, %v7908
    %v7912 = vunpack.c.l.s4 1966171168
    %v7913 = vunpack.c.0.s8 %v7912
    %v7914 = vlaneseq
    %v7915 = vshrl.u32 %v7914, 7
    %v7916 = vsub.s32 %v7913, %v7915
    %v7917 = vrot.slane %v7901, %v7916
    %v7919 = vunpack.c.l.s4 1966171168
    %v7920 = vunpack.c.0.s8 %v7919
    %v7921 = vlaneseq
    %v7922 = vshrl.u32 %v7921, 7
    %v7923 = vsub.s32 %v7920, %v7922
    %v7924 = vrot.slane %v7908, %v7923
    %v7926 = vunpack.c.l.s4 1966171168
    %v7927 = vunpack.c.0.s8 %v7926
    %v7928 = vlaneseq
    %v7929 = vshrl.u32 %v7928, 7
    %v7930 = vsub.s32 %v7927, %v7929
    %v7931 = vrot.slane %v7909, %v7930
    %v7933 = vunpack.c.l.s4 1966171168
    %v7934 = vunpack.c.0.s8 %v7933
    %v7935 = vlaneseq
    %v7936 = vshrl.u32 %v7935, 7
    %v7937 = vsub.s32 %v7934, %v7936
    %v7938 = vrot.slane %v7910, %v7937
    %v7939 = vcombine.high %v7917, %v7917
    %v7940 = vcombine.high %v7924, %v7924
    %v7941 = vcombine.high %v7931, %v7931
    %v7942 = vcombine.high %v7938, %v7938
    %v7943 = vcombine.high %v6487, %v6487
    %v7945 = vunpack.c.l.s4 1966171168
    %v7946 = vunpack.c.0.s8 %v7945
    %v7947 = vlaneseq
    %v7948 = vshrl.u32 %v7947, 7
    %v7949 = vsub.s32 %v7946, %v7948
    %v7950 = vrot.slane %v6487, %v7949
    %v7952 = vunpack.c.l.s4 1966171168
    %v7953 = vunpack.c.0.s8 %v7952
    %v7954 = vlaneseq
    %v7955 = vshrl.u32 %v7954, 7
    %v7956 = vsub.s32 %v7953, %v7955
    %v7957 = vrot.slane %v7943, %v7956
    %v7958 = vcombine.high %v7950, %v7950
    %v7959 = vcombine.high %v7957, %v7957
    %v7961 = vunpack.c.l.s4 1966171168
    %v7962 = vunpack.c.0.s8 %v7961
    %v7963 = vlaneseq
    %v7964 = vshrl.u32 %v7963, 7
    %v7965 = vsub.s32 %v7962, %v7964
    %v7966 = vrot.slane %v7950, %v7965
    %v7968 = vunpack.c.l.s4 1966171168
    %v7969 = vunpack.c.0.s8 %v7968
    %v7970 = vlaneseq
    %v7971 = vshrl.u32 %v7970, 7
    %v7972 = vsub.s32 %v7969, %v7971
    %v7973 = vrot.slane %v7957, %v7972
    %v7975 = vunpack.c.l.s4 1966171168
    %v7976 = vunpack.c.0.s8 %v7975
    %v7977 = vlaneseq
    %v7978 = vshrl.u32 %v7977, 7
    %v7979 = vsub.s32 %v7976, %v7978
    %v7980 = vrot.slane %v7958, %v7979
    %v7982 = vunpack.c.l.s4 1966171168
    %v7983 = vunpack.c.0.s8 %v7982
    %v7984 = vlaneseq
    %v7985 = vshrl.u32 %v7984, 7
    %v7986 = vsub.s32 %v7983, %v7985
    %v7987 = vrot.slane %v7959, %v7986
    %v7988 = vcombine.high %v7966, %v7966
    %v7989 = vcombine.high %v7973, %v7973
    %v7990 = vcombine.high %v7980, %v7980
    %v7991 = vcombine.high %v7987, %v7987
    %v7992 = vcombine.high %v6488, %v6488
    %v7994 = vunpack.c.l.s4 1966171168
    %v7995 = vunpack.c.0.s8 %v7994
    %v7996 = vlaneseq
    %v7997 = vshrl.u32 %v7996, 7
    %v7998 = vsub.s32 %v7995, %v7997
    %v7999 = vrot.slane %v6488, %v7998
    %v8001 = vunpack.c.l.s4 1966171168
    %v8002 = vunpack.c.0.s8 %v8001
    %v8003 = vlaneseq
    %v8004 = vshrl.u32 %v8003, 7
    %v8005 = vsub.s32 %v8002, %v8004
    %v8006 = vrot.slane %v7992, %v8005
    %v8007 = vcombine.high %v7999, %v7999
    %v8008 = vcombine.high %v8006, %v8006
    %v8010 = vunpack.c.l.s4 1966171168
    %v8011 = vunpack.c.0.s8 %v8010
    %v8012 = vlaneseq
    %v8013 = vshrl.u32 %v8012, 7
    %v8014 = vsub.s32 %v8011, %v8013
    %v8015 = vrot.slane %v7999, %v8014
    %v8017 = vunpack.c.l.s4 1966171168
    %v8018 = vunpack.c.0.s8 %v8017
    %v8019 = vlaneseq
    %v8020 = vshrl.u32 %v8019, 7
    %v8021 = vsub.s32 %v8018, %v8020
    %v8022 = vrot.slane %v8006, %v8021
    %v8024 = vunpack.c.l.s4 1966171168
    %v8025 = vunpack.c.0.s8 %v8024
    %v8026 = vlaneseq
    %v8027 = vshrl.u32 %v8026, 7
    %v8028 = vsub.s32 %v8025, %v8027
    %v8029 = vrot.slane %v8007, %v8028
    %v8031 = vunpack.c.l.s4 1966171168
    %v8032 = vunpack.c.0.s8 %v8031
    %v8033 = vlaneseq
    %v8034 = vshrl.u32 %v8033, 7
    %v8035 = vsub.s32 %v8032, %v8034
    %v8036 = vrot.slane %v8008, %v8035
    %v8037 = vcombine.high %v8015, %v8015
    %v8038 = vcombine.high %v8022, %v8022
    %v8039 = vcombine.high %v8029, %v8029
    %v8040 = vcombine.high %v8036, %v8036
    %v8041 = vcombine.high %v6489, %v6489
    %v8043 = vunpack.c.l.s4 1966171168
    %v8044 = vunpack.c.0.s8 %v8043
    %v8045 = vlaneseq
    %v8046 = vshrl.u32 %v8045, 7
    %v8047 = vsub.s32 %v8044, %v8046
    %v8048 = vrot.slane %v6489, %v8047
    %v8050 = vunpack.c.l.s4 1966171168
    %v8051 = vunpack.c.0.s8 %v8050
    %v8052 = vlaneseq
    %v8053 = vshrl.u32 %v8052, 7
    %v8054 = vsub.s32 %v8051, %v8053
    %v8055 = vrot.slane %v8041, %v8054
    %v8056 = vcombine.high %v8048, %v8048
    %v8057 = vcombine.high %v8055, %v8055
    %v8059 = vunpack.c.l.s4 1966171168
    %v8060 = vunpack.c.0.s8 %v8059
    %v8061 = vlaneseq
    %v8062 = vshrl.u32 %v8061, 7
    %v8063 = vsub.s32 %v8060, %v8062
    %v8064 = vrot.slane %v8048, %v8063
    %v8066 = vunpack.c.l.s4 1966171168
    %v8067 = vunpack.c.0.s8 %v8066
    %v8068 = vlaneseq
    %v8069 = vshrl.u32 %v8068, 7
    %v8070 = vsub.s32 %v8067, %v8069
    %v8071 = vrot.slane %v8055, %v8070
    %v8073 = vunpack.c.l.s4 1966171168
    %v8074 = vunpack.c.0.s8 %v8073
    %v8075 = vlaneseq
    %v8076 = vshrl.u32 %v8075, 7
    %v8077 = vsub.s32 %v8074, %v8076
    %v8078 = vrot.slane %v8056, %v8077
    %v8080 = vunpack.c.l.s4 1966171168
    %v8081 = vunpack.c.0.s8 %v8080
    %v8082 = vlaneseq
    %v8083 = vshrl.u32 %v8082, 7
    %v8084 = vsub.s32 %v8081, %v8083
    %v8085 = vrot.slane %v8057, %v8084
    %v8086 = vcombine.high %v8064, %v8064
    %v8087 = vcombine.high %v8071, %v8071
    %v8088 = vcombine.high %v8078, %v8078
    %v8089 = vcombine.high %v8085, %v8085
    %v8090 = vcombine.low %v6545, %v6559
    %v8091 = vcombine.low %v6567, %v6569
    %v8092 = vcombine.low %v6552, %v6566
    %v8093 = vcombine.low %v6568, %v6570
    %v8095 = vunpack.c.l.s4 1966171168
    %v8096 = vunpack.c.0.s8 %v8095
    %v8097 = vlaneseq
    %v8098 = vshrl.u32 %v8097, 7
    %v8099 = vsub.s32 %v8096, %v8098
    %v8100 = vrot.slane %v8090, %v8099
    %v8102 = vunpack.c.l.s4 1966171168
    %v8103 = vunpack.c.0.s8 %v8102
    %v8104 = vlaneseq
    %v8105 = vshrl.u32 %v8104, 7
    %v8106 = vsub.s32 %v8103, %v8105
    %v8107 = vrot.slane %v8091, %v8106
    %v8109 = vunpack.c.l.s4 1966171168
    %v8110 = vunpack.c.0.s8 %v8109
    %v8111 = vlaneseq
    %v8112 = vshrl.u32 %v8111, 7
    %v8113 = vsub.s32 %v8110, %v8112
    %v8114 = vrot.slane %v8092, %v8113
    %v8116 = vunpack.c.l.s4 1966171168
    %v8117 = vunpack.c.0.s8 %v8116
    %v8118 = vlaneseq
    %v8119 = vshrl.u32 %v8118, 7
    %v8120 = vsub.s32 %v8117, %v8119
    %v8121 = vrot.slane %v8093, %v8120
    %v8122 = vcombine.low %v8100, %v8107
    %v8123 = vcombine.low %v8114, %v8121
    %v8125 = vunpack.c.l.s4 1966171168
    %v8126 = vunpack.c.0.s8 %v8125
    %v8127 = vlaneseq
    %v8128 = vshrl.u32 %v8127, 7
    %v8129 = vsub.s32 %v8126, %v8128
    %v8130 = vrot.slane %v8122, %v8129
    %v8132 = vunpack.c.l.s4 1966171168
    %v8133 = vunpack.c.0.s8 %v8132
    %v8134 = vlaneseq
    %v8135 = vshrl.u32 %v8134, 7
    %v8136 = vsub.s32 %v8133, %v8135
    %v8137 = vrot.slane %v8123, %v8136
    %v8138 = vcombine.low %v8130, %v8137
    %v8139 = vcombine.low %v6594, %v6608
    %v8140 = vcombine.low %v6616, %v6618
    %v8141 = vcombine.low %v6601, %v6615
    %v8142 = vcombine.low %v6617, %v6619
    %v8144 = vunpack.c.l.s4 1966171168
    %v8145 = vunpack.c.0.s8 %v8144
    %v8146 = vlaneseq
    %v8147 = vshrl.u32 %v8146, 7
    %v8148 = vsub.s32 %v8145, %v8147
    %v8149 = vrot.slane %v8139, %v8148
    %v8151 = vunpack.c.l.s4 1966171168
    %v8152 = vunpack.c.0.s8 %v8151
    %v8153 = vlaneseq
    %v8154 = vshrl.u32 %v8153, 7
    %v8155 = vsub.s32 %v8152, %v8154
    %v8156 = vrot.slane %v8140, %v8155
    %v8158 = vunpack.c.l.s4 1966171168
    %v8159 = vunpack.c.0.s8 %v8158
    %v8160 = vlaneseq
    %v8161 = vshrl.u32 %v8160, 7
    %v8162 = vsub.s32 %v8159, %v8161
    %v8163 = vrot.slane %v8141, %v8162
    %v8165 = vunpack.c.l.s4 1966171168
    %v8166 = vunpack.c.0.s8 %v8165
    %v8167 = vlaneseq
    %v8168 = vshrl.u32 %v8167, 7
    %v8169 = vsub.s32 %v8166, %v8168
    %v8170 = vrot.slane %v8142, %v8169
    %v8171 = vcombine.low %v8149, %v8156
    %v8172 = vcombine.low %v8163, %v8170
    %v8174 = vunpack.c.l.s4 1966171168
    %v8175 = vunpack.c.0.s8 %v8174
    %v8176 = vlaneseq
    %v8177 = vshrl.u32 %v8176, 7
    %v8178 = vsub.s32 %v8175, %v8177
    %v8179 = vrot.slane %v8171, %v8178
    %v8181 = vunpack.c.l.s4 1966171168
    %v8182 = vunpack.c.0.s8 %v8181
    %v8183 = vlaneseq
    %v8184 = vshrl.u32 %v8183, 7
    %v8185 = vsub.s32 %v8182, %v8184
    %v8186 = vrot.slane %v8172, %v8185
    %v8187 = vcombine.low %v8179, %v8186
    %v8188 = vcombine.low %v6643, %v6657
    %v8189 = vcombine.low %v6665, %v6667
    %v8190 = vcombine.low %v6650, %v6664
    %v8191 = vcombine.low %v6666, %v6668
    %v8193 = vunpack.c.l.s4 1966171168
    %v8194 = vunpack.c.0.s8 %v8193
    %v8195 = vlaneseq
    %v8196 = vshrl.u32 %v8195, 7
    %v8197 = vsub.s32 %v8194, %v8196
    %v8198 = vrot.slane %v8188, %v8197
    %v8200 = vunpack.c.l.s4 1966171168
    %v8201 = vunpack.c.0.s8 %v8200
    %v8202 = vlaneseq
    %v8203 = vshrl.u32 %v8202, 7
    %v8204 = vsub.s32 %v8201, %v8203
    %v8205 = vrot.slane %v8189, %v8204
    %v8207 = vunpack.c.l.s4 1966171168
    %v8208 = vunpack.c.0.s8 %v8207
    %v8209 = vlaneseq
    %v8210 = vshrl.u32 %v8209, 7
    %v8211 = vsub.s32 %v8208, %v8210
    %v8212 = vrot.slane %v8190, %v8211
    %v8214 = vunpack.c.l.s4 1966171168
    %v8215 = vunpack.c.0.s8 %v8214
    %v8216 = vlaneseq
    %v8217 = vshrl.u32 %v8216, 7
    %v8218 = vsub.s32 %v8215, %v8217
    %v8219 = vrot.slane %v8191, %v8218
    %v8220 = vcombine.low %v8198, %v8205
    %v8221 = vcombine.low %v8212, %v8219
    %v8223 = vunpack.c.l.s4 1966171168
    %v8224 = vunpack.c.0.s8 %v8223
    %v8225 = vlaneseq
    %v8226 = vshrl.u32 %v8225, 7
    %v8227 = vsub.s32 %v8224, %v8226
    %v8228 = vrot.slane %v8220, %v8227
    %v8230 = vunpack.c.l.s4 1966171168
    %v8231 = vunpack.c.0.s8 %v8230
    %v8232 = vlaneseq
    %v8233 = vshrl.u32 %v8232, 7
    %v8234 = vsub.s32 %v8231, %v8233
    %v8235 = vrot.slane %v8221, %v8234
    %v8236 = vcombine.low %v8228, %v8235
    %v8237 = vcombine.low %v6692, %v6706
    %v8238 = vcombine.low %v6714, %v6716
    %v8239 = vcombine.low %v6699, %v6713
    %v8240 = vcombine.low %v6715, %v6717
    %v8242 = vunpack.c.l.s4 1966171168
    %v8243 = vunpack.c.0.s8 %v8242
    %v8244 = vlaneseq
    %v8245 = vshrl.u32 %v8244, 7
    %v8246 = vsub.s32 %v8243, %v8245
    %v8247 = vrot.slane %v8237, %v8246
    %v8249 = vunpack.c.l.s4 1966171168
    %v8250 = vunpack.c.0.s8 %v8249
    %v8251 = vlaneseq
    %v8252 = vshrl.u32 %v8251, 7
    %v8253 = vsub.s32 %v8250, %v8252
    %v8254 = vrot.slane %v8238, %v8253
    %v8256 = vunpack.c.l.s4 1966171168
    %v8257 = vunpack.c.0.s8 %v8256
    %v8258 = vlaneseq
    %v8259 = vshrl.u32 %v8258, 7
    %v8260 = vsub.s32 %v8257, %v8259
    %v8261 = vrot.slane %v8239, %v8260
    %v8263 = vunpack.c.l.s4 1966171168
    %v8264 = vunpack.c.0.s8 %v8263
    %v8265 = vlaneseq
    %v8266 = vshrl.u32 %v8265, 7
    %v8267 = vsub.s32 %v8264, %v8266
    %v8268 = vrot.slane %v8240, %v8267
    %v8269 = vcombine.low %v8247, %v8254
    %v8270 = vcombine.low %v8261, %v8268
    %v8272 = vunpack.c.l.s4 1966171168
    %v8273 = vunpack.c.0.s8 %v8272
    %v8274 = vlaneseq
    %v8275 = vshrl.u32 %v8274, 7
    %v8276 = vsub.s32 %v8273, %v8275
    %v8277 = vrot.slane %v8269, %v8276
    %v8279 = vunpack.c.l.s4 1966171168
    %v8280 = vunpack.c.0.s8 %v8279
    %v8281 = vlaneseq
    %v8282 = vshrl.u32 %v8281, 7
    %v8283 = vsub.s32 %v8280, %v8282
    %v8284 = vrot.slane %v8270, %v8283
    %v8285 = vcombine.low %v8277, %v8284
    %v8286 = vcombine.low %v6741, %v6755
    %v8287 = vcombine.low %v6763, %v6765
    %v8288 = vcombine.low %v6748, %v6762
    %v8289 = vcombine.low %v6764, %v6766
    %v8291 = vunpack.c.l.s4 1966171168
    %v8292 = vunpack.c.0.s8 %v8291
    %v8293 = vlaneseq
    %v8294 = vshrl.u32 %v8293, 7
    %v8295 = vsub.s32 %v8292, %v8294
    %v8296 = vrot.slane %v8286, %v8295
    %v8298 = vunpack.c.l.s4 1966171168
    %v8299 = vunpack.c.0.s8 %v8298
    %v8300 = vlaneseq
    %v8301 = vshrl.u32 %v8300, 7
    %v8302 = vsub.s32 %v8299, %v8301
    %v8303 = vrot.slane %v8287, %v8302
    %v8305 = vunpack.c.l.s4 1966171168
    %v8306 = vunpack.c.0.s8 %v8305
    %v8307 = vlaneseq
    %v8308 = vshrl.u32 %v8307, 7
    %v8309 = vsub.s32 %v8306, %v8308
    %v8310 = vrot.slane %v8288, %v8309
    %v8312 = vunpack.c.l.s4 1966171168
    %v8313 = vunpack.c.0.s8 %v8312
    %v8314 = vlaneseq
    %v8315 = vshrl.u32 %v8314, 7
    %v8316 = vsub.s32 %v8313, %v8315
    %v8317 = vrot.slane %v8289, %v8316
    %v8318 = vcombine.low %v8296, %v8303
    %v8319 = vcombine.low %v8310, %v8317
    %v8321 = vunpack.c.l.s4 1966171168
    %v8322 = vunpack.c.0.s8 %v8321
    %v8323 = vlaneseq
    %v8324 = vshrl.u32 %v8323, 7
    %v8325 = vsub.s32 %v8322, %v8324
    %v8326 = vrot.slane %v8318, %v8325
    %v8328 = vunpack.c.l.s4 1966171168
    %v8329 = vunpack.c.0.s8 %v8328
    %v8330 = vlaneseq
    %v8331 = vshrl.u32 %v8330, 7
    %v8332 = vsub.s32 %v8329, %v8331
    %v8333 = vrot.slane %v8319, %v8332
    %v8334 = vcombine.low %v8326, %v8333
    %v8335 = vcombine.low %v6790, %v6804
    %v8336 = vcombine.low %v6812, %v6814
    %v8337 = vcombine.low %v6797, %v6811
    %v8338 = vcombine.low %v6813, %v6815
    %v8340 = vunpack.c.l.s4 1966171168
    %v8341 = vunpack.c.0.s8 %v8340
    %v8342 = vlaneseq
    %v8343 = vshrl.u32 %v8342, 7
    %v8344 = vsub.s32 %v8341, %v8343
    %v8345 = vrot.slane %v8335, %v8344
    %v8347 = vunpack.c.l.s4 1966171168
    %v8348 = vunpack.c.0.s8 %v8347
    %v8349 = vlaneseq
    %v8350 = vshrl.u32 %v8349, 7
    %v8351 = vsub.s32 %v8348, %v8350
    %v8352 = vrot.slane %v8336, %v8351
    %v8354 = vunpack.c.l.s4 1966171168
    %v8355 = vunpack.c.0.s8 %v8354
    %v8356 = vlaneseq
    %v8357 = vshrl.u32 %v8356, 7
    %v8358 = vsub.s32 %v8355, %v8357
    %v8359 = vrot.slane %v8337, %v8358
    %v8361 = vunpack.c.l.s4 1966171168
    %v8362 = vunpack.c.0.s8 %v8361
    %v8363 = vlaneseq
    %v8364 = vshrl.u32 %v8363, 7
    %v8365 = vsub.s32 %v8362, %v8364
    %v8366 = vrot.slane %v8338, %v8365
    %v8367 = vcombine.low %v8345, %v8352
    %v8368 = vcombine.low %v8359, %v8366
    %v8370 = vunpack.c.l.s4 1966171168
    %v8371 = vunpack.c.0.s8 %v8370
    %v8372 = vlaneseq
    %v8373 = vshrl.u32 %v8372, 7
    %v8374 = vsub.s32 %v8371, %v8373
    %v8375 = vrot.slane %v8367, %v8374
    %v8377 = vunpack.c.l.s4 1966171168
    %v8378 = vunpack.c.0.s8 %v8377
    %v8379 = vlaneseq
    %v8380 = vshrl.u32 %v8379, 7
    %v8381 = vsub.s32 %v8378, %v8380
    %v8382 = vrot.slane %v8368, %v8381
    %v8383 = vcombine.low %v8375, %v8382
    %v8384 = vcombine.low %v6839, %v6853
    %v8385 = vcombine.low %v6861, %v6863
    %v8386 = vcombine.low %v6846, %v6860
    %v8387 = vcombine.low %v6862, %v6864
    %v8389 = vunpack.c.l.s4 1966171168
    %v8390 = vunpack.c.0.s8 %v8389
    %v8391 = vlaneseq
    %v8392 = vshrl.u32 %v8391, 7
    %v8393 = vsub.s32 %v8390, %v8392
    %v8394 = vrot.slane %v8384, %v8393
    %v8396 = vunpack.c.l.s4 1966171168
    %v8397 = vunpack.c.0.s8 %v8396
    %v8398 = vlaneseq
    %v8399 = vshrl.u32 %v8398, 7
    %v8400 = vsub.s32 %v8397, %v8399
    %v8401 = vrot.slane %v8385, %v8400
    %v8403 = vunpack.c.l.s4 1966171168
    %v8404 = vunpack.c.0.s8 %v8403
    %v8405 = vlaneseq
    %v8406 = vshrl.u32 %v8405, 7
    %v8407 = vsub.s32 %v8404, %v8406
    %v8408 = vrot.slane %v8386, %v8407
    %v8410 = vunpack.c.l.s4 1966171168
    %v8411 = vunpack.c.0.s8 %v8410
    %v8412 = vlaneseq
    %v8413 = vshrl.u32 %v8412, 7
    %v8414 = vsub.s32 %v8411, %v8413
    %v8415 = vrot.slane %v8387, %v8414
    %v8416 = vcombine.low %v8394, %v8401
    %v8417 = vcombine.low %v8408, %v8415
    %v8419 = vunpack.c.l.s4 1966171168
    %v8420 = vunpack.c.0.s8 %v8419
    %v8421 = vlaneseq
    %v8422 = vshrl.u32 %v8421, 7
    %v8423 = vsub.s32 %v8420, %v8422
    %v8424 = vrot.slane %v8416, %v8423
    %v8426 = vunpack.c.l.s4 1966171168
    %v8427 = vunpack.c.0.s8 %v8426
    %v8428 = vlaneseq
    %v8429 = vshrl.u32 %v8428, 7
    %v8430 = vsub.s32 %v8427, %v8429
    %v8431 = vrot.slane %v8417, %v8430
    %v8432 = vcombine.low %v8424, %v8431
    %v8433 = vcombine.low %v6888, %v6902
    %v8434 = vcombine.low %v6910, %v6912
    %v8435 = vcombine.low %v6895, %v6909
    %v8436 = vcombine.low %v6911, %v6913
    %v8438 = vunpack.c.l.s4 1966171168
    %v8439 = vunpack.c.0.s8 %v8438
    %v8440 = vlaneseq
    %v8441 = vshrl.u32 %v8440, 7
    %v8442 = vsub.s32 %v8439, %v8441
    %v8443 = vrot.slane %v8433, %v8442
    %v8445 = vunpack.c.l.s4 1966171168
    %v8446 = vunpack.c.0.s8 %v8445
    %v8447 = vlaneseq
    %v8448 = vshrl.u32 %v8447, 7
    %v8449 = vsub.s32 %v8446, %v8448
    %v8450 = vrot.slane %v8434, %v8449
    %v8452 = vunpack.c.l.s4 1966171168
    %v8453 = vunpack.c.0.s8 %v8452
    %v8454 = vlaneseq
    %v8455 = vshrl.u32 %v8454, 7
    %v8456 = vsub.s32 %v8453, %v8455
    %v8457 = vrot.slane %v8435, %v8456
    %v8459 = vunpack.c.l.s4 1966171168
    %v8460 = vunpack.c.0.s8 %v8459
    %v8461 = vlaneseq
    %v8462 = vshrl.u32 %v8461, 7
    %v8463 = vsub.s32 %v8460, %v8462
    %v8464 = vrot.slane %v8436, %v8463
    %v8465 = vcombine.low %v8443, %v8450
    %v8466 = vcombine.low %v8457, %v8464
    %v8468 = vunpack.c.l.s4 1966171168
    %v8469 = vunpack.c.0.s8 %v8468
    %v8470 = vlaneseq
    %v8471 = vshrl.u32 %v8470, 7
    %v8472 = vsub.s32 %v8469, %v8471
    %v8473 = vrot.slane %v8465, %v8472
    %v8475 = vunpack.c.l.s4 1966171168
    %v8476 = vunpack.c.0.s8 %v8475
    %v8477 = vlaneseq
    %v8478 = vshrl.u32 %v8477, 7
    %v8479 = vsub.s32 %v8476, %v8478
    %v8480 = vrot.slane %v8466, %v8479
    %v8481 = vcombine.low %v8473, %v8480
    %v8482 = vcombine.low %v6937, %v6951
    %v8483 = vcombine.low %v6959, %v6961
    %v8484 = vcombine.low %v6944, %v6958
    %v8485 = vcombine.low %v6960, %v6962
    %v8487 = vunpack.c.l.s4 1966171168
    %v8488 = vunpack.c.0.s8 %v8487
    %v8489 = vlaneseq
    %v8490 = vshrl.u32 %v8489, 7
    %v8491 = vsub.s32 %v8488, %v8490
    %v8492 = vrot.slane %v8482, %v8491
    %v8494 = vunpack.c.l.s4 1966171168
    %v8495 = vunpack.c.0.s8 %v8494
    %v8496 = vlaneseq
    %v8497 = vshrl.u32 %v8496, 7
    %v8498 = vsub.s32 %v8495, %v8497
    %v8499 = vrot.slane %v8483, %v8498
    %v8501 = vunpack.c.l.s4 1966171168
    %v8502 = vunpack.c.0.s8 %v8501
    %v8503 = vlaneseq
    %v8504 = vshrl.u32 %v8503, 7
    %v8505 = vsub.s32 %v8502, %v8504
    %v8506 = vrot.slane %v8484, %v8505
    %v8508 = vunpack.c.l.s4 1966171168
    %v8509 = vunpack.c.0.s8 %v8508
    %v8510 = vlaneseq
    %v8511 = vshrl.u32 %v8510, 7
    %v8512 = vsub.s32 %v8509, %v8511
    %v8513 = vrot.slane %v8485, %v8512
    %v8514 = vcombine.low %v8492, %v8499
    %v8515 = vcombine.low %v8506, %v8513
    %v8517 = vunpack.c.l.s4 1966171168
    %v8518 = vunpack.c.0.s8 %v8517
    %v8519 = vlaneseq
    %v8520 = vshrl.u32 %v8519, 7
    %v8521 = vsub.s32 %v8518, %v8520
    %v8522 = vrot.slane %v8514, %v8521
    %v8524 = vunpack.c.l.s4 1966171168
    %v8525 = vunpack.c.0.s8 %v8524
    %v8526 = vlaneseq
    %v8527 = vshrl.u32 %v8526, 7
    %v8528 = vsub.s32 %v8525, %v8527
    %v8529 = vrot.slane %v8515, %v8528
    %v8530 = vcombine.low %v8522, %v8529
    %v8531 = vcombine.low %v6986, %v7000
    %v8532 = vcombine.low %v7008, %v7010
    %v8533 = vcombine.low %v6993, %v7007
    %v8534 = vcombine.low %v7009, %v7011
    %v8536 = vunpack.c.l.s4 1966171168
    %v8537 = vunpack.c.0.s8 %v8536
    %v8538 = vlaneseq
    %v8539 = vshrl.u32 %v8538, 7
    %v8540 = vsub.s32 %v8537, %v8539
    %v8541 = vrot.slane %v8531, %v8540
    %v8543 = vunpack.c.l.s4 1966171168
    %v8544 = vunpack.c.0.s8 %v8543
    %v8545 = vlaneseq
    %v8546 = vshrl.u32 %v8545, 7
    %v8547 = vsub.s32 %v8544, %v8546
    %v8548 = vrot.slane %v8532, %v8547
    %v8550 = vunpack.c.l.s4 1966171168
    %v8551 = vunpack.c.0.s8 %v8550
    %v8552 = vlaneseq
    %v8553 = vshrl.u32 %v8552, 7
    %v8554 = vsub.s32 %v8551, %v8553
    %v8555 = vrot.slane %v8533, %v8554
    %v8557 = vunpack.c.l.s4 1966171168
    %v8558 = vunpack.c.0.s8 %v8557
    %v8559 = vlaneseq
    %v8560 = vshrl.u32 %v8559, 7
    %v8561 = vsub.s32 %v8558, %v8560
    %v8562 = vrot.slane %v8534, %v8561
    %v8563 = vcombine.low %v8541, %v8548
    %v8564 = vcombine.low %v8555, %v8562
    %v8566 = vunpack.c.l.s4 1966171168
    %v8567 = vunpack.c.0.s8 %v8566
    %v8568 = vlaneseq
    %v8569 = vshrl.u32 %v8568, 7
    %v8570 = vsub.s32 %v8567, %v8569
    %v8571 = vrot.slane %v8563, %v8570
    %v8573 = vunpack.c.l.s4 1966171168
    %v8574 = vunpack.c.0.s8 %v8573
    %v8575 = vlaneseq
    %v8576 = vshrl.u32 %v8575, 7
    %v8577 = vsub.s32 %v8574, %v8576
    %v8578 = vrot.slane %v8564, %v8577
    %v8579 = vcombine.low %v8571, %v8578
    %v8580 = vcombine.low %v7035, %v7049
    %v8581 = vcombine.low %v7057, %v7059
    %v8582 = vcombine.low %v7042, %v7056
    %v8583 = vcombine.low %v7058, %v7060
    %v8585 = vunpack.c.l.s4 1966171168
    %v8586 = vunpack.c.0.s8 %v8585
    %v8587 = vlaneseq
    %v8588 = vshrl.u32 %v8587, 7
    %v8589 = vsub.s32 %v8586, %v8588
    %v8590 = vrot.slane %v8580, %v8589
    %v8592 = vunpack.c.l.s4 1966171168
    %v8593 = vunpack.c.0.s8 %v8592
    %v8594 = vlaneseq
    %v8595 = vshrl.u32 %v8594, 7
    %v8596 = vsub.s32 %v8593, %v8595
    %v8597 = vrot.slane %v8581, %v8596
    %v8599 = vunpack.c.l.s4 1966171168
    %v8600 = vunpack.c.0.s8 %v8599
    %v8601 = vlaneseq
    %v8602 = vshrl.u32 %v8601, 7
    %v8603 = vsub.s32 %v8600, %v8602
    %v8604 = vrot.slane %v8582, %v8603
    %v8606 = vunpack.c.l.s4 1966171168
    %v8607 = vunpack.c.0.s8 %v8606
    %v8608 = vlaneseq
    %v8609 = vshrl.u32 %v8608, 7
    %v8610 = vsub.s32 %v8607, %v8609
    %v8611 = vrot.slane %v8583, %v8610
    %v8612 = vcombine.low %v8590, %v8597
    %v8613 = vcombine.low %v8604, %v8611
    %v8615 = vunpack.c.l.s4 1966171168
    %v8616 = vunpack.c.0.s8 %v8615
    %v8617 = vlaneseq
    %v8618 = vshrl.u32 %v8617, 7
    %v8619 = vsub.s32 %v8616, %v8618
    %v8620 = vrot.slane %v8612, %v8619
    %v8622 = vunpack.c.l.s4 1966171168
    %v8623 = vunpack.c.0.s8 %v8622
    %v8624 = vlaneseq
    %v8625 = vshrl.u32 %v8624, 7
    %v8626 = vsub.s32 %v8623, %v8625
    %v8627 = vrot.slane %v8613, %v8626
    %v8628 = vcombine.low %v8620, %v8627
    %v8629 = vcombine.low %v7084, %v7098
    %v8630 = vcombine.low %v7106, %v7108
    %v8631 = vcombine.low %v7091, %v7105
    %v8632 = vcombine.low %v7107, %v7109
    %v8634 = vunpack.c.l.s4 1966171168
    %v8635 = vunpack.c.0.s8 %v8634
    %v8636 = vlaneseq
    %v8637 = vshrl.u32 %v8636, 7
    %v8638 = vsub.s32 %v8635, %v8637
    %v8639 = vrot.slane %v8629, %v8638
    %v8641 = vunpack.c.l.s4 1966171168
    %v8642 = vunpack.c.0.s8 %v8641
    %v8643 = vlaneseq
    %v8644 = vshrl.u32 %v8643, 7
    %v8645 = vsub.s32 %v8642, %v8644
    %v8646 = vrot.slane %v8630, %v8645
    %v8648 = vunpack.c.l.s4 1966171168
    %v8649 = vunpack.c.0.s8 %v8648
    %v8650 = vlaneseq
    %v8651 = vshrl.u32 %v8650, 7
    %v8652 = vsub.s32 %v8649, %v8651
    %v8653 = vrot.slane %v8631, %v8652
    %v8655 = vunpack.c.l.s4 1966171168
    %v8656 = vunpack.c.0.s8 %v8655
    %v8657 = vlaneseq
    %v8658 = vshrl.u32 %v8657, 7
    %v8659 = vsub.s32 %v8656, %v8658
    %v8660 = vrot.slane %v8632, %v8659
    %v8661 = vcombine.low %v8639, %v8646
    %v8662 = vcombine.low %v8653, %v8660
    %v8664 = vunpack.c.l.s4 1966171168
    %v8665 = vunpack.c.0.s8 %v8664
    %v8666 = vlaneseq
    %v8667 = vshrl.u32 %v8666, 7
    %v8668 = vsub.s32 %v8665, %v8667
    %v8669 = vrot.slane %v8661, %v8668
    %v8671 = vunpack.c.l.s4 1966171168
    %v8672 = vunpack.c.0.s8 %v8671
    %v8673 = vlaneseq
    %v8674 = vshrl.u32 %v8673, 7
    %v8675 = vsub.s32 %v8672, %v8674
    %v8676 = vrot.slane %v8662, %v8675
    %v8677 = vcombine.low %v8669, %v8676
    %v8678 = vcombine.low %v7133, %v7147
    %v8679 = vcombine.low %v7155, %v7157
    %v8680 = vcombine.low %v7140, %v7154
    %v8681 = vcombine.low %v7156, %v7158
    %v8683 = vunpack.c.l.s4 1966171168
    %v8684 = vunpack.c.0.s8 %v8683
    %v8685 = vlaneseq
    %v8686 = vshrl.u32 %v8685, 7
    %v8687 = vsub.s32 %v8684, %v8686
    %v8688 = vrot.slane %v8678, %v8687
    %v8690 = vunpack.c.l.s4 1966171168
    %v8691 = vunpack.c.0.s8 %v8690
    %v8692 = vlaneseq
    %v8693 = vshrl.u32 %v8692, 7
    %v8694 = vsub.s32 %v8691, %v8693
    %v8695 = vrot.slane %v8679, %v8694
    %v8697 = vunpack.c.l.s4 1966171168
    %v8698 = vunpack.c.0.s8 %v8697
    %v8699 = vlaneseq
    %v8700 = vshrl.u32 %v8699, 7
    %v8701 = vsub.s32 %v8698, %v8700
    %v8702 = vrot.slane %v8680, %v8701
    %v8704 = vunpack.c.l.s4 1966171168
    %v8705 = vunpack.c.0.s8 %v8704
    %v8706 = vlaneseq
    %v8707 = vshrl.u32 %v8706, 7
    %v8708 = vsub.s32 %v8705, %v8707
    %v8709 = vrot.slane %v8681, %v8708
    %v8710 = vcombine.low %v8688, %v8695
    %v8711 = vcombine.low %v8702, %v8709
    %v8713 = vunpack.c.l.s4 1966171168
    %v8714 = vunpack.c.0.s8 %v8713
    %v8715 = vlaneseq
    %v8716 = vshrl.u32 %v8715, 7
    %v8717 = vsub.s32 %v8714, %v8716
    %v8718 = vrot.slane %v8710, %v8717
    %v8720 = vunpack.c.l.s4 1966171168
    %v8721 = vunpack.c.0.s8 %v8720
    %v8722 = vlaneseq
    %v8723 = vshrl.u32 %v8722, 7
    %v8724 = vsub.s32 %v8721, %v8723
    %v8725 = vrot.slane %v8711, %v8724
    %v8726 = vcombine.low %v8718, %v8725
    %v8727 = vcombine.low %v7182, %v7196
    %v8728 = vcombine.low %v7204, %v7206
    %v8729 = vcombine.low %v7189, %v7203
    %v8730 = vcombine.low %v7205, %v7207
    %v8732 = vunpack.c.l.s4 1966171168
    %v8733 = vunpack.c.0.s8 %v8732
    %v8734 = vlaneseq
    %v8735 = vshrl.u32 %v8734, 7
    %v8736 = vsub.s32 %v8733, %v8735
    %v8737 = vrot.slane %v8727, %v8736
    %v8739 = vunpack.c.l.s4 1966171168
    %v8740 = vunpack.c.0.s8 %v8739
    %v8741 = vlaneseq
    %v8742 = vshrl.u32 %v8741, 7
    %v8743 = vsub.s32 %v8740, %v8742
    %v8744 = vrot.slane %v8728, %v8743
    %v8746 = vunpack.c.l.s4 1966171168
    %v8747 = vunpack.c.0.s8 %v8746
    %v8748 = vlaneseq
    %v8749 = vshrl.u32 %v8748, 7
    %v8750 = vsub.s32 %v8747, %v8749
    %v8751 = vrot.slane %v8729, %v8750
    %v8753 = vunpack.c.l.s4 1966171168
    %v8754 = vunpack.c.0.s8 %v8753
    %v8755 = vlaneseq
    %v8756 = vshrl.u32 %v8755, 7
    %v8757 = vsub.s32 %v8754, %v8756
    %v8758 = vrot.slane %v8730, %v8757
    %v8759 = vcombine.low %v8737, %v8744
    %v8760 = vcombine.low %v8751, %v8758
    %v8762 = vunpack.c.l.s4 1966171168
    %v8763 = vunpack.c.0.s8 %v8762
    %v8764 = vlaneseq
    %v8765 = vshrl.u32 %v8764, 7
    %v8766 = vsub.s32 %v8763, %v8765
    %v8767 = vrot.slane %v8759, %v8766
    %v8769 = vunpack.c.l.s4 1966171168
    %v8770 = vunpack.c.0.s8 %v8769
    %v8771 = vlaneseq
    %v8772 = vshrl.u32 %v8771, 7
    %v8773 = vsub.s32 %v8770, %v8772
    %v8774 = vrot.slane %v8760, %v8773
    %v8775 = vcombine.low %v8767, %v8774
    %v8776 = vcombine.low %v7231, %v7245
    %v8777 = vcombine.low %v7253, %v7255
    %v8778 = vcombine.low %v7238, %v7252
    %v8779 = vcombine.low %v7254, %v7256
    %v8781 = vunpack.c.l.s4 1966171168
    %v8782 = vunpack.c.0.s8 %v8781
    %v8783 = vlaneseq
    %v8784 = vshrl.u32 %v8783, 7
    %v8785 = vsub.s32 %v8782, %v8784
    %v8786 = vrot.slane %v8776, %v8785
    %v8788 = vunpack.c.l.s4 1966171168
    %v8789 = vunpack.c.0.s8 %v8788
    %v8790 = vlaneseq
    %v8791 = vshrl.u32 %v8790, 7
    %v8792 = vsub.s32 %v8789, %v8791
    %v8793 = vrot.slane %v8777, %v8792
    %v8795 = vunpack.c.l.s4 1966171168
    %v8796 = vunpack.c.0.s8 %v8795
    %v8797 = vlaneseq
    %v8798 = vshrl.u32 %v8797, 7
    %v8799 = vsub.s32 %v8796, %v8798
    %v8800 = vrot.slane %v8778, %v8799
    %v8802 = vunpack.c.l.s4 1966171168
    %v8803 = vunpack.c.0.s8 %v8802
    %v8804 = vlaneseq
    %v8805 = vshrl.u32 %v8804, 7
    %v8806 = vsub.s32 %v8803, %v8805
    %v8807 = vrot.slane %v8779, %v8806
    %v8808 = vcombine.low %v8786, %v8793
    %v8809 = vcombine.low %v8800, %v8807
    %v8811 = vunpack.c.l.s4 1966171168
    %v8812 = vunpack.c.0.s8 %v8811
    %v8813 = vlaneseq
    %v8814 = vshrl.u32 %v8813, 7
    %v8815 = vsub.s32 %v8812, %v8814
    %v8816 = vrot.slane %v8808, %v8815
    %v8818 = vunpack.c.l.s4 1966171168
    %v8819 = vunpack.c.0.s8 %v8818
    %v8820 = vlaneseq
    %v8821 = vshrl.u32 %v8820, 7
    %v8822 = vsub.s32 %v8819, %v8821
    %v8823 = vrot.slane %v8809, %v8822
    %v8824 = vcombine.low %v8816, %v8823
    %v8825 = vcombine.low %v7280, %v7294
    %v8826 = vcombine.low %v7302, %v7304
    %v8827 = vcombine.low %v7287, %v7301
    %v8828 = vcombine.low %v7303, %v7305
    %v8830 = vunpack.c.l.s4 1966171168
    %v8831 = vunpack.c.0.s8 %v8830
    %v8832 = vlaneseq
    %v8833 = vshrl.u32 %v8832, 7
    %v8834 = vsub.s32 %v8831, %v8833
    %v8835 = vrot.slane %v8825, %v8834
    %v8837 = vunpack.c.l.s4 1966171168
    %v8838 = vunpack.c.0.s8 %v8837
    %v8839 = vlaneseq
    %v8840 = vshrl.u32 %v8839, 7
    %v8841 = vsub.s32 %v8838, %v8840
    %v8842 = vrot.slane %v8826, %v8841
    %v8844 = vunpack.c.l.s4 1966171168
    %v8845 = vunpack.c.0.s8 %v8844
    %v8846 = vlaneseq
    %v8847 = vshrl.u32 %v8846, 7
    %v8848 = vsub.s32 %v8845, %v8847
    %v8849 = vrot.slane %v8827, %v8848
    %v8851 = vunpack.c.l.s4 1966171168
    %v8852 = vunpack.c.0.s8 %v8851
    %v8853 = vlaneseq
    %v8854 = vshrl.u32 %v8853, 7
    %v8855 = vsub.s32 %v8852, %v8854
    %v8856 = vrot.slane %v8828, %v8855
    %v8857 = vcombine.low %v8835, %v8842
    %v8858 = vcombine.low %v8849, %v8856
    %v8860 = vunpack.c.l.s4 1966171168
    %v8861 = vunpack.c.0.s8 %v8860
    %v8862 = vlaneseq
    %v8863 = vshrl.u32 %v8862, 7
    %v8864 = vsub.s32 %v8861, %v8863
    %v8865 = vrot.slane %v8857, %v8864
    %v8867 = vunpack.c.l.s4 1966171168
    %v8868 = vunpack.c.0.s8 %v8867
    %v8869 = vlaneseq
    %v8870 = vshrl.u32 %v8869, 7
    %v8871 = vsub.s32 %v8868, %v8870
    %v8872 = vrot.slane %v8858, %v8871
    %v8873 = vcombine.low %v8865, %v8872
    %v8874 = vcombine.low %v7329, %v7343
    %v8875 = vcombine.low %v7351, %v7353
    %v8876 = vcombine.low %v7336, %v7350
    %v8877 = vcombine.low %v7352, %v7354
    %v8879 = vunpack.c.l.s4 1966171168
    %v8880 = vunpack.c.0.s8 %v8879
    %v8881 = vlaneseq
    %v8882 = vshrl.u32 %v8881, 7
    %v8883 = vsub.s32 %v8880, %v8882
    %v8884 = vrot.slane %v8874, %v8883
    %v8886 = vunpack.c.l.s4 1966171168
    %v8887 = vunpack.c.0.s8 %v8886
    %v8888 = vlaneseq
    %v8889 = vshrl.u32 %v8888, 7
    %v8890 = vsub.s32 %v8887, %v8889
    %v8891 = vrot.slane %v8875, %v8890
    %v8893 = vunpack.c.l.s4 1966171168
    %v8894 = vunpack.c.0.s8 %v8893
    %v8895 = vlaneseq
    %v8896 = vshrl.u32 %v8895, 7
    %v8897 = vsub.s32 %v8894, %v8896
    %v8898 = vrot.slane %v8876, %v8897
    %v8900 = vunpack.c.l.s4 1966171168
    %v8901 = vunpack.c.0.s8 %v8900
    %v8902 = vlaneseq
    %v8903 = vshrl.u32 %v8902, 7
    %v8904 = vsub.s32 %v8901, %v8903
    %v8905 = vrot.slane %v8877, %v8904
    %v8906 = vcombine.low %v8884, %v8891
    %v8907 = vcombine.low %v8898, %v8905
    %v8909 = vunpack.c.l.s4 1966171168
    %v8910 = vunpack.c.0.s8 %v8909
    %v8911 = vlaneseq
    %v8912 = vshrl.u32 %v8911, 7
    %v8913 = vsub.s32 %v8910, %v8912
    %v8914 = vrot.slane %v8906, %v8913
    %v8916 = vunpack.c.l.s4 1966171168
    %v8917 = vunpack.c.0.s8 %v8916
    %v8918 = vlaneseq
    %v8919 = vshrl.u32 %v8918, 7
    %v8920 = vsub.s32 %v8917, %v8919
    %v8921 = vrot.slane %v8907, %v8920
    %v8922 = vcombine.low %v8914, %v8921
    %v8923 = vcombine.low %v7378, %v7392
    %v8924 = vcombine.low %v7400, %v7402
    %v8925 = vcombine.low %v7385, %v7399
    %v8926 = vcombine.low %v7401, %v7403
    %v8928 = vunpack.c.l.s4 1966171168
    %v8929 = vunpack.c.0.s8 %v8928
    %v8930 = vlaneseq
    %v8931 = vshrl.u32 %v8930, 7
    %v8932 = vsub.s32 %v8929, %v8931
    %v8933 = vrot.slane %v8923, %v8932
    %v8935 = vunpack.c.l.s4 1966171168
    %v8936 = vunpack.c.0.s8 %v8935
    %v8937 = vlaneseq
    %v8938 = vshrl.u32 %v8937, 7
    %v8939 = vsub.s32 %v8936, %v8938
    %v8940 = vrot.slane %v8924, %v8939
    %v8942 = vunpack.c.l.s4 1966171168
    %v8943 = vunpack.c.0.s8 %v8942
    %v8944 = vlaneseq
    %v8945 = vshrl.u32 %v8944, 7
    %v8946 = vsub.s32 %v8943, %v8945
    %v8947 = vrot.slane %v8925, %v8946
    %v8949 = vunpack.c.l.s4 1966171168
    %v8950 = vunpack.c.0.s8 %v8949
    %v8951 = vlaneseq
    %v8952 = vshrl.u32 %v8951, 7
    %v8953 = vsub.s32 %v8950, %v8952
    %v8954 = vrot.slane %v8926, %v8953
    %v8955 = vcombine.low %v8933, %v8940
    %v8956 = vcombine.low %v8947, %v8954
    %v8958 = vunpack.c.l.s4 1966171168
    %v8959 = vunpack.c.0.s8 %v8958
    %v8960 = vlaneseq
    %v8961 = vshrl.u32 %v8960, 7
    %v8962 = vsub.s32 %v8959, %v8961
    %v8963 = vrot.slane %v8955, %v8962
    %v8965 = vunpack.c.l.s4 1966171168
    %v8966 = vunpack.c.0.s8 %v8965
    %v8967 = vlaneseq
    %v8968 = vshrl.u32 %v8967, 7
    %v8969 = vsub.s32 %v8966, %v8968
    %v8970 = vrot.slane %v8956, %v8969
    %v8971 = vcombine.low %v8963, %v8970
    %v8972 = vcombine.low %v7427, %v7441
    %v8973 = vcombine.low %v7449, %v7451
    %v8974 = vcombine.low %v7434, %v7448
    %v8975 = vcombine.low %v7450, %v7452
    %v8977 = vunpack.c.l.s4 1966171168
    %v8978 = vunpack.c.0.s8 %v8977
    %v8979 = vlaneseq
    %v8980 = vshrl.u32 %v8979, 7
    %v8981 = vsub.s32 %v8978, %v8980
    %v8982 = vrot.slane %v8972, %v8981
    %v8984 = vunpack.c.l.s4 1966171168
    %v8985 = vunpack.c.0.s8 %v8984
    %v8986 = vlaneseq
    %v8987 = vshrl.u32 %v8986, 7
    %v8988 = vsub.s32 %v8985, %v8987
    %v8989 = vrot.slane %v8973, %v8988
    %v8991 = vunpack.c.l.s4 1966171168
    %v8992 = vunpack.c.0.s8 %v8991
    %v8993 = vlaneseq
    %v8994 = vshrl.u32 %v8993, 7
    %v8995 = vsub.s32 %v8992, %v8994
    %v8996 = vrot.slane %v8974, %v8995
    %v8998 = vunpack.c.l.s4 1966171168
    %v8999 = vunpack.c.0.s8 %v8998
    %v9000 = vlaneseq
    %v9001 = vshrl.u32 %v9000, 7
    %v9002 = vsub.s32 %v8999, %v9001
    %v9003 = vrot.slane %v8975, %v9002
    %v9004 = vcombine.low %v8982, %v8989
    %v9005 = vcombine.low %v8996, %v9003
    %v9007 = vunpack.c.l.s4 1966171168
    %v9008 = vunpack.c.0.s8 %v9007
    %v9009 = vlaneseq
    %v9010 = vshrl.u32 %v9009, 7
    %v9011 = vsub.s32 %v9008, %v9010
    %v9012 = vrot.slane %v9004, %v9011
    %v9014 = vunpack.c.l.s4 1966171168
    %v9015 = vunpack.c.0.s8 %v9014
    %v9016 = vlaneseq
    %v9017 = vshrl.u32 %v9016, 7
    %v9018 = vsub.s32 %v9015, %v9017
    %v9019 = vrot.slane %v9005, %v9018
    %v9020 = vcombine.low %v9012, %v9019
    %v9021 = vcombine.low %v7476, %v7490
    %v9022 = vcombine.low %v7498, %v7500
    %v9023 = vcombine.low %v7483, %v7497
    %v9024 = vcombine.low %v7499, %v7501
    %v9026 = vunpack.c.l.s4 1966171168
    %v9027 = vunpack.c.0.s8 %v9026
    %v9028 = vlaneseq
    %v9029 = vshrl.u32 %v9028, 7
    %v9030 = vsub.s32 %v9027, %v9029
    %v9031 = vrot.slane %v9021, %v9030
    %v9033 = vunpack.c.l.s4 1966171168
    %v9034 = vunpack.c.0.s8 %v9033
    %v9035 = vlaneseq
    %v9036 = vshrl.u32 %v9035, 7
    %v9037 = vsub.s32 %v9034, %v9036
    %v9038 = vrot.slane %v9022, %v9037
    %v9040 = vunpack.c.l.s4 1966171168
    %v9041 = vunpack.c.0.s8 %v9040
    %v9042 = vlaneseq
    %v9043 = vshrl.u32 %v9042, 7
    %v9044 = vsub.s32 %v9041, %v9043
    %v9045 = vrot.slane %v9023, %v9044
    %v9047 = vunpack.c.l.s4 1966171168
    %v9048 = vunpack.c.0.s8 %v9047
    %v9049 = vlaneseq
    %v9050 = vshrl.u32 %v9049, 7
    %v9051 = vsub.s32 %v9048, %v9050
    %v9052 = vrot.slane %v9024, %v9051
    %v9053 = vcombine.low %v9031, %v9038
    %v9054 = vcombine.low %v9045, %v9052
    %v9056 = vunpack.c.l.s4 1966171168
    %v9057 = vunpack.c.0.s8 %v9056
    %v9058 = vlaneseq
    %v9059 = vshrl.u32 %v9058, 7
    %v9060 = vsub.s32 %v9057, %v9059
    %v9061 = vrot.slane %v9053, %v9060
    %v9063 = vunpack.c.l.s4 1966171168
    %v9064 = vunpack.c.0.s8 %v9063
    %v9065 = vlaneseq
    %v9066 = vshrl.u32 %v9065, 7
    %v9067 = vsub.s32 %v9064, %v9066
    %v9068 = vrot.slane %v9054, %v9067
    %v9069 = vcombine.low %v9061, %v9068
    %v9070 = vcombine.low %v7525, %v7539
    %v9071 = vcombine.low %v7547, %v7549
    %v9072 = vcombine.low %v7532, %v7546
    %v9073 = vcombine.low %v7548, %v7550
    %v9075 = vunpack.c.l.s4 1966171168
    %v9076 = vunpack.c.0.s8 %v9075
    %v9077 = vlaneseq
    %v9078 = vshrl.u32 %v9077, 7
    %v9079 = vsub.s32 %v9076, %v9078
    %v9080 = vrot.slane %v9070, %v9079
    %v9082 = vunpack.c.l.s4 1966171168
    %v9083 = vunpack.c.0.s8 %v9082
    %v9084 = vlaneseq
    %v9085 = vshrl.u32 %v9084, 7
    %v9086 = vsub.s32 %v9083, %v9085
    %v9087 = vrot.slane %v9071, %v9086
    %v9089 = vunpack.c.l.s4 1966171168
    %v9090 = vunpack.c.0.s8 %v9089
    %v9091 = vlaneseq
    %v9092 = vshrl.u32 %v9091, 7
    %v9093 = vsub.s32 %v9090, %v9092
    %v9094 = vrot.slane %v9072, %v9093
    %v9096 = vunpack.c.l.s4 1966171168
    %v9097 = vunpack.c.0.s8 %v9096
    %v9098 = vlaneseq
    %v9099 = vshrl.u32 %v9098, 7
    %v9100 = vsub.s32 %v9097, %v9099
    %v9101 = vrot.slane %v9073, %v9100
    %v9102 = vcombine.low %v9080, %v9087
    %v9103 = vcombine.low %v9094, %v9101
    %v9105 = vunpack.c.l.s4 1966171168
    %v9106 = vunpack.c.0.s8 %v9105
    %v9107 = vlaneseq
    %v9108 = vshrl.u32 %v9107, 7
    %v9109 = vsub.s32 %v9106, %v9108
    %v9110 = vrot.slane %v9102, %v9109
    %v9112 = vunpack.c.l.s4 1966171168
    %v9113 = vunpack.c.0.s8 %v9112
    %v9114 = vlaneseq
    %v9115 = vshrl.u32 %v9114, 7
    %v9116 = vsub.s32 %v9113, %v9115
    %v9117 = vrot.slane %v9103, %v9116
    %v9118 = vcombine.low %v9110, %v9117
    %v9119 = vcombine.low %v7574, %v7588
    %v9120 = vcombine.low %v7596, %v7598
    %v9121 = vcombine.low %v7581, %v7595
    %v9122 = vcombine.low %v7597, %v7599
    %v9124 = vunpack.c.l.s4 1966171168
    %v9125 = vunpack.c.0.s8 %v9124
    %v9126 = vlaneseq
    %v9127 = vshrl.u32 %v9126, 7
    %v9128 = vsub.s32 %v9125, %v9127
    %v9129 = vrot.slane %v9119, %v9128
    %v9131 = vunpack.c.l.s4 1966171168
    %v9132 = vunpack.c.0.s8 %v9131
    %v9133 = vlaneseq
    %v9134 = vshrl.u32 %v9133, 7
    %v9135 = vsub.s32 %v9132, %v9134
    %v9136 = vrot.slane %v9120, %v9135
    %v9138 = vunpack.c.l.s4 1966171168
    %v9139 = vunpack.c.0.s8 %v9138
    %v9140 = vlaneseq
    %v9141 = vshrl.u32 %v9140, 7
    %v9142 = vsub.s32 %v9139, %v9141
    %v9143 = vrot.slane %v9121, %v9142
    %v9145 = vunpack.c.l.s4 1966171168
    %v9146 = vunpack.c.0.s8 %v9145
    %v9147 = vlaneseq
    %v9148 = vshrl.u32 %v9147, 7
    %v9149 = vsub.s32 %v9146, %v9148
    %v9150 = vrot.slane %v9122, %v9149
    %v9151 = vcombine.low %v9129, %v9136
    %v9152 = vcombine.low %v9143, %v9150
    %v9154 = vunpack.c.l.s4 1966171168
    %v9155 = vunpack.c.0.s8 %v9154
    %v9156 = vlaneseq
    %v9157 = vshrl.u32 %v9156, 7
    %v9158 = vsub.s32 %v9155, %v9157
    %v9159 = vrot.slane %v9151, %v9158
    %v9161 = vunpack.c.l.s4 1966171168
    %v9162 = vunpack.c.0.s8 %v9161
    %v9163 = vlaneseq
    %v9164 = vshrl.u32 %v9163, 7
    %v9165 = vsub.s32 %v9162, %v9164
    %v9166 = vrot.slane %v9152, %v9165
    %v9167 = vcombine.low %v9159, %v9166
    %v9168 = vcombine.low %v7623, %v7637
    %v9169 = vcombine.low %v7645, %v7647
    %v9170 = vcombine.low %v7630, %v7644
    %v9171 = vcombine.low %v7646, %v7648
    %v9173 = vunpack.c.l.s4 1966171168
    %v9174 = vunpack.c.0.s8 %v9173
    %v9175 = vlaneseq
    %v9176 = vshrl.u32 %v9175, 7
    %v9177 = vsub.s32 %v9174, %v9176
    %v9178 = vrot.slane %v9168, %v9177
    %v9180 = vunpack.c.l.s4 1966171168
    %v9181 = vunpack.c.0.s8 %v9180
    %v9182 = vlaneseq
    %v9183 = vshrl.u32 %v9182, 7
    %v9184 = vsub.s32 %v9181, %v9183
    %v9185 = vrot.slane %v9169, %v9184
    %v9187 = vunpack.c.l.s4 1966171168
    %v9188 = vunpack.c.0.s8 %v9187
    %v9189 = vlaneseq
    %v9190 = vshrl.u32 %v9189, 7
    %v9191 = vsub.s32 %v9188, %v9190
    %v9192 = vrot.slane %v9170, %v9191
    %v9194 = vunpack.c.l.s4 1966171168
    %v9195 = vunpack.c.0.s8 %v9194
    %v9196 = vlaneseq
    %v9197 = vshrl.u32 %v9196, 7
    %v9198 = vsub.s32 %v9195, %v9197
    %v9199 = vrot.slane %v9171, %v9198
    %v9200 = vcombine.low %v9178, %v9185
    %v9201 = vcombine.low %v9192, %v9199
    %v9203 = vunpack.c.l.s4 1966171168
    %v9204 = vunpack.c.0.s8 %v9203
    %v9205 = vlaneseq
    %v9206 = vshrl.u32 %v9205, 7
    %v9207 = vsub.s32 %v9204, %v9206
    %v9208 = vrot.slane %v9200, %v9207
    %v9210 = vunpack.c.l.s4 1966171168
    %v9211 = vunpack.c.0.s8 %v9210
    %v9212 = vlaneseq
    %v9213 = vshrl.u32 %v9212, 7
    %v9214 = vsub.s32 %v9211, %v9213
    %v9215 = vrot.slane %v9201, %v9214
    %v9216 = vcombine.low %v9208, %v9215
    %v9217 = vcombine.low %v7672, %v7686
    %v9218 = vcombine.low %v7694, %v7696
    %v9219 = vcombine.low %v7679, %v7693
    %v9220 = vcombine.low %v7695, %v7697
    %v9222 = vunpack.c.l.s4 1966171168
    %v9223 = vunpack.c.0.s8 %v9222
    %v9224 = vlaneseq
    %v9225 = vshrl.u32 %v9224, 7
    %v9226 = vsub.s32 %v9223, %v9225
    %v9227 = vrot.slane %v9217, %v9226
    %v9229 = vunpack.c.l.s4 1966171168
    %v9230 = vunpack.c.0.s8 %v9229
    %v9231 = vlaneseq
    %v9232 = vshrl.u32 %v9231, 7
    %v9233 = vsub.s32 %v9230, %v9232
    %v9234 = vrot.slane %v9218, %v9233
    %v9236 = vunpack.c.l.s4 1966171168
    %v9237 = vunpack.c.0.s8 %v9236
    %v9238 = vlaneseq
    %v9239 = vshrl.u32 %v9238, 7
    %v9240 = vsub.s32 %v9237, %v9239
    %v9241 = vrot.slane %v9219, %v9240
    %v9243 = vunpack.c.l.s4 1966171168
    %v9244 = vunpack.c.0.s8 %v9243
    %v9245 = vlaneseq
    %v9246 = vshrl.u32 %v9245, 7
    %v9247 = vsub.s32 %v9244, %v9246
    %v9248 = vrot.slane %v9220, %v9247
    %v9249 = vcombine.low %v9227, %v9234
    %v9250 = vcombine.low %v9241, %v9248
    %v9252 = vunpack.c.l.s4 1966171168
    %v9253 = vunpack.c.0.s8 %v9252
    %v9254 = vlaneseq
    %v9255 = vshrl.u32 %v9254, 7
    %v9256 = vsub.s32 %v9253, %v9255
    %v9257 = vrot.slane %v9249, %v9256
    %v9259 = vunpack.c.l.s4 1966171168
    %v9260 = vunpack.c.0.s8 %v9259
    %v9261 = vlaneseq
    %v9262 = vshrl.u32 %v9261, 7
    %v9263 = vsub.s32 %v9260, %v9262
    %v9264 = vrot.slane %v9250, %v9263
    %v9265 = vcombine.low %v9257, %v9264
    %v9266 = vcombine.low %v7721, %v7735
    %v9267 = vcombine.low %v7743, %v7745
    %v9268 = vcombine.low %v7728, %v7742
    %v9269 = vcombine.low %v7744, %v7746
    %v9271 = vunpack.c.l.s4 1966171168
    %v9272 = vunpack.c.0.s8 %v9271
    %v9273 = vlaneseq
    %v9274 = vshrl.u32 %v9273, 7
    %v9275 = vsub.s32 %v9272, %v9274
    %v9276 = vrot.slane %v9266, %v9275
    %v9278 = vunpack.c.l.s4 1966171168
    %v9279 = vunpack.c.0.s8 %v9278
    %v9280 = vlaneseq
    %v9281 = vshrl.u32 %v9280, 7
    %v9282 = vsub.s32 %v9279, %v9281
    %v9283 = vrot.slane %v9267, %v9282
    %v9285 = vunpack.c.l.s4 1966171168
    %v9286 = vunpack.c.0.s8 %v9285
    %v9287 = vlaneseq
    %v9288 = vshrl.u32 %v9287, 7
    %v9289 = vsub.s32 %v9286, %v9288
    %v9290 = vrot.slane %v9268, %v9289
    %v9292 = vunpack.c.l.s4 1966171168
    %v9293 = vunpack.c.0.s8 %v9292
    %v9294 = vlaneseq
    %v9295 = vshrl.u32 %v9294, 7
    %v9296 = vsub.s32 %v9293, %v9295
    %v9297 = vrot.slane %v9269, %v9296
    %v9298 = vcombine.low %v9276, %v9283
    %v9299 = vcombine.low %v9290, %v9297
    %v9301 = vunpack.c.l.s4 1966171168
    %v9302 = vunpack.c.0.s8 %v9301
    %v9303 = vlaneseq
    %v9304 = vshrl.u32 %v9303, 7
    %v9305 = vsub.s32 %v9302, %v9304
    %v9306 = vrot.slane %v9298, %v9305
    %v9308 = vunpack.c.l.s4 1966171168
    %v9309 = vunpack.c.0.s8 %v9308
    %v9310 = vlaneseq
    %v9311 = vshrl.u32 %v9310, 7
    %v9312 = vsub.s32 %v9309, %v9311
    %v9313 = vrot.slane %v9299, %v9312
    %v9314 = vcombine.low %v9306, %v9313
    %v9315 = vcombine.low %v7770, %v7784
    %v9316 = vcombine.low %v7792, %v7794
    %v9317 = vcombine.low %v7777, %v7791
    %v9318 = vcombine.low %v7793, %v7795
    %v9320 = vunpack.c.l.s4 1966171168
    %v9321 = vunpack.c.0.s8 %v9320
    %v9322 = vlaneseq
    %v9323 = vshrl.u32 %v9322, 7
    %v9324 = vsub.s32 %v9321, %v9323
    %v9325 = vrot.slane %v9315, %v9324
    %v9327 = vunpack.c.l.s4 1966171168
    %v9328 = vunpack.c.0.s8 %v9327
    %v9329 = vlaneseq
    %v9330 = vshrl.u32 %v9329, 7
    %v9331 = vsub.s32 %v9328, %v9330
    %v9332 = vrot.slane %v9316, %v9331
    %v9334 = vunpack.c.l.s4 1966171168
    %v9335 = vunpack.c.0.s8 %v9334
    %v9336 = vlaneseq
    %v9337 = vshrl.u32 %v9336, 7
    %v9338 = vsub.s32 %v9335, %v9337
    %v9339 = vrot.slane %v9317, %v9338
    %v9341 = vunpack.c.l.s4 1966171168
    %v9342 = vunpack.c.0.s8 %v9341
    %v9343 = vlaneseq
    %v9344 = vshrl.u32 %v9343, 7
    %v9345 = vsub.s32 %v9342, %v9344
    %v9346 = vrot.slane %v9318, %v9345
    %v9347 = vcombine.low %v9325, %v9332
    %v9348 = vcombine.low %v9339, %v9346
    %v9350 = vunpack.c.l.s4 1966171168
    %v9351 = vunpack.c.0.s8 %v9350
    %v9352 = vlaneseq
    %v9353 = vshrl.u32 %v9352, 7
    %v9354 = vsub.s32 %v9351, %v9353
    %v9355 = vrot.slane %v9347, %v9354
    %v9357 = vunpack.c.l.s4 1966171168
    %v9358 = vunpack.c.0.s8 %v9357
    %v9359 = vlaneseq
    %v9360 = vshrl.u32 %v9359, 7
    %v9361 = vsub.s32 %v9358, %v9360
    %v9362 = vrot.slane %v9348, %v9361
    %v9363 = vcombine.low %v9355, %v9362
    %v9364 = vcombine.low %v7819, %v7833
    %v9365 = vcombine.low %v7841, %v7843
    %v9366 = vcombine.low %v7826, %v7840
    %v9367 = vcombine.low %v7842, %v7844
    %v9369 = vunpack.c.l.s4 1966171168
    %v9370 = vunpack.c.0.s8 %v9369
    %v9371 = vlaneseq
    %v9372 = vshrl.u32 %v9371, 7
    %v9373 = vsub.s32 %v9370, %v9372
    %v9374 = vrot.slane %v9364, %v9373
    %v9376 = vunpack.c.l.s4 1966171168
    %v9377 = vunpack.c.0.s8 %v9376
    %v9378 = vlaneseq
    %v9379 = vshrl.u32 %v9378, 7
    %v9380 = vsub.s32 %v9377, %v9379
    %v9381 = vrot.slane %v9365, %v9380
    %v9383 = vunpack.c.l.s4 1966171168
    %v9384 = vunpack.c.0.s8 %v9383
    %v9385 = vlaneseq
    %v9386 = vshrl.u32 %v9385, 7
    %v9387 = vsub.s32 %v9384, %v9386
    %v9388 = vrot.slane %v9366, %v9387
    %v9390 = vunpack.c.l.s4 1966171168
    %v9391 = vunpack.c.0.s8 %v9390
    %v9392 = vlaneseq
    %v9393 = vshrl.u32 %v9392, 7
    %v9394 = vsub.s32 %v9391, %v9393
    %v9395 = vrot.slane %v9367, %v9394
    %v9396 = vcombine.low %v9374, %v9381
    %v9397 = vcombine.low %v9388, %v9395
    %v9399 = vunpack.c.l.s4 1966171168
    %v9400 = vunpack.c.0.s8 %v9399
    %v9401 = vlaneseq
    %v9402 = vshrl.u32 %v9401, 7
    %v9403 = vsub.s32 %v9400, %v9402
    %v9404 = vrot.slane %v9396, %v9403
    %v9406 = vunpack.c.l.s4 1966171168
    %v9407 = vunpack.c.0.s8 %v9406
    %v9408 = vlaneseq
    %v9409 = vshrl.u32 %v9408, 7
    %v9410 = vsub.s32 %v9407, %v9409
    %v9411 = vrot.slane %v9397, %v9410
    %v9412 = vcombine.low %v9404, %v9411
    %v9413 = vcombine.low %v7868, %v7882
    %v9414 = vcombine.low %v7890, %v7892
    %v9415 = vcombine.low %v7875, %v7889
    %v9416 = vcombine.low %v7891, %v7893
    %v9418 = vunpack.c.l.s4 1966171168
    %v9419 = vunpack.c.0.s8 %v9418
    %v9420 = vlaneseq
    %v9421 = vshrl.u32 %v9420, 7
    %v9422 = vsub.s32 %v9419, %v9421
    %v9423 = vrot.slane %v9413, %v9422
    %v9425 = vunpack.c.l.s4 1966171168
    %v9426 = vunpack.c.0.s8 %v9425
    %v9427 = vlaneseq
    %v9428 = vshrl.u32 %v9427, 7
    %v9429 = vsub.s32 %v9426, %v9428
    %v9430 = vrot.slane %v9414, %v9429
    %v9432 = vunpack.c.l.s4 1966171168
    %v9433 = vunpack.c.0.s8 %v9432
    %v9434 = vlaneseq
    %v9435 = vshrl.u32 %v9434, 7
    %v9436 = vsub.s32 %v9433, %v9435
    %v9437 = vrot.slane %v9415, %v9436
    %v9439 = vunpack.c.l.s4 1966171168
    %v9440 = vunpack.c.0.s8 %v9439
    %v9441 = vlaneseq
    %v9442 = vshrl.u32 %v9441, 7
    %v9443 = vsub.s32 %v9440, %v9442
    %v9444 = vrot.slane %v9416, %v9443
    %v9445 = vcombine.low %v9423, %v9430
    %v9446 = vcombine.low %v9437, %v9444
    %v9448 = vunpack.c.l.s4 1966171168
    %v9449 = vunpack.c.0.s8 %v9448
    %v9450 = vlaneseq
    %v9451 = vshrl.u32 %v9450, 7
    %v9452 = vsub.s32 %v9449, %v9451
    %v9453 = vrot.slane %v9445, %v9452
    %v9455 = vunpack.c.l.s4 1966171168
    %v9456 = vunpack.c.0.s8 %v9455
    %v9457 = vlaneseq
    %v9458 = vshrl.u32 %v9457, 7
    %v9459 = vsub.s32 %v9456, %v9458
    %v9460 = vrot.slane %v9446, %v9459
    %v9461 = vcombine.low %v9453, %v9460
    %v9462 = vcombine.low %v7917, %v7931
    %v9463 = vcombine.low %v7939, %v7941
    %v9464 = vcombine.low %v7924, %v7938
    %v9465 = vcombine.low %v7940, %v7942
    %v9467 = vunpack.c.l.s4 1966171168
    %v9468 = vunpack.c.0.s8 %v9467
    %v9469 = vlaneseq
    %v9470 = vshrl.u32 %v9469, 7
    %v9471 = vsub.s32 %v9468, %v9470
    %v9472 = vrot.slane %v9462, %v9471
    %v9474 = vunpack.c.l.s4 1966171168
    %v9475 = vunpack.c.0.s8 %v9474
    %v9476 = vlaneseq
    %v9477 = vshrl.u32 %v9476, 7
    %v9478 = vsub.s32 %v9475, %v9477
    %v9479 = vrot.slane %v9463, %v9478
    %v9481 = vunpack.c.l.s4 1966171168
    %v9482 = vunpack.c.0.s8 %v9481
    %v9483 = vlaneseq
    %v9484 = vshrl.u32 %v9483, 7
    %v9485 = vsub.s32 %v9482, %v9484
    %v9486 = vrot.slane %v9464, %v9485
    %v9488 = vunpack.c.l.s4 1966171168
    %v9489 = vunpack.c.0.s8 %v9488
    %v9490 = vlaneseq
    %v9491 = vshrl.u32 %v9490, 7
    %v9492 = vsub.s32 %v9489, %v9491
    %v9493 = vrot.slane %v9465, %v9492
    %v9494 = vcombine.low %v9472, %v9479
    %v9495 = vcombine.low %v9486, %v9493
    %v9497 = vunpack.c.l.s4 1966171168
    %v9498 = vunpack.c.0.s8 %v9497
    %v9499 = vlaneseq
    %v9500 = vshrl.u32 %v9499, 7
    %v9501 = vsub.s32 %v9498, %v9500
    %v9502 = vrot.slane %v9494, %v9501
    %v9504 = vunpack.c.l.s4 1966171168
    %v9505 = vunpack.c.0.s8 %v9504
    %v9506 = vlaneseq
    %v9507 = vshrl.u32 %v9506, 7
    %v9508 = vsub.s32 %v9505, %v9507
    %v9509 = vrot.slane %v9495, %v9508
    %v9510 = vcombine.low %v9502, %v9509
    %v9511 = vcombine.low %v7966, %v7980
    %v9512 = vcombine.low %v7988, %v7990
    %v9513 = vcombine.low %v7973, %v7987
    %v9514 = vcombine.low %v7989, %v7991
    %v9516 = vunpack.c.l.s4 1966171168
    %v9517 = vunpack.c.0.s8 %v9516
    %v9518 = vlaneseq
    %v9519 = vshrl.u32 %v9518, 7
    %v9520 = vsub.s32 %v9517, %v9519
    %v9521 = vrot.slane %v9511, %v9520
    %v9523 = vunpack.c.l.s4 1966171168
    %v9524 = vunpack.c.0.s8 %v9523
    %v9525 = vlaneseq
    %v9526 = vshrl.u32 %v9525, 7
    %v9527 = vsub.s32 %v9524, %v9526
    %v9528 = vrot.slane %v9512, %v9527
    %v9530 = vunpack.c.l.s4 1966171168
    %v9531 = vunpack.c.0.s8 %v9530
    %v9532 = vlaneseq
    %v9533 = vshrl.u32 %v9532, 7
    %v9534 = vsub.s32 %v9531, %v9533
    %v9535 = vrot.slane %v9513, %v9534
    %v9537 = vunpack.c.l.s4 1966171168
    %v9538 = vunpack.c.0.s8 %v9537
    %v9539 = vlaneseq
    %v9540 = vshrl.u32 %v9539, 7
    %v9541 = vsub.s32 %v9538, %v9540
    %v9542 = vrot.slane %v9514, %v9541
    %v9543 = vcombine.low %v9521, %v9528
    %v9544 = vcombine.low %v9535, %v9542
    %v9546 = vunpack.c.l.s4 1966171168
    %v9547 = vunpack.c.0.s8 %v9546
    %v9548 = vlaneseq
    %v9549 = vshrl.u32 %v9548, 7
    %v9550 = vsub.s32 %v9547, %v9549
    %v9551 = vrot.slane %v9543, %v9550
    %v9553 = vunpack.c.l.s4 1966171168
    %v9554 = vunpack.c.0.s8 %v9553
    %v9555 = vlaneseq
    %v9556 = vshrl.u32 %v9555, 7
    %v9557 = vsub.s32 %v9554, %v9556
    %v9558 = vrot.slane %v9544, %v9557
    %v9559 = vcombine.low %v9551, %v9558
    %v9560 = vcombine.low %v8015, %v8029
    %v9561 = vcombine.low %v8037, %v8039
    %v9562 = vcombine.low %v8022, %v8036
    %v9563 = vcombine.low %v8038, %v8040
    %v9565 = vunpack.c.l.s4 1966171168
    %v9566 = vunpack.c.0.s8 %v9565
    %v9567 = vlaneseq
    %v9568 = vshrl.u32 %v9567, 7
    %v9569 = vsub.s32 %v9566, %v9568
    %v9570 = vrot.slane %v9560, %v9569
    %v9572 = vunpack.c.l.s4 1966171168
    %v9573 = vunpack.c.0.s8 %v9572
    %v9574 = vlaneseq
    %v9575 = vshrl.u32 %v9574, 7
    %v9576 = vsub.s32 %v9573, %v9575
    %v9577 = vrot.slane %v9561, %v9576
    %v9579 = vunpack.c.l.s4 1966171168
    %v9580 = vunpack.c.0.s8 %v9579
    %v9581 = vlaneseq
    %v9582 = vshrl.u32 %v9581, 7
    %v9583 = vsub.s32 %v9580, %v9582
    %v9584 = vrot.slane %v9562, %v9583
    %v9586 = vunpack.c.l.s4 1966171168
    %v9587 = vunpack.c.0.s8 %v9586
    %v9588 = vlaneseq
    %v9589 = vshrl.u32 %v9588, 7
    %v9590 = vsub.s32 %v9587, %v9589
    %v9591 = vrot.slane %v9563, %v9590
    %v9592 = vcombine.low %v9570, %v9577
    %v9593 = vcombine.low %v9584, %v9591
    %v9595 = vunpack.c.l.s4 1966171168
    %v9596 = vunpack.c.0.s8 %v9595
    %v9597 = vlaneseq
    %v9598 = vshrl.u32 %v9597, 7
    %v9599 = vsub.s32 %v9596, %v9598
    %v9600 = vrot.slane %v9592, %v9599
    %v9602 = vunpack.c.l.s4 1966171168
    %v9603 = vunpack.c.0.s8 %v9602
    %v9604 = vlaneseq
    %v9605 = vshrl.u32 %v9604, 7
    %v9606 = vsub.s32 %v9603, %v9605
    %v9607 = vrot.slane %v9593, %v9606
    %v9608 = vcombine.low %v9600, %v9607
    %v9609 = vcombine.low %v8064, %v8078
    %v9610 = vcombine.low %v8086, %v8088
    %v9611 = vcombine.low %v8071, %v8085
    %v9612 = vcombine.low %v8087, %v8089
    %v9614 = vunpack.c.l.s4 1966171168
    %v9615 = vunpack.c.0.s8 %v9614
    %v9616 = vlaneseq
    %v9617 = vshrl.u32 %v9616, 7
    %v9618 = vsub.s32 %v9615, %v9617
    %v9619 = vrot.slane %v9609, %v9618
    %v9621 = vunpack.c.l.s4 1966171168
    %v9622 = vunpack.c.0.s8 %v9621
    %v9623 = vlaneseq
    %v9624 = vshrl.u32 %v9623, 7
    %v9625 = vsub.s32 %v9622, %v9624
    %v9626 = vrot.slane %v9610, %v9625
    %v9628 = vunpack.c.l.s4 1966171168
    %v9629 = vunpack.c.0.s8 %v9628
    %v9630 = vlaneseq
    %v9631 = vshrl.u32 %v9630, 7
    %v9632 = vsub.s32 %v9629, %v9631
    %v9633 = vrot.slane %v9611, %v9632
    %v9635 = vunpack.c.l.s4 1966171168
    %v9636 = vunpack.c.0.s8 %v9635
    %v9637 = vlaneseq
    %v9638 = vshrl.u32 %v9637, 7
    %v9639 = vsub.s32 %v9636, %v9638
    %v9640 = vrot.slane %v9612, %v9639
    %v9641 = vcombine.low %v9619, %v9626
    %v9642 = vcombine.low %v9633, %v9640
    %v9644 = vunpack.c.l.s4 1966171168
    %v9645 = vunpack.c.0.s8 %v9644
    %v9646 = vlaneseq
    %v9647 = vshrl.u32 %v9646, 7
    %v9648 = vsub.s32 %v9645, %v9647
    %v9649 = vrot.slane %v9641, %v9648
    %v9651 = vunpack.c.l.s4 1966171168
    %v9652 = vunpack.c.0.s8 %v9651
    %v9653 = vlaneseq
    %v9654 = vshrl.u32 %v9653, 7
    %v9655 = vsub.s32 %v9652, %v9654
    %v9656 = vrot.slane %v9642, %v9655
    %v9657 = vcombine.low %v9649, %v9656
    %9658 = vset.pattern.permute.xlu0 0
    %9659 = vperm.xlu0 %9658, %v8138
    %v9660 = vpop.permute.xlu0 %9659
    %9661 = vset.pattern.permute.xlu0 0
    %9662 = vperm.xlu0 %9661, %v8187
    %v9663 = vpop.permute.xlu0 %9662
    %9664 = vset.pattern.permute.xlu0 0
    %9665 = vperm.xlu0 %9664, %v8236
    %v9666 = vpop.permute.xlu0 %9665
    %9667 = vset.pattern.permute.xlu0 0
    %9668 = vperm.xlu0 %9667, %v8285
    %v9669 = vpop.permute.xlu0 %9668
    %9670 = vset.pattern.permute.xlu0 0
    %9671 = vperm.xlu0 %9670, %v8334
    %v9672 = vpop.permute.xlu0 %9671
    %9673 = vset.pattern.permute.xlu0 0
    %9674 = vperm.xlu0 %9673, %v8383
    %v9675 = vpop.permute.xlu0 %9674
    %9676 = vset.pattern.permute.xlu0 0
    %9677 = vperm.xlu0 %9676, %v8432
    %v9678 = vpop.permute.xlu0 %9677
    %9679 = vset.pattern.permute.xlu0 0
    %9680 = vperm.xlu0 %9679, %v8481
    %v9681 = vpop.permute.xlu0 %9680
    %9682 = vset.pattern.permute.xlu0 0
    %9683 = vperm.xlu0 %9682, %v8530
    %v9684 = vpop.permute.xlu0 %9683
    %9685 = vset.pattern.permute.xlu0 0
    %9686 = vperm.xlu0 %9685, %v8579
    %v9687 = vpop.permute.xlu0 %9686
    %9688 = vset.pattern.permute.xlu0 0
    %9689 = vperm.xlu0 %9688, %v8628
    %v9690 = vpop.permute.xlu0 %9689
    %9691 = vset.pattern.permute.xlu0 0
    %9692 = vperm.xlu0 %9691, %v8677
    %v9693 = vpop.permute.xlu0 %9692
    %9694 = vset.pattern.permute.xlu0 0
    %9695 = vperm.xlu0 %9694, %v8726
    %v9696 = vpop.permute.xlu0 %9695
    %9697 = vset.pattern.permute.xlu0 0
    %9698 = vperm.xlu0 %9697, %v8775
    %v9699 = vpop.permute.xlu0 %9698
    %9700 = vset.pattern.permute.xlu0 0
    %9701 = vperm.xlu0 %9700, %v8824
    %v9702 = vpop.permute.xlu0 %9701
    %9703 = vset.pattern.permute.xlu0 0
    %9704 = vperm.xlu0 %9703, %v8873
    %v9705 = vpop.permute.xlu0 %9704
    %9706 = vset.pattern.permute.xlu0 0
    %9707 = vperm.xlu0 %9706, %v8922
    %v9708 = vpop.permute.xlu0 %9707
    %9709 = vset.pattern.permute.xlu0 0
    %9710 = vperm.xlu0 %9709, %v8971
    %v9711 = vpop.permute.xlu0 %9710
    %9712 = vset.pattern.permute.xlu0 0
    %9713 = vperm.xlu0 %9712, %v9020
    %v9714 = vpop.permute.xlu0 %9713
    %9715 = vset.pattern.permute.xlu0 0
    %9716 = vperm.xlu0 %9715, %v9069
    %v9717 = vpop.permute.xlu0 %9716
    %9718 = vset.pattern.permute.xlu0 0
    %9719 = vperm.xlu0 %9718, %v9118
    %v9720 = vpop.permute.xlu0 %9719
    %9721 = vset.pattern.permute.xlu0 0
    %9722 = vperm.xlu0 %9721, %v9167
    %v9723 = vpop.permute.xlu0 %9722
    %9724 = vset.pattern.permute.xlu0 0
    %9725 = vperm.xlu0 %9724, %v9216
    %v9726 = vpop.permute.xlu0 %9725
    %9727 = vset.pattern.permute.xlu0 0
    %9728 = vperm.xlu0 %9727, %v9265
    %v9729 = vpop.permute.xlu0 %9728
    %9730 = vset.pattern.permute.xlu0 0
    %9731 = vperm.xlu0 %9730, %v9314
    %v9732 = vpop.permute.xlu0 %9731
    %9733 = vset.pattern.permute.xlu0 0
    %9734 = vperm.xlu0 %9733, %v9363
    %v9735 = vpop.permute.xlu0 %9734
    %9736 = vset.pattern.permute.xlu0 0
    %9737 = vperm.xlu0 %9736, %v9412
    %v9738 = vpop.permute.xlu0 %9737
    %9739 = vset.pattern.permute.xlu0 0
    %9740 = vperm.xlu0 %9739, %v9461
    %v9741 = vpop.permute.xlu0 %9740
    %9742 = vset.pattern.permute.xlu0 0
    %9743 = vperm.xlu0 %9742, %v9510
    %v9744 = vpop.permute.xlu0 %9743
    %9745 = vset.pattern.permute.xlu0 0
    %9746 = vperm.xlu0 %9745, %v9559
    %v9747 = vpop.permute.xlu0 %9746
    %9748 = vset.pattern.permute.xlu0 0
    %9749 = vperm.xlu0 %9748, %v9608
    %v9750 = vpop.permute.xlu0 %9749
    %9751 = vset.pattern.permute.xlu0 0
    %9752 = vperm.xlu0 %9751, %v9657
    %v9753 = vpop.permute.xlu0 %9752
    %v9754 = vlaneseq
    %v9755 = vshrl.u32 %v9754, 7
    %v9756 = vsub.s32 %v2309, %v9755
    %v9757 = vrot.slane %v9660, %v9756
    %v9758 = vlaneseq
    %v9759 = vshrl.u32 %v9758, 7
    %v9760 = vsub.s32 %v2314, %v9759
    %v9761 = vrot.slane %v9663, %v9760
    %v9762 = vsel %vm2319, %v9761, %v9757
    %v9763 = vadd.s32 %v2309, 4294967280
    %v9764 = vlaneseq
    %v9765 = vshrl.u32 %v9764, 7
    %v9766 = vsub.s32 %v9763, %v9765
    %v9767 = vrot.slane %v9666, %v9766
    %vm9768 = vcmask 195712
    %v9769 = vsel %vm9768, %v9767, %v9762
    %v9770 = vadd.s32 %v2309, 4294967272
    %v9771 = vlaneseq
    %v9772 = vshrl.u32 %v9771, 7
    %v9773 = vsub.s32 %v9770, %v9772
    %v9774 = vrot.slane %v9669, %v9773
    %vm9775 = vcmask 261312
    %v9776 = vsel %vm9775, %v9774, %v9769
    %v9777 = vadd.s32 %v2309, 4294967264
    %v9778 = vlaneseq
    %v9779 = vshrl.u32 %v9778, 7
    %v9780 = vsub.s32 %v9777, %v9779
    %v9781 = vrot.slane %v9672, %v9780
    %vm9782 = vcmask 326912
    %v9783 = vsel %vm9782, %v9781, %v9776
    %v9784 = vadd.s32 %v2309, 4294967256
    %v9785 = vlaneseq
    %v9786 = vshrl.u32 %v9785, 7
    %v9787 = vsub.s32 %v9784, %v9786
    %v9788 = vrot.slane %v9675, %v9787
    %vm9789 = vcmask 392512
    %v9790 = vsel %vm9789, %v9788, %v9783
    %v9791 = vadd.s32 %v2309, 4294967248
    %v9792 = vlaneseq
    %v9793 = vshrl.u32 %v9792, 7
    %v9794 = vsub.s32 %v9791, %v9793
    %v9795 = vrot.slane %v9678, %v9794
    %vm9796 = vcmask 458112
    %v9797 = vsel %vm9796, %v9795, %v9790
    %v9798 = vadd.s32 %v2309, 4294967240
    %v9799 = vlaneseq
    %v9800 = vshrl.u32 %v9799, 7
    %v9801 = vsub.s32 %v9798, %v9800
    %v9802 = vrot.slane %v9681, %v9801
    %vm9803 = vcmask 523712
    %v9804 = vsel %vm9803, %v9802, %v9797
    %v9805 = vadd.s32 %v2309, 4294967232
    %v9806 = vlaneseq
    %v9807 = vshrl.u32 %v9806, 7
    %v9808 = vsub.s32 %v9805, %v9807
    %v9809 = vrot.slane %v9684, %v9808
    %vm9810 = vcmask 589312
    %v9811 = vsel %vm9810, %v9809, %v9804
    %v9812 = vadd.s32 %v2309, 4294967224
    %v9813 = vlaneseq
    %v9814 = vshrl.u32 %v9813, 7
    %v9815 = vsub.s32 %v9812, %v9814
    %v9816 = vrot.slane %v9687, %v9815
    %vm9817 = vcmask 654912
    %v9818 = vsel %vm9817, %v9816, %v9811
    %v9819 = vadd.s32 %v2309, 4294967216
    %v9820 = vlaneseq
    %v9821 = vshrl.u32 %v9820, 7
    %v9822 = vsub.s32 %v9819, %v9821
    %v9823 = vrot.slane %v9690, %v9822
    %vm9824 = vcmask 720512
    %v9825 = vsel %vm9824, %v9823, %v9818
    %v9826 = vadd.s32 %v2309, 4294967208
    %v9827 = vlaneseq
    %v9828 = vshrl.u32 %v9827, 7
    %v9829 = vsub.s32 %v9826, %v9828
    %v9830 = vrot.slane %v9693, %v9829
    %vm9831 = vcmask 786112
    %v9832 = vsel %vm9831, %v9830, %v9825
    %v9833 = vadd.s32 %v2309, 4294967200
    %v9834 = vlaneseq
    %v9835 = vshrl.u32 %v9834, 7
    %v9836 = vsub.s32 %v9833, %v9835
    %v9837 = vrot.slane %v9696, %v9836
    %vm9838 = vcmask 851712
    %v9839 = vsel %vm9838, %v9837, %v9832
    %v9840 = vadd.s32 %v2309, 4294967192
    %v9841 = vlaneseq
    %v9842 = vshrl.u32 %v9841, 7
    %v9843 = vsub.s32 %v9840, %v9842
    %v9844 = vrot.slane %v9699, %v9843
    %vm9845 = vcmask 917312
    %v9846 = vsel %vm9845, %v9844, %v9839
    %v9847 = vadd.s32 %v2309, 4294967184
    %v9848 = vlaneseq
    %v9849 = vshrl.u32 %v9848, 7
    %v9850 = vsub.s32 %v9847, %v9849
    %v9851 = vrot.slane %v9702, %v9850
    %vm9852 = vcmask 982912
    %v9853 = vsel %vm9852, %v9851, %v9846
    %v9854 = vadd.s32 %v2309, 4294967176
    %v9855 = vlaneseq
    %v9856 = vshrl.u32 %v9855, 7
    %v9857 = vsub.s32 %v9854, %v9856
    %v9858 = vrot.slane %v9705, %v9857
    %vm9859 = vcmask 1048512
    %v9860 = vsel %vm9859, %v9858, %v9853
    %v9861 = vlaneseq
    %v9862 = vshrl.u32 %v9861, 7
    %v9863 = vsub.s32 %v2309, %v9862
    %v9864 = vrot.slane %v9708, %v9863
    %v9865 = vlaneseq
    %v9866 = vshrl.u32 %v9865, 7
    %v9867 = vsub.s32 %v2314, %v9866
    %v9868 = vrot.slane %v9711, %v9867
    %v9869 = vsel %vm2319, %v9868, %v9864
    %v9870 = vlaneseq
    %v9871 = vshrl.u32 %v9870, 7
    %v9872 = vsub.s32 %v9763, %v9871
    %v9873 = vrot.slane %v9714, %v9872
    %v9874 = vsel %vm9768, %v9873, %v9869
    %v9875 = vlaneseq
    %v9876 = vshrl.u32 %v9875, 7
    %v9877 = vsub.s32 %v9770, %v9876
    %v9878 = vrot.slane %v9717, %v9877
    %v9879 = vsel %vm9775, %v9878, %v9874
    %v9880 = vlaneseq
    %v9881 = vshrl.u32 %v9880, 7
    %v9882 = vsub.s32 %v9777, %v9881
    %v9883 = vrot.slane %v9720, %v9882
    %v9884 = vsel %vm9782, %v9883, %v9879
    %v9885 = vlaneseq
    %v9886 = vshrl.u32 %v9885, 7
    %v9887 = vsub.s32 %v9784, %v9886
    %v9888 = vrot.slane %v9723, %v9887
    %v9889 = vsel %vm9789, %v9888, %v9884
    %v9890 = vlaneseq
    %v9891 = vshrl.u32 %v9890, 7
    %v9892 = vsub.s32 %v9791, %v9891
    %v9893 = vrot.slane %v9726, %v9892
    %v9894 = vsel %vm9796, %v9893, %v9889
    %v9895 = vlaneseq
    %v9896 = vshrl.u32 %v9895, 7
    %v9897 = vsub.s32 %v9798, %v9896
    %v9898 = vrot.slane %v9729, %v9897
    %v9899 = vsel %vm9803, %v9898, %v9894
    %v9900 = vlaneseq
    %v9901 = vshrl.u32 %v9900, 7
    %v9902 = vsub.s32 %v9805, %v9901
    %v9903 = vrot.slane %v9732, %v9902
    %v9904 = vsel %vm9810, %v9903, %v9899
    %v9905 = vlaneseq
    %v9906 = vshrl.u32 %v9905, 7
    %v9907 = vsub.s32 %v9812, %v9906
    %v9908 = vrot.slane %v9735, %v9907
    %v9909 = vsel %vm9817, %v9908, %v9904
    %v9910 = vlaneseq
    %v9911 = vshrl.u32 %v9910, 7
    %v9912 = vsub.s32 %v9819, %v9911
    %v9913 = vrot.slane %v9738, %v9912
    %v9914 = vsel %vm9824, %v9913, %v9909
    %v9915 = vlaneseq
    %v9916 = vshrl.u32 %v9915, 7
    %v9917 = vsub.s32 %v9826, %v9916
    %v9918 = vrot.slane %v9741, %v9917
    %v9919 = vsel %vm9831, %v9918, %v9914
    %v9920 = vlaneseq
    %v9921 = vshrl.u32 %v9920, 7
    %v9922 = vsub.s32 %v9833, %v9921
    %v9923 = vrot.slane %v9744, %v9922
    %v9924 = vsel %vm9838, %v9923, %v9919
    %v9925 = vlaneseq
    %v9926 = vshrl.u32 %v9925, 7
    %v9927 = vsub.s32 %v9840, %v9926
    %v9928 = vrot.slane %v9747, %v9927
    %v9929 = vsel %vm9845, %v9928, %v9924
    %v9930 = vlaneseq
    %v9931 = vshrl.u32 %v9930, 7
    %v9932 = vsub.s32 %v9847, %v9931
    %v9933 = vrot.slane %v9750, %v9932
    %v9934 = vsel %vm9852, %v9933, %v9929
    %v9935 = vlaneseq
    %v9936 = vshrl.u32 %v9935, 7
    %v9937 = vsub.s32 %v9854, %v9936
    %v9938 = vrot.slane %v9753, %v9937
    %v9939 = vsel %vm9859, %v9938, %v9934
    %v9940 = vcombine.low %v9860, %v9939
    %v9942 = vunpack.c.l.s4 1966171168
    %v9943 = vunpack.c.0.s8 %v9942
    %v9944 = vlaneseq
    %v9945 = vshrl.u32 %v9944, 7
    %v9946 = vsub.s32 %v9943, %v9945
    %v9947 = vrot.slane %v9940, %v9946
    %v9949 = vunpack.c.l.s4 1966171168
    %v9950 = vunpack.c.0.s8 %v9949
    %v9951 = vlaneseq
    %v9952 = vshrl.u32 %v9951, 7
    %v9953 = vsub.s32 %v9950, %v9952
    %v9954 = vrot.slane %v9947, %v9953
    %v9956 = vlaneseq
    %vm9957 = vcmp.ge.s32.totalorder %v9956, 0
    %vm9958 = vcmp.lt.s32.totalorder %v9956, 256
    %vm9959 = vmand %vm9957, %vm9958
    %9960 = vst.msk [vmem:[#allocation2] sm:$0x3] %vm9959, %v9954
    // Predicated region
    $region26: #{tpu_custom_call.1} parent=1 // pred_check
      _
    $region27: #{tpu_custom_call.1} parent=1 // pred_check_branch
      %9962 = sbr.rel (0) target = $region29
    $region28: #{tpu_custom_call.1} parent=1 // pred_region
      %s9964 = ssub.s32 32, 32
      %9965 = vsyncadd [#allocation3], %s9964
      %s9967 = sshll.u32 [#allocation2], 4
      %s9968 = int_to_ptr.vmem [resolvable:$true] %s9967
      %9970 = dma.vmem_to_hbm [thread:$0]  %s9968, 32, %s6, [#allocation3]
    $region29: #{tpu_custom_call.1} parent=1 // pred_fallthru
      _
    // Predicated region
    $region30: #{tpu_custom_call.1} parent=1 // pred_check
      _
    $region31: #{tpu_custom_call.1} parent=1 // pred_check_branch
      %9972 = sbr.rel (0) target = $region33
    $region32: #{tpu_custom_call.1} parent=1 // pred_region
      %9973 = dma.done [#allocation3], 32
    $region33: #{tpu_custom_call.1} parent=1 // pred_fallthru
      _
    %9974 = vsyncpa [#allocation3], 1

</llo_original>
